<compile_context>
chip_gen: v7x
topology: tpu7x:2x2x1
jax: 0.10.0
libtpu: 0.0.40
codegen_flags: <defaults>
</compile_context>

<pallas_src>
import numpy as np
import jax
import jax.numpy as jnp
from jax.experimental import pallas as pl
from jax.experimental.pallas import tpu as pltpu

EPS = 1e-5
_CP = pltpu.CompilerParams(dimension_semantics=("arbitrary",))

# stride=2, pad=1, k=4: output row 2m+a reads padded input row m+ro with kernel
# row kh, for (ro, kh) in _ROW_TERMS[a]; the same table applies to columns.
_ROW_TERMS = {0: ((1, 1), (0, 3)), 1: ((1, 2), (2, 0))}


# ------------------------------ Pallas kernel ------------------------------

def _bn_scale_shift(s1, s2, g, b, count):
    mean = s1 / count
    var = jnp.maximum(s2 / count - mean * mean, 0.0)      # cancellation-safe
    scale = g * jax.lax.rsqrt(var + EPS)
    shift = b - mean * scale
    return scale, shift


def _generator_kernel(x_ref, lw_ref, lb_ref, w1_ref, fold1_ref, exp1_ref,
                      g1_ref, b1_ref, p1_ref,
                      w2_ref, fold2_ref, exp2_ref, g2_ref, b2_ref, p2_ref,
                      w3_ref, fold3_ref, exp3_ref, g3_ref, b3_ref, p3_ref,
                      w4_ref, p4_ref, o_ref):
    f32, bf16 = jnp.float32, jnp.bfloat16
    B = x_ref.shape[0]
    C1 = g1_ref.shape[1]

    # ---------- stage 1: Linear + ConvT(k4,s2,p0 on 1x1) + BN + ReLU ----------
    z = jnp.dot(x_ref[...], lw_ref[...], preferred_element_type=f32) + lb_ref[...]
    # lanes of h1 = (spatial row h in [0,4), padded col jp in [0,6), channel c)
    h1 = jnp.dot(z.astype(bf16), w1_ref[...], preferred_element_type=f32)
    rs1 = jnp.sum(h1, axis=0, keepdims=True)
    rs2 = jnp.sum(h1 * h1, axis=0, keepdims=True)
    foldm = fold1_ref[...].astype(f32)
    expm = exp1_ref[...].astype(f32)
    s1 = jnp.dot(rs1, foldm, preferred_element_type=f32)
    s2 = jnp.dot(rs2, foldm, preferred_element_type=f32)
    scale, shift = _bn_scale_shift(s1, s2, g1_ref[...], b1_ref[...], float(16 * B))
    y1 = jnp.maximum(h1 * jnp.dot(scale, expm, preferred_element_type=f32)
                     + jnp.dot(shift, expm, preferred_element_type=f32), 0.0)
    # Restack the 4 spatial rows from lanes into rows (order: (h, b)), then use
    # 0/1 matmuls to build the 3 row-shifted padded tap slabs for stage 2.
    G1 = 6 * C1
    ystack = jnp.concatenate([y1[:, h * G1:(h + 1) * G1] for h in range(4)],
                             axis=0).astype(bf16)                  # (4B, 6*C1)
    slabs = [jnp.dot(p1_ref[ro], ystack, preferred_element_type=f32).astype(bf16)
             for ro in range(3)]

    # ---------- stages 2, 3: ConvT(k4,s2,p1) + BN + ReLU ----------
    for w_r, fold_r, exp_r, g_r, b_r, p_r, hs in (
            (w2_ref, fold2_ref, exp2_ref, g2_ref, b2_ref, p2_ref, 4),
            (w3_ref, fold3_ref, exp3_ref, g3_ref, b3_ref, p3_ref, 8)):
        accs = []
        for a in (0, 1):                     # output row phase
            (ro0, _), (ro1, _) = _ROW_TERMS[a]
            accs.append(jnp.dot(slabs[ro0], w_r[2 * a], preferred_element_type=f32)
                        + jnp.dot(slabs[ro1], w_r[2 * a + 1],
                                  preferred_element_type=f32))
        # batch statistics over both row phases (pad columns are exactly 0)
        rs1 = (jnp.sum(accs[0], axis=0, keepdims=True)
               + jnp.sum(accs[1], axis=0, keepdims=True))
        rs2 = (jnp.sum(accs[0] * accs[0], axis=0, keepdims=True)
               + jnp.sum(accs[1] * accs[1], axis=0, keepdims=True))
        foldm = fold_r[...].astype(f32)
        expm = exp_r[...].astype(f32)
        s1 = jnp.dot(rs1, foldm, preferred_element_type=f32)
        s2 = jnp.dot(rs2, foldm, preferred_element_type=f32)
        scale, shift = _bn_scale_shift(s1, s2, g_r[...], b_r[...],
                                       float(B * (2 * hs) * (2 * hs)))
        scale_w = jnp.dot(scale, expm, preferred_element_type=f32)
        shift_w = jnp.dot(shift, expm, preferred_element_type=f32)
        ys = [jnp.maximum(acc * scale_w + shift_w, 0.0).astype(bf16) for acc in accs]
        # interleave even/odd output rows + insert zero guard rows via 0/1 matmuls
        slabs = [(jnp.dot(p_r[2 * ro], ys[0], preferred_element_type=f32)
                  + jnp.dot(p_r[2 * ro + 1], ys[1], preferred_element_type=f32)
                  ).astype(bf16) for ro in range(3)]

    # ---------- stage 4: ConvT(k4,s2,p1) + Tanh ----------
    outs = []
    for a in (0, 1):
        (ro0, _), (ro1, _) = _ROW_TERMS[a]
        outs.append(jnp.dot(slabs[ro0], w4_ref[2 * a], preferred_element_type=f32)
                    + jnp.dot(slabs[ro1], w4_ref[2 * a + 1],
                              preferred_element_type=f32))
    o = (jnp.dot(p4_ref[0], outs[0], preferred_element_type=f32)
         + jnp.dot(p4_ref[1], outs[1], preferred_element_type=f32))
    o_ref[...] = jnp.tanh(o)                 # rows = (b, out_row), lanes = (col, c)


# --------------------- one-time parameter preparation ----------------------

def _pack_w1(w_pt, c1):
    """(C0, C1, 4, 4) -> (C0, 4*6*C1); lanes = (row h, padded col jp, c)."""
    w = np.asarray(w_pt, np.float32)
    c0 = w.shape[0]
    out = np.zeros((c0, 4 * 6 * c1), np.float32)
    for h in range(4):
        for wc in range(4):
            base = (h * 6 + (wc + 1)) * c1
            out[:, base:base + c1] = w[:, :, h, wc]
    return jnp.asarray(out, jnp.bfloat16)


def _pack_big_weight(w_pt, w_in, pad_out):
    """(Cin, Cout, 4, 4) -> (4, (w_in+2)*Cin, N); index = a*2 + tap.

    N = (2*w_in+2)*Cout with folded zero pad columns (pad_out) or 2*w_in*Cout
    for the final stage.  Maps one padded input row to one (padded) output row.
    """
    w = np.asarray(w_pt, np.float32)
    cin, cout = w.shape[0], w.shape[1]
    w_out = 2 * w_in
    n_lanes = (w_out + 2) * cout if pad_out else w_out * cout
    off = cout if pad_out else 0
    mats = np.zeros((4, (w_in + 2) * cin, n_lanes), np.float32)
    for a in (0, 1):
        for ti, (_ro, kh) in enumerate(_ROW_TERMS[a]):
            m = mats[a * 2 + ti]
            for ow in range(w_out):
                n, bb = ow // 2, ow % 2
                for co, kw in _ROW_TERMS[bb]:          # same table for columns
                    jp = n + co
                    m[jp * cin:(jp + 1) * cin,
                      off + ow * cout: off + (ow + 1) * cout] = w[:, :, kh, kw]
    return jnp.asarray(mats, jnp.bfloat16)


def _fold_exp(groups, valid, c):
    """0/1 fold ((groups*c, c)) and expand ((c, groups*c)) over valid lane groups."""
    eye = np.eye(c, dtype=np.float32)
    fold = np.zeros((groups * c, c), np.float32)
    expm = np.zeros((c, groups * c), np.float32)
    for g in valid:
        fold[g * c:(g + 1) * c, :] = eye
        expm[:, g * c:(g + 1) * c] = eye
    return jnp.asarray(fold, jnp.bfloat16), jnp.asarray(expm, jnp.bfloat16)


def _p_stage1(batch):
    p = np.zeros((3, 4 * batch, 4 * batch), np.float32)
    for ro in range(3):
        for b in range(batch):
            for m in range(4):
                h = m + ro - 1
                if 0 <= h < 4:
                    p[ro, b * 4 + m, h * batch + b] = 1.0
    return jnp.asarray(p, jnp.bfloat16)


def _p_interleave(batch, h_in):
    h_out = 2 * h_in
    p = np.zeros((6, batch * h_out, batch * h_in), np.float32)
    for ro in range(3):
        for a in range(2):
            for b in range(batch):
                for mp in range(h_out):
                    i = mp + ro - 1          # source output row of prev stage
                    if 0 <= i < h_out and (i & 1) == a:
                        p[ro * 2 + a, b * h_out + mp, b * h_in + (i >> 1)] = 1.0
    return jnp.asarray(p, jnp.bfloat16)


def _p_final(batch, h_in):
    h_out = 2 * h_in
    p = np.zeros((2, batch * h_out, batch * h_in), np.float32)
    for a in range(2):
        for b in range(batch):
            for i in range(a, h_out, 2):
                p[a, b * h_out + i, b * h_in + (i >> 1)] = 1.0
    return jnp.asarray(p, jnp.float32)


def prepare_params(params, batch_size):
    """One-time packing / bf16 casts (hoisted out of the forward pass)."""
    lin_w = np.asarray(params["lin_w"], np.float32)
    k_in, c0 = lin_w.shape
    c1 = np.asarray(params["w1"]).shape[1]
    c2 = np.asarray(params["w2"]).shape[1]
    c3 = np.asarray(params["w3"]).shape[1]
    kp = ((k_in + 127) // 128) * 128
    lw = np.zeros((kp, c0), np.float32)
    lw[:k_in] = lin_w

    fold1, exp1 = _fold_exp(24, [h * 6 + jp for h in range(4) for jp in range(1, 5)], c1)
    fold2, exp2 = _fold_exp(10, range(1, 9), c2)
    fold3, exp3 = _fold_exp(18, range(1, 17), c3)

    def _vec(v):
        return jnp.asarray(np.asarray(v, np.float32).reshape(1, -1))

    return {
        "lw": jnp.asarray(lw, jnp.bfloat16),
        "lb": _vec(params["lin_b"]),
        "w1": _pack_w1(params["w1"], c1),
        "fold1": fold1, "exp1": exp1,
        "g1": _vec(params["g1"]), "b1": _vec(params["b1"]),
        "p1": _p_stage1(batch_size),
        "w2": _pack_big_weight(params["w2"], 4, True),
        "fold2": fold2, "exp2": exp2,
        "g2": _vec(params["g2"]), "b2": _vec(params["b2"]),
        "p2": _p_interleave(batch_size, 4),
        "w3": _pack_big_weight(params["w3"], 8, True),
        "fold3": fold3, "exp3": exp3,
        "g3": _vec(params["g3"]), "b3": _vec(params["b3"]),
        "p3": _p_interleave(batch_size, 8),
        "w4": _pack_big_weight(params["w4"], 16, False),
        "p4": _p_final(batch_size, 16),
    }


# -------------------------------- wrapper -----------------------------------

_ARG_ORDER = ("lw", "lb", "w1", "fold1", "exp1", "g1", "b1", "p1",
              "w2", "fold2", "exp2", "g2", "b2", "p2",
              "w3", "fold3", "exp3", "g3", "b3", "p3",
              "w4", "p4")


def _full_spec(shape):
    nd = len(shape)
    return pl.BlockSpec(shape, lambda i, _nd=nd: (0,) * _nd)


def generator_forward(x, prep):
    """x: (B, 100) f32 -> (B, nc, 32, 32) f32, matching Generator.forward.

    (prep must have been built with prepare_params(params, batch_size=x.shape[0]).)
    """
    batch = x.shape[0]
    kp = prep["lw"].shape[0]
    nc = prep["w4"].shape[2] // 32
    xpad = jnp.zeros((batch, kp), jnp.float32).at[:, :x.shape[1]].set(x)
    args = (xpad.astype(jnp.bfloat16),) + tuple(prep[k] for k in _ARG_ORDER)

    out2d = pl.pallas_call(
        _generator_kernel,
        out_shape=jax.ShapeDtypeStruct((batch * 32, 32 * nc), jnp.float32),
        grid=(1,),
        in_specs=[_full_spec(a.shape) for a in args],
        out_specs=_full_spec((batch * 32, 32 * nc)),
        compiler_params=_CP,
    )(*args)
    # Only post-kernel glue: rows=(b, row), lanes=(col, c) -> NCHW.
    return jnp.transpose(out2d.reshape(batch, 32, 32, nc), (0, 3, 1, 2))


# ----------------------------- numpy reference ------------------------------

def _ref_deconv(x, w, stride, pad):
    B, Cin, H, W = x.shape
    Cout, K = w.shape[1], w.shape[2]
    Ho = (H - 1) * stride - 2 * pad + K
    Wo = (W - 1) * stride - 2 * pad + K
    out = np.zeros((B, Cout, Ho, Wo), np.float32)
    for ih in range(H):
        for iw in range(W):
            for kh in range(K):
                oh = ih * stride - pad + kh
                if oh < 0 or oh >= Ho:
                    continue
                for kw in range(K):
                    ow = iw * stride - pad + kw
                    if ow < 0 or ow >= Wo:
                        continue
                    out[:, :, oh, ow] += x[:, :, ih, iw] @ w[:, :, kh, kw]
    return out


def _ref_bn_relu(x, g, b):
    mean = x.mean(axis=(0, 2, 3), keepdims=True)
    var = ((x - mean) ** 2).mean(axis=(0, 2, 3), keepdims=True)
    y = (x - mean) / np.sqrt(var + EPS)
    y = y * g.reshape(1, -1, 1, 1) + b.reshape(1, -1, 1, 1)
    return np.maximum(y, 0.0)


def ref_forward(x, params):
    p = {k: np.asarray(v) for k, v in params.items()}
    x = np.asarray(x)
    h = x @ p["lin_w"] + p["lin_b"]
    h = h.reshape(h.shape[0], -1, 1, 1)
    h = _ref_bn_relu(_ref_deconv(h, p["w1"], 2, 0), p["g1"], p["b1"])
    h = _ref_bn_relu(_ref_deconv(h, p["w2"], 2, 1), p["g2"], p["b2"])
    h = _ref_bn_relu(_ref_deconv(h, p["w3"], 2, 1), p["g3"], p["b3"])
    return np.tanh(_ref_deconv(h, p["w4"], 2, 1))


# ----------------------------------- main ------------------------------------

if __name__ == "__main__":
    nf, nc, B = 16, 3, 2   # small, shape-consistent with Generator(nc, nf)
    key = jax.random.PRNGKey(0)
    ks = jax.random.split(key, 12)

    def nrm(k, shape, s=0.05):
        return s * jax.random.normal(k, shape, jnp.float32)

    params = {
        "lin_w": nrm(ks[0], (100, nf * 8)),
        "lin_b": nrm(ks[1], (nf * 8,)),
        "w1": nrm(ks[2], (nf * 8, nf * 4, 4, 4)),   # ConvTranspose2d (Cin,Cout,K,K)
        "g1": 1.0 + 0.1 * jax.random.normal(ks[3], (nf * 4,), jnp.float32),
        "b1": 0.1 * jax.random.normal(ks[4], (nf * 4,), jnp.float32),
        "w2": nrm(ks[5], (nf * 4, nf * 2, 4, 4)),
        "g2": 1.0 + 0.1 * jax.random.normal(ks[6], (nf * 2,), jnp.float32),
        "b2": 0.1 * jax.random.normal(ks[7], (nf * 2,), jnp.float32),
        "w3": nrm(ks[8], (nf * 2, nf, 4, 4)),
        "g3": 1.0 + 0.1 * jax.random.normal(ks[9], (nf,), jnp.float32),
        "b3": 0.1 * jax.random.normal(ks[10], (nf,), jnp.float32),
        "w4": nrm(ks[11], (nf, nc, 4, 4)),
    }
    x = jax.random.normal(jax.random.PRNGKey(1), (B, 100), jnp.float32)

    prep = prepare_params(params, batch_size=B)    # one-time packing / bf16 cast
    fwd = jax.jit(generator_forward)

    out = jax.block_until_ready(fwd(x, prep))
    assert out.shape == (B, nc, 32, 32), out.shape

    ref = ref_forward(x, params)
    # bf16 MXU operands (f32 accumulation / BN / activations) -> ~1% tolerance.
    np.testing.assert_allclose(np.asarray(out), ref, rtol=2e-2, atol=2e-2)
    print("KERNEL_OK")
</pallas_src>

<mosaic_0001>
module attributes {stable_mosaic.version = 11 : i64} {
  func.func @_generator_kernel(%arg0: i32, %arg1: memref<2x128xbf16, #tpu.memory_space<vmem>>, %arg2: memref<128x128xbf16, #tpu.memory_space<vmem>>, %arg3: memref<1x128xf32, #tpu.memory_space<vmem>>, %arg4: memref<128x1536xbf16, #tpu.memory_space<vmem>>, %arg5: memref<1536x64xbf16, #tpu.memory_space<vmem>>, %arg6: memref<64x1536xbf16, #tpu.memory_space<vmem>>, %arg7: memref<1x64xf32, #tpu.memory_space<vmem>>, %arg8: memref<1x64xf32, #tpu.memory_space<vmem>>, %arg9: memref<3x8x8xbf16, #tpu.memory_space<vmem>>, %arg10: memref<4x384x320xbf16, #tpu.memory_space<vmem>>, %arg11: memref<320x32xbf16, #tpu.memory_space<vmem>>, %arg12: memref<32x320xbf16, #tpu.memory_space<vmem>>, %arg13: memref<1x32xf32, #tpu.memory_space<vmem>>, %arg14: memref<1x32xf32, #tpu.memory_space<vmem>>, %arg15: memref<6x16x8xbf16, #tpu.memory_space<vmem>>, %arg16: memref<4x320x288xbf16, #tpu.memory_space<vmem>>, %arg17: memref<288x16xbf16, #tpu.memory_space<vmem>>, %arg18: memref<16x288xbf16, #tpu.memory_space<vmem>>, %arg19: memref<1x16xf32, #tpu.memory_space<vmem>>, %arg20: memref<1x16xf32, #tpu.memory_space<vmem>>, %arg21: memref<6x32x16xbf16, #tpu.memory_space<vmem>>, %arg22: memref<4x288x96xbf16, #tpu.memory_space<vmem>>, %arg23: memref<2x64x32xf32, #tpu.memory_space<vmem>>, %arg24: memref<64x96xf32, #tpu.memory_space<vmem>>) attributes {dimension_semantics = [#tpu.dimension_semantics<arbitrary>], iteration_bounds = array<i64: 1>, scalar_prefetch = 0 : i64, scratch_operands = 0 : i64, tpu.core_type = #tpu.core_type<tc>, window_params = [{pipeline_mode = #tpu.pipeline_mode<synchronous>, transform_indices = @transform_0, window_bounds = array<i64: 2, 128>}, {pipeline_mode = #tpu.pipeline_mode<synchronous>, transform_indices = @transform_1, window_bounds = array<i64: 128, 128>}, {pipeline_mode = #tpu.pipeline_mode<synchronous>, transform_indices = @transform_2, window_bounds = array<i64: 1, 128>}, {pipeline_mode = #tpu.pipeline_mode<synchronous>, transform_indices = @transform_3, window_bounds = array<i64: 128, 1536>}, {pipeline_mode = #tpu.pipeline_mode<synchronous>, transform_indices = @transform_4, window_bounds = array<i64: 1536, 64>}, {pipeline_mode = #tpu.pipeline_mode<synchronous>, transform_indices = @transform_5, window_bounds = array<i64: 64, 1536>}, {pipeline_mode = #tpu.pipeline_mode<synchronous>, transform_indices = @transform_6, window_bounds = array<i64: 1, 64>}, {pipeline_mode = #tpu.pipeline_mode<synchronous>, transform_indices = @transform_7, window_bounds = array<i64: 1, 64>}, {pipeline_mode = #tpu.pipeline_mode<synchronous>, transform_indices = @transform_8, window_bounds = array<i64: 3, 8, 8>}, {pipeline_mode = #tpu.pipeline_mode<synchronous>, transform_indices = @transform_9, window_bounds = array<i64: 4, 384, 320>}, {pipeline_mode = #tpu.pipeline_mode<synchronous>, transform_indices = @transform_10, window_bounds = array<i64: 320, 32>}, {pipeline_mode = #tpu.pipeline_mode<synchronous>, transform_indices = @transform_11, window_bounds = array<i64: 32, 320>}, {pipeline_mode = #tpu.pipeline_mode<synchronous>, transform_indices = @transform_12, window_bounds = array<i64: 1, 32>}, {pipeline_mode = #tpu.pipeline_mode<synchronous>, transform_indices = @transform_13, window_bounds = array<i64: 1, 32>}, {pipeline_mode = #tpu.pipeline_mode<synchronous>, transform_indices = @transform_14, window_bounds = array<i64: 6, 16, 8>}, {pipeline_mode = #tpu.pipeline_mode<synchronous>, transform_indices = @transform_15, window_bounds = array<i64: 4, 320, 288>}, {pipeline_mode = #tpu.pipeline_mode<synchronous>, transform_indices = @transform_16, window_bounds = array<i64: 288, 16>}, {pipeline_mode = #tpu.pipeline_mode<synchronous>, transform_indices = @transform_17, window_bounds = array<i64: 16, 288>}, {pipeline_mode = #tpu.pipeline_mode<synchronous>, transform_indices = @transform_18, window_bounds = array<i64: 1, 16>}, {pipeline_mode = #tpu.pipeline_mode<synchronous>, transform_indices = @transform_19, window_bounds = array<i64: 1, 16>}, {pipeline_mode = #tpu.pipeline_mode<synchronous>, transform_indices = @transform_20, window_bounds = array<i64: 6, 32, 16>}, {pipeline_mode = #tpu.pipeline_mode<synchronous>, transform_indices = @transform_21, window_bounds = array<i64: 4, 288, 96>}, {pipeline_mode = #tpu.pipeline_mode<synchronous>, transform_indices = @transform_22, window_bounds = array<i64: 2, 64, 32>}, {pipeline_mode = #tpu.pipeline_mode<synchronous>, transform_indices = @transform_23, window_bounds = array<i64: 64, 96>}]} {
    %c0 = arith.constant 0 : index
    %c0_0 = arith.constant 0 : index
    %0 = vector.load %arg1[%c0, %c0_0] : memref<2x128xbf16, #tpu.memory_space<vmem>>, vector<2x128xbf16>
    %c0_1 = arith.constant 0 : index
    %c0_2 = arith.constant 0 : index
    %1 = vector.load %arg2[%c0_1, %c0_2] : memref<128x128xbf16, #tpu.memory_space<vmem>>, vector<128x128xbf16>
    %cst = arith.constant dense<0.000000e+00> : vector<2x128xf32>
    %2 = tpu.matmul %0, %1, %cst {dimension_numbers = #tpu.dot_dimension_numbers<[1], [0], [0], [1], [0, 0, 1, 1], [], []>} : vector<2x128xbf16>, vector<128x128xbf16>, vector<2x128xf32> -> vector<2x128xf32>
    %c0_3 = arith.constant 0 : index
    %c0_4 = arith.constant 0 : index
    %3 = vector.load %arg3[%c0_3, %c0_4] : memref<1x128xf32, #tpu.memory_space<vmem>>, vector<1x128xf32>
    %4 = vector.broadcast %3 : vector<1x128xf32> to vector<2x128xf32>
    %5 = arith.addf %2, %4 : vector<2x128xf32>
    %6 = arith.truncf %5 : vector<2x128xf32> to vector<2x128xbf16>
    %c0_5 = arith.constant 0 : index
    %c0_6 = arith.constant 0 : index
    %7 = vector.load %arg4[%c0_5, %c0_6] : memref<128x1536xbf16, #tpu.memory_space<vmem>>, vector<128x1536xbf16>
    %cst_7 = arith.constant dense<0.000000e+00> : vector<2x1536xf32>
    %8 = tpu.matmul %6, %7, %cst_7 {dimension_numbers = #tpu.dot_dimension_numbers<[1], [0], [0], [1], [0, 0, 1, 1], [], []>} : vector<2x128xbf16>, vector<128x1536xbf16>, vector<2x1536xf32> -> vector<2x1536xf32>
    %cst_8 = arith.constant dense<0.000000e+00> : vector<1536xf32>
    %9 = vector.multi_reduction <add>, %8, %cst_8 [0] : vector<2x1536xf32> to vector<1536xf32>
    %10 = vector.shape_cast %9 : vector<1536xf32> to vector<1x1536xf32>
    %11 = arith.mulf %8, %8 : vector<2x1536xf32>
    %cst_9 = arith.constant dense<0.000000e+00> : vector<1536xf32>
    %12 = vector.multi_reduction <add>, %11, %cst_9 [0] : vector<2x1536xf32> to vector<1536xf32>
    %13 = vector.shape_cast %12 : vector<1536xf32> to vector<1x1536xf32>
    %c0_10 = arith.constant 0 : index
    %c0_11 = arith.constant 0 : index
    %14 = vector.load %arg5[%c0_10, %c0_11] : memref<1536x64xbf16, #tpu.memory_space<vmem>>, vector<1536x64xbf16>
    %15 = arith.extf %14 : vector<1536x64xbf16> to vector<1536x64xf32>
    %c0_12 = arith.constant 0 : index
    %c0_13 = arith.constant 0 : index
    %16 = vector.load %arg6[%c0_12, %c0_13] : memref<64x1536xbf16, #tpu.memory_space<vmem>>, vector<64x1536xbf16>
    %17 = arith.extf %16 : vector<64x1536xbf16> to vector<64x1536xf32>
    %cst_14 = arith.constant dense<0.000000e+00> : vector<1x64xf32>
    %18 = tpu.matmul %10, %15, %cst_14 {dimension_numbers = #tpu.dot_dimension_numbers<[1], [0], [0], [1], [0, 0, 1, 1], [], []>} : vector<1x1536xf32>, vector<1536x64xf32>, vector<1x64xf32> -> vector<1x64xf32>
    %cst_15 = arith.constant dense<0.000000e+00> : vector<1x64xf32>
    %19 = tpu.matmul %13, %15, %cst_15 {dimension_numbers = #tpu.dot_dimension_numbers<[1], [0], [0], [1], [0, 0, 1, 1], [], []>} : vector<1x1536xf32>, vector<1536x64xf32>, vector<1x64xf32> -> vector<1x64xf32>
    %c0_16 = arith.constant 0 : index
    %c0_17 = arith.constant 0 : index
    %20 = vector.load %arg7[%c0_16, %c0_17] : memref<1x64xf32, #tpu.memory_space<vmem>>, vector<1x64xf32>
    %c0_18 = arith.constant 0 : index
    %c0_19 = arith.constant 0 : index
    %21 = vector.load %arg8[%c0_18, %c0_19] : memref<1x64xf32, #tpu.memory_space<vmem>>, vector<1x64xf32>
    %cst_20 = arith.constant 3.200000e+01 : f32
    %22 = vector.broadcast %cst_20 : f32 to vector<1x64xf32>
    %23 = arith.divf %18, %22 : vector<1x64xf32>
    %cst_21 = arith.constant 3.200000e+01 : f32
    %24 = vector.broadcast %cst_21 : f32 to vector<1x64xf32>
    %25 = arith.divf %19, %24 : vector<1x64xf32>
    %26 = arith.mulf %23, %23 : vector<1x64xf32>
    %27 = arith.subf %25, %26 : vector<1x64xf32>
    %cst_22 = arith.constant 0.000000e+00 : f32
    %28 = vector.broadcast %cst_22 : f32 to vector<1x64xf32>
    %29 = arith.maximumf %27, %28 : vector<1x64xf32>
    %cst_23 = arith.constant 9.99999974E-6 : f32
    %30 = vector.broadcast %cst_23 : f32 to vector<1x64xf32>
    %31 = arith.addf %29, %30 : vector<1x64xf32>
    %32 = math.rsqrt %31 : vector<1x64xf32>
    %33 = arith.mulf %20, %32 : vector<1x64xf32>
    %34 = arith.mulf %23, %33 : vector<1x64xf32>
    %35 = arith.subf %21, %34 : vector<1x64xf32>
    %cst_24 = arith.constant dense<0.000000e+00> : vector<1x1536xf32>
    %36 = tpu.matmul %33, %17, %cst_24 {dimension_numbers = #tpu.dot_dimension_numbers<[1], [0], [0], [1], [0, 0, 1, 1], [], []>} : vector<1x64xf32>, vector<64x1536xf32>, vector<1x1536xf32> -> vector<1x1536xf32>
    %37 = vector.broadcast %36 : vector<1x1536xf32> to vector<2x1536xf32>
    %38 = arith.mulf %8, %37 : vector<2x1536xf32>
    %cst_25 = arith.constant dense<0.000000e+00> : vector<1x1536xf32>
    %39 = tpu.matmul %35, %17, %cst_25 {dimension_numbers = #tpu.dot_dimension_numbers<[1], [0], [0], [1], [0, 0, 1, 1], [], []>} : vector<1x64xf32>, vector<64x1536xf32>, vector<1x1536xf32> -> vector<1x1536xf32>
    %40 = vector.broadcast %39 : vector<1x1536xf32> to vector<2x1536xf32>
    %41 = arith.addf %38, %40 : vector<2x1536xf32>
    %cst_26 = arith.constant 0.000000e+00 : f32
    %42 = vector.broadcast %cst_26 : f32 to vector<2x1536xf32>
    %43 = arith.maximumf %41, %42 : vector<2x1536xf32>
    %44 = vector.extract_strided_slice %43 {offsets = [0, 0], sizes = [2, 384], strides = [1, 1]} : vector<2x1536xf32> to vector<2x384xf32>
    %45 = vector.extract_strided_slice %43 {offsets = [0, 384], sizes = [2, 384], strides = [1, 1]} : vector<2x1536xf32> to vector<2x384xf32>
    %46 = vector.extract_strided_slice %43 {offsets = [0, 768], sizes = [2, 384], strides = [1, 1]} : vector<2x1536xf32> to vector<2x384xf32>
    %47 = vector.extract_strided_slice %43 {offsets = [0, 1152], sizes = [2, 384], strides = [1, 1]} : vector<2x1536xf32> to vector<2x384xf32>
    %48 = tpu.concatenate %44, %45, %46, %47 in 0 : vector<2x384xf32>, vector<2x384xf32>, vector<2x384xf32>, vector<2x384xf32> -> vector<8x384xf32>
    %49 = arith.truncf %48 : vector<8x384xf32> to vector<8x384xbf16>
    %c0_27 = arith.constant 0 : index
    %c0_28 = arith.constant 0 : index
    %c0_29 = arith.constant 0 : index
    %50 = vector.load %arg9[%c0_27, %c0_28, %c0_29] : memref<3x8x8xbf16, #tpu.memory_space<vmem>>, vector<1x8x8xbf16>
    %51 = vector.shape_cast %50 : vector<1x8x8xbf16> to vector<8x8xbf16>
    %cst_30 = arith.constant dense<0.000000e+00> : vector<8x384xf32>
    %52 = tpu.matmul %51, %49, %cst_30 {dimension_numbers = #tpu.dot_dimension_numbers<[1], [0], [0], [1], [0, 0, 1, 1], [], []>} : vector<8x8xbf16>, vector<8x384xbf16>, vector<8x384xf32> -> vector<8x384xf32>
    %53 = arith.truncf %52 : vector<8x384xf32> to vector<8x384xbf16>
    %c1 = arith.constant 1 : index
    %c0_31 = arith.constant 0 : index
    %c0_32 = arith.constant 0 : index
    %54 = vector.load %arg9[%c1, %c0_31, %c0_32] : memref<3x8x8xbf16, #tpu.memory_space<vmem>>, vector<1x8x8xbf16>
    %55 = vector.shape_cast %54 : vector<1x8x8xbf16> to vector<8x8xbf16>
    %cst_33 = arith.constant dense<0.000000e+00> : vector<8x384xf32>
    %56 = tpu.matmul %55, %49, %cst_33 {dimension_numbers = #tpu.dot_dimension_numbers<[1], [0], [0], [1], [0, 0, 1, 1], [], []>} : vector<8x8xbf16>, vector<8x384xbf16>, vector<8x384xf32> -> vector<8x384xf32>
    %57 = arith.truncf %56 : vector<8x384xf32> to vector<8x384xbf16>
    %c2 = arith.constant 2 : index
    %c0_34 = arith.constant 0 : index
    %c0_35 = arith.constant 0 : index
    %58 = vector.load %arg9[%c2, %c0_34, %c0_35] : memref<3x8x8xbf16, #tpu.memory_space<vmem>>, vector<1x8x8xbf16>
    %59 = vector.shape_cast %58 : vector<1x8x8xbf16> to vector<8x8xbf16>
    %cst_36 = arith.constant dense<0.000000e+00> : vector<8x384xf32>
    %60 = tpu.matmul %59, %49, %cst_36 {dimension_numbers = #tpu.dot_dimension_numbers<[1], [0], [0], [1], [0, 0, 1, 1], [], []>} : vector<8x8xbf16>, vector<8x384xbf16>, vector<8x384xf32> -> vector<8x384xf32>
    %61 = arith.truncf %60 : vector<8x384xf32> to vector<8x384xbf16>
    %c0_37 = arith.constant 0 : index
    %c0_38 = arith.constant 0 : index
    %c0_39 = arith.constant 0 : index
    %62 = vector.load %arg10[%c0_37, %c0_38, %c0_39] : memref<4x384x320xbf16, #tpu.memory_space<vmem>>, vector<1x384x320xbf16>
    %63 = vector.shape_cast %62 : vector<1x384x320xbf16> to vector<384x320xbf16>
    %cst_40 = arith.constant dense<0.000000e+00> : vector<8x320xf32>
    %64 = tpu.matmul %57, %63, %cst_40 {dimension_numbers = #tpu.dot_dimension_numbers<[1], [0], [0], [1], [0, 0, 1, 1], [], []>} : vector<8x384xbf16>, vector<384x320xbf16>, vector<8x320xf32> -> vector<8x320xf32>
    %c1_41 = arith.constant 1 : index
    %c0_42 = arith.constant 0 : index
    %c0_43 = arith.constant 0 : index
    %65 = vector.load %arg10[%c1_41, %c0_42, %c0_43] : memref<4x384x320xbf16, #tpu.memory_space<vmem>>, vector<1x384x320xbf16>
    %66 = vector.shape_cast %65 : vector<1x384x320xbf16> to vector<384x320xbf16>
    %cst_44 = arith.constant dense<0.000000e+00> : vector<8x320xf32>
    %67 = tpu.matmul %53, %66, %cst_44 {dimension_numbers = #tpu.dot_dimension_numbers<[1], [0], [0], [1], [0, 0, 1, 1], [], []>} : vector<8x384xbf16>, vector<384x320xbf16>, vector<8x320xf32> -> vector<8x320xf32>
    %68 = arith.addf %64, %67 : vector<8x320xf32>
    %c2_45 = arith.constant 2 : index
    %c0_46 = arith.constant 0 : index
    %c0_47 = arith.constant 0 : index
    %69 = vector.load %arg10[%c2_45, %c0_46, %c0_47] : memref<4x384x320xbf16, #tpu.memory_space<vmem>>, vector<1x384x320xbf16>
    %70 = vector.shape_cast %69 : vector<1x384x320xbf16> to vector<384x320xbf16>
    %cst_48 = arith.constant dense<0.000000e+00> : vector<8x320xf32>
    %71 = tpu.matmul %57, %70, %cst_48 {dimension_numbers = #tpu.dot_dimension_numbers<[1], [0], [0], [1], [0, 0, 1, 1], [], []>} : vector<8x384xbf16>, vector<384x320xbf16>, vector<8x320xf32> -> vector<8x320xf32>
    %c3 = arith.constant 3 : index
    %c0_49 = arith.constant 0 : index
    %c0_50 = arith.constant 0 : index
    %72 = vector.load %arg10[%c3, %c0_49, %c0_50] : memref<4x384x320xbf16, #tpu.memory_space<vmem>>, vector<1x384x320xbf16>
    %73 = vector.shape_cast %72 : vector<1x384x320xbf16> to vector<384x320xbf16>
    %cst_51 = arith.constant dense<0.000000e+00> : vector<8x320xf32>
    %74 = tpu.matmul %61, %73, %cst_51 {dimension_numbers = #tpu.dot_dimension_numbers<[1], [0], [0], [1], [0, 0, 1, 1], [], []>} : vector<8x384xbf16>, vector<384x320xbf16>, vector<8x320xf32> -> vector<8x320xf32>
    %75 = arith.addf %71, %74 : vector<8x320xf32>
    %cst_52 = arith.constant dense<0.000000e+00> : vector<320xf32>
    %76 = vector.multi_reduction <add>, %68, %cst_52 [0] : vector<8x320xf32> to vector<320xf32>
    %77 = vector.shape_cast %76 : vector<320xf32> to vector<1x320xf32>
    %cst_53 = arith.constant dense<0.000000e+00> : vector<320xf32>
    %78 = vector.multi_reduction <add>, %75, %cst_53 [0] : vector<8x320xf32> to vector<320xf32>
    %79 = vector.shape_cast %78 : vector<320xf32> to vector<1x320xf32>
    %80 = arith.addf %77, %79 : vector<1x320xf32>
    %81 = arith.mulf %68, %68 : vector<8x320xf32>
    %cst_54 = arith.constant dense<0.000000e+00> : vector<320xf32>
    %82 = vector.multi_reduction <add>, %81, %cst_54 [0] : vector<8x320xf32> to vector<320xf32>
    %83 = vector.shape_cast %82 : vector<320xf32> to vector<1x320xf32>
    %84 = arith.mulf %75, %75 : vector<8x320xf32>
    %cst_55 = arith.constant dense<0.000000e+00> : vector<320xf32>
    %85 = vector.multi_reduction <add>, %84, %cst_55 [0] : vector<8x320xf32> to vector<320xf32>
    %86 = vector.shape_cast %85 : vector<320xf32> to vector<1x320xf32>
    %87 = arith.addf %83, %86 : vector<1x320xf32>
    %c0_56 = arith.constant 0 : index
    %c0_57 = arith.constant 0 : index
    %88 = vector.load %arg11[%c0_56, %c0_57] : memref<320x32xbf16, #tpu.memory_space<vmem>>, vector<320x32xbf16>
    %89 = arith.extf %88 : vector<320x32xbf16> to vector<320x32xf32>
    %c0_58 = arith.constant 0 : index
    %c0_59 = arith.constant 0 : index
    %90 = vector.load %arg12[%c0_58, %c0_59] : memref<32x320xbf16, #tpu.memory_space<vmem>>, vector<32x320xbf16>
    %91 = arith.extf %90 : vector<32x320xbf16> to vector<32x320xf32>
    %cst_60 = arith.constant dense<0.000000e+00> : vector<1x32xf32>
    %92 = tpu.matmul %80, %89, %cst_60 {dimension_numbers = #tpu.dot_dimension_numbers<[1], [0], [0], [1], [0, 0, 1, 1], [], []>} : vector<1x320xf32>, vector<320x32xf32>, vector<1x32xf32> -> vector<1x32xf32>
    %cst_61 = arith.constant dense<0.000000e+00> : vector<1x32xf32>
    %93 = tpu.matmul %87, %89, %cst_61 {dimension_numbers = #tpu.dot_dimension_numbers<[1], [0], [0], [1], [0, 0, 1, 1], [], []>} : vector<1x320xf32>, vector<320x32xf32>, vector<1x32xf32> -> vector<1x32xf32>
    %c0_62 = arith.constant 0 : index
    %c0_63 = arith.constant 0 : index
    %94 = vector.load %arg13[%c0_62, %c0_63] : memref<1x32xf32, #tpu.memory_space<vmem>>, vector<1x32xf32>
    %c0_64 = arith.constant 0 : index
    %c0_65 = arith.constant 0 : index
    %95 = vector.load %arg14[%c0_64, %c0_65] : memref<1x32xf32, #tpu.memory_space<vmem>>, vector<1x32xf32>
    %cst_66 = arith.constant 1.280000e+02 : f32
    %96 = vector.broadcast %cst_66 : f32 to vector<1x32xf32>
    %97 = arith.divf %92, %96 : vector<1x32xf32>
    %cst_67 = arith.constant 1.280000e+02 : f32
    %98 = vector.broadcast %cst_67 : f32 to vector<1x32xf32>
    %99 = arith.divf %93, %98 : vector<1x32xf32>
    %100 = arith.mulf %97, %97 : vector<1x32xf32>
    %101 = arith.subf %99, %100 : vector<1x32xf32>
    %cst_68 = arith.constant 0.000000e+00 : f32
    %102 = vector.broadcast %cst_68 : f32 to vector<1x32xf32>
    %103 = arith.maximumf %101, %102 : vector<1x32xf32>
    %cst_69 = arith.constant 9.99999974E-6 : f32
    %104 = vector.broadcast %cst_69 : f32 to vector<1x32xf32>
    %105 = arith.addf %103, %104 : vector<1x32xf32>
    %106 = math.rsqrt %105 : vector<1x32xf32>
    %107 = arith.mulf %94, %106 : vector<1x32xf32>
    %108 = arith.mulf %97, %107 : vector<1x32xf32>
    %109 = arith.subf %95, %108 : vector<1x32xf32>
    %cst_70 = arith.constant dense<0.000000e+00> : vector<1x320xf32>
    %110 = tpu.matmul %107, %91, %cst_70 {dimension_numbers = #tpu.dot_dimension_numbers<[1], [0], [0], [1], [0, 0, 1, 1], [], []>} : vector<1x32xf32>, vector<32x320xf32>, vector<1x320xf32> -> vector<1x320xf32>
    %cst_71 = arith.constant dense<0.000000e+00> : vector<1x320xf32>
    %111 = tpu.matmul %109, %91, %cst_71 {dimension_numbers = #tpu.dot_dimension_numbers<[1], [0], [0], [1], [0, 0, 1, 1], [], []>} : vector<1x32xf32>, vector<32x320xf32>, vector<1x320xf32> -> vector<1x320xf32>
    %112 = vector.broadcast %110 : vector<1x320xf32> to vector<8x320xf32>
    %113 = arith.mulf %68, %112 : vector<8x320xf32>
    %114 = vector.broadcast %111 : vector<1x320xf32> to vector<8x320xf32>
    %115 = arith.addf %113, %114 : vector<8x320xf32>
    %cst_72 = arith.constant 0.000000e+00 : f32
    %116 = vector.broadcast %cst_72 : f32 to vector<8x320xf32>
    %117 = arith.maximumf %115, %116 : vector<8x320xf32>
    %118 = arith.truncf %117 : vector<8x320xf32> to vector<8x320xbf16>
    %119 = vector.broadcast %110 : vector<1x320xf32> to vector<8x320xf32>
    %120 = arith.mulf %75, %119 : vector<8x320xf32>
    %121 = vector.broadcast %111 : vector<1x320xf32> to vector<8x320xf32>
    %122 = arith.addf %120, %121 : vector<8x320xf32>
    %cst_73 = arith.constant 0.000000e+00 : f32
    %123 = vector.broadcast %cst_73 : f32 to vector<8x320xf32>
    %124 = arith.maximumf %122, %123 : vector<8x320xf32>
    %125 = arith.truncf %124 : vector<8x320xf32> to vector<8x320xbf16>
    %c0_74 = arith.constant 0 : index
    %c0_75 = arith.constant 0 : index
    %c0_76 = arith.constant 0 : index
    %126 = vector.load %arg15[%c0_74, %c0_75, %c0_76] : memref<6x16x8xbf16, #tpu.memory_space<vmem>>, vector<1x16x8xbf16>
    %127 = vector.shape_cast %126 : vector<1x16x8xbf16> to vector<16x8xbf16>
    %cst_77 = arith.constant dense<0.000000e+00> : vector<16x320xf32>
    %128 = tpu.matmul %127, %118, %cst_77 {dimension_numbers = #tpu.dot_dimension_numbers<[1], [0], [0], [1], [0, 0, 1, 1], [], []>} : vector<16x8xbf16>, vector<8x320xbf16>, vector<16x320xf32> -> vector<16x320xf32>
    %c1_78 = arith.constant 1 : index
    %c0_79 = arith.constant 0 : index
    %c0_80 = arith.constant 0 : index
    %129 = vector.load %arg15[%c1_78, %c0_79, %c0_80] : memref<6x16x8xbf16, #tpu.memory_space<vmem>>, vector<1x16x8xbf16>
    %130 = vector.shape_cast %129 : vector<1x16x8xbf16> to vector<16x8xbf16>
    %cst_81 = arith.constant dense<0.000000e+00> : vector<16x320xf32>
    %131 = tpu.matmul %130, %125, %cst_81 {dimension_numbers = #tpu.dot_dimension_numbers<[1], [0], [0], [1], [0, 0, 1, 1], [], []>} : vector<16x8xbf16>, vector<8x320xbf16>, vector<16x320xf32> -> vector<16x320xf32>
    %132 = arith.addf %128, %131 : vector<16x320xf32>
    %133 = arith.truncf %132 : vector<16x320xf32> to vector<16x320xbf16>
    %c2_82 = arith.constant 2 : index
    %c0_83 = arith.constant 0 : index
    %c0_84 = arith.constant 0 : index
    %134 = vector.load %arg15[%c2_82, %c0_83, %c0_84] : memref<6x16x8xbf16, #tpu.memory_space<vmem>>, vector<1x16x8xbf16>
    %135 = vector.shape_cast %134 : vector<1x16x8xbf16> to vector<16x8xbf16>
    %cst_85 = arith.constant dense<0.000000e+00> : vector<16x320xf32>
    %136 = tpu.matmul %135, %118, %cst_85 {dimension_numbers = #tpu.dot_dimension_numbers<[1], [0], [0], [1], [0, 0, 1, 1], [], []>} : vector<16x8xbf16>, vector<8x320xbf16>, vector<16x320xf32> -> vector<16x320xf32>
    %c3_86 = arith.constant 3 : index
    %c0_87 = arith.constant 0 : index
    %c0_88 = arith.constant 0 : index
    %137 = vector.load %arg15[%c3_86, %c0_87, %c0_88] : memref<6x16x8xbf16, #tpu.memory_space<vmem>>, vector<1x16x8xbf16>
    %138 = vector.shape_cast %137 : vector<1x16x8xbf16> to vector<16x8xbf16>
    %cst_89 = arith.constant dense<0.000000e+00> : vector<16x320xf32>
    %139 = tpu.matmul %138, %125, %cst_89 {dimension_numbers = #tpu.dot_dimension_numbers<[1], [0], [0], [1], [0, 0, 1, 1], [], []>} : vector<16x8xbf16>, vector<8x320xbf16>, vector<16x320xf32> -> vector<16x320xf32>
    %140 = arith.addf %136, %139 : vector<16x320xf32>
    %141 = arith.truncf %140 : vector<16x320xf32> to vector<16x320xbf16>
    %c4 = arith.constant 4 : index
    %c0_90 = arith.constant 0 : index
    %c0_91 = arith.constant 0 : index
    %142 = vector.load %arg15[%c4, %c0_90, %c0_91] : memref<6x16x8xbf16, #tpu.memory_space<vmem>>, vector<1x16x8xbf16>
    %143 = vector.shape_cast %142 : vector<1x16x8xbf16> to vector<16x8xbf16>
    %cst_92 = arith.constant dense<0.000000e+00> : vector<16x320xf32>
    %144 = tpu.matmul %143, %118, %cst_92 {dimension_numbers = #tpu.dot_dimension_numbers<[1], [0], [0], [1], [0, 0, 1, 1], [], []>} : vector<16x8xbf16>, vector<8x320xbf16>, vector<16x320xf32> -> vector<16x320xf32>
    %c5 = arith.constant 5 : index
    %c0_93 = arith.constant 0 : index
    %c0_94 = arith.constant 0 : index
    %145 = vector.load %arg15[%c5, %c0_93, %c0_94] : memref<6x16x8xbf16, #tpu.memory_space<vmem>>, vector<1x16x8xbf16>
    %146 = vector.shape_cast %145 : vector<1x16x8xbf16> to vector<16x8xbf16>
    %cst_95 = arith.constant dense<0.000000e+00> : vector<16x320xf32>
    %147 = tpu.matmul %146, %125, %cst_95 {dimension_numbers = #tpu.dot_dimension_numbers<[1], [0], [0], [1], [0, 0, 1, 1], [], []>} : vector<16x8xbf16>, vector<8x320xbf16>, vector<16x320xf32> -> vector<16x320xf32>
    %148 = arith.addf %144, %147 : vector<16x320xf32>
    %149 = arith.truncf %148 : vector<16x320xf32> to vector<16x320xbf16>
    %c0_96 = arith.constant 0 : index
    %c0_97 = arith.constant 0 : index
    %c0_98 = arith.constant 0 : index
    %150 = vector.load %arg16[%c0_96, %c0_97, %c0_98] : memref<4x320x288xbf16, #tpu.memory_space<vmem>>, vector<1x320x288xbf16>
    %151 = vector.shape_cast %150 : vector<1x320x288xbf16> to vector<320x288xbf16>
    %cst_99 = arith.constant dense<0.000000e+00> : vector<16x288xf32>
    %152 = tpu.matmul %141, %151, %cst_99 {dimension_numbers = #tpu.dot_dimension_numbers<[1], [0], [0], [1], [0, 0, 1, 1], [], []>} : vector<16x320xbf16>, vector<320x288xbf16>, vector<16x288xf32> -> vector<16x288xf32>
    %c1_100 = arith.constant 1 : index
    %c0_101 = arith.constant 0 : index
    %c0_102 = arith.constant 0 : index
    %153 = vector.load %arg16[%c1_100, %c0_101, %c0_102] : memref<4x320x288xbf16, #tpu.memory_space<vmem>>, vector<1x320x288xbf16>
    %154 = vector.shape_cast %153 : vector<1x320x288xbf16> to vector<320x288xbf16>
    %cst_103 = arith.constant dense<0.000000e+00> : vector<16x288xf32>
    %155 = tpu.matmul %133, %154, %cst_103 {dimension_numbers = #tpu.dot_dimension_numbers<[1], [0], [0], [1], [0, 0, 1, 1], [], []>} : vector<16x320xbf16>, vector<320x288xbf16>, vector<16x288xf32> -> vector<16x288xf32>
    %156 = arith.addf %152, %155 : vector<16x288xf32>
    %c2_104 = arith.constant 2 : index
    %c0_105 = arith.constant 0 : index
    %c0_106 = arith.constant 0 : index
    %157 = vector.load %arg16[%c2_104, %c0_105, %c0_106] : memref<4x320x288xbf16, #tpu.memory_space<vmem>>, vector<1x320x288xbf16>
    %158 = vector.shape_cast %157 : vector<1x320x288xbf16> to vector<320x288xbf16>
    %cst_107 = arith.constant dense<0.000000e+00> : vector<16x288xf32>
    %159 = tpu.matmul %141, %158, %cst_107 {dimension_numbers = #tpu.dot_dimension_numbers<[1], [0], [0], [1], [0, 0, 1, 1], [], []>} : vector<16x320xbf16>, vector<320x288xbf16>, vector<16x288xf32> -> vector<16x288xf32>
    %c3_108 = arith.constant 3 : index
    %c0_109 = arith.constant 0 : index
    %c0_110 = arith.constant 0 : index
    %160 = vector.load %arg16[%c3_108, %c0_109, %c0_110] : memref<4x320x288xbf16, #tpu.memory_space<vmem>>, vector<1x320x288xbf16>
    %161 = vector.shape_cast %160 : vector<1x320x288xbf16> to vector<320x288xbf16>
    %cst_111 = arith.constant dense<0.000000e+00> : vector<16x288xf32>
    %162 = tpu.matmul %149, %161, %cst_111 {dimension_numbers = #tpu.dot_dimension_numbers<[1], [0], [0], [1], [0, 0, 1, 1], [], []>} : vector<16x320xbf16>, vector<320x288xbf16>, vector<16x288xf32> -> vector<16x288xf32>
    %163 = arith.addf %159, %162 : vector<16x288xf32>
    %cst_112 = arith.constant dense<0.000000e+00> : vector<288xf32>
    %164 = vector.multi_reduction <add>, %156, %cst_112 [0] : vector<16x288xf32> to vector<288xf32>
    %165 = vector.shape_cast %164 : vector<288xf32> to vector<1x288xf32>
    %cst_113 = arith.constant dense<0.000000e+00> : vector<288xf32>
    %166 = vector.multi_reduction <add>, %163, %cst_113 [0] : vector<16x288xf32> to vector<288xf32>
    %167 = vector.shape_cast %166 : vector<288xf32> to vector<1x288xf32>
    %168 = arith.addf %165, %167 : vector<1x288xf32>
    %169 = arith.mulf %156, %156 : vector<16x288xf32>
    %cst_114 = arith.constant dense<0.000000e+00> : vector<288xf32>
    %170 = vector.multi_reduction <add>, %169, %cst_114 [0] : vector<16x288xf32> to vector<288xf32>
    %171 = vector.shape_cast %170 : vector<288xf32> to vector<1x288xf32>
    %172 = arith.mulf %163, %163 : vector<16x288xf32>
    %cst_115 = arith.constant dense<0.000000e+00> : vector<288xf32>
    %173 = vector.multi_reduction <add>, %172, %cst_115 [0] : vector<16x288xf32> to vector<288xf32>
    %174 = vector.shape_cast %173 : vector<288xf32> to vector<1x288xf32>
    %175 = arith.addf %171, %174 : vector<1x288xf32>
    %c0_116 = arith.constant 0 : index
    %c0_117 = arith.constant 0 : index
    %176 = vector.load %arg17[%c0_116, %c0_117] : memref<288x16xbf16, #tpu.memory_space<vmem>>, vector<288x16xbf16>
    %177 = arith.extf %176 : vector<288x16xbf16> to vector<288x16xf32>
    %c0_118 = arith.constant 0 : index
    %c0_119 = arith.constant 0 : index
    %178 = vector.load %arg18[%c0_118, %c0_119] : memref<16x288xbf16, #tpu.memory_space<vmem>>, vector<16x288xbf16>
    %179 = arith.extf %178 : vector<16x288xbf16> to vector<16x288xf32>
    %cst_120 = arith.constant dense<0.000000e+00> : vector<1x16xf32>
    %180 = tpu.matmul %168, %177, %cst_120 {dimension_numbers = #tpu.dot_dimension_numbers<[1], [0], [0], [1], [0, 0, 1, 1], [], []>} : vector<1x288xf32>, vector<288x16xf32>, vector<1x16xf32> -> vector<1x16xf32>
    %cst_121 = arith.constant dense<0.000000e+00> : vector<1x16xf32>
    %181 = tpu.matmul %175, %177, %cst_121 {dimension_numbers = #tpu.dot_dimension_numbers<[1], [0], [0], [1], [0, 0, 1, 1], [], []>} : vector<1x288xf32>, vector<288x16xf32>, vector<1x16xf32> -> vector<1x16xf32>
    %c0_122 = arith.constant 0 : index
    %c0_123 = arith.constant 0 : index
    %182 = vector.load %arg19[%c0_122, %c0_123] : memref<1x16xf32, #tpu.memory_space<vmem>>, vector<1x16xf32>
    %c0_124 = arith.constant 0 : index
    %c0_125 = arith.constant 0 : index
    %183 = vector.load %arg20[%c0_124, %c0_125] : memref<1x16xf32, #tpu.memory_space<vmem>>, vector<1x16xf32>
    %cst_126 = arith.constant 5.120000e+02 : f32
    %184 = vector.broadcast %cst_126 : f32 to vector<1x16xf32>
    %185 = arith.divf %180, %184 : vector<1x16xf32>
    %cst_127 = arith.constant 5.120000e+02 : f32
    %186 = vector.broadcast %cst_127 : f32 to vector<1x16xf32>
    %187 = arith.divf %181, %186 : vector<1x16xf32>
    %188 = arith.mulf %185, %185 : vector<1x16xf32>
    %189 = arith.subf %187, %188 : vector<1x16xf32>
    %cst_128 = arith.constant 0.000000e+00 : f32
    %190 = vector.broadcast %cst_128 : f32 to vector<1x16xf32>
    %191 = arith.maximumf %189, %190 : vector<1x16xf32>
    %cst_129 = arith.constant 9.99999974E-6 : f32
    %192 = vector.broadcast %cst_129 : f32 to vector<1x16xf32>
    %193 = arith.addf %191, %192 : vector<1x16xf32>
    %194 = math.rsqrt %193 : vector<1x16xf32>
    %195 = arith.mulf %182, %194 : vector<1x16xf32>
    %196 = arith.mulf %185, %195 : vector<1x16xf32>
    %197 = arith.subf %183, %196 : vector<1x16xf32>
    %cst_130 = arith.constant dense<0.000000e+00> : vector<1x288xf32>
    %198 = tpu.matmul %195, %179, %cst_130 {dimension_numbers = #tpu.dot_dimension_numbers<[1], [0], [0], [1], [0, 0, 1, 1], [], []>} : vector<1x16xf32>, vector<16x288xf32>, vector<1x288xf32> -> vector<1x288xf32>
    %cst_131 = arith.constant dense<0.000000e+00> : vector<1x288xf32>
    %199 = tpu.matmul %197, %179, %cst_131 {dimension_numbers = #tpu.dot_dimension_numbers<[1], [0], [0], [1], [0, 0, 1, 1], [], []>} : vector<1x16xf32>, vector<16x288xf32>, vector<1x288xf32> -> vector<1x288xf32>
    %200 = vector.broadcast %198 : vector<1x288xf32> to vector<16x288xf32>
    %201 = arith.mulf %156, %200 : vector<16x288xf32>
    %202 = vector.broadcast %199 : vector<1x288xf32> to vector<16x288xf32>
    %203 = arith.addf %201, %202 : vector<16x288xf32>
    %cst_132 = arith.constant 0.000000e+00 : f32
    %204 = vector.broadcast %cst_132 : f32 to vector<16x288xf32>
    %205 = arith.maximumf %203, %204 : vector<16x288xf32>
    %206 = arith.truncf %205 : vector<16x288xf32> to vector<16x288xbf16>
    %207 = vector.broadcast %198 : vector<1x288xf32> to vector<16x288xf32>
    %208 = arith.mulf %163, %207 : vector<16x288xf32>
    %209 = vector.broadcast %199 : vector<1x288xf32> to vector<16x288xf32>
    %210 = arith.addf %208, %209 : vector<16x288xf32>
    %cst_133 = arith.constant 0.000000e+00 : f32
    %211 = vector.broadcast %cst_133 : f32 to vector<16x288xf32>
    %212 = arith.maximumf %210, %211 : vector<16x288xf32>
    %213 = arith.truncf %212 : vector<16x288xf32> to vector<16x288xbf16>
    %c0_134 = arith.constant 0 : index
    %c0_135 = arith.constant 0 : index
    %c0_136 = arith.constant 0 : index
    %214 = vector.load %arg21[%c0_134, %c0_135, %c0_136] : memref<6x32x16xbf16, #tpu.memory_space<vmem>>, vector<1x32x16xbf16>
    %215 = vector.shape_cast %214 : vector<1x32x16xbf16> to vector<32x16xbf16>
    %cst_137 = arith.constant dense<0.000000e+00> : vector<32x288xf32>
    %216 = tpu.matmul %215, %206, %cst_137 {dimension_numbers = #tpu.dot_dimension_numbers<[1], [0], [0], [1], [0, 0, 1, 1], [], []>} : vector<32x16xbf16>, vector<16x288xbf16>, vector<32x288xf32> -> vector<32x288xf32>
    %c1_138 = arith.constant 1 : index
    %c0_139 = arith.constant 0 : index
    %c0_140 = arith.constant 0 : index
    %217 = vector.load %arg21[%c1_138, %c0_139, %c0_140] : memref<6x32x16xbf16, #tpu.memory_space<vmem>>, vector<1x32x16xbf16>
    %218 = vector.shape_cast %217 : vector<1x32x16xbf16> to vector<32x16xbf16>
    %cst_141 = arith.constant dense<0.000000e+00> : vector<32x288xf32>
    %219 = tpu.matmul %218, %213, %cst_141 {dimension_numbers = #tpu.dot_dimension_numbers<[1], [0], [0], [1], [0, 0, 1, 1], [], []>} : vector<32x16xbf16>, vector<16x288xbf16>, vector<32x288xf32> -> vector<32x288xf32>
    %220 = arith.addf %216, %219 : vector<32x288xf32>
    %221 = arith.truncf %220 : vector<32x288xf32> to vector<32x288xbf16>
    %c2_142 = arith.constant 2 : index
    %c0_143 = arith.constant 0 : index
    %c0_144 = arith.constant 0 : index
    %222 = vector.load %arg21[%c2_142, %c0_143, %c0_144] : memref<6x32x16xbf16, #tpu.memory_space<vmem>>, vector<1x32x16xbf16>
    %223 = vector.shape_cast %222 : vector<1x32x16xbf16> to vector<32x16xbf16>
    %cst_145 = arith.constant dense<0.000000e+00> : vector<32x288xf32>
    %224 = tpu.matmul %223, %206, %cst_145 {dimension_numbers = #tpu.dot_dimension_numbers<[1], [0], [0], [1], [0, 0, 1, 1], [], []>} : vector<32x16xbf16>, vector<16x288xbf16>, vector<32x288xf32> -> vector<32x288xf32>
    %c3_146 = arith.constant 3 : index
    %c0_147 = arith.constant 0 : index
    %c0_148 = arith.constant 0 : index
    %225 = vector.load %arg21[%c3_146, %c0_147, %c0_148] : memref<6x32x16xbf16, #tpu.memory_space<vmem>>, vector<1x32x16xbf16>
    %226 = vector.shape_cast %225 : vector<1x32x16xbf16> to vector<32x16xbf16>
    %cst_149 = arith.constant dense<0.000000e+00> : vector<32x288xf32>
    %227 = tpu.matmul %226, %213, %cst_149 {dimension_numbers = #tpu.dot_dimension_numbers<[1], [0], [0], [1], [0, 0, 1, 1], [], []>} : vector<32x16xbf16>, vector<16x288xbf16>, vector<32x288xf32> -> vector<32x288xf32>
    %228 = arith.addf %224, %227 : vector<32x288xf32>
    %229 = arith.truncf %228 : vector<32x288xf32> to vector<32x288xbf16>
    %c4_150 = arith.constant 4 : index
    %c0_151 = arith.constant 0 : index
    %c0_152 = arith.constant 0 : index
    %230 = vector.load %arg21[%c4_150, %c0_151, %c0_152] : memref<6x32x16xbf16, #tpu.memory_space<vmem>>, vector<1x32x16xbf16>
    %231 = vector.shape_cast %230 : vector<1x32x16xbf16> to vector<32x16xbf16>
    %cst_153 = arith.constant dense<0.000000e+00> : vector<32x288xf32>
    %232 = tpu.matmul %231, %206, %cst_153 {dimension_numbers = #tpu.dot_dimension_numbers<[1], [0], [0], [1], [0, 0, 1, 1], [], []>} : vector<32x16xbf16>, vector<16x288xbf16>, vector<32x288xf32> -> vector<32x288xf32>
    %c5_154 = arith.constant 5 : index
    %c0_155 = arith.constant 0 : index
    %c0_156 = arith.constant 0 : index
    %233 = vector.load %arg21[%c5_154, %c0_155, %c0_156] : memref<6x32x16xbf16, #tpu.memory_space<vmem>>, vector<1x32x16xbf16>
    %234 = vector.shape_cast %233 : vector<1x32x16xbf16> to vector<32x16xbf16>
    %cst_157 = arith.constant dense<0.000000e+00> : vector<32x288xf32>
    %235 = tpu.matmul %234, %213, %cst_157 {dimension_numbers = #tpu.dot_dimension_numbers<[1], [0], [0], [1], [0, 0, 1, 1], [], []>} : vector<32x16xbf16>, vector<16x288xbf16>, vector<32x288xf32> -> vector<32x288xf32>
    %236 = arith.addf %232, %235 : vector<32x288xf32>
    %237 = arith.truncf %236 : vector<32x288xf32> to vector<32x288xbf16>
    %c0_158 = arith.constant 0 : index
    %c0_159 = arith.constant 0 : index
    %c0_160 = arith.constant 0 : index
    %238 = vector.load %arg22[%c0_158, %c0_159, %c0_160] : memref<4x288x96xbf16, #tpu.memory_space<vmem>>, vector<1x288x96xbf16>
    %239 = vector.shape_cast %238 : vector<1x288x96xbf16> to vector<288x96xbf16>
    %cst_161 = arith.constant dense<0.000000e+00> : vector<32x96xf32>
    %240 = tpu.matmul %229, %239, %cst_161 {dimension_numbers = #tpu.dot_dimension_numbers<[1], [0], [0], [1], [0, 0, 1, 1], [], []>} : vector<32x288xbf16>, vector<288x96xbf16>, vector<32x96xf32> -> vector<32x96xf32>
    %c1_162 = arith.constant 1 : index
    %c0_163 = arith.constant 0 : index
    %c0_164 = arith.constant 0 : index
    %241 = vector.load %arg22[%c1_162, %c0_163, %c0_164] : memref<4x288x96xbf16, #tpu.memory_space<vmem>>, vector<1x288x96xbf16>
    %242 = vector.shape_cast %241 : vector<1x288x96xbf16> to vector<288x96xbf16>
    %cst_165 = arith.constant dense<0.000000e+00> : vector<32x96xf32>
    %243 = tpu.matmul %221, %242, %cst_165 {dimension_numbers = #tpu.dot_dimension_numbers<[1], [0], [0], [1], [0, 0, 1, 1], [], []>} : vector<32x288xbf16>, vector<288x96xbf16>, vector<32x96xf32> -> vector<32x96xf32>
    %244 = arith.addf %240, %243 : vector<32x96xf32>
    %c2_166 = arith.constant 2 : index
    %c0_167 = arith.constant 0 : index
    %c0_168 = arith.constant 0 : index
    %245 = vector.load %arg22[%c2_166, %c0_167, %c0_168] : memref<4x288x96xbf16, #tpu.memory_space<vmem>>, vector<1x288x96xbf16>
    %246 = vector.shape_cast %245 : vector<1x288x96xbf16> to vector<288x96xbf16>
    %cst_169 = arith.constant dense<0.000000e+00> : vector<32x96xf32>
    %247 = tpu.matmul %229, %246, %cst_169 {dimension_numbers = #tpu.dot_dimension_numbers<[1], [0], [0], [1], [0, 0, 1, 1], [], []>} : vector<32x288xbf16>, vector<288x96xbf16>, vector<32x96xf32> -> vector<32x96xf32>
    %c3_170 = arith.constant 3 : index
    %c0_171 = arith.constant 0 : index
    %c0_172 = arith.constant 0 : index
    %248 = vector.load %arg22[%c3_170, %c0_171, %c0_172] : memref<4x288x96xbf16, #tpu.memory_space<vmem>>, vector<1x288x96xbf16>
    %249 = vector.shape_cast %248 : vector<1x288x96xbf16> to vector<288x96xbf16>
    %cst_173 = arith.constant dense<0.000000e+00> : vector<32x96xf32>
    %250 = tpu.matmul %237, %249, %cst_173 {dimension_numbers = #tpu.dot_dimension_numbers<[1], [0], [0], [1], [0, 0, 1, 1], [], []>} : vector<32x288xbf16>, vector<288x96xbf16>, vector<32x96xf32> -> vector<32x96xf32>
    %251 = arith.addf %247, %250 : vector<32x96xf32>
    %c0_174 = arith.constant 0 : index
    %c0_175 = arith.constant 0 : index
    %c0_176 = arith.constant 0 : index
    %252 = vector.load %arg23[%c0_174, %c0_175, %c0_176] : memref<2x64x32xf32, #tpu.memory_space<vmem>>, vector<1x64x32xf32>
    %253 = vector.shape_cast %252 : vector<1x64x32xf32> to vector<64x32xf32>
    %cst_177 = arith.constant dense<0.000000e+00> : vector<64x96xf32>
    %254 = tpu.matmul %253, %244, %cst_177 {dimension_numbers = #tpu.dot_dimension_numbers<[1], [0], [0], [1], [0, 0, 1, 1], [], []>} : vector<64x32xf32>, vector<32x96xf32>, vector<64x96xf32> -> vector<64x96xf32>
    %c1_178 = arith.constant 1 : index
    %c0_179 = arith.constant 0 : index
    %c0_180 = arith.constant 0 : index
    %255 = vector.load %arg23[%c1_178, %c0_179, %c0_180] : memref<2x64x32xf32, #tpu.memory_space<vmem>>, vector<1x64x32xf32>
    %256 = vector.shape_cast %255 : vector<1x64x32xf32> to vector<64x32xf32>
    %cst_181 = arith.constant dense<0.000000e+00> : vector<64x96xf32>
    %257 = tpu.matmul %256, %251, %cst_181 {dimension_numbers = #tpu.dot_dimension_numbers<[1], [0], [0], [1], [0, 0, 1, 1], [], []>} : vector<64x32xf32>, vector<32x96xf32>, vector<64x96xf32> -> vector<64x96xf32>
    %258 = arith.addf %254, %257 : vector<64x96xf32>
    %259 = math.tanh %258 : vector<64x96xf32>
    %c0_182 = arith.constant 0 : index
    %c0_183 = arith.constant 0 : index
    %260 = vector.load %arg24[%c0_182, %c0_183] : memref<64x96xf32, #tpu.memory_space<vmem>>, vector<64x96xf32>
    tpu.vector_store %arg24[%c0_182, %c0_183], %259 {strides = array<i32>} : memref<64x96xf32, #tpu.memory_space<vmem>>, vector<64x96xf32>,
    return
  }
  func.func @transform_0(%arg0: i32) -> (i32, i32) {
    %c0_i32 = arith.constant 0 : i32
    %c0_i32_0 = arith.constant 0 : i32
    %c0_i32_1 = arith.constant 0 : i32
    return %c0_i32, %c0_i32_0 : i32, i32
  }
  func.func @transform_1(%arg0: i32) -> (i32, i32) {
    %c0_i32 = arith.constant 0 : i32
    %c0_i32_0 = arith.constant 0 : i32
    %c0_i32_1 = arith.constant 0 : i32
    return %c0_i32, %c0_i32_0 : i32, i32
  }
  func.func @transform_2(%arg0: i32) -> (i32, i32) {
    %c0_i32 = arith.constant 0 : i32
    %c0_i32_0 = arith.constant 0 : i32
    %c0_i32_1 = arith.constant 0 : i32
    return %c0_i32, %c0_i32_0 : i32, i32
  }
  func.func @transform_3(%arg0: i32) -> (i32, i32) {
    %c0_i32 = arith.constant 0 : i32
    %c0_i32_0 = arith.constant 0 : i32
    %c0_i32_1 = arith.constant 0 : i32
    return %c0_i32, %c0_i32_0 : i32, i32
  }
  func.func @transform_4(%arg0: i32) -> (i32, i32) {
    %c0_i32 = arith.constant 0 : i32
    %c0_i32_0 = arith.constant 0 : i32
    %c0_i32_1 = arith.constant 0 : i32
    return %c0_i32, %c0_i32_0 : i32, i32
  }
  func.func @transform_5(%arg0: i32) -> (i32, i32) {
    %c0_i32 = arith.constant 0 : i32
    %c0_i32_0 = arith.constant 0 : i32
    %c0_i32_1 = arith.constant 0 : i32
    return %c0_i32, %c0_i32_0 : i32, i32
  }
  func.func @transform_6(%arg0: i32) -> (i32, i32) {
    %c0_i32 = arith.constant 0 : i32
    %c0_i32_0 = arith.constant 0 : i32
    %c0_i32_1 = arith.constant 0 : i32
    return %c0_i32, %c0_i32_0 : i32, i32
  }
  func.func @transform_7(%arg0: i32) -> (i32, i32) {
    %c0_i32 = arith.constant 0 : i32
    %c0_i32_0 = arith.constant 0 : i32
    %c0_i32_1 = arith.constant 0 : i32
    return %c0_i32, %c0_i32_0 : i32, i32
  }
  func.func @transform_8(%arg0: i32) -> (i32, i32, i32) {
    %c0_i32 = arith.constant 0 : i32
    %c0_i32_0 = arith.constant 0 : i32
    %c0_i32_1 = arith.constant 0 : i32
    %c0_i32_2 = arith.constant 0 : i32
    return %c0_i32, %c0_i32_0, %c0_i32_1 : i32, i32, i32
  }
  func.func @transform_9(%arg0: i32) -> (i32, i32, i32) {
    %c0_i32 = arith.constant 0 : i32
    %c0_i32_0 = arith.constant 0 : i32
    %c0_i32_1 = arith.constant 0 : i32
    %c0_i32_2 = arith.constant 0 : i32
    return %c0_i32, %c0_i32_0, %c0_i32_1 : i32, i32, i32
  }
  func.func @transform_10(%arg0: i32) -> (i32, i32) {
    %c0_i32 = arith.constant 0 : i32
    %c0_i32_0 = arith.constant 0 : i32
    %c0_i32_1 = arith.constant 0 : i32
    return %c0_i32, %c0_i32_0 : i32, i32
  }
  func.func @transform_11(%arg0: i32) -> (i32, i32) {
    %c0_i32 = arith.constant 0 : i32
    %c0_i32_0 = arith.constant 0 : i32
    %c0_i32_1 = arith.constant 0 : i32
    return %c0_i32, %c0_i32_0 : i32, i32
  }
  func.func @transform_12(%arg0: i32) -> (i32, i32) {
    %c0_i32 = arith.constant 0 : i32
    %c0_i32_0 = arith.constant 0 : i32
    %c0_i32_1 = arith.constant 0 : i32
    return %c0_i32, %c0_i32_0 : i32, i32
  }
  func.func @transform_13(%arg0: i32) -> (i32, i32) {
    %c0_i32 = arith.constant 0 : i32
    %c0_i32_0 = arith.constant 0 : i32
    %c0_i32_1 = arith.constant 0 : i32
    return %c0_i32, %c0_i32_0 : i32, i32
  }
  func.func @transform_14(%arg0: i32) -> (i32, i32, i32) {
    %c0_i32 = arith.constant 0 : i32
    %c0_i32_0 = arith.constant 0 : i32
    %c0_i32_1 = arith.constant 0 : i32
    %c0_i32_2 = arith.constant 0 : i32
    return %c0_i32, %c0_i32_0, %c0_i32_1 : i32, i32, i32
  }
  func.func @transform_15(%arg0: i32) -> (i32, i32, i32) {
    %c0_i32 = arith.constant 0 : i32
    %c0_i32_0 = arith.constant 0 : i32
    %c0_i32_1 = arith.constant 0 : i32
    %c0_i32_2 = arith.constant 0 : i32
    return %c0_i32, %c0_i32_0, %c0_i32_1 : i32, i32, i32
  }
  func.func @transform_16(%arg0: i32) -> (i32, i32) {
    %c0_i32 = arith.constant 0 : i32
    %c0_i32_0 = arith.constant 0 : i32
    %c0_i32_1 = arith.constant 0 : i32
    return %c0_i32, %c0_i32_0 : i32, i32
  }
  func.func @transform_17(%arg0: i32) -> (i32, i32) {
    %c0_i32 = arith.constant 0 : i32
    %c0_i32_0 = arith.constant 0 : i32
    %c0_i32_1 = arith.constant 0 : i32
    return %c0_i32, %c0_i32_0 : i32, i32
  }
  func.func @transform_18(%arg0: i32) -> (i32, i32) {
    %c0_i32 = arith.constant 0 : i32
    %c0_i32_0 = arith.constant 0 : i32
    %c0_i32_1 = arith.constant 0 : i32
    return %c0_i32, %c0_i32_0 : i32, i32
  }
  func.func @transform_19(%arg0: i32) -> (i32, i32) {
    %c0_i32 = arith.constant 0 : i32
    %c0_i32_0 = arith.constant 0 : i32
    %c0_i32_1 = arith.constant 0 : i32
    return %c0_i32, %c0_i32_0 : i32, i32
  }
  func.func @transform_20(%arg0: i32) -> (i32, i32, i32) {
    %c0_i32 = arith.constant 0 : i32
    %c0_i32_0 = arith.constant 0 : i32
    %c0_i32_1 = arith.constant 0 : i32
    %c0_i32_2 = arith.constant 0 : i32
    return %c0_i32, %c0_i32_0, %c0_i32_1 : i32, i32, i32
  }
  func.func @transform_21(%arg0: i32) -> (i32, i32, i32) {
    %c0_i32 = arith.constant 0 : i32
    %c0_i32_0 = arith.constant 0 : i32
    %c0_i32_1 = arith.constant 0 : i32
    %c0_i32_2 = arith.constant 0 : i32
    return %c0_i32, %c0_i32_0, %c0_i32_1 : i32, i32, i32
  }
  func.func @transform_22(%arg0: i32) -> (i32, i32, i32) {
    %c0_i32 = arith.constant 0 : i32
    %c0_i32_0 = arith.constant 0 : i32
    %c0_i32_1 = arith.constant 0 : i32
    %c0_i32_2 = arith.constant 0 : i32
    return %c0_i32, %c0_i32_0, %c0_i32_1 : i32, i32, i32
  }
  func.func @transform_23(%arg0: i32) -> (i32, i32) {
    %c0_i32 = arith.constant 0 : i32
    %c0_i32_0 = arith.constant 0 : i32
    %c0_i32_1 = arith.constant 0 : i32
    return %c0_i32, %c0_i32_0 : i32, i32
  }
}

</mosaic_0001>

<llo_original>
// kernel: generator_forward.1
$region0: #{generator_forward.1}
  #allocation0 [shape = 'u32[]', space=smem, size = 0x4, offset = 0x4, fixed_abs, tag = 'smem constant byte address 0x4 - core index']
  #allocation1 [shape = 'u32[144,128]{1,0:T(1,128)}', space=vmem, size = 0x12000, scoped, tag = 'internal scratch']
  %s0 = inlined_call_operand.vmem [shape: bf16[2,128], index: 0, kind: input, shape index: {}]
  %s1 = inlined_call_operand.vmem [shape: bf16[128,128], index: 1, kind: input, shape index: {}]
  %s2 = inlined_call_operand.vmem [shape: f32[1,128], index: 2, kind: input, shape index: {}]
  %s3 = inlined_call_operand.vmem [shape: bf16[128,1536], index: 3, kind: input, shape index: {}]
  %s4 = inlined_call_operand.vmem [shape: bf16[1536,64], index: 4, kind: input, shape index: {}]
  %s5 = inlined_call_operand.vmem [shape: bf16[64,1536], index: 5, kind: input, shape index: {}]
  %s6 = inlined_call_operand.vmem [shape: f32[1,64], index: 6, kind: input, shape index: {}]
  %s7 = inlined_call_operand.vmem [shape: f32[1,64], index: 7, kind: input, shape index: {}]
  %s8 = inlined_call_operand.vmem [shape: bf16[3,8,8], index: 8, kind: input, shape index: {}]
  %s9 = inlined_call_operand.vmem [shape: bf16[4,384,320], index: 9, kind: input, shape index: {}]
  %s10 = inlined_call_operand.vmem [shape: bf16[320,32], index: 10, kind: input, shape index: {}]
  %s11 = inlined_call_operand.vmem [shape: bf16[32,320], index: 11, kind: input, shape index: {}]
  %s12 = inlined_call_operand.vmem [shape: f32[1,32], index: 12, kind: input, shape index: {}]
  %s13 = inlined_call_operand.vmem [shape: f32[1,32], index: 13, kind: input, shape index: {}]
  %s14 = inlined_call_operand.vmem [shape: bf16[6,16,8], index: 14, kind: input, shape index: {}]
  %s15 = inlined_call_operand.vmem [shape: bf16[4,320,288], index: 15, kind: input, shape index: {}]
  %s16 = inlined_call_operand.vmem [shape: bf16[288,16], index: 16, kind: input, shape index: {}]
  %s17 = inlined_call_operand.vmem [shape: bf16[16,288], index: 17, kind: input, shape index: {}]
  %s18 = inlined_call_operand.vmem [shape: f32[1,16], index: 18, kind: input, shape index: {}]
  %s19 = inlined_call_operand.vmem [shape: f32[1,16], index: 19, kind: input, shape index: {}]
  %s20 = inlined_call_operand.vmem [shape: bf16[6,32,16], index: 20, kind: input, shape index: {}]
  %s21 = inlined_call_operand.vmem [shape: bf16[4,288,96], index: 21, kind: input, shape index: {}]
  %s22 = inlined_call_operand.vmem [shape: f32[2,64,32], index: 22, kind: input, shape index: {}]
  %s23 = inlined_call_operand.vmem [shape: f32[64,96], index: 23, kind: output, shape index: {}]
  %s24 = sld [smem:[#allocation0]]
  $region102: #{generator_forward.1} parent=0
    _
  %s26 = ssub.s32 1, %s24
  %s27 = scalar_select 0, %s26, %s24
  // Predicated region
  $region2: #{generator_forward.1} parent=0 // pred_check
    _
  $region3: #{generator_forward.1} parent=0 // pred_check_branch
    %29 = sbr.rel (0) target = $region5
  $region4: #{generator_forward.1} parent=0 // pred_region
    _
  $region5: #{generator_forward.1} parent=0 // pred_fallthru
    _
  // Predicated region
  $region6: #{generator_forward.1} parent=0 // pred_check
    _
  $region7: #{generator_forward.1} parent=0 // pred_check_branch
    %31 = sbr.rel (0) target = $region9
  $region8: #{generator_forward.1} parent=0 // pred_region
    _
  $region9: #{generator_forward.1} parent=0 // pred_fallthru
    _
  // Predicated region
  $region10: #{generator_forward.1} parent=0 // pred_check
    _
  $region11: #{generator_forward.1} parent=0 // pred_check_branch
    %33 = sbr.rel (0) target = $region13
  $region12: #{generator_forward.1} parent=0 // pred_region
    _
  $region13: #{generator_forward.1} parent=0 // pred_fallthru
    _
  // Predicated region
  $region14: #{generator_forward.1} parent=0 // pred_check
    _
  $region15: #{generator_forward.1} parent=0 // pred_check_branch
    %35 = sbr.rel (0) target = $region17
  $region16: #{generator_forward.1} parent=0 // pred_region
    _
  $region17: #{generator_forward.1} parent=0 // pred_fallthru
    _
  // Predicated region
  $region18: #{generator_forward.1} parent=0 // pred_check
    _
  $region19: #{generator_forward.1} parent=0 // pred_check_branch
    %37 = sbr.rel (0) target = $region21
  $region20: #{generator_forward.1} parent=0 // pred_region
    _
  $region21: #{generator_forward.1} parent=0 // pred_fallthru
    _
  // Predicated region
  $region22: #{generator_forward.1} parent=0 // pred_check
    _
  $region23: #{generator_forward.1} parent=0 // pred_check_branch
    %39 = sbr.rel (0) target = $region25
  $region24: #{generator_forward.1} parent=0 // pred_region
    _
  $region25: #{generator_forward.1} parent=0 // pred_fallthru
    _
  // Predicated region
  $region26: #{generator_forward.1} parent=0 // pred_check
    _
  $region27: #{generator_forward.1} parent=0 // pred_check_branch
    %41 = sbr.rel (0) target = $region29
  $region28: #{generator_forward.1} parent=0 // pred_region
    _
  $region29: #{generator_forward.1} parent=0 // pred_fallthru
    _
  // Predicated region
  $region30: #{generator_forward.1} parent=0 // pred_check
    _
  $region31: #{generator_forward.1} parent=0 // pred_check_branch
    %43 = sbr.rel (0) target = $region33
  $region32: #{generator_forward.1} parent=0 // pred_region
    _
  $region33: #{generator_forward.1} parent=0 // pred_fallthru
    _
  // Predicated region
  $region34: #{generator_forward.1} parent=0 // pred_check
    _
  $region35: #{generator_forward.1} parent=0 // pred_check_branch
    %45 = sbr.rel (0) target = $region37
  $region36: #{generator_forward.1} parent=0 // pred_region
    _
  $region37: #{generator_forward.1} parent=0 // pred_fallthru
    _
  // Predicated region
  $region38: #{generator_forward.1} parent=0 // pred_check
    _
  $region39: #{generator_forward.1} parent=0 // pred_check_branch
    %47 = sbr.rel (0) target = $region41
  $region40: #{generator_forward.1} parent=0 // pred_region
    _
  $region41: #{generator_forward.1} parent=0 // pred_fallthru
    _
  // Predicated region
  $region42: #{generator_forward.1} parent=0 // pred_check
    _
  $region43: #{generator_forward.1} parent=0 // pred_check_branch
    %49 = sbr.rel (0) target = $region45
  $region44: #{generator_forward.1} parent=0 // pred_region
    _
  $region45: #{generator_forward.1} parent=0 // pred_fallthru
    _
  // Predicated region
  $region46: #{generator_forward.1} parent=0 // pred_check
    _
  $region47: #{generator_forward.1} parent=0 // pred_check_branch
    %51 = sbr.rel (0) target = $region49
  $region48: #{generator_forward.1} parent=0 // pred_region
    _
  $region49: #{generator_forward.1} parent=0 // pred_fallthru
    _
  // Predicated region
  $region50: #{generator_forward.1} parent=0 // pred_check
    _
  $region51: #{generator_forward.1} parent=0 // pred_check_branch
    %53 = sbr.rel (0) target = $region53
  $region52: #{generator_forward.1} parent=0 // pred_region
    _
  $region53: #{generator_forward.1} parent=0 // pred_fallthru
    _
  // Predicated region
  $region54: #{generator_forward.1} parent=0 // pred_check
    _
  $region55: #{generator_forward.1} parent=0 // pred_check_branch
    %55 = sbr.rel (0) target = $region57
  $region56: #{generator_forward.1} parent=0 // pred_region
    _
  $region57: #{generator_forward.1} parent=0 // pred_fallthru
    _
  // Predicated region
  $region58: #{generator_forward.1} parent=0 // pred_check
    _
  $region59: #{generator_forward.1} parent=0 // pred_check_branch
    %57 = sbr.rel (0) target = $region61
  $region60: #{generator_forward.1} parent=0 // pred_region
    _
  $region61: #{generator_forward.1} parent=0 // pred_fallthru
    _
  // Predicated region
  $region62: #{generator_forward.1} parent=0 // pred_check
    _
  $region63: #{generator_forward.1} parent=0 // pred_check_branch
    %59 = sbr.rel (0) target = $region65
  $region64: #{generator_forward.1} parent=0 // pred_region
    _
  $region65: #{generator_forward.1} parent=0 // pred_fallthru
    _
  // Predicated region
  $region66: #{generator_forward.1} parent=0 // pred_check
    _
  $region67: #{generator_forward.1} parent=0 // pred_check_branch
    %61 = sbr.rel (0) target = $region69
  $region68: #{generator_forward.1} parent=0 // pred_region
    _
  $region69: #{generator_forward.1} parent=0 // pred_fallthru
    _
  // Predicated region
  $region70: #{generator_forward.1} parent=0 // pred_check
    _
  $region71: #{generator_forward.1} parent=0 // pred_check_branch
    %63 = sbr.rel (0) target = $region73
  $region72: #{generator_forward.1} parent=0 // pred_region
    _
  $region73: #{generator_forward.1} parent=0 // pred_fallthru
    _
  // Predicated region
  $region74: #{generator_forward.1} parent=0 // pred_check
    _
  $region75: #{generator_forward.1} parent=0 // pred_check_branch
    %65 = sbr.rel (0) target = $region77
  $region76: #{generator_forward.1} parent=0 // pred_region
    _
  $region77: #{generator_forward.1} parent=0 // pred_fallthru
    _
  // Predicated region
  $region78: #{generator_forward.1} parent=0 // pred_check
    _
  $region79: #{generator_forward.1} parent=0 // pred_check_branch
    %67 = sbr.rel (0) target = $region81
  $region80: #{generator_forward.1} parent=0 // pred_region
    _
  $region81: #{generator_forward.1} parent=0 // pred_fallthru
    _
  // Predicated region
  $region82: #{generator_forward.1} parent=0 // pred_check
    _
  $region83: #{generator_forward.1} parent=0 // pred_check_branch
    %69 = sbr.rel (0) target = $region85
  $region84: #{generator_forward.1} parent=0 // pred_region
    _
  $region85: #{generator_forward.1} parent=0 // pred_fallthru
    _
  // Predicated region
  $region86: #{generator_forward.1} parent=0 // pred_check
    _
  $region87: #{generator_forward.1} parent=0 // pred_check_branch
    %71 = sbr.rel (0) target = $region89
  $region88: #{generator_forward.1} parent=0 // pred_region
    _
  $region89: #{generator_forward.1} parent=0 // pred_fallthru
    _
  // Predicated region
  $region90: #{generator_forward.1} parent=0 // pred_check
    _
  $region91: #{generator_forward.1} parent=0 // pred_check_branch
    %73 = sbr.rel (0) target = $region93
  $region92: #{generator_forward.1} parent=0 // pred_region
    _
  $region93: #{generator_forward.1} parent=0 // pred_fallthru
    _
  %v75 = vld [vmem:[%s0] sm:$0x1]
  %v76 = vld [vmem:[%s1] sm:$0xf]
  %v77 = vld [vmem:[%s1 + $0x4] sm:$0xf]
  %v78 = vld [vmem:[%s1 + $0x8] sm:$0xf]
  %v79 = vld [vmem:[%s1 + $0xc] sm:$0xf]
  %v80 = vld [vmem:[%s1 + $0x10] sm:$0xf]
  %v81 = vld [vmem:[%s1 + $0x14] sm:$0xf]
  %v82 = vld [vmem:[%s1 + $0x18] sm:$0xf]
  %v83 = vld [vmem:[%s1 + $0x1c] sm:$0xf]
  %v84 = vld [vmem:[%s1 + $0x20] sm:$0xf]
  %v85 = vld [vmem:[%s1 + $0x24] sm:$0xf]
  %v86 = vld [vmem:[%s1 + $0x28] sm:$0xf]
  %v87 = vld [vmem:[%s1 + $0x2c] sm:$0xf]
  %v88 = vld [vmem:[%s1 + $0x30] sm:$0xf]
  %v89 = vld [vmem:[%s1 + $0x34] sm:$0xf]
  %v90 = vld [vmem:[%s1 + $0x38] sm:$0xf]
  %v91 = vld [vmem:[%s1 + $0x3c] sm:$0xf]
  %v92 = vld [vmem:[%s2] sm:$0x1]
  %v94 = vlaneseq
  %v95 = vshrl.u32 %v94, 7
  %v96 = vsub.s32 0, %v95
  %v97 = vrot.slane %v92, %v96
  %v115 = vunpack.c.l.b16 %v76
  %v116 = vunpack.c.l.b16 %v77
  %v117 = vunpack.c.l.b16 %v78
  %v118 = vunpack.c.l.b16 %v79
  %v119 = vunpack.c.l.b16 %v80
  %v120 = vunpack.c.l.b16 %v81
  %v121 = vunpack.c.l.b16 %v82
  %v122 = vunpack.c.l.b16 %v83
  %v123 = vunpack.c.l.b16 %v84
  %v124 = vunpack.c.l.b16 %v85
  %v125 = vunpack.c.l.b16 %v86
  %v126 = vunpack.c.l.b16 %v87
  %v127 = vunpack.c.l.b16 %v88
  %v128 = vunpack.c.l.b16 %v89
  %v129 = vunpack.c.l.b16 %v90
  %v130 = vunpack.c.l.b16 %v91
  %v131 = vpack.c.b16 %v116, %v115
  %v132 = vpack.c.b16 %v118, %v117
  %v133 = vpack.c.b16 %v120, %v119
  %v134 = vpack.c.b16 %v122, %v121
  %v135 = vpack.c.b16 %v124, %v123
  %v136 = vpack.c.b16 %v126, %v125
  %v137 = vpack.c.b16 %v128, %v127
  %v138 = vpack.c.b16 %v130, %v129
  %147 = vmatprep.subr.bf16.mxu0 0
  %148 = vmatpush1.bf16.msra.mxu0 %v131
  %149 = vmatprep.subr.bf16.mxu0 0
  %150 = vmatpush1.bf16.msra.mxu0 %v132
  %151 = vmatprep.subr.bf16.mxu0 0
  %152 = vmatpush1.bf16.msra.mxu0 %v133
  %153 = vmatprep.subr.bf16.mxu0 0
  %154 = vmatpush1.bf16.msra.mxu0 %v134
  %155 = vmatprep.subr.bf16.mxu0 0
  %156 = vmatpush1.bf16.msra.mxu0 %v135
  %157 = vmatprep.subr.bf16.mxu0 0
  %158 = vmatpush1.bf16.msra.mxu0 %v136
  %159 = vmatprep.subr.bf16.mxu0 0
  %160 = vmatpush1.bf16.msra.mxu0 %v137
  %161 = vmatprep.subr.bf16.mxu0 0
  %162 = vmatpush1.bf16.msra.mxu0 %v138
  %163 = vmatprep.subr.bf16.mxu0 0
  %164 = vmatpush1.bf16.msra.mxu0 0
  %165 = vmatprep.subr.bf16.mxu0 0
  %166 = vmatpush1.bf16.msra.mxu0 0
  %167 = vmatprep.subr.bf16.mxu0 0
  %168 = vmatpush1.bf16.msra.mxu0 0
  %169 = vmatprep.subr.bf16.mxu0 0
  %170 = vmatpush1.bf16.msra.mxu0 0
  %171 = vmatprep.subr.bf16.mxu0 0
  %172 = vmatpush1.bf16.msra.mxu0 0
  %173 = vmatprep.subr.bf16.mxu0 0
  %174 = vmatpush1.bf16.msra.mxu0 0
  %175 = vmatprep.subr.bf16.mxu0 0
  %176 = vmatpush1.bf16.msra.mxu0 0
  %177 = vmatprep.subr.bf16.mxu0 0
  %178 = vmatpush1.bf16.msra.mxu0 0
  %179 = vmatprep.mubr.bf16.mxu0 0
  %180 = vmatmul.mubr.bf16.gmra.mrb[0].mxu0 %v75
  %v181 = vpop.f32.mrb[0].mxu0
  %v182 = vadd.f32 %v97, %v181
  %v183 = vpop.f32.mrb[0].mxu0
  %v184 = vpop.f32.mrb[0].mxu0
  %v185 = vpop.f32.mrb[0].mxu0
  %186 = vdwg.mxu0
  %v187 = vpack.c.bf16 %v182, %v182
  %v188 = vld [vmem:[%s3] sm:$0xff]
  %v189 = vld [vmem:[%s3 + $0x8] sm:$0xff]
  %v190 = vld [vmem:[%s3 + $0x10] sm:$0xff]
  %v191 = vld [vmem:[%s3 + $0x18] sm:$0xff]
  %v192 = vld [vmem:[%s3 + $0x20] sm:$0xff]
  %v193 = vld [vmem:[%s3 + $0x28] sm:$0xff]
  %v194 = vld [vmem:[%s3 + $0x30] sm:$0xff]
  %v195 = vld [vmem:[%s3 + $0x38] sm:$0xff]
  %v196 = vld [vmem:[%s3 + $0x40] sm:$0xff]
  %v197 = vld [vmem:[%s3 + $0x48] sm:$0xff]
  %v198 = vld [vmem:[%s3 + $0x50] sm:$0xff]
  %v199 = vld [vmem:[%s3 + $0x58] sm:$0xff]
  %v200 = vld [vmem:[%s3 + $0x60] sm:$0xff]
  %v201 = vld [vmem:[%s3 + $0x68] sm:$0xff]
  %v202 = vld [vmem:[%s3 + $0x70] sm:$0xff]
  %v203 = vld [vmem:[%s3 + $0x78] sm:$0xff]
  %v204 = vld [vmem:[%s3 + $0x80] sm:$0xff]
  %v205 = vld [vmem:[%s3 + $0x88] sm:$0xff]
  %v206 = vld [vmem:[%s3 + $0x90] sm:$0xff]
  %v207 = vld [vmem:[%s3 + $0x98] sm:$0xff]
  %v208 = vld [vmem:[%s3 + $0xa0] sm:$0xff]
  %v209 = vld [vmem:[%s3 + $0xa8] sm:$0xff]
  %v210 = vld [vmem:[%s3 + $0xb0] sm:$0xff]
  %v211 = vld [vmem:[%s3 + $0xb8] sm:$0xff]
  %v212 = vld [vmem:[%s3 + $0xc0] sm:$0xff]
  %v213 = vld [vmem:[%s3 + $0xc8] sm:$0xff]
  %v214 = vld [vmem:[%s3 + $0xd0] sm:$0xff]
  %v215 = vld [vmem:[%s3 + $0xd8] sm:$0xff]
  %v216 = vld [vmem:[%s3 + $0xe0] sm:$0xff]
  %v217 = vld [vmem:[%s3 + $0xe8] sm:$0xff]
  %v218 = vld [vmem:[%s3 + $0xf0] sm:$0xff]
  %v219 = vld [vmem:[%s3 + $0xf8] sm:$0xff]
  %v220 = vld [vmem:[%s3 + $0x100] sm:$0xff]
  %v221 = vld [vmem:[%s3 + $0x108] sm:$0xff]
  %v222 = vld [vmem:[%s3 + $0x110] sm:$0xff]
  %v223 = vld [vmem:[%s3 + $0x118] sm:$0xff]
  %v224 = vld [vmem:[%s3 + $0x120] sm:$0xff]
  %v225 = vld [vmem:[%s3 + $0x128] sm:$0xff]
  %v226 = vld [vmem:[%s3 + $0x130] sm:$0xff]
  %v227 = vld [vmem:[%s3 + $0x138] sm:$0xff]
  %v228 = vld [vmem:[%s3 + $0x140] sm:$0xff]
  %v229 = vld [vmem:[%s3 + $0x148] sm:$0xff]
  %v230 = vld [vmem:[%s3 + $0x150] sm:$0xff]
  %v231 = vld [vmem:[%s3 + $0x158] sm:$0xff]
  %v232 = vld [vmem:[%s3 + $0x160] sm:$0xff]
  %v233 = vld [vmem:[%s3 + $0x168] sm:$0xff]
  %v234 = vld [vmem:[%s3 + $0x170] sm:$0xff]
  %v235 = vld [vmem:[%s3 + $0x178] sm:$0xff]
  %v236 = vld [vmem:[%s3 + $0x180] sm:$0xff]
  %v237 = vld [vmem:[%s3 + $0x188] sm:$0xff]
  %v238 = vld [vmem:[%s3 + $0x190] sm:$0xff]
  %v239 = vld [vmem:[%s3 + $0x198] sm:$0xff]
  %v240 = vld [vmem:[%s3 + $0x1a0] sm:$0xff]
  %v241 = vld [vmem:[%s3 + $0x1a8] sm:$0xff]
  %v242 = vld [vmem:[%s3 + $0x1b0] sm:$0xff]
  %v243 = vld [vmem:[%s3 + $0x1b8] sm:$0xff]
  %v244 = vld [vmem:[%s3 + $0x1c0] sm:$0xff]
  %v245 = vld [vmem:[%s3 + $0x1c8] sm:$0xff]
  %v246 = vld [vmem:[%s3 + $0x1d0] sm:$0xff]
  %v247 = vld [vmem:[%s3 + $0x1d8] sm:$0xff]
  %v248 = vld [vmem:[%s3 + $0x1e0] sm:$0xff]
  %v249 = vld [vmem:[%s3 + $0x1e8] sm:$0xff]
  %v250 = vld [vmem:[%s3 + $0x1f0] sm:$0xff]
  %v251 = vld [vmem:[%s3 + $0x1f8] sm:$0xff]
  %v252 = vld [vmem:[%s3 + $0x200] sm:$0xff]
  %v253 = vld [vmem:[%s3 + $0x208] sm:$0xff]
  %v254 = vld [vmem:[%s3 + $0x210] sm:$0xff]
  %v255 = vld [vmem:[%s3 + $0x218] sm:$0xff]
  %v256 = vld [vmem:[%s3 + $0x220] sm:$0xff]
  %v257 = vld [vmem:[%s3 + $0x228] sm:$0xff]
  %v258 = vld [vmem:[%s3 + $0x230] sm:$0xff]
  %v259 = vld [vmem:[%s3 + $0x238] sm:$0xff]
  %v260 = vld [vmem:[%s3 + $0x240] sm:$0xff]
  %v261 = vld [vmem:[%s3 + $0x248] sm:$0xff]
  %v262 = vld [vmem:[%s3 + $0x250] sm:$0xff]
  %v263 = vld [vmem:[%s3 + $0x258] sm:$0xff]
  %v264 = vld [vmem:[%s3 + $0x260] sm:$0xff]
  %v265 = vld [vmem:[%s3 + $0x268] sm:$0xff]
  %v266 = vld [vmem:[%s3 + $0x270] sm:$0xff]
  %v267 = vld [vmem:[%s3 + $0x278] sm:$0xff]
  %v268 = vld [vmem:[%s3 + $0x280] sm:$0xff]
  %v269 = vld [vmem:[%s3 + $0x288] sm:$0xff]
  %v270 = vld [vmem:[%s3 + $0x290] sm:$0xff]
  %v271 = vld [vmem:[%s3 + $0x298] sm:$0xff]
  %v272 = vld [vmem:[%s3 + $0x2a0] sm:$0xff]
  %v273 = vld [vmem:[%s3 + $0x2a8] sm:$0xff]
  %v274 = vld [vmem:[%s3 + $0x2b0] sm:$0xff]
  %v275 = vld [vmem:[%s3 + $0x2b8] sm:$0xff]
  %v276 = vld [vmem:[%s3 + $0x2c0] sm:$0xff]
  %v277 = vld [vmem:[%s3 + $0x2c8] sm:$0xff]
  %v278 = vld [vmem:[%s3 + $0x2d0] sm:$0xff]
  %v279 = vld [vmem:[%s3 + $0x2d8] sm:$0xff]
  %v280 = vld [vmem:[%s3 + $0x2e0] sm:$0xff]
  %v281 = vld [vmem:[%s3 + $0x2e8] sm:$0xff]
  %v282 = vld [vmem:[%s3 + $0x2f0] sm:$0xff]
  %v283 = vld [vmem:[%s3 + $0x2f8] sm:$0xff]
  %v380 = vunpack.c.l.b16 %v188
  %v381 = vunpack.c.h.b16 %v188
  %v382 = vunpack.c.l.b16 %v189
  %v383 = vunpack.c.h.b16 %v189
  %v384 = vunpack.c.l.b16 %v190
  %v385 = vunpack.c.h.b16 %v190
  %v386 = vunpack.c.l.b16 %v191
  %v387 = vunpack.c.h.b16 %v191
  %v388 = vunpack.c.l.b16 %v192
  %v389 = vunpack.c.h.b16 %v192
  %v390 = vunpack.c.l.b16 %v193
  %v391 = vunpack.c.h.b16 %v193
  %v392 = vunpack.c.l.b16 %v194
  %v393 = vunpack.c.h.b16 %v194
  %v394 = vunpack.c.l.b16 %v195
  %v395 = vunpack.c.h.b16 %v195
  %v396 = vunpack.c.l.b16 %v196
  %v397 = vunpack.c.h.b16 %v196
  %v398 = vunpack.c.l.b16 %v197
  %v399 = vunpack.c.h.b16 %v197
  %v400 = vunpack.c.l.b16 %v198
  %v401 = vunpack.c.h.b16 %v198
  %v402 = vunpack.c.l.b16 %v199
  %v403 = vunpack.c.h.b16 %v199
  %v404 = vunpack.c.l.b16 %v200
  %v405 = vunpack.c.h.b16 %v200
  %v406 = vunpack.c.l.b16 %v201
  %v407 = vunpack.c.h.b16 %v201
  %v408 = vunpack.c.l.b16 %v202
  %v409 = vunpack.c.h.b16 %v202
  %v410 = vunpack.c.l.b16 %v203
  %v411 = vunpack.c.h.b16 %v203
  %v412 = vunpack.c.l.b16 %v204
  %v413 = vunpack.c.h.b16 %v204
  %v414 = vunpack.c.l.b16 %v205
  %v415 = vunpack.c.h.b16 %v205
  %v416 = vunpack.c.l.b16 %v206
  %v417 = vunpack.c.h.b16 %v206
  %v418 = vunpack.c.l.b16 %v207
  %v419 = vunpack.c.h.b16 %v207
  %v420 = vunpack.c.l.b16 %v208
  %v421 = vunpack.c.h.b16 %v208
  %v422 = vunpack.c.l.b16 %v209
  %v423 = vunpack.c.h.b16 %v209
  %v424 = vunpack.c.l.b16 %v210
  %v425 = vunpack.c.h.b16 %v210
  %v426 = vunpack.c.l.b16 %v211
  %v427 = vunpack.c.h.b16 %v211
  %v428 = vunpack.c.l.b16 %v212
  %v429 = vunpack.c.h.b16 %v212
  %v430 = vunpack.c.l.b16 %v213
  %v431 = vunpack.c.h.b16 %v213
  %v432 = vunpack.c.l.b16 %v214
  %v433 = vunpack.c.h.b16 %v214
  %v434 = vunpack.c.l.b16 %v215
  %v435 = vunpack.c.h.b16 %v215
  %v436 = vunpack.c.l.b16 %v216
  %v437 = vunpack.c.h.b16 %v216
  %v438 = vunpack.c.l.b16 %v217
  %v439 = vunpack.c.h.b16 %v217
  %v440 = vunpack.c.l.b16 %v218
  %v441 = vunpack.c.h.b16 %v218
  %v442 = vunpack.c.l.b16 %v219
  %v443 = vunpack.c.h.b16 %v219
  %v444 = vunpack.c.l.b16 %v220
  %v445 = vunpack.c.h.b16 %v220
  %v446 = vunpack.c.l.b16 %v221
  %v447 = vunpack.c.h.b16 %v221
  %v448 = vunpack.c.l.b16 %v222
  %v449 = vunpack.c.h.b16 %v222
  %v450 = vunpack.c.l.b16 %v223
  %v451 = vunpack.c.h.b16 %v223
  %v452 = vunpack.c.l.b16 %v224
  %v453 = vunpack.c.h.b16 %v224
  %v454 = vunpack.c.l.b16 %v225
  %v455 = vunpack.c.h.b16 %v225
  %v456 = vunpack.c.l.b16 %v226
  %v457 = vunpack.c.h.b16 %v226
  %v458 = vunpack.c.l.b16 %v227
  %v459 = vunpack.c.h.b16 %v227
  %v460 = vunpack.c.l.b16 %v228
  %v461 = vunpack.c.h.b16 %v228
  %v462 = vunpack.c.l.b16 %v229
  %v463 = vunpack.c.h.b16 %v229
  %v464 = vunpack.c.l.b16 %v230
  %v465 = vunpack.c.h.b16 %v230
  %v466 = vunpack.c.l.b16 %v231
  %v467 = vunpack.c.h.b16 %v231
  %v468 = vunpack.c.l.b16 %v232
  %v469 = vunpack.c.h.b16 %v232
  %v470 = vunpack.c.l.b16 %v233
  %v471 = vunpack.c.h.b16 %v233
  %v472 = vunpack.c.l.b16 %v234
  %v473 = vunpack.c.h.b16 %v234
  %v474 = vunpack.c.l.b16 %v235
  %v475 = vunpack.c.h.b16 %v235
  %v476 = vunpack.c.l.b16 %v236
  %v477 = vunpack.c.h.b16 %v236
  %v478 = vunpack.c.l.b16 %v237
  %v479 = vunpack.c.h.b16 %v237
  %v480 = vunpack.c.l.b16 %v238
  %v481 = vunpack.c.h.b16 %v238
  %v482 = vunpack.c.l.b16 %v239
  %v483 = vunpack.c.h.b16 %v239
  %v484 = vunpack.c.l.b16 %v240
  %v485 = vunpack.c.h.b16 %v240
  %v486 = vunpack.c.l.b16 %v241
  %v487 = vunpack.c.h.b16 %v241
  %v488 = vunpack.c.l.b16 %v242
  %v489 = vunpack.c.h.b16 %v242
  %v490 = vunpack.c.l.b16 %v243
  %v491 = vunpack.c.h.b16 %v243
  %v492 = vunpack.c.l.b16 %v244
  %v493 = vunpack.c.h.b16 %v244
  %v494 = vunpack.c.l.b16 %v245
  %v495 = vunpack.c.h.b16 %v245
  %v496 = vunpack.c.l.b16 %v246
  %v497 = vunpack.c.h.b16 %v246
  %v498 = vunpack.c.l.b16 %v247
  %v499 = vunpack.c.h.b16 %v247
  %v500 = vunpack.c.l.b16 %v248
  %v501 = vunpack.c.h.b16 %v248
  %v502 = vunpack.c.l.b16 %v249
  %v503 = vunpack.c.h.b16 %v249
  %v504 = vunpack.c.l.b16 %v250
  %v505 = vunpack.c.h.b16 %v250
  %v506 = vunpack.c.l.b16 %v251
  %v507 = vunpack.c.h.b16 %v251
  %v508 = vunpack.c.l.b16 %v252
  %v509 = vunpack.c.h.b16 %v252
  %v510 = vunpack.c.l.b16 %v253
  %v511 = vunpack.c.h.b16 %v253
  %v512 = vunpack.c.l.b16 %v254
  %v513 = vunpack.c.h.b16 %v254
  %v514 = vunpack.c.l.b16 %v255
  %v515 = vunpack.c.h.b16 %v255
  %v516 = vunpack.c.l.b16 %v256
  %v517 = vunpack.c.h.b16 %v256
  %v518 = vunpack.c.l.b16 %v257
  %v519 = vunpack.c.h.b16 %v257
  %v520 = vunpack.c.l.b16 %v258
  %v521 = vunpack.c.h.b16 %v258
  %v522 = vunpack.c.l.b16 %v259
  %v523 = vunpack.c.h.b16 %v259
  %v524 = vunpack.c.l.b16 %v260
  %v525 = vunpack.c.h.b16 %v260
  %v526 = vunpack.c.l.b16 %v261
  %v527 = vunpack.c.h.b16 %v261
  %v528 = vunpack.c.l.b16 %v262
  %v529 = vunpack.c.h.b16 %v262
  %v530 = vunpack.c.l.b16 %v263
  %v531 = vunpack.c.h.b16 %v263
  %v532 = vunpack.c.l.b16 %v264
  %v533 = vunpack.c.h.b16 %v264
  %v534 = vunpack.c.l.b16 %v265
  %v535 = vunpack.c.h.b16 %v265
  %v536 = vunpack.c.l.b16 %v266
  %v537 = vunpack.c.h.b16 %v266
  %v538 = vunpack.c.l.b16 %v267
  %v539 = vunpack.c.h.b16 %v267
  %v540 = vunpack.c.l.b16 %v268
  %v541 = vunpack.c.h.b16 %v268
  %v542 = vunpack.c.l.b16 %v269
  %v543 = vunpack.c.h.b16 %v269
  %v544 = vunpack.c.l.b16 %v270
  %v545 = vunpack.c.h.b16 %v270
  %v546 = vunpack.c.l.b16 %v271
  %v547 = vunpack.c.h.b16 %v271
  %v548 = vunpack.c.l.b16 %v272
  %v549 = vunpack.c.h.b16 %v272
  %v550 = vunpack.c.l.b16 %v273
  %v551 = vunpack.c.h.b16 %v273
  %v552 = vunpack.c.l.b16 %v274
  %v553 = vunpack.c.h.b16 %v274
  %v554 = vunpack.c.l.b16 %v275
  %v555 = vunpack.c.h.b16 %v275
  %v556 = vunpack.c.l.b16 %v276
  %v557 = vunpack.c.h.b16 %v276
  %v558 = vunpack.c.l.b16 %v277
  %v559 = vunpack.c.h.b16 %v277
  %v560 = vunpack.c.l.b16 %v278
  %v561 = vunpack.c.h.b16 %v278
  %v562 = vunpack.c.l.b16 %v279
  %v563 = vunpack.c.h.b16 %v279
  %v564 = vunpack.c.l.b16 %v280
  %v565 = vunpack.c.h.b16 %v280
  %v566 = vunpack.c.l.b16 %v281
  %v567 = vunpack.c.h.b16 %v281
  %v568 = vunpack.c.l.b16 %v282
  %v569 = vunpack.c.h.b16 %v282
  %v570 = vunpack.c.l.b16 %v283
  %v571 = vunpack.c.h.b16 %v283
  %v572 = vpack.c.b16 %v392, %v380
  %v573 = vpack.c.b16 %v393, %v381
  %v574 = vpack.c.b16 %v394, %v382
  %v575 = vpack.c.b16 %v395, %v383
  %v576 = vpack.c.b16 %v396, %v384
  %v577 = vpack.c.b16 %v397, %v385
  %v578 = vpack.c.b16 %v398, %v386
  %v579 = vpack.c.b16 %v399, %v387
  %v580 = vpack.c.b16 %v400, %v388
  %v581 = vpack.c.b16 %v401, %v389
  %v582 = vpack.c.b16 %v402, %v390
  %v583 = vpack.c.b16 %v403, %v391
  %v584 = vpack.c.b16 %v416, %v404
  %v585 = vpack.c.b16 %v417, %v405
  %v586 = vpack.c.b16 %v418, %v406
  %v587 = vpack.c.b16 %v419, %v407
  %v588 = vpack.c.b16 %v420, %v408
  %v589 = vpack.c.b16 %v421, %v409
  %v590 = vpack.c.b16 %v422, %v410
  %v591 = vpack.c.b16 %v423, %v411
  %v592 = vpack.c.b16 %v424, %v412
  %v593 = vpack.c.b16 %v425, %v413
  %v594 = vpack.c.b16 %v426, %v414
  %v595 = vpack.c.b16 %v427, %v415
  %v596 = vpack.c.b16 %v440, %v428
  %v597 = vpack.c.b16 %v441, %v429
  %v598 = vpack.c.b16 %v442, %v430
  %v599 = vpack.c.b16 %v443, %v431
  %v600 = vpack.c.b16 %v444, %v432
  %v601 = vpack.c.b16 %v445, %v433
  %v602 = vpack.c.b16 %v446, %v434
  %v603 = vpack.c.b16 %v447, %v435
  %v604 = vpack.c.b16 %v448, %v436
  %v605 = vpack.c.b16 %v449, %v437
  %v606 = vpack.c.b16 %v450, %v438
  %v607 = vpack.c.b16 %v451, %v439
  %v608 = vpack.c.b16 %v464, %v452
  %v609 = vpack.c.b16 %v465, %v453
  %v610 = vpack.c.b16 %v466, %v454
  %v611 = vpack.c.b16 %v467, %v455
  %v612 = vpack.c.b16 %v468, %v456
  %v613 = vpack.c.b16 %v469, %v457
  %v614 = vpack.c.b16 %v470, %v458
  %v615 = vpack.c.b16 %v471, %v459
  %v616 = vpack.c.b16 %v472, %v460
  %v617 = vpack.c.b16 %v473, %v461
  %v618 = vpack.c.b16 %v474, %v462
  %v619 = vpack.c.b16 %v475, %v463
  %v620 = vpack.c.b16 %v488, %v476
  %v621 = vpack.c.b16 %v489, %v477
  %v622 = vpack.c.b16 %v490, %v478
  %v623 = vpack.c.b16 %v491, %v479
  %v624 = vpack.c.b16 %v492, %v480
  %v625 = vpack.c.b16 %v493, %v481
  %v626 = vpack.c.b16 %v494, %v482
  %v627 = vpack.c.b16 %v495, %v483
  %v628 = vpack.c.b16 %v496, %v484
  %v629 = vpack.c.b16 %v497, %v485
  %v630 = vpack.c.b16 %v498, %v486
  %v631 = vpack.c.b16 %v499, %v487
  %v632 = vpack.c.b16 %v512, %v500
  %v633 = vpack.c.b16 %v513, %v501
  %v634 = vpack.c.b16 %v514, %v502
  %v635 = vpack.c.b16 %v515, %v503
  %v636 = vpack.c.b16 %v516, %v504
  %v637 = vpack.c.b16 %v517, %v505
  %v638 = vpack.c.b16 %v518, %v506
  %v639 = vpack.c.b16 %v519, %v507
  %v640 = vpack.c.b16 %v520, %v508
  %v641 = vpack.c.b16 %v521, %v509
  %v642 = vpack.c.b16 %v522, %v510
  %v643 = vpack.c.b16 %v523, %v511
  %v644 = vpack.c.b16 %v536, %v524
  %v645 = vpack.c.b16 %v537, %v525
  %v646 = vpack.c.b16 %v538, %v526
  %v647 = vpack.c.b16 %v539, %v527
  %v648 = vpack.c.b16 %v540, %v528
  %v649 = vpack.c.b16 %v541, %v529
  %v650 = vpack.c.b16 %v542, %v530
  %v651 = vpack.c.b16 %v543, %v531
  %v652 = vpack.c.b16 %v544, %v532
  %v653 = vpack.c.b16 %v545, %v533
  %v654 = vpack.c.b16 %v546, %v534
  %v655 = vpack.c.b16 %v547, %v535
  %v656 = vpack.c.b16 %v560, %v548
  %v657 = vpack.c.b16 %v561, %v549
  %v658 = vpack.c.b16 %v562, %v550
  %v659 = vpack.c.b16 %v563, %v551
  %v660 = vpack.c.b16 %v564, %v552
  %v661 = vpack.c.b16 %v565, %v553
  %v662 = vpack.c.b16 %v566, %v554
  %v663 = vpack.c.b16 %v567, %v555
  %v664 = vpack.c.b16 %v568, %v556
  %v665 = vpack.c.b16 %v569, %v557
  %v666 = vpack.c.b16 %v570, %v558
  %v667 = vpack.c.b16 %v571, %v559
  %764 = vmatprep.subr.bf16.mxu0 %v573
  %765 = vmatpush1.bf16.msra.mxu0 %v572
  %766 = vmatprep.subr.bf16.mxu0 %v585
  %767 = vmatpush1.bf16.msra.mxu0 %v584
  %768 = vmatprep.subr.bf16.mxu0 %v597
  %769 = vmatpush1.bf16.msra.mxu0 %v596
  %770 = vmatprep.subr.bf16.mxu0 %v609
  %771 = vmatpush1.bf16.msra.mxu0 %v608
  %772 = vmatprep.subr.bf16.mxu0 %v621
  %773 = vmatpush1.bf16.msra.mxu0 %v620
  %774 = vmatprep.subr.bf16.mxu0 %v633
  %775 = vmatpush1.bf16.msra.mxu0 %v632
  %776 = vmatprep.subr.bf16.mxu0 %v645
  %777 = vmatpush1.bf16.msra.mxu0 %v644
  %778 = vmatprep.subr.bf16.mxu0 %v657
  %779 = vmatpush1.bf16.msra.mxu0 %v656
  %780 = vmatprep.subr.bf16.mxu0 0
  %781 = vmatpush1.bf16.msra.mxu0 0
  %782 = vmatprep.subr.bf16.mxu0 0
  %783 = vmatpush1.bf16.msra.mxu0 0
  %784 = vmatprep.subr.bf16.mxu0 0
  %785 = vmatpush1.bf16.msra.mxu0 0
  %786 = vmatprep.subr.bf16.mxu0 0
  %787 = vmatpush1.bf16.msra.mxu0 0
  %788 = vmatprep.subr.bf16.mxu0 0
  %789 = vmatpush1.bf16.msra.mxu0 0
  %790 = vmatprep.subr.bf16.mxu0 0
  %791 = vmatpush1.bf16.msra.mxu0 0
  %792 = vmatprep.subr.bf16.mxu0 0
  %793 = vmatpush1.bf16.msra.mxu0 0
  %794 = vmatprep.subr.bf16.mxu0 0
  %795 = vmatpush1.bf16.msra.mxu0 0
  %796 = vmatprep.mubr.bf16.mxu0 0
  %797 = vmatmul.mubr.bf16.gmra.mrb[0].mxu0 %v187
  %v798 = vpop.f32.mrb[0].mxu0
  %v799 = vadd.f32 0.0, %v798
  %v800 = vpop.f32.mrb[0].mxu0
  %v801 = vadd.f32 0.0, %v800
  %v802 = vpop.f32.mrb[0].mxu0
  %v803 = vpop.f32.mrb[0].mxu0
  %804 = vdwg.mxu0
  %805 = vmatprep.subr.bf16.mxu0 %v575
  %806 = vmatpush1.bf16.msra.mxu0 %v574
  %807 = vmatprep.subr.bf16.mxu0 %v587
  %808 = vmatpush1.bf16.msra.mxu0 %v586
  %809 = vmatprep.subr.bf16.mxu0 %v599
  %810 = vmatpush1.bf16.msra.mxu0 %v598
  %811 = vmatprep.subr.bf16.mxu0 %v611
  %812 = vmatpush1.bf16.msra.mxu0 %v610
  %813 = vmatprep.subr.bf16.mxu0 %v623
  %814 = vmatpush1.bf16.msra.mxu0 %v622
  %815 = vmatprep.subr.bf16.mxu0 %v635
  %816 = vmatpush1.bf16.msra.mxu0 %v634
  %817 = vmatprep.subr.bf16.mxu0 %v647
  %818 = vmatpush1.bf16.msra.mxu0 %v646
  %819 = vmatprep.subr.bf16.mxu0 %v659
  %820 = vmatpush1.bf16.msra.mxu0 %v658
  %821 = vmatprep.subr.bf16.mxu0 0
  %822 = vmatpush1.bf16.msra.mxu0 0
  %823 = vmatprep.subr.bf16.mxu0 0
  %824 = vmatpush1.bf16.msra.mxu0 0
  %825 = vmatprep.subr.bf16.mxu0 0
  %826 = vmatpush1.bf16.msra.mxu0 0
  %827 = vmatprep.subr.bf16.mxu0 0
  %828 = vmatpush1.bf16.msra.mxu0 0
  %829 = vmatprep.subr.bf16.mxu0 0
  %830 = vmatpush1.bf16.msra.mxu0 0
  %831 = vmatprep.subr.bf16.mxu0 0
  %832 = vmatpush1.bf16.msra.mxu0 0
  %833 = vmatprep.subr.bf16.mxu0 0
  %834 = vmatpush1.bf16.msra.mxu0 0
  %835 = vmatprep.subr.bf16.mxu0 0
  %836 = vmatpush1.bf16.msra.mxu0 0
  %837 = vmatprep.mubr.bf16.mxu0 0
  %838 = vmatmul.mubr.bf16.gmra.mrb[0].mxu0 %v187
  %v839 = vpop.f32.mrb[0].mxu0
  %v840 = vadd.f32 0.0, %v839
  %v841 = vpop.f32.mrb[0].mxu0
  %v842 = vadd.f32 0.0, %v841
  %v843 = vpop.f32.mrb[0].mxu0
  %v844 = vpop.f32.mrb[0].mxu0
  %845 = vdwg.mxu0
  %846 = vmatprep.subr.bf16.mxu0 %v577
  %847 = vmatpush1.bf16.msra.mxu0 %v576
  %848 = vmatprep.subr.bf16.mxu0 %v589
  %849 = vmatpush1.bf16.msra.mxu0 %v588
  %850 = vmatprep.subr.bf16.mxu0 %v601
  %851 = vmatpush1.bf16.msra.mxu0 %v600
  %852 = vmatprep.subr.bf16.mxu0 %v613
  %853 = vmatpush1.bf16.msra.mxu0 %v612
  %854 = vmatprep.subr.bf16.mxu0 %v625
  %855 = vmatpush1.bf16.msra.mxu0 %v624
  %856 = vmatprep.subr.bf16.mxu0 %v637
  %857 = vmatpush1.bf16.msra.mxu0 %v636
  %858 = vmatprep.subr.bf16.mxu0 %v649
  %859 = vmatpush1.bf16.msra.mxu0 %v648
  %860 = vmatprep.subr.bf16.mxu0 %v661
  %861 = vmatpush1.bf16.msra.mxu0 %v660
  %862 = vmatprep.subr.bf16.mxu0 0
  %863 = vmatpush1.bf16.msra.mxu0 0
  %864 = vmatprep.subr.bf16.mxu0 0
  %865 = vmatpush1.bf16.msra.mxu0 0
  %866 = vmatprep.subr.bf16.mxu0 0
  %867 = vmatpush1.bf16.msra.mxu0 0
  %868 = vmatprep.subr.bf16.mxu0 0
  %869 = vmatpush1.bf16.msra.mxu0 0
  %870 = vmatprep.subr.bf16.mxu0 0
  %871 = vmatpush1.bf16.msra.mxu0 0
  %872 = vmatprep.subr.bf16.mxu0 0
  %873 = vmatpush1.bf16.msra.mxu0 0
  %874 = vmatprep.subr.bf16.mxu0 0
  %875 = vmatpush1.bf16.msra.mxu0 0
  %876 = vmatprep.subr.bf16.mxu0 0
  %877 = vmatpush1.bf16.msra.mxu0 0
  %878 = vmatprep.mubr.bf16.mxu0 0
  %879 = vmatmul.mubr.bf16.gmra.mrb[0].mxu0 %v187
  %v880 = vpop.f32.mrb[0].mxu0
  %v881 = vadd.f32 0.0, %v880
  %v882 = vpop.f32.mrb[0].mxu0
  %v883 = vadd.f32 0.0, %v882
  %v884 = vpop.f32.mrb[0].mxu0
  %v885 = vpop.f32.mrb[0].mxu0
  %886 = vdwg.mxu0
  %887 = vmatprep.subr.bf16.mxu0 %v579
  %888 = vmatpush1.bf16.msra.mxu0 %v578
  %889 = vmatprep.subr.bf16.mxu0 %v591
  %890 = vmatpush1.bf16.msra.mxu0 %v590
  %891 = vmatprep.subr.bf16.mxu0 %v603
  %892 = vmatpush1.bf16.msra.mxu0 %v602
  %893 = vmatprep.subr.bf16.mxu0 %v615
  %894 = vmatpush1.bf16.msra.mxu0 %v614
  %895 = vmatprep.subr.bf16.mxu0 %v627
  %896 = vmatpush1.bf16.msra.mxu0 %v626
  %897 = vmatprep.subr.bf16.mxu0 %v639
  %898 = vmatpush1.bf16.msra.mxu0 %v638
  %899 = vmatprep.subr.bf16.mxu0 %v651
  %900 = vmatpush1.bf16.msra.mxu0 %v650
  %901 = vmatprep.subr.bf16.mxu0 %v663
  %902 = vmatpush1.bf16.msra.mxu0 %v662
  %903 = vmatprep.subr.bf16.mxu0 0
  %904 = vmatpush1.bf16.msra.mxu0 0
  %905 = vmatprep.subr.bf16.mxu0 0
  %906 = vmatpush1.bf16.msra.mxu0 0
  %907 = vmatprep.subr.bf16.mxu0 0
  %908 = vmatpush1.bf16.msra.mxu0 0
  %909 = vmatprep.subr.bf16.mxu0 0
  %910 = vmatpush1.bf16.msra.mxu0 0
  %911 = vmatprep.subr.bf16.mxu0 0
  %912 = vmatpush1.bf16.msra.mxu0 0
  %913 = vmatprep.subr.bf16.mxu0 0
  %914 = vmatpush1.bf16.msra.mxu0 0
  %915 = vmatprep.subr.bf16.mxu0 0
  %916 = vmatpush1.bf16.msra.mxu0 0
  %917 = vmatprep.subr.bf16.mxu0 0
  %918 = vmatpush1.bf16.msra.mxu0 0
  %919 = vmatprep.mubr.bf16.mxu0 0
  %920 = vmatmul.mubr.bf16.gmra.mrb[0].mxu0 %v187
  %v921 = vpop.f32.mrb[0].mxu0
  %v922 = vadd.f32 0.0, %v921
  %v923 = vpop.f32.mrb[0].mxu0
  %v924 = vadd.f32 0.0, %v923
  %v925 = vpop.f32.mrb[0].mxu0
  %v926 = vpop.f32.mrb[0].mxu0
  %927 = vdwg.mxu0
  %928 = vmatprep.subr.bf16.mxu0 %v581
  %929 = vmatpush1.bf16.msra.mxu0 %v580
  %930 = vmatprep.subr.bf16.mxu0 %v593
  %931 = vmatpush1.bf16.msra.mxu0 %v592
  %932 = vmatprep.subr.bf16.mxu0 %v605
  %933 = vmatpush1.bf16.msra.mxu0 %v604
  %934 = vmatprep.subr.bf16.mxu0 %v617
  %935 = vmatpush1.bf16.msra.mxu0 %v616
  %936 = vmatprep.subr.bf16.mxu0 %v629
  %937 = vmatpush1.bf16.msra.mxu0 %v628
  %938 = vmatprep.subr.bf16.mxu0 %v641
  %939 = vmatpush1.bf16.msra.mxu0 %v640
  %940 = vmatprep.subr.bf16.mxu0 %v653
  %941 = vmatpush1.bf16.msra.mxu0 %v652
  %942 = vmatprep.subr.bf16.mxu0 %v665
  %943 = vmatpush1.bf16.msra.mxu0 %v664
  %944 = vmatprep.subr.bf16.mxu0 0
  %945 = vmatpush1.bf16.msra.mxu0 0
  %946 = vmatprep.subr.bf16.mxu0 0
  %947 = vmatpush1.bf16.msra.mxu0 0
  %948 = vmatprep.subr.bf16.mxu0 0
  %949 = vmatpush1.bf16.msra.mxu0 0
  %950 = vmatprep.subr.bf16.mxu0 0
  %951 = vmatpush1.bf16.msra.mxu0 0
  %952 = vmatprep.subr.bf16.mxu0 0
  %953 = vmatpush1.bf16.msra.mxu0 0
  %954 = vmatprep.subr.bf16.mxu0 0
  %955 = vmatpush1.bf16.msra.mxu0 0
  %956 = vmatprep.subr.bf16.mxu0 0
  %957 = vmatpush1.bf16.msra.mxu0 0
  %958 = vmatprep.subr.bf16.mxu0 0
  %959 = vmatpush1.bf16.msra.mxu0 0
  %960 = vmatprep.mubr.bf16.mxu0 0
  %961 = vmatmul.mubr.bf16.gmra.mrb[0].mxu0 %v187
  %v962 = vpop.f32.mrb[0].mxu0
  %v963 = vadd.f32 0.0, %v962
  %v964 = vpop.f32.mrb[0].mxu0
  %v965 = vadd.f32 0.0, %v964
  %v966 = vpop.f32.mrb[0].mxu0
  %v967 = vpop.f32.mrb[0].mxu0
  %968 = vdwg.mxu0
  %969 = vmatprep.subr.bf16.mxu0 %v583
  %970 = vmatpush1.bf16.msra.mxu0 %v582
  %971 = vmatprep.subr.bf16.mxu0 %v595
  %972 = vmatpush1.bf16.msra.mxu0 %v594
  %973 = vmatprep.subr.bf16.mxu0 %v607
  %974 = vmatpush1.bf16.msra.mxu0 %v606
  %975 = vmatprep.subr.bf16.mxu0 %v619
  %976 = vmatpush1.bf16.msra.mxu0 %v618
  %977 = vmatprep.subr.bf16.mxu0 %v631
  %978 = vmatpush1.bf16.msra.mxu0 %v630
  %979 = vmatprep.subr.bf16.mxu0 %v643
  %980 = vmatpush1.bf16.msra.mxu0 %v642
  %981 = vmatprep.subr.bf16.mxu0 %v655
  %982 = vmatpush1.bf16.msra.mxu0 %v654
  %983 = vmatprep.subr.bf16.mxu0 %v667
  %984 = vmatpush1.bf16.msra.mxu0 %v666
  %985 = vmatprep.subr.bf16.mxu0 0
  %986 = vmatpush1.bf16.msra.mxu0 0
  %987 = vmatprep.subr.bf16.mxu0 0
  %988 = vmatpush1.bf16.msra.mxu0 0
  %989 = vmatprep.subr.bf16.mxu0 0
  %990 = vmatpush1.bf16.msra.mxu0 0
  %991 = vmatprep.subr.bf16.mxu0 0
  %992 = vmatpush1.bf16.msra.mxu0 0
  %993 = vmatprep.subr.bf16.mxu0 0
  %994 = vmatpush1.bf16.msra.mxu0 0
  %995 = vmatprep.subr.bf16.mxu0 0
  %996 = vmatpush1.bf16.msra.mxu0 0
  %997 = vmatprep.subr.bf16.mxu0 0
  %998 = vmatpush1.bf16.msra.mxu0 0
  %999 = vmatprep.subr.bf16.mxu0 0
  %1000 = vmatpush1.bf16.msra.mxu0 0
  %1001 = vmatprep.mubr.bf16.mxu0 0
  %1002 = vmatmul.mubr.bf16.gmra.mrb[0].mxu0 %v187
  %v1003 = vpop.f32.mrb[0].mxu0
  %v1004 = vadd.f32 0.0, %v1003
  %v1005 = vpop.f32.mrb[0].mxu0
  %v1006 = vadd.f32 0.0, %v1005
  %v1007 = vpop.f32.mrb[0].mxu0
  %v1008 = vpop.f32.mrb[0].mxu0
  %1009 = vdwg.mxu0
  %vm1010 = vcmask 1041408
  %v1011 = vsel %vm1010, %v799, 0.0
  %v1012 = vrot.slane %v1011, 4
  %v1013 = vadd.f32 %v1011, %v1012
  %v1014 = vrot.slane %v1013, 2
  %v1015 = vadd.f32 %v1013, %v1014
  %v1016 = vrot.slane %v1015, 1
  %v1017 = vadd.f32 %v1015, %v1016
  %v1018 = vsel %vm1010, %v801, 0.0
  %v1019 = vrot.slane %v1018, 4
  %v1020 = vadd.f32 %v1018, %v1019
  %v1021 = vrot.slane %v1020, 2
  %v1022 = vadd.f32 %v1020, %v1021
  %v1023 = vrot.slane %v1022, 1
  %v1024 = vadd.f32 %v1022, %v1023
  %v1025 = vsel %vm1010, %v840, 0.0
  %v1026 = vrot.slane %v1025, 4
  %v1027 = vadd.f32 %v1025, %v1026
  %v1028 = vrot.slane %v1027, 2
  %v1029 = vadd.f32 %v1027, %v1028
  %v1030 = vrot.slane %v1029, 1
  %v1031 = vadd.f32 %v1029, %v1030
  %v1032 = vsel %vm1010, %v842, 0.0
  %v1033 = vrot.slane %v1032, 4
  %v1034 = vadd.f32 %v1032, %v1033
  %v1035 = vrot.slane %v1034, 2
  %v1036 = vadd.f32 %v1034, %v1035
  %v1037 = vrot.slane %v1036, 1
  %v1038 = vadd.f32 %v1036, %v1037
  %v1039 = vsel %vm1010, %v881, 0.0
  %v1040 = vrot.slane %v1039, 4
  %v1041 = vadd.f32 %v1039, %v1040
  %v1042 = vrot.slane %v1041, 2
  %v1043 = vadd.f32 %v1041, %v1042
  %v1044 = vrot.slane %v1043, 1
  %v1045 = vadd.f32 %v1043, %v1044
  %v1046 = vsel %vm1010, %v883, 0.0
  %v1047 = vrot.slane %v1046, 4
  %v1048 = vadd.f32 %v1046, %v1047
  %v1049 = vrot.slane %v1048, 2
  %v1050 = vadd.f32 %v1048, %v1049
  %v1051 = vrot.slane %v1050, 1
  %v1052 = vadd.f32 %v1050, %v1051
  %v1053 = vsel %vm1010, %v922, 0.0
  %v1054 = vrot.slane %v1053, 4
  %v1055 = vadd.f32 %v1053, %v1054
  %v1056 = vrot.slane %v1055, 2
  %v1057 = vadd.f32 %v1055, %v1056
  %v1058 = vrot.slane %v1057, 1
  %v1059 = vadd.f32 %v1057, %v1058
  %v1060 = vsel %vm1010, %v924, 0.0
  %v1061 = vrot.slane %v1060, 4
  %v1062 = vadd.f32 %v1060, %v1061
  %v1063 = vrot.slane %v1062, 2
  %v1064 = vadd.f32 %v1062, %v1063
  %v1065 = vrot.slane %v1064, 1
  %v1066 = vadd.f32 %v1064, %v1065
  %v1067 = vsel %vm1010, %v963, 0.0
  %v1068 = vrot.slane %v1067, 4
  %v1069 = vadd.f32 %v1067, %v1068
  %v1070 = vrot.slane %v1069, 2
  %v1071 = vadd.f32 %v1069, %v1070
  %v1072 = vrot.slane %v1071, 1
  %v1073 = vadd.f32 %v1071, %v1072
  %v1074 = vsel %vm1010, %v965, 0.0
  %v1075 = vrot.slane %v1074, 4
  %v1076 = vadd.f32 %v1074, %v1075
  %v1077 = vrot.slane %v1076, 2
  %v1078 = vadd.f32 %v1076, %v1077
  %v1079 = vrot.slane %v1078, 1
  %v1080 = vadd.f32 %v1078, %v1079
  %v1081 = vsel %vm1010, %v1004, 0.0
  %v1082 = vrot.slane %v1081, 4
  %v1083 = vadd.f32 %v1081, %v1082
  %v1084 = vrot.slane %v1083, 2
  %v1085 = vadd.f32 %v1083, %v1084
  %v1086 = vrot.slane %v1085, 1
  %v1087 = vadd.f32 %v1085, %v1086
  %v1088 = vsel %vm1010, %v1006, 0.0
  %v1089 = vrot.slane %v1088, 4
  %v1090 = vadd.f32 %v1088, %v1089
  %v1091 = vrot.slane %v1090, 2
  %v1092 = vadd.f32 %v1090, %v1091
  %v1093 = vrot.slane %v1092, 1
  %v1094 = vadd.f32 %v1092, %v1093
  %v1095 = vmul.f32 %v799, %v799
  %v1096 = vmul.f32 %v801, %v801
  %v1097 = vmul.f32 %v840, %v840
  %v1098 = vmul.f32 %v842, %v842
  %v1099 = vmul.f32 %v881, %v881
  %v1100 = vmul.f32 %v883, %v883
  %v1101 = vmul.f32 %v922, %v922
  %v1102 = vmul.f32 %v924, %v924
  %v1103 = vmul.f32 %v963, %v963
  %v1104 = vmul.f32 %v965, %v965
  %v1105 = vmul.f32 %v1004, %v1004
  %v1106 = vmul.f32 %v1006, %v1006
  %v1107 = vsel %vm1010, %v1095, 0.0
  %v1108 = vrot.slane %v1107, 4
  %v1109 = vadd.f32 %v1107, %v1108
  %v1110 = vrot.slane %v1109, 2
  %v1111 = vadd.f32 %v1109, %v1110
  %v1112 = vrot.slane %v1111, 1
  %v1113 = vadd.f32 %v1111, %v1112
  %v1114 = vsel %vm1010, %v1096, 0.0
  %v1115 = vrot.slane %v1114, 4
  %v1116 = vadd.f32 %v1114, %v1115
  %v1117 = vrot.slane %v1116, 2
  %v1118 = vadd.f32 %v1116, %v1117
  %v1119 = vrot.slane %v1118, 1
  %v1120 = vadd.f32 %v1118, %v1119
  %v1121 = vsel %vm1010, %v1097, 0.0
  %v1122 = vrot.slane %v1121, 4
  %v1123 = vadd.f32 %v1121, %v1122
  %v1124 = vrot.slane %v1123, 2
  %v1125 = vadd.f32 %v1123, %v1124
  %v1126 = vrot.slane %v1125, 1
  %v1127 = vadd.f32 %v1125, %v1126
  %v1128 = vsel %vm1010, %v1098, 0.0
  %v1129 = vrot.slane %v1128, 4
  %v1130 = vadd.f32 %v1128, %v1129
  %v1131 = vrot.slane %v1130, 2
  %v1132 = vadd.f32 %v1130, %v1131
  %v1133 = vrot.slane %v1132, 1
  %v1134 = vadd.f32 %v1132, %v1133
  %v1135 = vsel %vm1010, %v1099, 0.0
  %v1136 = vrot.slane %v1135, 4
  %v1137 = vadd.f32 %v1135, %v1136
  %v1138 = vrot.slane %v1137, 2
  %v1139 = vadd.f32 %v1137, %v1138
  %v1140 = vrot.slane %v1139, 1
  %v1141 = vadd.f32 %v1139, %v1140
  %v1142 = vsel %vm1010, %v1100, 0.0
  %v1143 = vrot.slane %v1142, 4
  %v1144 = vadd.f32 %v1142, %v1143
  %v1145 = vrot.slane %v1144, 2
  %v1146 = vadd.f32 %v1144, %v1145
  %v1147 = vrot.slane %v1146, 1
  %v1148 = vadd.f32 %v1146, %v1147
  %v1149 = vsel %vm1010, %v1101, 0.0
  %v1150 = vrot.slane %v1149, 4
  %v1151 = vadd.f32 %v1149, %v1150
  %v1152 = vrot.slane %v1151, 2
  %v1153 = vadd.f32 %v1151, %v1152
  %v1154 = vrot.slane %v1153, 1
  %v1155 = vadd.f32 %v1153, %v1154
  %v1156 = vsel %vm1010, %v1102, 0.0
  %v1157 = vrot.slane %v1156, 4
  %v1158 = vadd.f32 %v1156, %v1157
  %v1159 = vrot.slane %v1158, 2
  %v1160 = vadd.f32 %v1158, %v1159
  %v1161 = vrot.slane %v1160, 1
  %v1162 = vadd.f32 %v1160, %v1161
  %v1163 = vsel %vm1010, %v1103, 0.0
  %v1164 = vrot.slane %v1163, 4
  %v1165 = vadd.f32 %v1163, %v1164
  %v1166 = vrot.slane %v1165, 2
  %v1167 = vadd.f32 %v1165, %v1166
  %v1168 = vrot.slane %v1167, 1
  %v1169 = vadd.f32 %v1167, %v1168
  %v1170 = vsel %vm1010, %v1104, 0.0
  %v1171 = vrot.slane %v1170, 4
  %v1172 = vadd.f32 %v1170, %v1171
  %v1173 = vrot.slane %v1172, 2
  %v1174 = vadd.f32 %v1172, %v1173
  %v1175 = vrot.slane %v1174, 1
  %v1176 = vadd.f32 %v1174, %v1175
  %v1177 = vsel %vm1010, %v1105, 0.0
  %v1178 = vrot.slane %v1177, 4
  %v1179 = vadd.f32 %v1177, %v1178
  %v1180 = vrot.slane %v1179, 2
  %v1181 = vadd.f32 %v1179, %v1180
  %v1182 = vrot.slane %v1181, 1
  %v1183 = vadd.f32 %v1181, %v1182
  %v1184 = vsel %vm1010, %v1106, 0.0
  %v1185 = vrot.slane %v1184, 4
  %v1186 = vadd.f32 %v1184, %v1185
  %v1187 = vrot.slane %v1186, 2
  %v1188 = vadd.f32 %v1186, %v1187
  %v1189 = vrot.slane %v1188, 1
  %v1190 = vadd.f32 %v1188, %v1189
  %v1191 = vld [vmem:[%s4] sm:$0xf]
  %v1192 = vld [vmem:[%s4 + $0x4] sm:$0xf]
  %v1193 = vld [vmem:[%s4 + $0x8] sm:$0xf]
  %v1194 = vld [vmem:[%s4 + $0xc] sm:$0xf]
  %v1195 = vld [vmem:[%s4 + $0x10] sm:$0xf]
  %v1196 = vld [vmem:[%s4 + $0x14] sm:$0xf]
  %v1197 = vld [vmem:[%s4 + $0x18] sm:$0xf]
  %v1198 = vld [vmem:[%s4 + $0x1c] sm:$0xf]
  %v1199 = vld [vmem:[%s4 + $0x20] sm:$0xf]
  %v1200 = vld [vmem:[%s4 + $0x24] sm:$0xf]
  %v1201 = vld [vmem:[%s4 + $0x28] sm:$0xf]
  %v1202 = vld [vmem:[%s4 + $0x2c] sm:$0xf]
  %v1203 = vld [vmem:[%s4 + $0x30] sm:$0xf]
  %v1204 = vld [vmem:[%s4 + $0x34] sm:$0xf]
  %v1205 = vld [vmem:[%s4 + $0x38] sm:$0xf]
  %v1206 = vld [vmem:[%s4 + $0x3c] sm:$0xf]
  %v1207 = vld [vmem:[%s4 + $0x40] sm:$0xf]
  %v1208 = vld [vmem:[%s4 + $0x44] sm:$0xf]
  %v1209 = vld [vmem:[%s4 + $0x48] sm:$0xf]
  %v1210 = vld [vmem:[%s4 + $0x4c] sm:$0xf]
  %v1211 = vld [vmem:[%s4 + $0x50] sm:$0xf]
  %v1212 = vld [vmem:[%s4 + $0x54] sm:$0xf]
  %v1213 = vld [vmem:[%s4 + $0x58] sm:$0xf]
  %v1214 = vld [vmem:[%s4 + $0x5c] sm:$0xf]
  %v1215 = vld [vmem:[%s4 + $0x60] sm:$0xf]
  %v1216 = vld [vmem:[%s4 + $0x64] sm:$0xf]
  %v1217 = vld [vmem:[%s4 + $0x68] sm:$0xf]
  %v1218 = vld [vmem:[%s4 + $0x6c] sm:$0xf]
  %v1219 = vld [vmem:[%s4 + $0x70] sm:$0xf]
  %v1220 = vld [vmem:[%s4 + $0x74] sm:$0xf]
  %v1221 = vld [vmem:[%s4 + $0x78] sm:$0xf]
  %v1222 = vld [vmem:[%s4 + $0x7c] sm:$0xf]
  %v1223 = vld [vmem:[%s4 + $0x80] sm:$0xf]
  %v1224 = vld [vmem:[%s4 + $0x84] sm:$0xf]
  %v1225 = vld [vmem:[%s4 + $0x88] sm:$0xf]
  %v1226 = vld [vmem:[%s4 + $0x8c] sm:$0xf]
  %v1227 = vld [vmem:[%s4 + $0x90] sm:$0xf]
  %v1228 = vld [vmem:[%s4 + $0x94] sm:$0xf]
  %v1229 = vld [vmem:[%s4 + $0x98] sm:$0xf]
  %v1230 = vld [vmem:[%s4 + $0x9c] sm:$0xf]
  %v1231 = vld [vmem:[%s4 + $0xa0] sm:$0xf]
  %v1232 = vld [vmem:[%s4 + $0xa4] sm:$0xf]
  %v1233 = vld [vmem:[%s4 + $0xa8] sm:$0xf]
  %v1234 = vld [vmem:[%s4 + $0xac] sm:$0xf]
  %v1235 = vld [vmem:[%s4 + $0xb0] sm:$0xf]
  %v1236 = vld [vmem:[%s4 + $0xb4] sm:$0xf]
  %v1237 = vld [vmem:[%s4 + $0xb8] sm:$0xf]
  %v1238 = vld [vmem:[%s4 + $0xbc] sm:$0xf]
  %v1239 = vld [vmem:[%s4 + $0xc0] sm:$0xf]
  %v1240 = vld [vmem:[%s4 + $0xc4] sm:$0xf]
  %v1241 = vld [vmem:[%s4 + $0xc8] sm:$0xf]
  %v1242 = vld [vmem:[%s4 + $0xcc] sm:$0xf]
  %v1243 = vld [vmem:[%s4 + $0xd0] sm:$0xf]
  %v1244 = vld [vmem:[%s4 + $0xd4] sm:$0xf]
  %v1245 = vld [vmem:[%s4 + $0xd8] sm:$0xf]
  %v1246 = vld [vmem:[%s4 + $0xdc] sm:$0xf]
  %v1247 = vld [vmem:[%s4 + $0xe0] sm:$0xf]
  %v1248 = vld [vmem:[%s4 + $0xe4] sm:$0xf]
  %v1249 = vld [vmem:[%s4 + $0xe8] sm:$0xf]
  %v1250 = vld [vmem:[%s4 + $0xec] sm:$0xf]
  %v1251 = vld [vmem:[%s4 + $0xf0] sm:$0xf]
  %v1252 = vld [vmem:[%s4 + $0xf4] sm:$0xf]
  %v1253 = vld [vmem:[%s4 + $0xf8] sm:$0xf]
  %v1254 = vld [vmem:[%s4 + $0xfc] sm:$0xf]
  %v1255 = vld [vmem:[%s4 + $0x100] sm:$0xf]
  %v1256 = vld [vmem:[%s4 + $0x104] sm:$0xf]
  %v1257 = vld [vmem:[%s4 + $0x108] sm:$0xf]
  %v1258 = vld [vmem:[%s4 + $0x10c] sm:$0xf]
  %v1259 = vld [vmem:[%s4 + $0x110] sm:$0xf]
  %v1260 = vld [vmem:[%s4 + $0x114] sm:$0xf]
  %v1261 = vld [vmem:[%s4 + $0x118] sm:$0xf]
  %v1262 = vld [vmem:[%s4 + $0x11c] sm:$0xf]
  %v1263 = vld [vmem:[%s4 + $0x120] sm:$0xf]
  %v1264 = vld [vmem:[%s4 + $0x124] sm:$0xf]
  %v1265 = vld [vmem:[%s4 + $0x128] sm:$0xf]
  %v1266 = vld [vmem:[%s4 + $0x12c] sm:$0xf]
  %v1267 = vld [vmem:[%s4 + $0x130] sm:$0xf]
  %v1268 = vld [vmem:[%s4 + $0x134] sm:$0xf]
  %v1269 = vld [vmem:[%s4 + $0x138] sm:$0xf]
  %v1270 = vld [vmem:[%s4 + $0x13c] sm:$0xf]
  %v1271 = vld [vmem:[%s4 + $0x140] sm:$0xf]
  %v1272 = vld [vmem:[%s4 + $0x144] sm:$0xf]
  %v1273 = vld [vmem:[%s4 + $0x148] sm:$0xf]
  %v1274 = vld [vmem:[%s4 + $0x14c] sm:$0xf]
  %v1275 = vld [vmem:[%s4 + $0x150] sm:$0xf]
  %v1276 = vld [vmem:[%s4 + $0x154] sm:$0xf]
  %v1277 = vld [vmem:[%s4 + $0x158] sm:$0xf]
  %v1278 = vld [vmem:[%s4 + $0x15c] sm:$0xf]
  %v1279 = vld [vmem:[%s4 + $0x160] sm:$0xf]
  %v1280 = vld [vmem:[%s4 + $0x164] sm:$0xf]
  %v1281 = vld [vmem:[%s4 + $0x168] sm:$0xf]
  %v1282 = vld [vmem:[%s4 + $0x16c] sm:$0xf]
  %v1283 = vld [vmem:[%s4 + $0x170] sm:$0xf]
  %v1284 = vld [vmem:[%s4 + $0x174] sm:$0xf]
  %v1285 = vld [vmem:[%s4 + $0x178] sm:$0xf]
  %v1286 = vld [vmem:[%s4 + $0x17c] sm:$0xf]
  %v1287 = vld [vmem:[%s4 + $0x180] sm:$0xf]
  %v1288 = vld [vmem:[%s4 + $0x184] sm:$0xf]
  %v1289 = vld [vmem:[%s4 + $0x188] sm:$0xf]
  %v1290 = vld [vmem:[%s4 + $0x18c] sm:$0xf]
  %v1291 = vld [vmem:[%s4 + $0x190] sm:$0xf]
  %v1292 = vld [vmem:[%s4 + $0x194] sm:$0xf]
  %v1293 = vld [vmem:[%s4 + $0x198] sm:$0xf]
  %v1294 = vld [vmem:[%s4 + $0x19c] sm:$0xf]
  %v1295 = vld [vmem:[%s4 + $0x1a0] sm:$0xf]
  %v1296 = vld [vmem:[%s4 + $0x1a4] sm:$0xf]
  %v1297 = vld [vmem:[%s4 + $0x1a8] sm:$0xf]
  %v1298 = vld [vmem:[%s4 + $0x1ac] sm:$0xf]
  %v1299 = vld [vmem:[%s4 + $0x1b0] sm:$0xf]
  %v1300 = vld [vmem:[%s4 + $0x1b4] sm:$0xf]
  %v1301 = vld [vmem:[%s4 + $0x1b8] sm:$0xf]
  %v1302 = vld [vmem:[%s4 + $0x1bc] sm:$0xf]
  %v1303 = vld [vmem:[%s4 + $0x1c0] sm:$0xf]
  %v1304 = vld [vmem:[%s4 + $0x1c4] sm:$0xf]
  %v1305 = vld [vmem:[%s4 + $0x1c8] sm:$0xf]
  %v1306 = vld [vmem:[%s4 + $0x1cc] sm:$0xf]
  %v1307 = vld [vmem:[%s4 + $0x1d0] sm:$0xf]
  %v1308 = vld [vmem:[%s4 + $0x1d4] sm:$0xf]
  %v1309 = vld [vmem:[%s4 + $0x1d8] sm:$0xf]
  %v1310 = vld [vmem:[%s4 + $0x1dc] sm:$0xf]
  %v1311 = vld [vmem:[%s4 + $0x1e0] sm:$0xf]
  %v1312 = vld [vmem:[%s4 + $0x1e4] sm:$0xf]
  %v1313 = vld [vmem:[%s4 + $0x1e8] sm:$0xf]
  %v1314 = vld [vmem:[%s4 + $0x1ec] sm:$0xf]
  %v1315 = vld [vmem:[%s4 + $0x1f0] sm:$0xf]
  %v1316 = vld [vmem:[%s4 + $0x1f4] sm:$0xf]
  %v1317 = vld [vmem:[%s4 + $0x1f8] sm:$0xf]
  %v1318 = vld [vmem:[%s4 + $0x1fc] sm:$0xf]
  %v1319 = vld [vmem:[%s4 + $0x200] sm:$0xf]
  %v1320 = vld [vmem:[%s4 + $0x204] sm:$0xf]
  %v1321 = vld [vmem:[%s4 + $0x208] sm:$0xf]
  %v1322 = vld [vmem:[%s4 + $0x20c] sm:$0xf]
  %v1323 = vld [vmem:[%s4 + $0x210] sm:$0xf]
  %v1324 = vld [vmem:[%s4 + $0x214] sm:$0xf]
  %v1325 = vld [vmem:[%s4 + $0x218] sm:$0xf]
  %v1326 = vld [vmem:[%s4 + $0x21c] sm:$0xf]
  %v1327 = vld [vmem:[%s4 + $0x220] sm:$0xf]
  %v1328 = vld [vmem:[%s4 + $0x224] sm:$0xf]
  %v1329 = vld [vmem:[%s4 + $0x228] sm:$0xf]
  %v1330 = vld [vmem:[%s4 + $0x22c] sm:$0xf]
  %v1331 = vld [vmem:[%s4 + $0x230] sm:$0xf]
  %v1332 = vld [vmem:[%s4 + $0x234] sm:$0xf]
  %v1333 = vld [vmem:[%s4 + $0x238] sm:$0xf]
  %v1334 = vld [vmem:[%s4 + $0x23c] sm:$0xf]
  %v1335 = vld [vmem:[%s4 + $0x240] sm:$0xf]
  %v1336 = vld [vmem:[%s4 + $0x244] sm:$0xf]
  %v1337 = vld [vmem:[%s4 + $0x248] sm:$0xf]
  %v1338 = vld [vmem:[%s4 + $0x24c] sm:$0xf]
  %v1339 = vld [vmem:[%s4 + $0x250] sm:$0xf]
  %v1340 = vld [vmem:[%s4 + $0x254] sm:$0xf]
  %v1341 = vld [vmem:[%s4 + $0x258] sm:$0xf]
  %v1342 = vld [vmem:[%s4 + $0x25c] sm:$0xf]
  %v1343 = vld [vmem:[%s4 + $0x260] sm:$0xf]
  %v1344 = vld [vmem:[%s4 + $0x264] sm:$0xf]
  %v1345 = vld [vmem:[%s4 + $0x268] sm:$0xf]
  %v1346 = vld [vmem:[%s4 + $0x26c] sm:$0xf]
  %v1347 = vld [vmem:[%s4 + $0x270] sm:$0xf]
  %v1348 = vld [vmem:[%s4 + $0x274] sm:$0xf]
  %v1349 = vld [vmem:[%s4 + $0x278] sm:$0xf]
  %v1350 = vld [vmem:[%s4 + $0x27c] sm:$0xf]
  %v1351 = vld [vmem:[%s4 + $0x280] sm:$0xf]
  %v1352 = vld [vmem:[%s4 + $0x284] sm:$0xf]
  %v1353 = vld [vmem:[%s4 + $0x288] sm:$0xf]
  %v1354 = vld [vmem:[%s4 + $0x28c] sm:$0xf]
  %v1355 = vld [vmem:[%s4 + $0x290] sm:$0xf]
  %v1356 = vld [vmem:[%s4 + $0x294] sm:$0xf]
  %v1357 = vld [vmem:[%s4 + $0x298] sm:$0xf]
  %v1358 = vld [vmem:[%s4 + $0x29c] sm:$0xf]
  %v1359 = vld [vmem:[%s4 + $0x2a0] sm:$0xf]
  %v1360 = vld [vmem:[%s4 + $0x2a4] sm:$0xf]
  %v1361 = vld [vmem:[%s4 + $0x2a8] sm:$0xf]
  %v1362 = vld [vmem:[%s4 + $0x2ac] sm:$0xf]
  %v1363 = vld [vmem:[%s4 + $0x2b0] sm:$0xf]
  %v1364 = vld [vmem:[%s4 + $0x2b4] sm:$0xf]
  %v1365 = vld [vmem:[%s4 + $0x2b8] sm:$0xf]
  %v1366 = vld [vmem:[%s4 + $0x2bc] sm:$0xf]
  %v1367 = vld [vmem:[%s4 + $0x2c0] sm:$0xf]
  %v1368 = vld [vmem:[%s4 + $0x2c4] sm:$0xf]
  %v1369 = vld [vmem:[%s4 + $0x2c8] sm:$0xf]
  %v1370 = vld [vmem:[%s4 + $0x2cc] sm:$0xf]
  %v1371 = vld [vmem:[%s4 + $0x2d0] sm:$0xf]
  %v1372 = vld [vmem:[%s4 + $0x2d4] sm:$0xf]
  %v1373 = vld [vmem:[%s4 + $0x2d8] sm:$0xf]
  %v1374 = vld [vmem:[%s4 + $0x2dc] sm:$0xf]
  %v1375 = vld [vmem:[%s4 + $0x2e0] sm:$0xf]
  %v1376 = vld [vmem:[%s4 + $0x2e4] sm:$0xf]
  %v1377 = vld [vmem:[%s4 + $0x2e8] sm:$0xf]
  %v1378 = vld [vmem:[%s4 + $0x2ec] sm:$0xf]
  %v1379 = vld [vmem:[%s4 + $0x2f0] sm:$0xf]
  %v1380 = vld [vmem:[%s4 + $0x2f4] sm:$0xf]
  %v1381 = vld [vmem:[%s4 + $0x2f8] sm:$0xf]
  %v1382 = vld [vmem:[%s4 + $0x2fc] sm:$0xf]
  %v1383 = vunpack.c.l.bf16 %v1191
  %v1384 = vunpack.c.l.bf16 %v1192
  %v1385 = vunpack.c.l.bf16 %v1193
  %v1386 = vunpack.c.l.bf16 %v1194
  %v1387 = vunpack.c.l.bf16 %v1195
  %v1388 = vunpack.c.l.bf16 %v1196
  %v1389 = vunpack.c.l.bf16 %v1197
  %v1390 = vunpack.c.l.bf16 %v1198
  %v1391 = vunpack.c.l.bf16 %v1199
  %v1392 = vunpack.c.l.bf16 %v1200
  %v1393 = vunpack.c.l.bf16 %v1201
  %v1394 = vunpack.c.l.bf16 %v1202
  %v1395 = vunpack.c.l.bf16 %v1203
  %v1396 = vunpack.c.l.bf16 %v1204
  %v1397 = vunpack.c.l.bf16 %v1205
  %v1398 = vunpack.c.l.bf16 %v1206
  %v1399 = vunpack.c.l.bf16 %v1207
  %v1400 = vunpack.c.l.bf16 %v1208
  %v1401 = vunpack.c.l.bf16 %v1209
  %v1402 = vunpack.c.l.bf16 %v1210
  %v1403 = vunpack.c.l.bf16 %v1211
  %v1404 = vunpack.c.l.bf16 %v1212
  %v1405 = vunpack.c.l.bf16 %v1213
  %v1406 = vunpack.c.l.bf16 %v1214
  %v1407 = vunpack.c.l.bf16 %v1215
  %v1408 = vunpack.c.l.bf16 %v1216
  %v1409 = vunpack.c.l.bf16 %v1217
  %v1410 = vunpack.c.l.bf16 %v1218
  %v1411 = vunpack.c.l.bf16 %v1219
  %v1412 = vunpack.c.l.bf16 %v1220
  %v1413 = vunpack.c.l.bf16 %v1221
  %v1414 = vunpack.c.l.bf16 %v1222
  %v1415 = vunpack.c.l.bf16 %v1223
  %v1416 = vunpack.c.l.bf16 %v1224
  %v1417 = vunpack.c.l.bf16 %v1225
  %v1418 = vunpack.c.l.bf16 %v1226
  %v1419 = vunpack.c.l.bf16 %v1227
  %v1420 = vunpack.c.l.bf16 %v1228
  %v1421 = vunpack.c.l.bf16 %v1229
  %v1422 = vunpack.c.l.bf16 %v1230
  %v1423 = vunpack.c.l.bf16 %v1231
  %v1424 = vunpack.c.l.bf16 %v1232
  %v1425 = vunpack.c.l.bf16 %v1233
  %v1426 = vunpack.c.l.bf16 %v1234
  %v1427 = vunpack.c.l.bf16 %v1235
  %v1428 = vunpack.c.l.bf16 %v1236
  %v1429 = vunpack.c.l.bf16 %v1237
  %v1430 = vunpack.c.l.bf16 %v1238
  %v1431 = vunpack.c.l.bf16 %v1239
  %v1432 = vunpack.c.l.bf16 %v1240
  %v1433 = vunpack.c.l.bf16 %v1241
  %v1434 = vunpack.c.l.bf16 %v1242
  %v1435 = vunpack.c.l.bf16 %v1243
  %v1436 = vunpack.c.l.bf16 %v1244
  %v1437 = vunpack.c.l.bf16 %v1245
  %v1438 = vunpack.c.l.bf16 %v1246
  %v1439 = vunpack.c.l.bf16 %v1247
  %v1440 = vunpack.c.l.bf16 %v1248
  %v1441 = vunpack.c.l.bf16 %v1249
  %v1442 = vunpack.c.l.bf16 %v1250
  %v1443 = vunpack.c.l.bf16 %v1251
  %v1444 = vunpack.c.l.bf16 %v1252
  %v1445 = vunpack.c.l.bf16 %v1253
  %v1446 = vunpack.c.l.bf16 %v1254
  %v1447 = vunpack.c.l.bf16 %v1255
  %v1448 = vunpack.c.l.bf16 %v1256
  %v1449 = vunpack.c.l.bf16 %v1257
  %v1450 = vunpack.c.l.bf16 %v1258
  %v1451 = vunpack.c.l.bf16 %v1259
  %v1452 = vunpack.c.l.bf16 %v1260
  %v1453 = vunpack.c.l.bf16 %v1261
  %v1454 = vunpack.c.l.bf16 %v1262
  %v1455 = vunpack.c.l.bf16 %v1263
  %v1456 = vunpack.c.l.bf16 %v1264
  %v1457 = vunpack.c.l.bf16 %v1265
  %v1458 = vunpack.c.l.bf16 %v1266
  %v1459 = vunpack.c.l.bf16 %v1267
  %v1460 = vunpack.c.l.bf16 %v1268
  %v1461 = vunpack.c.l.bf16 %v1269
  %v1462 = vunpack.c.l.bf16 %v1270
  %v1463 = vunpack.c.l.bf16 %v1271
  %v1464 = vunpack.c.l.bf16 %v1272
  %v1465 = vunpack.c.l.bf16 %v1273
  %v1466 = vunpack.c.l.bf16 %v1274
  %v1467 = vunpack.c.l.bf16 %v1275
  %v1468 = vunpack.c.l.bf16 %v1276
  %v1469 = vunpack.c.l.bf16 %v1277
  %v1470 = vunpack.c.l.bf16 %v1278
  %v1471 = vunpack.c.l.bf16 %v1279
  %v1472 = vunpack.c.l.bf16 %v1280
  %v1473 = vunpack.c.l.bf16 %v1281
  %v1474 = vunpack.c.l.bf16 %v1282
  %v1475 = vunpack.c.l.bf16 %v1283
  %v1476 = vunpack.c.l.bf16 %v1284
  %v1477 = vunpack.c.l.bf16 %v1285
  %v1478 = vunpack.c.l.bf16 %v1286
  %v1479 = vunpack.c.l.bf16 %v1287
  %v1480 = vunpack.c.l.bf16 %v1288
  %v1481 = vunpack.c.l.bf16 %v1289
  %v1482 = vunpack.c.l.bf16 %v1290
  %v1483 = vunpack.c.l.bf16 %v1291
  %v1484 = vunpack.c.l.bf16 %v1292
  %v1485 = vunpack.c.l.bf16 %v1293
  %v1486 = vunpack.c.l.bf16 %v1294
  %v1487 = vunpack.c.l.bf16 %v1295
  %v1488 = vunpack.c.l.bf16 %v1296
  %v1489 = vunpack.c.l.bf16 %v1297
  %v1490 = vunpack.c.l.bf16 %v1298
  %v1491 = vunpack.c.l.bf16 %v1299
  %v1492 = vunpack.c.l.bf16 %v1300
  %v1493 = vunpack.c.l.bf16 %v1301
  %v1494 = vunpack.c.l.bf16 %v1302
  %v1495 = vunpack.c.l.bf16 %v1303
  %v1496 = vunpack.c.l.bf16 %v1304
  %v1497 = vunpack.c.l.bf16 %v1305
  %v1498 = vunpack.c.l.bf16 %v1306
  %v1499 = vunpack.c.l.bf16 %v1307
  %v1500 = vunpack.c.l.bf16 %v1308
  %v1501 = vunpack.c.l.bf16 %v1309
  %v1502 = vunpack.c.l.bf16 %v1310
  %v1503 = vunpack.c.l.bf16 %v1311
  %v1504 = vunpack.c.l.bf16 %v1312
  %v1505 = vunpack.c.l.bf16 %v1313
  %v1506 = vunpack.c.l.bf16 %v1314
  %v1507 = vunpack.c.l.bf16 %v1315
  %v1508 = vunpack.c.l.bf16 %v1316
  %v1509 = vunpack.c.l.bf16 %v1317
  %v1510 = vunpack.c.l.bf16 %v1318
  %v1511 = vunpack.c.l.bf16 %v1319
  %v1512 = vunpack.c.l.bf16 %v1320
  %v1513 = vunpack.c.l.bf16 %v1321
  %v1514 = vunpack.c.l.bf16 %v1322
  %v1515 = vunpack.c.l.bf16 %v1323
  %v1516 = vunpack.c.l.bf16 %v1324
  %v1517 = vunpack.c.l.bf16 %v1325
  %v1518 = vunpack.c.l.bf16 %v1326
  %v1519 = vunpack.c.l.bf16 %v1327
  %v1520 = vunpack.c.l.bf16 %v1328
  %v1521 = vunpack.c.l.bf16 %v1329
  %v1522 = vunpack.c.l.bf16 %v1330
  %v1523 = vunpack.c.l.bf16 %v1331
  %v1524 = vunpack.c.l.bf16 %v1332
  %v1525 = vunpack.c.l.bf16 %v1333
  %v1526 = vunpack.c.l.bf16 %v1334
  %v1527 = vunpack.c.l.bf16 %v1335
  %v1528 = vunpack.c.l.bf16 %v1336
  %v1529 = vunpack.c.l.bf16 %v1337
  %v1530 = vunpack.c.l.bf16 %v1338
  %v1531 = vunpack.c.l.bf16 %v1339
  %v1532 = vunpack.c.l.bf16 %v1340
  %v1533 = vunpack.c.l.bf16 %v1341
  %v1534 = vunpack.c.l.bf16 %v1342
  %v1535 = vunpack.c.l.bf16 %v1343
  %v1536 = vunpack.c.l.bf16 %v1344
  %v1537 = vunpack.c.l.bf16 %v1345
  %v1538 = vunpack.c.l.bf16 %v1346
  %v1539 = vunpack.c.l.bf16 %v1347
  %v1540 = vunpack.c.l.bf16 %v1348
  %v1541 = vunpack.c.l.bf16 %v1349
  %v1542 = vunpack.c.l.bf16 %v1350
  %v1543 = vunpack.c.l.bf16 %v1351
  %v1544 = vunpack.c.l.bf16 %v1352
  %v1545 = vunpack.c.l.bf16 %v1353
  %v1546 = vunpack.c.l.bf16 %v1354
  %v1547 = vunpack.c.l.bf16 %v1355
  %v1548 = vunpack.c.l.bf16 %v1356
  %v1549 = vunpack.c.l.bf16 %v1357
  %v1550 = vunpack.c.l.bf16 %v1358
  %v1551 = vunpack.c.l.bf16 %v1359
  %v1552 = vunpack.c.l.bf16 %v1360
  %v1553 = vunpack.c.l.bf16 %v1361
  %v1554 = vunpack.c.l.bf16 %v1362
  %v1555 = vunpack.c.l.bf16 %v1363
  %v1556 = vunpack.c.l.bf16 %v1364
  %v1557 = vunpack.c.l.bf16 %v1365
  %v1558 = vunpack.c.l.bf16 %v1366
  %v1559 = vunpack.c.l.bf16 %v1367
  %v1560 = vunpack.c.l.bf16 %v1368
  %v1561 = vunpack.c.l.bf16 %v1369
  %v1562 = vunpack.c.l.bf16 %v1370
  %v1563 = vunpack.c.l.bf16 %v1371
  %v1564 = vunpack.c.l.bf16 %v1372
  %v1565 = vunpack.c.l.bf16 %v1373
  %v1566 = vunpack.c.l.bf16 %v1374
  %v1567 = vunpack.c.l.bf16 %v1375
  %v1568 = vunpack.c.l.bf16 %v1376
  %v1569 = vunpack.c.l.bf16 %v1377
  %v1570 = vunpack.c.l.bf16 %v1378
  %v1571 = vunpack.c.l.bf16 %v1379
  %v1572 = vunpack.c.l.bf16 %v1380
  %v1573 = vunpack.c.l.bf16 %v1381
  %v1574 = vunpack.c.l.bf16 %v1382
  %v1575 = vld [vmem:[%s5] sm:$0xff]
  %v1576 = vld [vmem:[%s5 + $0x8] sm:$0xff]
  %v1577 = vld [vmem:[%s5 + $0x10] sm:$0xff]
  %v1578 = vld [vmem:[%s5 + $0x18] sm:$0xff]
  %v1579 = vld [vmem:[%s5 + $0x20] sm:$0xff]
  %v1580 = vld [vmem:[%s5 + $0x28] sm:$0xff]
  %v1581 = vld [vmem:[%s5 + $0x30] sm:$0xff]
  %v1582 = vld [vmem:[%s5 + $0x38] sm:$0xff]
  %v1583 = vld [vmem:[%s5 + $0x40] sm:$0xff]
  %v1584 = vld [vmem:[%s5 + $0x48] sm:$0xff]
  %v1585 = vld [vmem:[%s5 + $0x50] sm:$0xff]
  %v1586 = vld [vmem:[%s5 + $0x58] sm:$0xff]
  %v1587 = vld [vmem:[%s5 + $0x60] sm:$0xff]
  %v1588 = vld [vmem:[%s5 + $0x68] sm:$0xff]
  %v1589 = vld [vmem:[%s5 + $0x70] sm:$0xff]
  %v1590 = vld [vmem:[%s5 + $0x78] sm:$0xff]
  %v1591 = vld [vmem:[%s5 + $0x80] sm:$0xff]
  %v1592 = vld [vmem:[%s5 + $0x88] sm:$0xff]
  %v1593 = vld [vmem:[%s5 + $0x90] sm:$0xff]
  %v1594 = vld [vmem:[%s5 + $0x98] sm:$0xff]
  %v1595 = vld [vmem:[%s5 + $0xa0] sm:$0xff]
  %v1596 = vld [vmem:[%s5 + $0xa8] sm:$0xff]
  %v1597 = vld [vmem:[%s5 + $0xb0] sm:$0xff]
  %v1598 = vld [vmem:[%s5 + $0xb8] sm:$0xff]
  %v1599 = vld [vmem:[%s5 + $0xc0] sm:$0xff]
  %v1600 = vld [vmem:[%s5 + $0xc8] sm:$0xff]
  %v1601 = vld [vmem:[%s5 + $0xd0] sm:$0xff]
  %v1602 = vld [vmem:[%s5 + $0xd8] sm:$0xff]
  %v1603 = vld [vmem:[%s5 + $0xe0] sm:$0xff]
  %v1604 = vld [vmem:[%s5 + $0xe8] sm:$0xff]
  %v1605 = vld [vmem:[%s5 + $0xf0] sm:$0xff]
  %v1606 = vld [vmem:[%s5 + $0xf8] sm:$0xff]
  %v1607 = vld [vmem:[%s5 + $0x100] sm:$0xff]
  %v1608 = vld [vmem:[%s5 + $0x108] sm:$0xff]
  %v1609 = vld [vmem:[%s5 + $0x110] sm:$0xff]
  %v1610 = vld [vmem:[%s5 + $0x118] sm:$0xff]
  %v1611 = vld [vmem:[%s5 + $0x120] sm:$0xff]
  %v1612 = vld [vmem:[%s5 + $0x128] sm:$0xff]
  %v1613 = vld [vmem:[%s5 + $0x130] sm:$0xff]
  %v1614 = vld [vmem:[%s5 + $0x138] sm:$0xff]
  %v1615 = vld [vmem:[%s5 + $0x140] sm:$0xff]
  %v1616 = vld [vmem:[%s5 + $0x148] sm:$0xff]
  %v1617 = vld [vmem:[%s5 + $0x150] sm:$0xff]
  %v1618 = vld [vmem:[%s5 + $0x158] sm:$0xff]
  %v1619 = vld [vmem:[%s5 + $0x160] sm:$0xff]
  %v1620 = vld [vmem:[%s5 + $0x168] sm:$0xff]
  %v1621 = vld [vmem:[%s5 + $0x170] sm:$0xff]
  %v1622 = vld [vmem:[%s5 + $0x178] sm:$0xff]
  %v1623 = vunpack.c.l.bf16 %v1575
  %v1624 = vunpack.c.h.bf16 %v1575
  %v1625 = vunpack.c.l.bf16 %v1576
  %v1626 = vunpack.c.h.bf16 %v1576
  %v1627 = vunpack.c.l.bf16 %v1577
  %v1628 = vunpack.c.h.bf16 %v1577
  %v1629 = vunpack.c.l.bf16 %v1578
  %v1630 = vunpack.c.h.bf16 %v1578
  %v1631 = vunpack.c.l.bf16 %v1579
  %v1632 = vunpack.c.h.bf16 %v1579
  %v1633 = vunpack.c.l.bf16 %v1580
  %v1634 = vunpack.c.h.bf16 %v1580
  %v1635 = vunpack.c.l.bf16 %v1581
  %v1636 = vunpack.c.h.bf16 %v1581
  %v1637 = vunpack.c.l.bf16 %v1582
  %v1638 = vunpack.c.h.bf16 %v1582
  %v1639 = vunpack.c.l.bf16 %v1583
  %v1640 = vunpack.c.h.bf16 %v1583
  %v1641 = vunpack.c.l.bf16 %v1584
  %v1642 = vunpack.c.h.bf16 %v1584
  %v1643 = vunpack.c.l.bf16 %v1585
  %v1644 = vunpack.c.h.bf16 %v1585
  %v1645 = vunpack.c.l.bf16 %v1586
  %v1646 = vunpack.c.h.bf16 %v1586
  %v1647 = vunpack.c.l.bf16 %v1587
  %v1648 = vunpack.c.h.bf16 %v1587
  %v1649 = vunpack.c.l.bf16 %v1588
  %v1650 = vunpack.c.h.bf16 %v1588
  %v1651 = vunpack.c.l.bf16 %v1589
  %v1652 = vunpack.c.h.bf16 %v1589
  %v1653 = vunpack.c.l.bf16 %v1590
  %v1654 = vunpack.c.h.bf16 %v1590
  %v1655 = vunpack.c.l.bf16 %v1591
  %v1656 = vunpack.c.h.bf16 %v1591
  %v1657 = vunpack.c.l.bf16 %v1592
  %v1658 = vunpack.c.h.bf16 %v1592
  %v1659 = vunpack.c.l.bf16 %v1593
  %v1660 = vunpack.c.h.bf16 %v1593
  %v1661 = vunpack.c.l.bf16 %v1594
  %v1662 = vunpack.c.h.bf16 %v1594
  %v1663 = vunpack.c.l.bf16 %v1595
  %v1664 = vunpack.c.h.bf16 %v1595
  %v1665 = vunpack.c.l.bf16 %v1596
  %v1666 = vunpack.c.h.bf16 %v1596
  %v1667 = vunpack.c.l.bf16 %v1597
  %v1668 = vunpack.c.h.bf16 %v1597
  %v1669 = vunpack.c.l.bf16 %v1598
  %v1670 = vunpack.c.h.bf16 %v1598
  %v1671 = vunpack.c.l.bf16 %v1599
  %v1672 = vunpack.c.h.bf16 %v1599
  %v1673 = vunpack.c.l.bf16 %v1600
  %v1674 = vunpack.c.h.bf16 %v1600
  %v1675 = vunpack.c.l.bf16 %v1601
  %v1676 = vunpack.c.h.bf16 %v1601
  %v1677 = vunpack.c.l.bf16 %v1602
  %v1678 = vunpack.c.h.bf16 %v1602
  %v1679 = vunpack.c.l.bf16 %v1603
  %v1680 = vunpack.c.h.bf16 %v1603
  %v1681 = vunpack.c.l.bf16 %v1604
  %v1682 = vunpack.c.h.bf16 %v1604
  %v1683 = vunpack.c.l.bf16 %v1605
  %v1684 = vunpack.c.h.bf16 %v1605
  %v1685 = vunpack.c.l.bf16 %v1606
  %v1686 = vunpack.c.h.bf16 %v1606
  %v1687 = vunpack.c.l.bf16 %v1607
  %v1688 = vunpack.c.h.bf16 %v1607
  %v1689 = vunpack.c.l.bf16 %v1608
  %v1690 = vunpack.c.h.bf16 %v1608
  %v1691 = vunpack.c.l.bf16 %v1609
  %v1692 = vunpack.c.h.bf16 %v1609
  %v1693 = vunpack.c.l.bf16 %v1610
  %v1694 = vunpack.c.h.bf16 %v1610
  %v1695 = vunpack.c.l.bf16 %v1611
  %v1696 = vunpack.c.h.bf16 %v1611
  %v1697 = vunpack.c.l.bf16 %v1612
  %v1698 = vunpack.c.h.bf16 %v1612
  %v1699 = vunpack.c.l.bf16 %v1613
  %v1700 = vunpack.c.h.bf16 %v1613
  %v1701 = vunpack.c.l.bf16 %v1614
  %v1702 = vunpack.c.h.bf16 %v1614
  %v1703 = vunpack.c.l.bf16 %v1615
  %v1704 = vunpack.c.h.bf16 %v1615
  %v1705 = vunpack.c.l.bf16 %v1616
  %v1706 = vunpack.c.h.bf16 %v1616
  %v1707 = vunpack.c.l.bf16 %v1617
  %v1708 = vunpack.c.h.bf16 %v1617
  %v1709 = vunpack.c.l.bf16 %v1618
  %v1710 = vunpack.c.h.bf16 %v1618
  %v1711 = vunpack.c.l.bf16 %v1619
  %v1712 = vunpack.c.h.bf16 %v1619
  %v1713 = vunpack.c.l.bf16 %v1620
  %v1714 = vunpack.c.h.bf16 %v1620
  %v1715 = vunpack.c.l.bf16 %v1621
  %v1716 = vunpack.c.h.bf16 %v1621
  %v1717 = vunpack.c.l.bf16 %v1622
  %v1718 = vunpack.c.h.bf16 %v1622
  %1719 = vmatprep.subr.mxu0 0.0
  %1720 = vmatpush1.msra.mxu0 %v1383
  %1721 = vmatprep.subr.mxu0 0.0
  %1722 = vmatpush1.msra.mxu0 %v1384
  %1723 = vmatprep.subr.mxu0 0.0
  %1724 = vmatpush1.msra.mxu0 %v1385
  %1725 = vmatprep.subr.mxu0 0.0
  %1726 = vmatpush1.msra.mxu0 %v1386
  %1727 = vmatprep.subr.mxu0 0.0
  %1728 = vmatpush1.msra.mxu0 %v1387
  %1729 = vmatprep.subr.mxu0 0.0
  %1730 = vmatpush1.msra.mxu0 %v1388
  %1731 = vmatprep.subr.mxu0 0.0
  %1732 = vmatpush1.msra.mxu0 %v1389
  %1733 = vmatprep.subr.mxu0 0.0
  %1734 = vmatpush1.msra.mxu0 %v1390
  %1735 = vmatprep.subr.mxu0 0.0
  %1736 = vmatpush1.msra.mxu0 %v1391
  %1737 = vmatprep.subr.mxu0 0.0
  %1738 = vmatpush1.msra.mxu0 %v1392
  %1739 = vmatprep.subr.mxu0 0.0
  %1740 = vmatpush1.msra.mxu0 %v1393
  %1741 = vmatprep.subr.mxu0 0.0
  %1742 = vmatpush1.msra.mxu0 %v1394
  %1743 = vmatprep.subr.mxu0 0.0
  %1744 = vmatpush1.msra.mxu0 %v1395
  %1745 = vmatprep.subr.mxu0 0.0
  %1746 = vmatpush1.msra.mxu0 %v1396
  %1747 = vmatprep.subr.mxu0 0.0
  %1748 = vmatpush1.msra.mxu0 %v1397
  %1749 = vmatprep.subr.mxu0 0.0
  %1750 = vmatpush1.msra.mxu0 %v1398
  %1751 = vmatprep.subr.mxu0 0.0
  %1752 = vmatpush1.msra.mxu0 %v1399
  %1753 = vmatprep.subr.mxu0 0.0
  %1754 = vmatpush1.msra.mxu0 %v1400
  %1755 = vmatprep.subr.mxu0 0.0
  %1756 = vmatpush1.msra.mxu0 %v1401
  %1757 = vmatprep.subr.mxu0 0.0
  %1758 = vmatpush1.msra.mxu0 %v1402
  %1759 = vmatprep.subr.mxu0 0.0
  %1760 = vmatpush1.msra.mxu0 %v1403
  %1761 = vmatprep.subr.mxu0 0.0
  %1762 = vmatpush1.msra.mxu0 %v1404
  %1763 = vmatprep.subr.mxu0 0.0
  %1764 = vmatpush1.msra.mxu0 %v1405
  %1765 = vmatprep.subr.mxu0 0.0
  %1766 = vmatpush1.msra.mxu0 %v1406
  %1767 = vmatprep.subr.mxu0 0.0
  %1768 = vmatpush1.msra.mxu0 %v1407
  %1769 = vmatprep.subr.mxu0 0.0
  %1770 = vmatpush1.msra.mxu0 %v1408
  %1771 = vmatprep.subr.mxu0 0.0
  %1772 = vmatpush1.msra.mxu0 %v1409
  %1773 = vmatprep.subr.mxu0 0.0
  %1774 = vmatpush1.msra.mxu0 %v1410
  %1775 = vmatprep.subr.mxu0 0.0
  %1776 = vmatpush1.msra.mxu0 %v1411
  %1777 = vmatprep.subr.mxu0 0.0
  %1778 = vmatpush1.msra.mxu0 %v1412
  %1779 = vmatprep.subr.mxu0 0.0
  %1780 = vmatpush1.msra.mxu0 %v1413
  %1781 = vmatprep.subr.mxu0 0.0
  %1782 = vmatpush1.msra.mxu0 %v1414
  %1783 = vmatprep.mubr.f32.mxu0 %v1024
  %1784 = vmatmul.mubr.f32.gmra.mrb[0].mxu0 %v1017
  %v1785 = vpop.f32.mrb[0].mxu0
  %v1786 = vadd.f32 0.0, %v1785
  %v1787 = vpop.f32.mrb[0].mxu0
  %1788 = vdwg.mxu0
  %1789 = vmatprep.subr.mxu0 0.0
  %1790 = vmatpush1.msra.mxu0 %v1415
  %1791 = vmatprep.subr.mxu0 0.0
  %1792 = vmatpush1.msra.mxu0 %v1416
  %1793 = vmatprep.subr.mxu0 0.0
  %1794 = vmatpush1.msra.mxu0 %v1417
  %1795 = vmatprep.subr.mxu0 0.0
  %1796 = vmatpush1.msra.mxu0 %v1418
  %1797 = vmatprep.subr.mxu0 0.0
  %1798 = vmatpush1.msra.mxu0 %v1419
  %1799 = vmatprep.subr.mxu0 0.0
  %1800 = vmatpush1.msra.mxu0 %v1420
  %1801 = vmatprep.subr.mxu0 0.0
  %1802 = vmatpush1.msra.mxu0 %v1421
  %1803 = vmatprep.subr.mxu0 0.0
  %1804 = vmatpush1.msra.mxu0 %v1422
  %1805 = vmatprep.subr.mxu0 0.0
  %1806 = vmatpush1.msra.mxu0 %v1423
  %1807 = vmatprep.subr.mxu0 0.0
  %1808 = vmatpush1.msra.mxu0 %v1424
  %1809 = vmatprep.subr.mxu0 0.0
  %1810 = vmatpush1.msra.mxu0 %v1425
  %1811 = vmatprep.subr.mxu0 0.0
  %1812 = vmatpush1.msra.mxu0 %v1426
  %1813 = vmatprep.subr.mxu0 0.0
  %1814 = vmatpush1.msra.mxu0 %v1427
  %1815 = vmatprep.subr.mxu0 0.0
  %1816 = vmatpush1.msra.mxu0 %v1428
  %1817 = vmatprep.subr.mxu0 0.0
  %1818 = vmatpush1.msra.mxu0 %v1429
  %1819 = vmatprep.subr.mxu0 0.0
  %1820 = vmatpush1.msra.mxu0 %v1430
  %1821 = vmatprep.subr.mxu0 0.0
  %1822 = vmatpush1.msra.mxu0 %v1431
  %1823 = vmatprep.subr.mxu0 0.0
  %1824 = vmatpush1.msra.mxu0 %v1432
  %1825 = vmatprep.subr.mxu0 0.0
  %1826 = vmatpush1.msra.mxu0 %v1433
  %1827 = vmatprep.subr.mxu0 0.0
  %1828 = vmatpush1.msra.mxu0 %v1434
  %1829 = vmatprep.subr.mxu0 0.0
  %1830 = vmatpush1.msra.mxu0 %v1435
  %1831 = vmatprep.subr.mxu0 0.0
  %1832 = vmatpush1.msra.mxu0 %v1436
  %1833 = vmatprep.subr.mxu0 0.0
  %1834 = vmatpush1.msra.mxu0 %v1437
  %1835 = vmatprep.subr.mxu0 0.0
  %1836 = vmatpush1.msra.mxu0 %v1438
  %1837 = vmatprep.subr.mxu0 0.0
  %1838 = vmatpush1.msra.mxu0 %v1439
  %1839 = vmatprep.subr.mxu0 0.0
  %1840 = vmatpush1.msra.mxu0 %v1440
  %1841 = vmatprep.subr.mxu0 0.0
  %1842 = vmatpush1.msra.mxu0 %v1441
  %1843 = vmatprep.subr.mxu0 0.0
  %1844 = vmatpush1.msra.mxu0 %v1442
  %1845 = vmatprep.subr.mxu0 0.0
  %1846 = vmatpush1.msra.mxu0 %v1443
  %1847 = vmatprep.subr.mxu0 0.0
  %1848 = vmatpush1.msra.mxu0 %v1444
  %1849 = vmatprep.subr.mxu0 0.0
  %1850 = vmatpush1.msra.mxu0 %v1445
  %1851 = vmatprep.subr.mxu0 0.0
  %1852 = vmatpush1.msra.mxu0 %v1446
  %1853 = vmatprep.mubr.f32.mxu0 %v1038
  %1854 = vmatmul.mubr.f32.gmra.mrb[0].mxu0 %v1031
  %v1855 = vpop.f32.mrb[0].mxu0
  %v1856 = vadd.f32 %v1786, %v1855
  %v1857 = vpop.f32.mrb[0].mxu0
  %1858 = vdwg.mxu0
  %1859 = vmatprep.subr.mxu0 0.0
  %1860 = vmatpush1.msra.mxu0 %v1447
  %1861 = vmatprep.subr.mxu0 0.0
  %1862 = vmatpush1.msra.mxu0 %v1448
  %1863 = vmatprep.subr.mxu0 0.0
  %1864 = vmatpush1.msra.mxu0 %v1449
  %1865 = vmatprep.subr.mxu0 0.0
  %1866 = vmatpush1.msra.mxu0 %v1450
  %1867 = vmatprep.subr.mxu0 0.0
  %1868 = vmatpush1.msra.mxu0 %v1451
  %1869 = vmatprep.subr.mxu0 0.0
  %1870 = vmatpush1.msra.mxu0 %v1452
  %1871 = vmatprep.subr.mxu0 0.0
  %1872 = vmatpush1.msra.mxu0 %v1453
  %1873 = vmatprep.subr.mxu0 0.0
  %1874 = vmatpush1.msra.mxu0 %v1454
  %1875 = vmatprep.subr.mxu0 0.0
  %1876 = vmatpush1.msra.mxu0 %v1455
  %1877 = vmatprep.subr.mxu0 0.0
  %1878 = vmatpush1.msra.mxu0 %v1456
  %1879 = vmatprep.subr.mxu0 0.0
  %1880 = vmatpush1.msra.mxu0 %v1457
  %1881 = vmatprep.subr.mxu0 0.0
  %1882 = vmatpush1.msra.mxu0 %v1458
  %1883 = vmatprep.subr.mxu0 0.0
  %1884 = vmatpush1.msra.mxu0 %v1459
  %1885 = vmatprep.subr.mxu0 0.0
  %1886 = vmatpush1.msra.mxu0 %v1460
  %1887 = vmatprep.subr.mxu0 0.0
  %1888 = vmatpush1.msra.mxu0 %v1461
  %1889 = vmatprep.subr.mxu0 0.0
  %1890 = vmatpush1.msra.mxu0 %v1462
  %1891 = vmatprep.subr.mxu0 0.0
  %1892 = vmatpush1.msra.mxu0 %v1463
  %1893 = vmatprep.subr.mxu0 0.0
  %1894 = vmatpush1.msra.mxu0 %v1464
  %1895 = vmatprep.subr.mxu0 0.0
  %1896 = vmatpush1.msra.mxu0 %v1465
  %1897 = vmatprep.subr.mxu0 0.0
  %1898 = vmatpush1.msra.mxu0 %v1466
  %1899 = vmatprep.subr.mxu0 0.0
  %1900 = vmatpush1.msra.mxu0 %v1467
  %1901 = vmatprep.subr.mxu0 0.0
  %1902 = vmatpush1.msra.mxu0 %v1468
  %1903 = vmatprep.subr.mxu0 0.0
  %1904 = vmatpush1.msra.mxu0 %v1469
  %1905 = vmatprep.subr.mxu0 0.0
  %1906 = vmatpush1.msra.mxu0 %v1470
  %1907 = vmatprep.subr.mxu0 0.0
  %1908 = vmatpush1.msra.mxu0 %v1471
  %1909 = vmatprep.subr.mxu0 0.0
  %1910 = vmatpush1.msra.mxu0 %v1472
  %1911 = vmatprep.subr.mxu0 0.0
  %1912 = vmatpush1.msra.mxu0 %v1473
  %1913 = vmatprep.subr.mxu0 0.0
  %1914 = vmatpush1.msra.mxu0 %v1474
  %1915 = vmatprep.subr.mxu0 0.0
  %1916 = vmatpush1.msra.mxu0 %v1475
  %1917 = vmatprep.subr.mxu0 0.0
  %1918 = vmatpush1.msra.mxu0 %v1476
  %1919 = vmatprep.subr.mxu0 0.0
  %1920 = vmatpush1.msra.mxu0 %v1477
  %1921 = vmatprep.subr.mxu0 0.0
  %1922 = vmatpush1.msra.mxu0 %v1478
  %1923 = vmatprep.mubr.f32.mxu0 %v1052
  %1924 = vmatmul.mubr.f32.gmra.mrb[0].mxu0 %v1045
  %v1925 = vpop.f32.mrb[0].mxu0
  %v1926 = vadd.f32 %v1856, %v1925
  %v1927 = vpop.f32.mrb[0].mxu0
  %1928 = vdwg.mxu0
  %1929 = vmatprep.subr.mxu0 0.0
  %1930 = vmatpush1.msra.mxu0 %v1479
  %1931 = vmatprep.subr.mxu0 0.0
  %1932 = vmatpush1.msra.mxu0 %v1480
  %1933 = vmatprep.subr.mxu0 0.0
  %1934 = vmatpush1.msra.mxu0 %v1481
  %1935 = vmatprep.subr.mxu0 0.0
  %1936 = vmatpush1.msra.mxu0 %v1482
  %1937 = vmatprep.subr.mxu0 0.0
  %1938 = vmatpush1.msra.mxu0 %v1483
  %1939 = vmatprep.subr.mxu0 0.0
  %1940 = vmatpush1.msra.mxu0 %v1484
  %1941 = vmatprep.subr.mxu0 0.0
  %1942 = vmatpush1.msra.mxu0 %v1485
  %1943 = vmatprep.subr.mxu0 0.0
  %1944 = vmatpush1.msra.mxu0 %v1486
  %1945 = vmatprep.subr.mxu0 0.0
  %1946 = vmatpush1.msra.mxu0 %v1487
  %1947 = vmatprep.subr.mxu0 0.0
  %1948 = vmatpush1.msra.mxu0 %v1488
  %1949 = vmatprep.subr.mxu0 0.0
  %1950 = vmatpush1.msra.mxu0 %v1489
  %1951 = vmatprep.subr.mxu0 0.0
  %1952 = vmatpush1.msra.mxu0 %v1490
  %1953 = vmatprep.subr.mxu0 0.0
  %1954 = vmatpush1.msra.mxu0 %v1491
  %1955 = vmatprep.subr.mxu0 0.0
  %1956 = vmatpush1.msra.mxu0 %v1492
  %1957 = vmatprep.subr.mxu0 0.0
  %1958 = vmatpush1.msra.mxu0 %v1493
  %1959 = vmatprep.subr.mxu0 0.0
  %1960 = vmatpush1.msra.mxu0 %v1494
  %1961 = vmatprep.subr.mxu0 0.0
  %1962 = vmatpush1.msra.mxu0 %v1495
  %1963 = vmatprep.subr.mxu0 0.0
  %1964 = vmatpush1.msra.mxu0 %v1496
  %1965 = vmatprep.subr.mxu0 0.0
  %1966 = vmatpush1.msra.mxu0 %v1497
  %1967 = vmatprep.subr.mxu0 0.0
  %1968 = vmatpush1.msra.mxu0 %v1498
  %1969 = vmatprep.subr.mxu0 0.0
  %1970 = vmatpush1.msra.mxu0 %v1499
  %1971 = vmatprep.subr.mxu0 0.0
  %1972 = vmatpush1.msra.mxu0 %v1500
  %1973 = vmatprep.subr.mxu0 0.0
  %1974 = vmatpush1.msra.mxu0 %v1501
  %1975 = vmatprep.subr.mxu0 0.0
  %1976 = vmatpush1.msra.mxu0 %v1502
  %1977 = vmatprep.subr.mxu0 0.0
  %1978 = vmatpush1.msra.mxu0 %v1503
  %1979 = vmatprep.subr.mxu0 0.0
  %1980 = vmatpush1.msra.mxu0 %v1504
  %1981 = vmatprep.subr.mxu0 0.0
  %1982 = vmatpush1.msra.mxu0 %v1505
  %1983 = vmatprep.subr.mxu0 0.0
  %1984 = vmatpush1.msra.mxu0 %v1506
  %1985 = vmatprep.subr.mxu0 0.0
  %1986 = vmatpush1.msra.mxu0 %v1507
  %1987 = vmatprep.subr.mxu0 0.0
  %1988 = vmatpush1.msra.mxu0 %v1508
  %1989 = vmatprep.subr.mxu0 0.0
  %1990 = vmatpush1.msra.mxu0 %v1509
  %1991 = vmatprep.subr.mxu0 0.0
  %1992 = vmatpush1.msra.mxu0 %v1510
  %1993 = vmatprep.mubr.f32.mxu0 %v1066
  %1994 = vmatmul.mubr.f32.gmra.mrb[0].mxu0 %v1059
  %v1995 = vpop.f32.mrb[0].mxu0
  %v1996 = vadd.f32 %v1926, %v1995
  %v1997 = vpop.f32.mrb[0].mxu0
  %1998 = vdwg.mxu0
  %1999 = vmatprep.subr.mxu0 0.0
  %2000 = vmatpush1.msra.mxu0 %v1511
  %2001 = vmatprep.subr.mxu0 0.0
  %2002 = vmatpush1.msra.mxu0 %v1512
  %2003 = vmatprep.subr.mxu0 0.0
  %2004 = vmatpush1.msra.mxu0 %v1513
  %2005 = vmatprep.subr.mxu0 0.0
  %2006 = vmatpush1.msra.mxu0 %v1514
  %2007 = vmatprep.subr.mxu0 0.0
  %2008 = vmatpush1.msra.mxu0 %v1515
  %2009 = vmatprep.subr.mxu0 0.0
  %2010 = vmatpush1.msra.mxu0 %v1516
  %2011 = vmatprep.subr.mxu0 0.0
  %2012 = vmatpush1.msra.mxu0 %v1517
  %2013 = vmatprep.subr.mxu0 0.0
  %2014 = vmatpush1.msra.mxu0 %v1518
  %2015 = vmatprep.subr.mxu0 0.0
  %2016 = vmatpush1.msra.mxu0 %v1519
  %2017 = vmatprep.subr.mxu0 0.0
  %2018 = vmatpush1.msra.mxu0 %v1520
  %2019 = vmatprep.subr.mxu0 0.0
  %2020 = vmatpush1.msra.mxu0 %v1521
  %2021 = vmatprep.subr.mxu0 0.0
  %2022 = vmatpush1.msra.mxu0 %v1522
  %2023 = vmatprep.subr.mxu0 0.0
  %2024 = vmatpush1.msra.mxu0 %v1523
  %2025 = vmatprep.subr.mxu0 0.0
  %2026 = vmatpush1.msra.mxu0 %v1524
  %2027 = vmatprep.subr.mxu0 0.0
  %2028 = vmatpush1.msra.mxu0 %v1525
  %2029 = vmatprep.subr.mxu0 0.0
  %2030 = vmatpush1.msra.mxu0 %v1526
  %2031 = vmatprep.subr.mxu0 0.0
  %2032 = vmatpush1.msra.mxu0 %v1527
  %2033 = vmatprep.subr.mxu0 0.0
  %2034 = vmatpush1.msra.mxu0 %v1528
  %2035 = vmatprep.subr.mxu0 0.0
  %2036 = vmatpush1.msra.mxu0 %v1529
  %2037 = vmatprep.subr.mxu0 0.0
  %2038 = vmatpush1.msra.mxu0 %v1530
  %2039 = vmatprep.subr.mxu0 0.0
  %2040 = vmatpush1.msra.mxu0 %v1531
  %2041 = vmatprep.subr.mxu0 0.0
  %2042 = vmatpush1.msra.mxu0 %v1532
  %2043 = vmatprep.subr.mxu0 0.0
  %2044 = vmatpush1.msra.mxu0 %v1533
  %2045 = vmatprep.subr.mxu0 0.0
  %2046 = vmatpush1.msra.mxu0 %v1534
  %2047 = vmatprep.subr.mxu0 0.0
  %2048 = vmatpush1.msra.mxu0 %v1535
  %2049 = vmatprep.subr.mxu0 0.0
  %2050 = vmatpush1.msra.mxu0 %v1536
  %2051 = vmatprep.subr.mxu0 0.0
  %2052 = vmatpush1.msra.mxu0 %v1537
  %2053 = vmatprep.subr.mxu0 0.0
  %2054 = vmatpush1.msra.mxu0 %v1538
  %2055 = vmatprep.subr.mxu0 0.0
  %2056 = vmatpush1.msra.mxu0 %v1539
  %2057 = vmatprep.subr.mxu0 0.0
  %2058 = vmatpush1.msra.mxu0 %v1540
  %2059 = vmatprep.subr.mxu0 0.0
  %2060 = vmatpush1.msra.mxu0 %v1541
  %2061 = vmatprep.subr.mxu0 0.0
  %2062 = vmatpush1.msra.mxu0 %v1542
  %2063 = vmatprep.mubr.f32.mxu0 %v1080
  %2064 = vmatmul.mubr.f32.gmra.mrb[0].mxu0 %v1073
  %v2065 = vpop.f32.mrb[0].mxu0
  %v2066 = vadd.f32 %v1996, %v2065
  %v2067 = vpop.f32.mrb[0].mxu0
  %2068 = vdwg.mxu0
  %2069 = vmatprep.subr.mxu0 0.0
  %2070 = vmatpush1.msra.mxu0 %v1543
  %2071 = vmatprep.subr.mxu0 0.0
  %2072 = vmatpush1.msra.mxu0 %v1544
  %2073 = vmatprep.subr.mxu0 0.0
  %2074 = vmatpush1.msra.mxu0 %v1545
  %2075 = vmatprep.subr.mxu0 0.0
  %2076 = vmatpush1.msra.mxu0 %v1546
  %2077 = vmatprep.subr.mxu0 0.0
  %2078 = vmatpush1.msra.mxu0 %v1547
  %2079 = vmatprep.subr.mxu0 0.0
  %2080 = vmatpush1.msra.mxu0 %v1548
  %2081 = vmatprep.subr.mxu0 0.0
  %2082 = vmatpush1.msra.mxu0 %v1549
  %2083 = vmatprep.subr.mxu0 0.0
  %2084 = vmatpush1.msra.mxu0 %v1550
  %2085 = vmatprep.subr.mxu0 0.0
  %2086 = vmatpush1.msra.mxu0 %v1551
  %2087 = vmatprep.subr.mxu0 0.0
  %2088 = vmatpush1.msra.mxu0 %v1552
  %2089 = vmatprep.subr.mxu0 0.0
  %2090 = vmatpush1.msra.mxu0 %v1553
  %2091 = vmatprep.subr.mxu0 0.0
  %2092 = vmatpush1.msra.mxu0 %v1554
  %2093 = vmatprep.subr.mxu0 0.0
  %2094 = vmatpush1.msra.mxu0 %v1555
  %2095 = vmatprep.subr.mxu0 0.0
  %2096 = vmatpush1.msra.mxu0 %v1556
  %2097 = vmatprep.subr.mxu0 0.0
  %2098 = vmatpush1.msra.mxu0 %v1557
  %2099 = vmatprep.subr.mxu0 0.0
  %2100 = vmatpush1.msra.mxu0 %v1558
  %2101 = vmatprep.subr.mxu0 0.0
  %2102 = vmatpush1.msra.mxu0 %v1559
  %2103 = vmatprep.subr.mxu0 0.0
  %2104 = vmatpush1.msra.mxu0 %v1560
  %2105 = vmatprep.subr.mxu0 0.0
  %2106 = vmatpush1.msra.mxu0 %v1561
  %2107 = vmatprep.subr.mxu0 0.0
  %2108 = vmatpush1.msra.mxu0 %v1562
  %2109 = vmatprep.subr.mxu0 0.0
  %2110 = vmatpush1.msra.mxu0 %v1563
  %2111 = vmatprep.subr.mxu0 0.0
  %2112 = vmatpush1.msra.mxu0 %v1564
  %2113 = vmatprep.subr.mxu0 0.0
  %2114 = vmatpush1.msra.mxu0 %v1565
  %2115 = vmatprep.subr.mxu0 0.0
  %2116 = vmatpush1.msra.mxu0 %v1566
  %2117 = vmatprep.subr.mxu0 0.0
  %2118 = vmatpush1.msra.mxu0 %v1567
  %2119 = vmatprep.subr.mxu0 0.0
  %2120 = vmatpush1.msra.mxu0 %v1568
  %2121 = vmatprep.subr.mxu0 0.0
  %2122 = vmatpush1.msra.mxu0 %v1569
  %2123 = vmatprep.subr.mxu0 0.0
  %2124 = vmatpush1.msra.mxu0 %v1570
  %2125 = vmatprep.subr.mxu0 0.0
  %2126 = vmatpush1.msra.mxu0 %v1571
  %2127 = vmatprep.subr.mxu0 0.0
  %2128 = vmatpush1.msra.mxu0 %v1572
  %2129 = vmatprep.subr.mxu0 0.0
  %2130 = vmatpush1.msra.mxu0 %v1573
  %2131 = vmatprep.subr.mxu0 0.0
  %2132 = vmatpush1.msra.mxu0 %v1574
  %2133 = vmatprep.mubr.f32.mxu0 %v1094
  %2134 = vmatmul.mubr.f32.gmra.mrb[0].mxu0 %v1087
  %v2135 = vpop.f32.mrb[0].mxu0
  %v2136 = vadd.f32 %v2066, %v2135
  %v2137 = vpop.f32.mrb[0].mxu0
  %2138 = vdwg.mxu0
  %2139 = vmatprep.subr.mxu0 0.0
  %2140 = vmatpush1.msra.mxu0 %v1383
  %2141 = vmatprep.subr.mxu0 0.0
  %2142 = vmatpush1.msra.mxu0 %v1384
  %2143 = vmatprep.subr.mxu0 0.0
  %2144 = vmatpush1.msra.mxu0 %v1385
  %2145 = vmatprep.subr.mxu0 0.0
  %2146 = vmatpush1.msra.mxu0 %v1386
  %2147 = vmatprep.subr.mxu0 0.0
  %2148 = vmatpush1.msra.mxu0 %v1387
  %2149 = vmatprep.subr.mxu0 0.0
  %2150 = vmatpush1.msra.mxu0 %v1388
  %2151 = vmatprep.subr.mxu0 0.0
  %2152 = vmatpush1.msra.mxu0 %v1389
  %2153 = vmatprep.subr.mxu0 0.0
  %2154 = vmatpush1.msra.mxu0 %v1390
  %2155 = vmatprep.subr.mxu0 0.0
  %2156 = vmatpush1.msra.mxu0 %v1391
  %2157 = vmatprep.subr.mxu0 0.0
  %2158 = vmatpush1.msra.mxu0 %v1392
  %2159 = vmatprep.subr.mxu0 0.0
  %2160 = vmatpush1.msra.mxu0 %v1393
  %2161 = vmatprep.subr.mxu0 0.0
  %2162 = vmatpush1.msra.mxu0 %v1394
  %2163 = vmatprep.subr.mxu0 0.0
  %2164 = vmatpush1.msra.mxu0 %v1395
  %2165 = vmatprep.subr.mxu0 0.0
  %2166 = vmatpush1.msra.mxu0 %v1396
  %2167 = vmatprep.subr.mxu0 0.0
  %2168 = vmatpush1.msra.mxu0 %v1397
  %2169 = vmatprep.subr.mxu0 0.0
  %2170 = vmatpush1.msra.mxu0 %v1398
  %2171 = vmatprep.subr.mxu0 0.0
  %2172 = vmatpush1.msra.mxu0 %v1399
  %2173 = vmatprep.subr.mxu0 0.0
  %2174 = vmatpush1.msra.mxu0 %v1400
  %2175 = vmatprep.subr.mxu0 0.0
  %2176 = vmatpush1.msra.mxu0 %v1401
  %2177 = vmatprep.subr.mxu0 0.0
  %2178 = vmatpush1.msra.mxu0 %v1402
  %2179 = vmatprep.subr.mxu0 0.0
  %2180 = vmatpush1.msra.mxu0 %v1403
  %2181 = vmatprep.subr.mxu0 0.0
  %2182 = vmatpush1.msra.mxu0 %v1404
  %2183 = vmatprep.subr.mxu0 0.0
  %2184 = vmatpush1.msra.mxu0 %v1405
  %2185 = vmatprep.subr.mxu0 0.0
  %2186 = vmatpush1.msra.mxu0 %v1406
  %2187 = vmatprep.subr.mxu0 0.0
  %2188 = vmatpush1.msra.mxu0 %v1407
  %2189 = vmatprep.subr.mxu0 0.0
  %2190 = vmatpush1.msra.mxu0 %v1408
  %2191 = vmatprep.subr.mxu0 0.0
  %2192 = vmatpush1.msra.mxu0 %v1409
  %2193 = vmatprep.subr.mxu0 0.0
  %2194 = vmatpush1.msra.mxu0 %v1410
  %2195 = vmatprep.subr.mxu0 0.0
  %2196 = vmatpush1.msra.mxu0 %v1411
  %2197 = vmatprep.subr.mxu0 0.0
  %2198 = vmatpush1.msra.mxu0 %v1412
  %2199 = vmatprep.subr.mxu0 0.0
  %2200 = vmatpush1.msra.mxu0 %v1413
  %2201 = vmatprep.subr.mxu0 0.0
  %2202 = vmatpush1.msra.mxu0 %v1414
  %2203 = vmatprep.mubr.f32.mxu0 %v1120
  %2204 = vmatmul.mubr.f32.gmra.mrb[0].mxu0 %v1113
  %v2205 = vpop.f32.mrb[0].mxu0
  %v2206 = vadd.f32 0.0, %v2205
  %v2207 = vpop.f32.mrb[0].mxu0
  %2208 = vdwg.mxu0
  %2209 = vmatprep.subr.mxu0 0.0
  %2210 = vmatpush1.msra.mxu0 %v1415
  %2211 = vmatprep.subr.mxu0 0.0
  %2212 = vmatpush1.msra.mxu0 %v1416
  %2213 = vmatprep.subr.mxu0 0.0
  %2214 = vmatpush1.msra.mxu0 %v1417
  %2215 = vmatprep.subr.mxu0 0.0
  %2216 = vmatpush1.msra.mxu0 %v1418
  %2217 = vmatprep.subr.mxu0 0.0
  %2218 = vmatpush1.msra.mxu0 %v1419
  %2219 = vmatprep.subr.mxu0 0.0
  %2220 = vmatpush1.msra.mxu0 %v1420
  %2221 = vmatprep.subr.mxu0 0.0
  %2222 = vmatpush1.msra.mxu0 %v1421
  %2223 = vmatprep.subr.mxu0 0.0
  %2224 = vmatpush1.msra.mxu0 %v1422
  %2225 = vmatprep.subr.mxu0 0.0
  %2226 = vmatpush1.msra.mxu0 %v1423
  %2227 = vmatprep.subr.mxu0 0.0
  %2228 = vmatpush1.msra.mxu0 %v1424
  %2229 = vmatprep.subr.mxu0 0.0
  %2230 = vmatpush1.msra.mxu0 %v1425
  %2231 = vmatprep.subr.mxu0 0.0
  %2232 = vmatpush1.msra.mxu0 %v1426
  %2233 = vmatprep.subr.mxu0 0.0
  %2234 = vmatpush1.msra.mxu0 %v1427
  %2235 = vmatprep.subr.mxu0 0.0
  %2236 = vmatpush1.msra.mxu0 %v1428
  %2237 = vmatprep.subr.mxu0 0.0
  %2238 = vmatpush1.msra.mxu0 %v1429
  %2239 = vmatprep.subr.mxu0 0.0
  %2240 = vmatpush1.msra.mxu0 %v1430
  %2241 = vmatprep.subr.mxu0 0.0
  %2242 = vmatpush1.msra.mxu0 %v1431
  %2243 = vmatprep.subr.mxu0 0.0
  %2244 = vmatpush1.msra.mxu0 %v1432
  %2245 = vmatprep.subr.mxu0 0.0
  %2246 = vmatpush1.msra.mxu0 %v1433
  %2247 = vmatprep.subr.mxu0 0.0
  %2248 = vmatpush1.msra.mxu0 %v1434
  %2249 = vmatprep.subr.mxu0 0.0
  %2250 = vmatpush1.msra.mxu0 %v1435
  %2251 = vmatprep.subr.mxu0 0.0
  %2252 = vmatpush1.msra.mxu0 %v1436
  %2253 = vmatprep.subr.mxu0 0.0
  %2254 = vmatpush1.msra.mxu0 %v1437
  %2255 = vmatprep.subr.mxu0 0.0
  %2256 = vmatpush1.msra.mxu0 %v1438
  %2257 = vmatprep.subr.mxu0 0.0
  %2258 = vmatpush1.msra.mxu0 %v1439
  %2259 = vmatprep.subr.mxu0 0.0
  %2260 = vmatpush1.msra.mxu0 %v1440
  %2261 = vmatprep.subr.mxu0 0.0
  %2262 = vmatpush1.msra.mxu0 %v1441
  %2263 = vmatprep.subr.mxu0 0.0
  %2264 = vmatpush1.msra.mxu0 %v1442
  %2265 = vmatprep.subr.mxu0 0.0
  %2266 = vmatpush1.msra.mxu0 %v1443
  %2267 = vmatprep.subr.mxu0 0.0
  %2268 = vmatpush1.msra.mxu0 %v1444
  %2269 = vmatprep.subr.mxu0 0.0
  %2270 = vmatpush1.msra.mxu0 %v1445
  %2271 = vmatprep.subr.mxu0 0.0
  %2272 = vmatpush1.msra.mxu0 %v1446
  %2273 = vmatprep.mubr.f32.mxu0 %v1134
  %2274 = vmatmul.mubr.f32.gmra.mrb[0].mxu0 %v1127
  %v2275 = vpop.f32.mrb[0].mxu0
  %v2276 = vadd.f32 %v2206, %v2275
  %v2277 = vpop.f32.mrb[0].mxu0
  %2278 = vdwg.mxu0
  %2279 = vmatprep.subr.mxu0 0.0
  %2280 = vmatpush1.msra.mxu0 %v1447
  %2281 = vmatprep.subr.mxu0 0.0
  %2282 = vmatpush1.msra.mxu0 %v1448
  %2283 = vmatprep.subr.mxu0 0.0
  %2284 = vmatpush1.msra.mxu0 %v1449
  %2285 = vmatprep.subr.mxu0 0.0
  %2286 = vmatpush1.msra.mxu0 %v1450
  %2287 = vmatprep.subr.mxu0 0.0
  %2288 = vmatpush1.msra.mxu0 %v1451
  %2289 = vmatprep.subr.mxu0 0.0
  %2290 = vmatpush1.msra.mxu0 %v1452
  %2291 = vmatprep.subr.mxu0 0.0
  %2292 = vmatpush1.msra.mxu0 %v1453
  %2293 = vmatprep.subr.mxu0 0.0
  %2294 = vmatpush1.msra.mxu0 %v1454
  %2295 = vmatprep.subr.mxu0 0.0
  %2296 = vmatpush1.msra.mxu0 %v1455
  %2297 = vmatprep.subr.mxu0 0.0
  %2298 = vmatpush1.msra.mxu0 %v1456
  %2299 = vmatprep.subr.mxu0 0.0
  %2300 = vmatpush1.msra.mxu0 %v1457
  %2301 = vmatprep.subr.mxu0 0.0
  %2302 = vmatpush1.msra.mxu0 %v1458
  %2303 = vmatprep.subr.mxu0 0.0
  %2304 = vmatpush1.msra.mxu0 %v1459
  %2305 = vmatprep.subr.mxu0 0.0
  %2306 = vmatpush1.msra.mxu0 %v1460
  %2307 = vmatprep.subr.mxu0 0.0
  %2308 = vmatpush1.msra.mxu0 %v1461
  %2309 = vmatprep.subr.mxu0 0.0
  %2310 = vmatpush1.msra.mxu0 %v1462
  %2311 = vmatprep.subr.mxu0 0.0
  %2312 = vmatpush1.msra.mxu0 %v1463
  %2313 = vmatprep.subr.mxu0 0.0
  %2314 = vmatpush1.msra.mxu0 %v1464
  %2315 = vmatprep.subr.mxu0 0.0
  %2316 = vmatpush1.msra.mxu0 %v1465
  %2317 = vmatprep.subr.mxu0 0.0
  %2318 = vmatpush1.msra.mxu0 %v1466
  %2319 = vmatprep.subr.mxu0 0.0
  %2320 = vmatpush1.msra.mxu0 %v1467
  %2321 = vmatprep.subr.mxu0 0.0
  %2322 = vmatpush1.msra.mxu0 %v1468
  %2323 = vmatprep.subr.mxu0 0.0
  %2324 = vmatpush1.msra.mxu0 %v1469
  %2325 = vmatprep.subr.mxu0 0.0
  %2326 = vmatpush1.msra.mxu0 %v1470
  %2327 = vmatprep.subr.mxu0 0.0
  %2328 = vmatpush1.msra.mxu0 %v1471
  %2329 = vmatprep.subr.mxu0 0.0
  %2330 = vmatpush1.msra.mxu0 %v1472
  %2331 = vmatprep.subr.mxu0 0.0
  %2332 = vmatpush1.msra.mxu0 %v1473
  %2333 = vmatprep.subr.mxu0 0.0
  %2334 = vmatpush1.msra.mxu0 %v1474
  %2335 = vmatprep.subr.mxu0 0.0
  %2336 = vmatpush1.msra.mxu0 %v1475
  %2337 = vmatprep.subr.mxu0 0.0
  %2338 = vmatpush1.msra.mxu0 %v1476
  %2339 = vmatprep.subr.mxu0 0.0
  %2340 = vmatpush1.msra.mxu0 %v1477
  %2341 = vmatprep.subr.mxu0 0.0
  %2342 = vmatpush1.msra.mxu0 %v1478
  %2343 = vmatprep.mubr.f32.mxu0 %v1148
  %2344 = vmatmul.mubr.f32.gmra.mrb[0].mxu0 %v1141
  %v2345 = vpop.f32.mrb[0].mxu0
  %v2346 = vadd.f32 %v2276, %v2345
  %v2347 = vpop.f32.mrb[0].mxu0
  %2348 = vdwg.mxu0
  %2349 = vmatprep.subr.mxu0 0.0
  %2350 = vmatpush1.msra.mxu0 %v1479
  %2351 = vmatprep.subr.mxu0 0.0
  %2352 = vmatpush1.msra.mxu0 %v1480
  %2353 = vmatprep.subr.mxu0 0.0
  %2354 = vmatpush1.msra.mxu0 %v1481
  %2355 = vmatprep.subr.mxu0 0.0
  %2356 = vmatpush1.msra.mxu0 %v1482
  %2357 = vmatprep.subr.mxu0 0.0
  %2358 = vmatpush1.msra.mxu0 %v1483
  %2359 = vmatprep.subr.mxu0 0.0
  %2360 = vmatpush1.msra.mxu0 %v1484
  %2361 = vmatprep.subr.mxu0 0.0
  %2362 = vmatpush1.msra.mxu0 %v1485
  %2363 = vmatprep.subr.mxu0 0.0
  %2364 = vmatpush1.msra.mxu0 %v1486
  %2365 = vmatprep.subr.mxu0 0.0
  %2366 = vmatpush1.msra.mxu0 %v1487
  %2367 = vmatprep.subr.mxu0 0.0
  %2368 = vmatpush1.msra.mxu0 %v1488
  %2369 = vmatprep.subr.mxu0 0.0
  %2370 = vmatpush1.msra.mxu0 %v1489
  %2371 = vmatprep.subr.mxu0 0.0
  %2372 = vmatpush1.msra.mxu0 %v1490
  %2373 = vmatprep.subr.mxu0 0.0
  %2374 = vmatpush1.msra.mxu0 %v1491
  %2375 = vmatprep.subr.mxu0 0.0
  %2376 = vmatpush1.msra.mxu0 %v1492
  %2377 = vmatprep.subr.mxu0 0.0
  %2378 = vmatpush1.msra.mxu0 %v1493
  %2379 = vmatprep.subr.mxu0 0.0
  %2380 = vmatpush1.msra.mxu0 %v1494
  %2381 = vmatprep.subr.mxu0 0.0
  %2382 = vmatpush1.msra.mxu0 %v1495
  %2383 = vmatprep.subr.mxu0 0.0
  %2384 = vmatpush1.msra.mxu0 %v1496
  %2385 = vmatprep.subr.mxu0 0.0
  %2386 = vmatpush1.msra.mxu0 %v1497
  %2387 = vmatprep.subr.mxu0 0.0
  %2388 = vmatpush1.msra.mxu0 %v1498
  %2389 = vmatprep.subr.mxu0 0.0
  %2390 = vmatpush1.msra.mxu0 %v1499
  %2391 = vmatprep.subr.mxu0 0.0
  %2392 = vmatpush1.msra.mxu0 %v1500
  %2393 = vmatprep.subr.mxu0 0.0
  %2394 = vmatpush1.msra.mxu0 %v1501
  %2395 = vmatprep.subr.mxu0 0.0
  %2396 = vmatpush1.msra.mxu0 %v1502
  %2397 = vmatprep.subr.mxu0 0.0
  %2398 = vmatpush1.msra.mxu0 %v1503
  %2399 = vmatprep.subr.mxu0 0.0
  %2400 = vmatpush1.msra.mxu0 %v1504
  %2401 = vmatprep.subr.mxu0 0.0
  %2402 = vmatpush1.msra.mxu0 %v1505
  %2403 = vmatprep.subr.mxu0 0.0
  %2404 = vmatpush1.msra.mxu0 %v1506
  %2405 = vmatprep.subr.mxu0 0.0
  %2406 = vmatpush1.msra.mxu0 %v1507
  %2407 = vmatprep.subr.mxu0 0.0
  %2408 = vmatpush1.msra.mxu0 %v1508
  %2409 = vmatprep.subr.mxu0 0.0
  %2410 = vmatpush1.msra.mxu0 %v1509
  %2411 = vmatprep.subr.mxu0 0.0
  %2412 = vmatpush1.msra.mxu0 %v1510
  %2413 = vmatprep.mubr.f32.mxu0 %v1162
  %2414 = vmatmul.mubr.f32.gmra.mrb[0].mxu0 %v1155
  %v2415 = vpop.f32.mrb[0].mxu0
  %v2416 = vadd.f32 %v2346, %v2415
  %v2417 = vpop.f32.mrb[0].mxu0
  %2418 = vdwg.mxu0
  %2419 = vmatprep.subr.mxu0 0.0
  %2420 = vmatpush1.msra.mxu0 %v1511
  %2421 = vmatprep.subr.mxu0 0.0
  %2422 = vmatpush1.msra.mxu0 %v1512
  %2423 = vmatprep.subr.mxu0 0.0
  %2424 = vmatpush1.msra.mxu0 %v1513
  %2425 = vmatprep.subr.mxu0 0.0
  %2426 = vmatpush1.msra.mxu0 %v1514
  %2427 = vmatprep.subr.mxu0 0.0
  %2428 = vmatpush1.msra.mxu0 %v1515
  %2429 = vmatprep.subr.mxu0 0.0
  %2430 = vmatpush1.msra.mxu0 %v1516
  %2431 = vmatprep.subr.mxu0 0.0
  %2432 = vmatpush1.msra.mxu0 %v1517
  %2433 = vmatprep.subr.mxu0 0.0
  %2434 = vmatpush1.msra.mxu0 %v1518
  %2435 = vmatprep.subr.mxu0 0.0
  %2436 = vmatpush1.msra.mxu0 %v1519
  %2437 = vmatprep.subr.mxu0 0.0
  %2438 = vmatpush1.msra.mxu0 %v1520
  %2439 = vmatprep.subr.mxu0 0.0
  %2440 = vmatpush1.msra.mxu0 %v1521
  %2441 = vmatprep.subr.mxu0 0.0
  %2442 = vmatpush1.msra.mxu0 %v1522
  %2443 = vmatprep.subr.mxu0 0.0
  %2444 = vmatpush1.msra.mxu0 %v1523
  %2445 = vmatprep.subr.mxu0 0.0
  %2446 = vmatpush1.msra.mxu0 %v1524
  %2447 = vmatprep.subr.mxu0 0.0
  %2448 = vmatpush1.msra.mxu0 %v1525
  %2449 = vmatprep.subr.mxu0 0.0
  %2450 = vmatpush1.msra.mxu0 %v1526
  %2451 = vmatprep.subr.mxu0 0.0
  %2452 = vmatpush1.msra.mxu0 %v1527
  %2453 = vmatprep.subr.mxu0 0.0
  %2454 = vmatpush1.msra.mxu0 %v1528
  %2455 = vmatprep.subr.mxu0 0.0
  %2456 = vmatpush1.msra.mxu0 %v1529
  %2457 = vmatprep.subr.mxu0 0.0
  %2458 = vmatpush1.msra.mxu0 %v1530
  %2459 = vmatprep.subr.mxu0 0.0
  %2460 = vmatpush1.msra.mxu0 %v1531
  %2461 = vmatprep.subr.mxu0 0.0
  %2462 = vmatpush1.msra.mxu0 %v1532
  %2463 = vmatprep.subr.mxu0 0.0
  %2464 = vmatpush1.msra.mxu0 %v1533
  %2465 = vmatprep.subr.mxu0 0.0
  %2466 = vmatpush1.msra.mxu0 %v1534
  %2467 = vmatprep.subr.mxu0 0.0
  %2468 = vmatpush1.msra.mxu0 %v1535
  %2469 = vmatprep.subr.mxu0 0.0
  %2470 = vmatpush1.msra.mxu0 %v1536
  %2471 = vmatprep.subr.mxu0 0.0
  %2472 = vmatpush1.msra.mxu0 %v1537
  %2473 = vmatprep.subr.mxu0 0.0
  %2474 = vmatpush1.msra.mxu0 %v1538
  %2475 = vmatprep.subr.mxu0 0.0
  %2476 = vmatpush1.msra.mxu0 %v1539
  %2477 = vmatprep.subr.mxu0 0.0
  %2478 = vmatpush1.msra.mxu0 %v1540
  %2479 = vmatprep.subr.mxu0 0.0
  %2480 = vmatpush1.msra.mxu0 %v1541
  %2481 = vmatprep.subr.mxu0 0.0
  %2482 = vmatpush1.msra.mxu0 %v1542
  %2483 = vmatprep.mubr.f32.mxu0 %v1176
  %2484 = vmatmul.mubr.f32.gmra.mrb[0].mxu0 %v1169
  %v2485 = vpop.f32.mrb[0].mxu0
  %v2486 = vadd.f32 %v2416, %v2485
  %v2487 = vpop.f32.mrb[0].mxu0
  %2488 = vdwg.mxu0
  %2489 = vmatprep.subr.mxu0 0.0
  %2490 = vmatpush1.msra.mxu0 %v1543
  %2491 = vmatprep.subr.mxu0 0.0
  %2492 = vmatpush1.msra.mxu0 %v1544
  %2493 = vmatprep.subr.mxu0 0.0
  %2494 = vmatpush1.msra.mxu0 %v1545
  %2495 = vmatprep.subr.mxu0 0.0
  %2496 = vmatpush1.msra.mxu0 %v1546
  %2497 = vmatprep.subr.mxu0 0.0
  %2498 = vmatpush1.msra.mxu0 %v1547
  %2499 = vmatprep.subr.mxu0 0.0
  %2500 = vmatpush1.msra.mxu0 %v1548
  %2501 = vmatprep.subr.mxu0 0.0
  %2502 = vmatpush1.msra.mxu0 %v1549
  %2503 = vmatprep.subr.mxu0 0.0
  %2504 = vmatpush1.msra.mxu0 %v1550
  %2505 = vmatprep.subr.mxu0 0.0
  %2506 = vmatpush1.msra.mxu0 %v1551
  %2507 = vmatprep.subr.mxu0 0.0
  %2508 = vmatpush1.msra.mxu0 %v1552
  %2509 = vmatprep.subr.mxu0 0.0
  %2510 = vmatpush1.msra.mxu0 %v1553
  %2511 = vmatprep.subr.mxu0 0.0
  %2512 = vmatpush1.msra.mxu0 %v1554
  %2513 = vmatprep.subr.mxu0 0.0
  %2514 = vmatpush1.msra.mxu0 %v1555
  %2515 = vmatprep.subr.mxu0 0.0
  %2516 = vmatpush1.msra.mxu0 %v1556
  %2517 = vmatprep.subr.mxu0 0.0
  %2518 = vmatpush1.msra.mxu0 %v1557
  %2519 = vmatprep.subr.mxu0 0.0
  %2520 = vmatpush1.msra.mxu0 %v1558
  %2521 = vmatprep.subr.mxu0 0.0
  %2522 = vmatpush1.msra.mxu0 %v1559
  %2523 = vmatprep.subr.mxu0 0.0
  %2524 = vmatpush1.msra.mxu0 %v1560
  %2525 = vmatprep.subr.mxu0 0.0
  %2526 = vmatpush1.msra.mxu0 %v1561
  %2527 = vmatprep.subr.mxu0 0.0
  %2528 = vmatpush1.msra.mxu0 %v1562
  %2529 = vmatprep.subr.mxu0 0.0
  %2530 = vmatpush1.msra.mxu0 %v1563
  %2531 = vmatprep.subr.mxu0 0.0
  %2532 = vmatpush1.msra.mxu0 %v1564
  %2533 = vmatprep.subr.mxu0 0.0
  %2534 = vmatpush1.msra.mxu0 %v1565
  %2535 = vmatprep.subr.mxu0 0.0
  %2536 = vmatpush1.msra.mxu0 %v1566
  %2537 = vmatprep.subr.mxu0 0.0
  %2538 = vmatpush1.msra.mxu0 %v1567
  %2539 = vmatprep.subr.mxu0 0.0
  %2540 = vmatpush1.msra.mxu0 %v1568
  %2541 = vmatprep.subr.mxu0 0.0
  %2542 = vmatpush1.msra.mxu0 %v1569
  %2543 = vmatprep.subr.mxu0 0.0
  %2544 = vmatpush1.msra.mxu0 %v1570
  %2545 = vmatprep.subr.mxu0 0.0
  %2546 = vmatpush1.msra.mxu0 %v1571
  %2547 = vmatprep.subr.mxu0 0.0
  %2548 = vmatpush1.msra.mxu0 %v1572
  %2549 = vmatprep.subr.mxu0 0.0
  %2550 = vmatpush1.msra.mxu0 %v1573
  %2551 = vmatprep.subr.mxu0 0.0
  %2552 = vmatpush1.msra.mxu0 %v1574
  %2553 = vmatprep.mubr.f32.mxu0 %v1190
  %2554 = vmatmul.mubr.f32.gmra.mrb[0].mxu0 %v1183
  %v2555 = vpop.f32.mrb[0].mxu0
  %v2556 = vadd.f32 %v2486, %v2555
  %v2557 = vpop.f32.mrb[0].mxu0
  %2558 = vdwg.mxu0
  %v2559 = vld [vmem:[%s6] sm:$0x1]
  %v2560 = vld [vmem:[%s7] sm:$0x1]
  %v2561 = vrcp.pop 32.0
  %v2562 = vmul.f32 %v2136, %v2561
  %v2563 = vmul.f32 %v2556, %v2561
  %v2564 = vmul.f32 %v2562, %v2562
  %v2565 = vsub.f32 %v2563, %v2564
  %v2566 = vmax.f32 %v2565, 0.0
  %v2567 = vadd.f32 %v2566, 1e-05
  %v2568 = vrsqrt.pop %v2567
  %v2569 = vmul.f32 %v2559, %v2568
  %v2570 = vmul.f32 %v2562, %v2569
  %v2571 = vsub.f32 %v2560, %v2570
  %vm2572 = vcmask 523264
  %v2574 = vsel %vm2572, %v2569, 0
  %2576 = vmatprep.subr.mxu0 %v1624
  %2577 = vmatpush1.msra.mxu0 %v1623
  %2578 = vmatprep.subr.mxu0 %v1636
  %2579 = vmatpush1.msra.mxu0 %v1635
  %2580 = vmatprep.subr.mxu0 %v1648
  %2581 = vmatpush1.msra.mxu0 %v1647
  %2582 = vmatprep.subr.mxu0 %v1660
  %2583 = vmatpush1.msra.mxu0 %v1659
  %2584 = vmatprep.subr.mxu0 %v1672
  %2585 = vmatpush1.msra.mxu0 %v1671
  %2586 = vmatprep.subr.mxu0 %v1684
  %2587 = vmatpush1.msra.mxu0 %v1683
  %2588 = vmatprep.subr.mxu0 %v1696
  %2589 = vmatpush1.msra.mxu0 %v1695
  %2590 = vmatprep.subr.mxu0 %v1708
  %2591 = vmatpush1.msra.mxu0 %v1707
  %2592 = vmatprep.subr.mxu0 0.0
  %2593 = vmatpush1.msra.mxu0 0.0
  %2594 = vmatprep.subr.mxu0 0.0
  %2595 = vmatpush1.msra.mxu0 0.0
  %2596 = vmatprep.subr.mxu0 0.0
  %2597 = vmatpush1.msra.mxu0 0.0
  %2598 = vmatprep.subr.mxu0 0.0
  %2599 = vmatpush1.msra.mxu0 0.0
  %2600 = vmatprep.subr.mxu0 0.0
  %2601 = vmatpush1.msra.mxu0 0.0
  %2602 = vmatprep.subr.mxu0 0.0
  %2603 = vmatpush1.msra.mxu0 0.0
  %2604 = vmatprep.subr.mxu0 0.0
  %2605 = vmatpush1.msra.mxu0 0.0
  %2606 = vmatprep.subr.mxu0 0.0
  %2607 = vmatpush1.msra.mxu0 0.0
  %2608 = vmatprep.subr.mxu0 0.0
  %2609 = vmatpush1.msra.mxu0 0.0
  %2610 = vmatprep.subr.mxu0 0.0
  %2611 = vmatpush1.msra.mxu0 0.0
  %2612 = vmatprep.subr.mxu0 0.0
  %2613 = vmatpush1.msra.mxu0 0.0
  %2614 = vmatprep.subr.mxu0 0.0
  %2615 = vmatpush1.msra.mxu0 0.0
  %2616 = vmatprep.subr.mxu0 0.0
  %2617 = vmatpush1.msra.mxu0 0.0
  %2618 = vmatprep.subr.mxu0 0.0
  %2619 = vmatpush1.msra.mxu0 0.0
  %2620 = vmatprep.subr.mxu0 0.0
  %2621 = vmatpush1.msra.mxu0 0.0
  %2622 = vmatprep.subr.mxu0 0.0
  %2623 = vmatpush1.msra.mxu0 0.0
  %2624 = vmatprep.subr.mxu0 0.0
  %2625 = vmatpush1.msra.mxu0 0.0
  %2626 = vmatprep.subr.mxu0 0.0
  %2627 = vmatpush1.msra.mxu0 0.0
  %2628 = vmatprep.subr.mxu0 0.0
  %2629 = vmatpush1.msra.mxu0 0.0
  %2630 = vmatprep.subr.mxu0 0.0
  %2631 = vmatpush1.msra.mxu0 0.0
  %2632 = vmatprep.subr.mxu0 0.0
  %2633 = vmatpush1.msra.mxu0 0.0
  %2634 = vmatprep.subr.mxu0 0.0
  %2635 = vmatpush1.msra.mxu0 0.0
  %2636 = vmatprep.subr.mxu0 0.0
  %2637 = vmatpush1.msra.mxu0 0.0
  %2638 = vmatprep.subr.mxu0 0.0
  %2639 = vmatpush1.msra.mxu0 0.0
  %2640 = vmatprep.mubr.f32.mxu0 0.0
  %2641 = vmatmul.mubr.f32.gmra.mrb[0].mxu0 %v2574
  %v2642 = vpop.f32.mrb[0].mxu0
  %v2643 = vadd.f32 0.0, %v2642
  %v2644 = vpop.f32.mrb[0].mxu0
  %v2645 = vadd.f32 0.0, %v2644
  %2646 = vdwg.mxu0
  %2647 = vmatprep.subr.mxu0 %v1626
  %2648 = vmatpush1.msra.mxu0 %v1625
  %2649 = vmatprep.subr.mxu0 %v1638
  %2650 = vmatpush1.msra.mxu0 %v1637
  %2651 = vmatprep.subr.mxu0 %v1650
  %2652 = vmatpush1.msra.mxu0 %v1649
  %2653 = vmatprep.subr.mxu0 %v1662
  %2654 = vmatpush1.msra.mxu0 %v1661
  %2655 = vmatprep.subr.mxu0 %v1674
  %2656 = vmatpush1.msra.mxu0 %v1673
  %2657 = vmatprep.subr.mxu0 %v1686
  %2658 = vmatpush1.msra.mxu0 %v1685
  %2659 = vmatprep.subr.mxu0 %v1698
  %2660 = vmatpush1.msra.mxu0 %v1697
  %2661 = vmatprep.subr.mxu0 %v1710
  %2662 = vmatpush1.msra.mxu0 %v1709
  %2663 = vmatprep.subr.mxu0 0.0
  %2664 = vmatpush1.msra.mxu0 0.0
  %2665 = vmatprep.subr.mxu0 0.0
  %2666 = vmatpush1.msra.mxu0 0.0
  %2667 = vmatprep.subr.mxu0 0.0
  %2668 = vmatpush1.msra.mxu0 0.0
  %2669 = vmatprep.subr.mxu0 0.0
  %2670 = vmatpush1.msra.mxu0 0.0
  %2671 = vmatprep.subr.mxu0 0.0
  %2672 = vmatpush1.msra.mxu0 0.0
  %2673 = vmatprep.subr.mxu0 0.0
  %2674 = vmatpush1.msra.mxu0 0.0
  %2675 = vmatprep.subr.mxu0 0.0
  %2676 = vmatpush1.msra.mxu0 0.0
  %2677 = vmatprep.subr.mxu0 0.0
  %2678 = vmatpush1.msra.mxu0 0.0
  %2679 = vmatprep.subr.mxu0 0.0
  %2680 = vmatpush1.msra.mxu0 0.0
  %2681 = vmatprep.subr.mxu0 0.0
  %2682 = vmatpush1.msra.mxu0 0.0
  %2683 = vmatprep.subr.mxu0 0.0
  %2684 = vmatpush1.msra.mxu0 0.0
  %2685 = vmatprep.subr.mxu0 0.0
  %2686 = vmatpush1.msra.mxu0 0.0
  %2687 = vmatprep.subr.mxu0 0.0
  %2688 = vmatpush1.msra.mxu0 0.0
  %2689 = vmatprep.subr.mxu0 0.0
  %2690 = vmatpush1.msra.mxu0 0.0
  %2691 = vmatprep.subr.mxu0 0.0
  %2692 = vmatpush1.msra.mxu0 0.0
  %2693 = vmatprep.subr.mxu0 0.0
  %2694 = vmatpush1.msra.mxu0 0.0
  %2695 = vmatprep.subr.mxu0 0.0
  %2696 = vmatpush1.msra.mxu0 0.0
  %2697 = vmatprep.subr.mxu0 0.0
  %2698 = vmatpush1.msra.mxu0 0.0
  %2699 = vmatprep.subr.mxu0 0.0
  %2700 = vmatpush1.msra.mxu0 0.0
  %2701 = vmatprep.subr.mxu0 0.0
  %2702 = vmatpush1.msra.mxu0 0.0
  %2703 = vmatprep.subr.mxu0 0.0
  %2704 = vmatpush1.msra.mxu0 0.0
  %2705 = vmatprep.subr.mxu0 0.0
  %2706 = vmatpush1.msra.mxu0 0.0
  %2707 = vmatprep.subr.mxu0 0.0
  %2708 = vmatpush1.msra.mxu0 0.0
  %2709 = vmatprep.subr.mxu0 0.0
  %2710 = vmatpush1.msra.mxu0 0.0
  %2711 = vmatprep.mubr.f32.mxu0 0.0
  %2712 = vmatmul.mubr.f32.gmra.mrb[0].mxu0 %v2574
  %v2713 = vpop.f32.mrb[0].mxu0
  %v2714 = vadd.f32 0.0, %v2713
  %v2715 = vpop.f32.mrb[0].mxu0
  %v2716 = vadd.f32 0.0, %v2715
  %2717 = vdwg.mxu0
  %2718 = vmatprep.subr.mxu0 %v1628
  %2719 = vmatpush1.msra.mxu0 %v1627
  %2720 = vmatprep.subr.mxu0 %v1640
  %2721 = vmatpush1.msra.mxu0 %v1639
  %2722 = vmatprep.subr.mxu0 %v1652
  %2723 = vmatpush1.msra.mxu0 %v1651
  %2724 = vmatprep.subr.mxu0 %v1664
  %2725 = vmatpush1.msra.mxu0 %v1663
  %2726 = vmatprep.subr.mxu0 %v1676
  %2727 = vmatpush1.msra.mxu0 %v1675
  %2728 = vmatprep.subr.mxu0 %v1688
  %2729 = vmatpush1.msra.mxu0 %v1687
  %2730 = vmatprep.subr.mxu0 %v1700
  %2731 = vmatpush1.msra.mxu0 %v1699
  %2732 = vmatprep.subr.mxu0 %v1712
  %2733 = vmatpush1.msra.mxu0 %v1711
  %2734 = vmatprep.subr.mxu0 0.0
  %2735 = vmatpush1.msra.mxu0 0.0
  %2736 = vmatprep.subr.mxu0 0.0
  %2737 = vmatpush1.msra.mxu0 0.0
  %2738 = vmatprep.subr.mxu0 0.0
  %2739 = vmatpush1.msra.mxu0 0.0
  %2740 = vmatprep.subr.mxu0 0.0
  %2741 = vmatpush1.msra.mxu0 0.0
  %2742 = vmatprep.subr.mxu0 0.0
  %2743 = vmatpush1.msra.mxu0 0.0
  %2744 = vmatprep.subr.mxu0 0.0
  %2745 = vmatpush1.msra.mxu0 0.0
  %2746 = vmatprep.subr.mxu0 0.0
  %2747 = vmatpush1.msra.mxu0 0.0
  %2748 = vmatprep.subr.mxu0 0.0
  %2749 = vmatpush1.msra.mxu0 0.0
  %2750 = vmatprep.subr.mxu0 0.0
  %2751 = vmatpush1.msra.mxu0 0.0
  %2752 = vmatprep.subr.mxu0 0.0
  %2753 = vmatpush1.msra.mxu0 0.0
  %2754 = vmatprep.subr.mxu0 0.0
  %2755 = vmatpush1.msra.mxu0 0.0
  %2756 = vmatprep.subr.mxu0 0.0
  %2757 = vmatpush1.msra.mxu0 0.0
  %2758 = vmatprep.subr.mxu0 0.0
  %2759 = vmatpush1.msra.mxu0 0.0
  %2760 = vmatprep.subr.mxu0 0.0
  %2761 = vmatpush1.msra.mxu0 0.0
  %2762 = vmatprep.subr.mxu0 0.0
  %2763 = vmatpush1.msra.mxu0 0.0
  %2764 = vmatprep.subr.mxu0 0.0
  %2765 = vmatpush1.msra.mxu0 0.0
  %2766 = vmatprep.subr.mxu0 0.0
  %2767 = vmatpush1.msra.mxu0 0.0
  %2768 = vmatprep.subr.mxu0 0.0
  %2769 = vmatpush1.msra.mxu0 0.0
  %2770 = vmatprep.subr.mxu0 0.0
  %2771 = vmatpush1.msra.mxu0 0.0
  %2772 = vmatprep.subr.mxu0 0.0
  %2773 = vmatpush1.msra.mxu0 0.0
  %2774 = vmatprep.subr.mxu0 0.0
  %2775 = vmatpush1.msra.mxu0 0.0
  %2776 = vmatprep.subr.mxu0 0.0
  %2777 = vmatpush1.msra.mxu0 0.0
  %2778 = vmatprep.subr.mxu0 0.0
  %2779 = vmatpush1.msra.mxu0 0.0
  %2780 = vmatprep.subr.mxu0 0.0
  %2781 = vmatpush1.msra.mxu0 0.0
  %2782 = vmatprep.mubr.f32.mxu0 0.0
  %2783 = vmatmul.mubr.f32.gmra.mrb[0].mxu0 %v2574
  %v2784 = vpop.f32.mrb[0].mxu0
  %v2785 = vadd.f32 0.0, %v2784
  %v2786 = vpop.f32.mrb[0].mxu0
  %v2787 = vadd.f32 0.0, %v2786
  %2788 = vdwg.mxu0
  %2789 = vmatprep.subr.mxu0 %v1630
  %2790 = vmatpush1.msra.mxu0 %v1629
  %2791 = vmatprep.subr.mxu0 %v1642
  %2792 = vmatpush1.msra.mxu0 %v1641
  %2793 = vmatprep.subr.mxu0 %v1654
  %2794 = vmatpush1.msra.mxu0 %v1653
  %2795 = vmatprep.subr.mxu0 %v1666
  %2796 = vmatpush1.msra.mxu0 %v1665
  %2797 = vmatprep.subr.mxu0 %v1678
  %2798 = vmatpush1.msra.mxu0 %v1677
  %2799 = vmatprep.subr.mxu0 %v1690
  %2800 = vmatpush1.msra.mxu0 %v1689
  %2801 = vmatprep.subr.mxu0 %v1702
  %2802 = vmatpush1.msra.mxu0 %v1701
  %2803 = vmatprep.subr.mxu0 %v1714
  %2804 = vmatpush1.msra.mxu0 %v1713
  %2805 = vmatprep.subr.mxu0 0.0
  %2806 = vmatpush1.msra.mxu0 0.0
  %2807 = vmatprep.subr.mxu0 0.0
  %2808 = vmatpush1.msra.mxu0 0.0
  %2809 = vmatprep.subr.mxu0 0.0
  %2810 = vmatpush1.msra.mxu0 0.0
  %2811 = vmatprep.subr.mxu0 0.0
  %2812 = vmatpush1.msra.mxu0 0.0
  %2813 = vmatprep.subr.mxu0 0.0
  %2814 = vmatpush1.msra.mxu0 0.0
  %2815 = vmatprep.subr.mxu0 0.0
  %2816 = vmatpush1.msra.mxu0 0.0
  %2817 = vmatprep.subr.mxu0 0.0
  %2818 = vmatpush1.msra.mxu0 0.0
  %2819 = vmatprep.subr.mxu0 0.0
  %2820 = vmatpush1.msra.mxu0 0.0
  %2821 = vmatprep.subr.mxu0 0.0
  %2822 = vmatpush1.msra.mxu0 0.0
  %2823 = vmatprep.subr.mxu0 0.0
  %2824 = vmatpush1.msra.mxu0 0.0
  %2825 = vmatprep.subr.mxu0 0.0
  %2826 = vmatpush1.msra.mxu0 0.0
  %2827 = vmatprep.subr.mxu0 0.0
  %2828 = vmatpush1.msra.mxu0 0.0
  %2829 = vmatprep.subr.mxu0 0.0
  %2830 = vmatpush1.msra.mxu0 0.0
  %2831 = vmatprep.subr.mxu0 0.0
  %2832 = vmatpush1.msra.mxu0 0.0
  %2833 = vmatprep.subr.mxu0 0.0
  %2834 = vmatpush1.msra.mxu0 0.0
  %2835 = vmatprep.subr.mxu0 0.0
  %2836 = vmatpush1.msra.mxu0 0.0
  %2837 = vmatprep.subr.mxu0 0.0
  %2838 = vmatpush1.msra.mxu0 0.0
  %2839 = vmatprep.subr.mxu0 0.0
  %2840 = vmatpush1.msra.mxu0 0.0
  %2841 = vmatprep.subr.mxu0 0.0
  %2842 = vmatpush1.msra.mxu0 0.0
  %2843 = vmatprep.subr.mxu0 0.0
  %2844 = vmatpush1.msra.mxu0 0.0
  %2845 = vmatprep.subr.mxu0 0.0
  %2846 = vmatpush1.msra.mxu0 0.0
  %2847 = vmatprep.subr.mxu0 0.0
  %2848 = vmatpush1.msra.mxu0 0.0
  %2849 = vmatprep.subr.mxu0 0.0
  %2850 = vmatpush1.msra.mxu0 0.0
  %2851 = vmatprep.subr.mxu0 0.0
  %2852 = vmatpush1.msra.mxu0 0.0
  %2853 = vmatprep.mubr.f32.mxu0 0.0
  %2854 = vmatmul.mubr.f32.gmra.mrb[0].mxu0 %v2574
  %v2855 = vpop.f32.mrb[0].mxu0
  %v2856 = vadd.f32 0.0, %v2855
  %v2857 = vpop.f32.mrb[0].mxu0
  %v2858 = vadd.f32 0.0, %v2857
  %2859 = vdwg.mxu0
  %2860 = vmatprep.subr.mxu0 %v1632
  %2861 = vmatpush1.msra.mxu0 %v1631
  %2862 = vmatprep.subr.mxu0 %v1644
  %2863 = vmatpush1.msra.mxu0 %v1643
  %2864 = vmatprep.subr.mxu0 %v1656
  %2865 = vmatpush1.msra.mxu0 %v1655
  %2866 = vmatprep.subr.mxu0 %v1668
  %2867 = vmatpush1.msra.mxu0 %v1667
  %2868 = vmatprep.subr.mxu0 %v1680
  %2869 = vmatpush1.msra.mxu0 %v1679
  %2870 = vmatprep.subr.mxu0 %v1692
  %2871 = vmatpush1.msra.mxu0 %v1691
  %2872 = vmatprep.subr.mxu0 %v1704
  %2873 = vmatpush1.msra.mxu0 %v1703
  %2874 = vmatprep.subr.mxu0 %v1716
  %2875 = vmatpush1.msra.mxu0 %v1715
  %2876 = vmatprep.subr.mxu0 0.0
  %2877 = vmatpush1.msra.mxu0 0.0
  %2878 = vmatprep.subr.mxu0 0.0
  %2879 = vmatpush1.msra.mxu0 0.0
  %2880 = vmatprep.subr.mxu0 0.0
  %2881 = vmatpush1.msra.mxu0 0.0
  %2882 = vmatprep.subr.mxu0 0.0
  %2883 = vmatpush1.msra.mxu0 0.0
  %2884 = vmatprep.subr.mxu0 0.0
  %2885 = vmatpush1.msra.mxu0 0.0
  %2886 = vmatprep.subr.mxu0 0.0
  %2887 = vmatpush1.msra.mxu0 0.0
  %2888 = vmatprep.subr.mxu0 0.0
  %2889 = vmatpush1.msra.mxu0 0.0
  %2890 = vmatprep.subr.mxu0 0.0
  %2891 = vmatpush1.msra.mxu0 0.0
  %2892 = vmatprep.subr.mxu0 0.0
  %2893 = vmatpush1.msra.mxu0 0.0
  %2894 = vmatprep.subr.mxu0 0.0
  %2895 = vmatpush1.msra.mxu0 0.0
  %2896 = vmatprep.subr.mxu0 0.0
  %2897 = vmatpush1.msra.mxu0 0.0
  %2898 = vmatprep.subr.mxu0 0.0
  %2899 = vmatpush1.msra.mxu0 0.0
  %2900 = vmatprep.subr.mxu0 0.0
  %2901 = vmatpush1.msra.mxu0 0.0
  %2902 = vmatprep.subr.mxu0 0.0
  %2903 = vmatpush1.msra.mxu0 0.0
  %2904 = vmatprep.subr.mxu0 0.0
  %2905 = vmatpush1.msra.mxu0 0.0
  %2906 = vmatprep.subr.mxu0 0.0
  %2907 = vmatpush1.msra.mxu0 0.0
  %2908 = vmatprep.subr.mxu0 0.0
  %2909 = vmatpush1.msra.mxu0 0.0
  %2910 = vmatprep.subr.mxu0 0.0
  %2911 = vmatpush1.msra.mxu0 0.0
  %2912 = vmatprep.subr.mxu0 0.0
  %2913 = vmatpush1.msra.mxu0 0.0
  %2914 = vmatprep.subr.mxu0 0.0
  %2915 = vmatpush1.msra.mxu0 0.0
  %2916 = vmatprep.subr.mxu0 0.0
  %2917 = vmatpush1.msra.mxu0 0.0
  %2918 = vmatprep.subr.mxu0 0.0
  %2919 = vmatpush1.msra.mxu0 0.0
  %2920 = vmatprep.subr.mxu0 0.0
  %2921 = vmatpush1.msra.mxu0 0.0
  %2922 = vmatprep.subr.mxu0 0.0
  %2923 = vmatpush1.msra.mxu0 0.0
  %2924 = vmatprep.mubr.f32.mxu0 0.0
  %2925 = vmatmul.mubr.f32.gmra.mrb[0].mxu0 %v2574
  %v2926 = vpop.f32.mrb[0].mxu0
  %v2927 = vadd.f32 0.0, %v2926
  %v2928 = vpop.f32.mrb[0].mxu0
  %v2929 = vadd.f32 0.0, %v2928
  %2930 = vdwg.mxu0
  %2931 = vmatprep.subr.mxu0 %v1634
  %2932 = vmatpush1.msra.mxu0 %v1633
  %2933 = vmatprep.subr.mxu0 %v1646
  %2934 = vmatpush1.msra.mxu0 %v1645
  %2935 = vmatprep.subr.mxu0 %v1658
  %2936 = vmatpush1.msra.mxu0 %v1657
  %2937 = vmatprep.subr.mxu0 %v1670
  %2938 = vmatpush1.msra.mxu0 %v1669
  %2939 = vmatprep.subr.mxu0 %v1682
  %2940 = vmatpush1.msra.mxu0 %v1681
  %2941 = vmatprep.subr.mxu0 %v1694
  %2942 = vmatpush1.msra.mxu0 %v1693
  %2943 = vmatprep.subr.mxu0 %v1706
  %2944 = vmatpush1.msra.mxu0 %v1705
  %2945 = vmatprep.subr.mxu0 %v1718
  %2946 = vmatpush1.msra.mxu0 %v1717
  %2947 = vmatprep.subr.mxu0 0.0
  %2948 = vmatpush1.msra.mxu0 0.0
  %2949 = vmatprep.subr.mxu0 0.0
  %2950 = vmatpush1.msra.mxu0 0.0
  %2951 = vmatprep.subr.mxu0 0.0
  %2952 = vmatpush1.msra.mxu0 0.0
  %2953 = vmatprep.subr.mxu0 0.0
  %2954 = vmatpush1.msra.mxu0 0.0
  %2955 = vmatprep.subr.mxu0 0.0
  %2956 = vmatpush1.msra.mxu0 0.0
  %2957 = vmatprep.subr.mxu0 0.0
  %2958 = vmatpush1.msra.mxu0 0.0
  %2959 = vmatprep.subr.mxu0 0.0
  %2960 = vmatpush1.msra.mxu0 0.0
  %2961 = vmatprep.subr.mxu0 0.0
  %2962 = vmatpush1.msra.mxu0 0.0
  %2963 = vmatprep.subr.mxu0 0.0
  %2964 = vmatpush1.msra.mxu0 0.0
  %2965 = vmatprep.subr.mxu0 0.0
  %2966 = vmatpush1.msra.mxu0 0.0
  %2967 = vmatprep.subr.mxu0 0.0
  %2968 = vmatpush1.msra.mxu0 0.0
  %2969 = vmatprep.subr.mxu0 0.0
  %2970 = vmatpush1.msra.mxu0 0.0
  %2971 = vmatprep.subr.mxu0 0.0
  %2972 = vmatpush1.msra.mxu0 0.0
  %2973 = vmatprep.subr.mxu0 0.0
  %2974 = vmatpush1.msra.mxu0 0.0
  %2975 = vmatprep.subr.mxu0 0.0
  %2976 = vmatpush1.msra.mxu0 0.0
  %2977 = vmatprep.subr.mxu0 0.0
  %2978 = vmatpush1.msra.mxu0 0.0
  %2979 = vmatprep.subr.mxu0 0.0
  %2980 = vmatpush1.msra.mxu0 0.0
  %2981 = vmatprep.subr.mxu0 0.0
  %2982 = vmatpush1.msra.mxu0 0.0
  %2983 = vmatprep.subr.mxu0 0.0
  %2984 = vmatpush1.msra.mxu0 0.0
  %2985 = vmatprep.subr.mxu0 0.0
  %2986 = vmatpush1.msra.mxu0 0.0
  %2987 = vmatprep.subr.mxu0 0.0
  %2988 = vmatpush1.msra.mxu0 0.0
  %2989 = vmatprep.subr.mxu0 0.0
  %2990 = vmatpush1.msra.mxu0 0.0
  %2991 = vmatprep.subr.mxu0 0.0
  %2992 = vmatpush1.msra.mxu0 0.0
  %2993 = vmatprep.subr.mxu0 0.0
  %2994 = vmatpush1.msra.mxu0 0.0
  %2995 = vmatprep.mubr.f32.mxu0 0.0
  %2996 = vmatmul.mubr.f32.gmra.mrb[0].mxu0 %v2574
  %v2997 = vpop.f32.mrb[0].mxu0
  %v2998 = vadd.f32 0.0, %v2997
  %v2999 = vpop.f32.mrb[0].mxu0
  %v3000 = vadd.f32 0.0, %v2999
  %3001 = vdwg.mxu0
  %v3002 = vlaneseq
  %v3003 = vshrl.u32 %v3002, 7
  %v3004 = vsub.s32 0, %v3003
  %v3005 = vrot.slane %v2643, %v3004
  %v3006 = vlaneseq
  %v3007 = vshrl.u32 %v3006, 7
  %v3008 = vsub.s32 0, %v3007
  %v3009 = vrot.slane %v2645, %v3008
  %v3010 = vlaneseq
  %v3011 = vshrl.u32 %v3010, 7
  %v3012 = vsub.s32 0, %v3011
  %v3013 = vrot.slane %v2714, %v3012
  %v3014 = vlaneseq
  %v3015 = vshrl.u32 %v3014, 7
  %v3016 = vsub.s32 0, %v3015
  %v3017 = vrot.slane %v2716, %v3016
  %v3018 = vlaneseq
  %v3019 = vshrl.u32 %v3018, 7
  %v3020 = vsub.s32 0, %v3019
  %v3021 = vrot.slane %v2785, %v3020
  %v3022 = vlaneseq
  %v3023 = vshrl.u32 %v3022, 7
  %v3024 = vsub.s32 0, %v3023
  %v3025 = vrot.slane %v2787, %v3024
  %v3026 = vlaneseq
  %v3027 = vshrl.u32 %v3026, 7
  %v3028 = vsub.s32 0, %v3027
  %v3029 = vrot.slane %v2856, %v3028
  %v3030 = vlaneseq
  %v3031 = vshrl.u32 %v3030, 7
  %v3032 = vsub.s32 0, %v3031
  %v3033 = vrot.slane %v2858, %v3032
  %v3034 = vlaneseq
  %v3035 = vshrl.u32 %v3034, 7
  %v3036 = vsub.s32 0, %v3035
  %v3037 = vrot.slane %v2927, %v3036
  %v3038 = vlaneseq
  %v3039 = vshrl.u32 %v3038, 7
  %v3040 = vsub.s32 0, %v3039
  %v3041 = vrot.slane %v2929, %v3040
  %v3042 = vlaneseq
  %v3043 = vshrl.u32 %v3042, 7
  %v3044 = vsub.s32 0, %v3043
  %v3045 = vrot.slane %v2998, %v3044
  %v3046 = vlaneseq
  %v3047 = vshrl.u32 %v3046, 7
  %v3048 = vsub.s32 0, %v3047
  %v3049 = vrot.slane %v3000, %v3048
  %v3050 = vmul.f32 %v799, %v3005
  %v3051 = vmul.f32 %v801, %v3009
  %v3052 = vmul.f32 %v840, %v3013
  %v3053 = vmul.f32 %v842, %v3017
  %v3054 = vmul.f32 %v881, %v3021
  %v3055 = vmul.f32 %v883, %v3025
  %v3056 = vmul.f32 %v922, %v3029
  %v3057 = vmul.f32 %v924, %v3033
  %v3058 = vmul.f32 %v963, %v3037
  %v3059 = vmul.f32 %v965, %v3041
  %v3060 = vmul.f32 %v1004, %v3045
  %v3061 = vmul.f32 %v1006, %v3049
  %v3063 = vsel %vm2572, %v2571, 0
  %3065 = vmatprep.subr.mxu0 %v1624
  %3066 = vmatpush1.msra.mxu0 %v1623
  %3067 = vmatprep.subr.mxu0 %v1636
  %3068 = vmatpush1.msra.mxu0 %v1635
  %3069 = vmatprep.subr.mxu0 %v1648
  %3070 = vmatpush1.msra.mxu0 %v1647
  %3071 = vmatprep.subr.mxu0 %v1660
  %3072 = vmatpush1.msra.mxu0 %v1659
  %3073 = vmatprep.subr.mxu0 %v1672
  %3074 = vmatpush1.msra.mxu0 %v1671
  %3075 = vmatprep.subr.mxu0 %v1684
  %3076 = vmatpush1.msra.mxu0 %v1683
  %3077 = vmatprep.subr.mxu0 %v1696
  %3078 = vmatpush1.msra.mxu0 %v1695
  %3079 = vmatprep.subr.mxu0 %v1708
  %3080 = vmatpush1.msra.mxu0 %v1707
  %3081 = vmatprep.subr.mxu0 0.0
  %3082 = vmatpush1.msra.mxu0 0.0
  %3083 = vmatprep.subr.mxu0 0.0
  %3084 = vmatpush1.msra.mxu0 0.0
  %3085 = vmatprep.subr.mxu0 0.0
  %3086 = vmatpush1.msra.mxu0 0.0
  %3087 = vmatprep.subr.mxu0 0.0
  %3088 = vmatpush1.msra.mxu0 0.0
  %3089 = vmatprep.subr.mxu0 0.0
  %3090 = vmatpush1.msra.mxu0 0.0
  %3091 = vmatprep.subr.mxu0 0.0
  %3092 = vmatpush1.msra.mxu0 0.0
  %3093 = vmatprep.subr.mxu0 0.0
  %3094 = vmatpush1.msra.mxu0 0.0
  %3095 = vmatprep.subr.mxu0 0.0
  %3096 = vmatpush1.msra.mxu0 0.0
  %3097 = vmatprep.subr.mxu0 0.0
  %3098 = vmatpush1.msra.mxu0 0.0
  %3099 = vmatprep.subr.mxu0 0.0
  %3100 = vmatpush1.msra.mxu0 0.0
  %3101 = vmatprep.subr.mxu0 0.0
  %3102 = vmatpush1.msra.mxu0 0.0
  %3103 = vmatprep.subr.mxu0 0.0
  %3104 = vmatpush1.msra.mxu0 0.0
  %3105 = vmatprep.subr.mxu0 0.0
  %3106 = vmatpush1.msra.mxu0 0.0
  %3107 = vmatprep.subr.mxu0 0.0
  %3108 = vmatpush1.msra.mxu0 0.0
  %3109 = vmatprep.subr.mxu0 0.0
  %3110 = vmatpush1.msra.mxu0 0.0
  %3111 = vmatprep.subr.mxu0 0.0
  %3112 = vmatpush1.msra.mxu0 0.0
  %3113 = vmatprep.subr.mxu0 0.0
  %3114 = vmatpush1.msra.mxu0 0.0
  %3115 = vmatprep.subr.mxu0 0.0
  %3116 = vmatpush1.msra.mxu0 0.0
  %3117 = vmatprep.subr.mxu0 0.0
  %3118 = vmatpush1.msra.mxu0 0.0
  %3119 = vmatprep.subr.mxu0 0.0
  %3120 = vmatpush1.msra.mxu0 0.0
  %3121 = vmatprep.subr.mxu0 0.0
  %3122 = vmatpush1.msra.mxu0 0.0
  %3123 = vmatprep.subr.mxu0 0.0
  %3124 = vmatpush1.msra.mxu0 0.0
  %3125 = vmatprep.subr.mxu0 0.0
  %3126 = vmatpush1.msra.mxu0 0.0
  %3127 = vmatprep.subr.mxu0 0.0
  %3128 = vmatpush1.msra.mxu0 0.0
  %3129 = vmatprep.mubr.f32.mxu0 0.0
  %3130 = vmatmul.mubr.f32.gmra.mrb[0].mxu0 %v3063
  %v3131 = vpop.f32.mrb[0].mxu0
  %v3132 = vadd.f32 0.0, %v3131
  %v3133 = vpop.f32.mrb[0].mxu0
  %v3134 = vadd.f32 0.0, %v3133
  %3135 = vdwg.mxu0
  %3136 = vmatprep.subr.mxu0 %v1626
  %3137 = vmatpush1.msra.mxu0 %v1625
  %3138 = vmatprep.subr.mxu0 %v1638
  %3139 = vmatpush1.msra.mxu0 %v1637
  %3140 = vmatprep.subr.mxu0 %v1650
  %3141 = vmatpush1.msra.mxu0 %v1649
  %3142 = vmatprep.subr.mxu0 %v1662
  %3143 = vmatpush1.msra.mxu0 %v1661
  %3144 = vmatprep.subr.mxu0 %v1674
  %3145 = vmatpush1.msra.mxu0 %v1673
  %3146 = vmatprep.subr.mxu0 %v1686
  %3147 = vmatpush1.msra.mxu0 %v1685
  %3148 = vmatprep.subr.mxu0 %v1698
  %3149 = vmatpush1.msra.mxu0 %v1697
  %3150 = vmatprep.subr.mxu0 %v1710
  %3151 = vmatpush1.msra.mxu0 %v1709
  %3152 = vmatprep.subr.mxu0 0.0
  %3153 = vmatpush1.msra.mxu0 0.0
  %3154 = vmatprep.subr.mxu0 0.0
  %3155 = vmatpush1.msra.mxu0 0.0
  %3156 = vmatprep.subr.mxu0 0.0
  %3157 = vmatpush1.msra.mxu0 0.0
  %3158 = vmatprep.subr.mxu0 0.0
  %3159 = vmatpush1.msra.mxu0 0.0
  %3160 = vmatprep.subr.mxu0 0.0
  %3161 = vmatpush1.msra.mxu0 0.0
  %3162 = vmatprep.subr.mxu0 0.0
  %3163 = vmatpush1.msra.mxu0 0.0
  %3164 = vmatprep.subr.mxu0 0.0
  %3165 = vmatpush1.msra.mxu0 0.0
  %3166 = vmatprep.subr.mxu0 0.0
  %3167 = vmatpush1.msra.mxu0 0.0
  %3168 = vmatprep.subr.mxu0 0.0
  %3169 = vmatpush1.msra.mxu0 0.0
  %3170 = vmatprep.subr.mxu0 0.0
  %3171 = vmatpush1.msra.mxu0 0.0
  %3172 = vmatprep.subr.mxu0 0.0
  %3173 = vmatpush1.msra.mxu0 0.0
  %3174 = vmatprep.subr.mxu0 0.0
  %3175 = vmatpush1.msra.mxu0 0.0
  %3176 = vmatprep.subr.mxu0 0.0
  %3177 = vmatpush1.msra.mxu0 0.0
  %3178 = vmatprep.subr.mxu0 0.0
  %3179 = vmatpush1.msra.mxu0 0.0
  %3180 = vmatprep.subr.mxu0 0.0
  %3181 = vmatpush1.msra.mxu0 0.0
  %3182 = vmatprep.subr.mxu0 0.0
  %3183 = vmatpush1.msra.mxu0 0.0
  %3184 = vmatprep.subr.mxu0 0.0
  %3185 = vmatpush1.msra.mxu0 0.0
  %3186 = vmatprep.subr.mxu0 0.0
  %3187 = vmatpush1.msra.mxu0 0.0
  %3188 = vmatprep.subr.mxu0 0.0
  %3189 = vmatpush1.msra.mxu0 0.0
  %3190 = vmatprep.subr.mxu0 0.0
  %3191 = vmatpush1.msra.mxu0 0.0
  %3192 = vmatprep.subr.mxu0 0.0
  %3193 = vmatpush1.msra.mxu0 0.0
  %3194 = vmatprep.subr.mxu0 0.0
  %3195 = vmatpush1.msra.mxu0 0.0
  %3196 = vmatprep.subr.mxu0 0.0
  %3197 = vmatpush1.msra.mxu0 0.0
  %3198 = vmatprep.subr.mxu0 0.0
  %3199 = vmatpush1.msra.mxu0 0.0
  %3200 = vmatprep.mubr.f32.mxu0 0.0
  %3201 = vmatmul.mubr.f32.gmra.mrb[0].mxu0 %v3063
  %v3202 = vpop.f32.mrb[0].mxu0
  %v3203 = vadd.f32 0.0, %v3202
  %v3204 = vpop.f32.mrb[0].mxu0
  %v3205 = vadd.f32 0.0, %v3204
  %3206 = vdwg.mxu0
  %3207 = vmatprep.subr.mxu0 %v1628
  %3208 = vmatpush1.msra.mxu0 %v1627
  %3209 = vmatprep.subr.mxu0 %v1640
  %3210 = vmatpush1.msra.mxu0 %v1639
  %3211 = vmatprep.subr.mxu0 %v1652
  %3212 = vmatpush1.msra.mxu0 %v1651
  %3213 = vmatprep.subr.mxu0 %v1664
  %3214 = vmatpush1.msra.mxu0 %v1663
  %3215 = vmatprep.subr.mxu0 %v1676
  %3216 = vmatpush1.msra.mxu0 %v1675
  %3217 = vmatprep.subr.mxu0 %v1688
  %3218 = vmatpush1.msra.mxu0 %v1687
  %3219 = vmatprep.subr.mxu0 %v1700
  %3220 = vmatpush1.msra.mxu0 %v1699
  %3221 = vmatprep.subr.mxu0 %v1712
  %3222 = vmatpush1.msra.mxu0 %v1711
  %3223 = vmatprep.subr.mxu0 0.0
  %3224 = vmatpush1.msra.mxu0 0.0
  %3225 = vmatprep.subr.mxu0 0.0
  %3226 = vmatpush1.msra.mxu0 0.0
  %3227 = vmatprep.subr.mxu0 0.0
  %3228 = vmatpush1.msra.mxu0 0.0
  %3229 = vmatprep.subr.mxu0 0.0
  %3230 = vmatpush1.msra.mxu0 0.0
  %3231 = vmatprep.subr.mxu0 0.0
  %3232 = vmatpush1.msra.mxu0 0.0
  %3233 = vmatprep.subr.mxu0 0.0
  %3234 = vmatpush1.msra.mxu0 0.0
  %3235 = vmatprep.subr.mxu0 0.0
  %3236 = vmatpush1.msra.mxu0 0.0
  %3237 = vmatprep.subr.mxu0 0.0
  %3238 = vmatpush1.msra.mxu0 0.0
  %3239 = vmatprep.subr.mxu0 0.0
  %3240 = vmatpush1.msra.mxu0 0.0
  %3241 = vmatprep.subr.mxu0 0.0
  %3242 = vmatpush1.msra.mxu0 0.0
  %3243 = vmatprep.subr.mxu0 0.0
  %3244 = vmatpush1.msra.mxu0 0.0
  %3245 = vmatprep.subr.mxu0 0.0
  %3246 = vmatpush1.msra.mxu0 0.0
  %3247 = vmatprep.subr.mxu0 0.0
  %3248 = vmatpush1.msra.mxu0 0.0
  %3249 = vmatprep.subr.mxu0 0.0
  %3250 = vmatpush1.msra.mxu0 0.0
  %3251 = vmatprep.subr.mxu0 0.0
  %3252 = vmatpush1.msra.mxu0 0.0
  %3253 = vmatprep.subr.mxu0 0.0
  %3254 = vmatpush1.msra.mxu0 0.0
  %3255 = vmatprep.subr.mxu0 0.0
  %3256 = vmatpush1.msra.mxu0 0.0
  %3257 = vmatprep.subr.mxu0 0.0
  %3258 = vmatpush1.msra.mxu0 0.0
  %3259 = vmatprep.subr.mxu0 0.0
  %3260 = vmatpush1.msra.mxu0 0.0
  %3261 = vmatprep.subr.mxu0 0.0
  %3262 = vmatpush1.msra.mxu0 0.0
  %3263 = vmatprep.subr.mxu0 0.0
  %3264 = vmatpush1.msra.mxu0 0.0
  %3265 = vmatprep.subr.mxu0 0.0
  %3266 = vmatpush1.msra.mxu0 0.0
  %3267 = vmatprep.subr.mxu0 0.0
  %3268 = vmatpush1.msra.mxu0 0.0
  %3269 = vmatprep.subr.mxu0 0.0
  %3270 = vmatpush1.msra.mxu0 0.0
  %3271 = vmatprep.mubr.f32.mxu0 0.0
  %3272 = vmatmul.mubr.f32.gmra.mrb[0].mxu0 %v3063
  %v3273 = vpop.f32.mrb[0].mxu0
  %v3274 = vadd.f32 0.0, %v3273
  %v3275 = vpop.f32.mrb[0].mxu0
  %v3276 = vadd.f32 0.0, %v3275
  %3277 = vdwg.mxu0
  %3278 = vmatprep.subr.mxu0 %v1630
  %3279 = vmatpush1.msra.mxu0 %v1629
  %3280 = vmatprep.subr.mxu0 %v1642
  %3281 = vmatpush1.msra.mxu0 %v1641
  %3282 = vmatprep.subr.mxu0 %v1654
  %3283 = vmatpush1.msra.mxu0 %v1653
  %3284 = vmatprep.subr.mxu0 %v1666
  %3285 = vmatpush1.msra.mxu0 %v1665
  %3286 = vmatprep.subr.mxu0 %v1678
  %3287 = vmatpush1.msra.mxu0 %v1677
  %3288 = vmatprep.subr.mxu0 %v1690
  %3289 = vmatpush1.msra.mxu0 %v1689
  %3290 = vmatprep.subr.mxu0 %v1702
  %3291 = vmatpush1.msra.mxu0 %v1701
  %3292 = vmatprep.subr.mxu0 %v1714
  %3293 = vmatpush1.msra.mxu0 %v1713
  %3294 = vmatprep.subr.mxu0 0.0
  %3295 = vmatpush1.msra.mxu0 0.0
  %3296 = vmatprep.subr.mxu0 0.0
  %3297 = vmatpush1.msra.mxu0 0.0
  %3298 = vmatprep.subr.mxu0 0.0
  %3299 = vmatpush1.msra.mxu0 0.0
  %3300 = vmatprep.subr.mxu0 0.0
  %3301 = vmatpush1.msra.mxu0 0.0
  %3302 = vmatprep.subr.mxu0 0.0
  %3303 = vmatpush1.msra.mxu0 0.0
  %3304 = vmatprep.subr.mxu0 0.0
  %3305 = vmatpush1.msra.mxu0 0.0
  %3306 = vmatprep.subr.mxu0 0.0
  %3307 = vmatpush1.msra.mxu0 0.0
  %3308 = vmatprep.subr.mxu0 0.0
  %3309 = vmatpush1.msra.mxu0 0.0
  %3310 = vmatprep.subr.mxu0 0.0
  %3311 = vmatpush1.msra.mxu0 0.0
  %3312 = vmatprep.subr.mxu0 0.0
  %3313 = vmatpush1.msra.mxu0 0.0
  %3314 = vmatprep.subr.mxu0 0.0
  %3315 = vmatpush1.msra.mxu0 0.0
  %3316 = vmatprep.subr.mxu0 0.0
  %3317 = vmatpush1.msra.mxu0 0.0
  %3318 = vmatprep.subr.mxu0 0.0
  %3319 = vmatpush1.msra.mxu0 0.0
  %3320 = vmatprep.subr.mxu0 0.0
  %3321 = vmatpush1.msra.mxu0 0.0
  %3322 = vmatprep.subr.mxu0 0.0
  %3323 = vmatpush1.msra.mxu0 0.0
  %3324 = vmatprep.subr.mxu0 0.0
  %3325 = vmatpush1.msra.mxu0 0.0
  %3326 = vmatprep.subr.mxu0 0.0
  %3327 = vmatpush1.msra.mxu0 0.0
  %3328 = vmatprep.subr.mxu0 0.0
  %3329 = vmatpush1.msra.mxu0 0.0
  %3330 = vmatprep.subr.mxu0 0.0
  %3331 = vmatpush1.msra.mxu0 0.0
  %3332 = vmatprep.subr.mxu0 0.0
  %3333 = vmatpush1.msra.mxu0 0.0
  %3334 = vmatprep.subr.mxu0 0.0
  %3335 = vmatpush1.msra.mxu0 0.0
  %3336 = vmatprep.subr.mxu0 0.0
  %3337 = vmatpush1.msra.mxu0 0.0
  %3338 = vmatprep.subr.mxu0 0.0
  %3339 = vmatpush1.msra.mxu0 0.0
  %3340 = vmatprep.subr.mxu0 0.0
  %3341 = vmatpush1.msra.mxu0 0.0
  %3342 = vmatprep.mubr.f32.mxu0 0.0
  %3343 = vmatmul.mubr.f32.gmra.mrb[0].mxu0 %v3063
  %v3344 = vpop.f32.mrb[0].mxu0
  %v3345 = vadd.f32 0.0, %v3344
  %v3346 = vpop.f32.mrb[0].mxu0
  %v3347 = vadd.f32 0.0, %v3346
  %3348 = vdwg.mxu0
  %3349 = vmatprep.subr.mxu0 %v1632
  %3350 = vmatpush1.msra.mxu0 %v1631
  %3351 = vmatprep.subr.mxu0 %v1644
  %3352 = vmatpush1.msra.mxu0 %v1643
  %3353 = vmatprep.subr.mxu0 %v1656
  %3354 = vmatpush1.msra.mxu0 %v1655
  %3355 = vmatprep.subr.mxu0 %v1668
  %3356 = vmatpush1.msra.mxu0 %v1667
  %3357 = vmatprep.subr.mxu0 %v1680
  %3358 = vmatpush1.msra.mxu0 %v1679
  %3359 = vmatprep.subr.mxu0 %v1692
  %3360 = vmatpush1.msra.mxu0 %v1691
  %3361 = vmatprep.subr.mxu0 %v1704
  %3362 = vmatpush1.msra.mxu0 %v1703
  %3363 = vmatprep.subr.mxu0 %v1716
  %3364 = vmatpush1.msra.mxu0 %v1715
  %3365 = vmatprep.subr.mxu0 0.0
  %3366 = vmatpush1.msra.mxu0 0.0
  %3367 = vmatprep.subr.mxu0 0.0
  %3368 = vmatpush1.msra.mxu0 0.0
  %3369 = vmatprep.subr.mxu0 0.0
  %3370 = vmatpush1.msra.mxu0 0.0
  %3371 = vmatprep.subr.mxu0 0.0
  %3372 = vmatpush1.msra.mxu0 0.0
  %3373 = vmatprep.subr.mxu0 0.0
  %3374 = vmatpush1.msra.mxu0 0.0
  %3375 = vmatprep.subr.mxu0 0.0
  %3376 = vmatpush1.msra.mxu0 0.0
  %3377 = vmatprep.subr.mxu0 0.0
  %3378 = vmatpush1.msra.mxu0 0.0
  %3379 = vmatprep.subr.mxu0 0.0
  %3380 = vmatpush1.msra.mxu0 0.0
  %3381 = vmatprep.subr.mxu0 0.0
  %3382 = vmatpush1.msra.mxu0 0.0
  %3383 = vmatprep.subr.mxu0 0.0
  %3384 = vmatpush1.msra.mxu0 0.0
  %3385 = vmatprep.subr.mxu0 0.0
  %3386 = vmatpush1.msra.mxu0 0.0
  %3387 = vmatprep.subr.mxu0 0.0
  %3388 = vmatpush1.msra.mxu0 0.0
  %3389 = vmatprep.subr.mxu0 0.0
  %3390 = vmatpush1.msra.mxu0 0.0
  %3391 = vmatprep.subr.mxu0 0.0
  %3392 = vmatpush1.msra.mxu0 0.0
  %3393 = vmatprep.subr.mxu0 0.0
  %3394 = vmatpush1.msra.mxu0 0.0
  %3395 = vmatprep.subr.mxu0 0.0
  %3396 = vmatpush1.msra.mxu0 0.0
  %3397 = vmatprep.subr.mxu0 0.0
  %3398 = vmatpush1.msra.mxu0 0.0
  %3399 = vmatprep.subr.mxu0 0.0
  %3400 = vmatpush1.msra.mxu0 0.0
  %3401 = vmatprep.subr.mxu0 0.0
  %3402 = vmatpush1.msra.mxu0 0.0
  %3403 = vmatprep.subr.mxu0 0.0
  %3404 = vmatpush1.msra.mxu0 0.0
  %3405 = vmatprep.subr.mxu0 0.0
  %3406 = vmatpush1.msra.mxu0 0.0
  %3407 = vmatprep.subr.mxu0 0.0
  %3408 = vmatpush1.msra.mxu0 0.0
  %3409 = vmatprep.subr.mxu0 0.0
  %3410 = vmatpush1.msra.mxu0 0.0
  %3411 = vmatprep.subr.mxu0 0.0
  %3412 = vmatpush1.msra.mxu0 0.0
  %3413 = vmatprep.mubr.f32.mxu0 0.0
  %3414 = vmatmul.mubr.f32.gmra.mrb[0].mxu0 %v3063
  %v3415 = vpop.f32.mrb[0].mxu0
  %v3416 = vadd.f32 0.0, %v3415
  %v3417 = vpop.f32.mrb[0].mxu0
  %v3418 = vadd.f32 0.0, %v3417
  %3419 = vdwg.mxu0
  %3420 = vmatprep.subr.mxu0 %v1634
  %3421 = vmatpush1.msra.mxu0 %v1633
  %3422 = vmatprep.subr.mxu0 %v1646
  %3423 = vmatpush1.msra.mxu0 %v1645
  %3424 = vmatprep.subr.mxu0 %v1658
  %3425 = vmatpush1.msra.mxu0 %v1657
  %3426 = vmatprep.subr.mxu0 %v1670
  %3427 = vmatpush1.msra.mxu0 %v1669
  %3428 = vmatprep.subr.mxu0 %v1682
  %3429 = vmatpush1.msra.mxu0 %v1681
  %3430 = vmatprep.subr.mxu0 %v1694
  %3431 = vmatpush1.msra.mxu0 %v1693
  %3432 = vmatprep.subr.mxu0 %v1706
  %3433 = vmatpush1.msra.mxu0 %v1705
  %3434 = vmatprep.subr.mxu0 %v1718
  %3435 = vmatpush1.msra.mxu0 %v1717
  %3436 = vmatprep.subr.mxu0 0.0
  %3437 = vmatpush1.msra.mxu0 0.0
  %3438 = vmatprep.subr.mxu0 0.0
  %3439 = vmatpush1.msra.mxu0 0.0
  %3440 = vmatprep.subr.mxu0 0.0
  %3441 = vmatpush1.msra.mxu0 0.0
  %3442 = vmatprep.subr.mxu0 0.0
  %3443 = vmatpush1.msra.mxu0 0.0
  %3444 = vmatprep.subr.mxu0 0.0
  %3445 = vmatpush1.msra.mxu0 0.0
  %3446 = vmatprep.subr.mxu0 0.0
  %3447 = vmatpush1.msra.mxu0 0.0
  %3448 = vmatprep.subr.mxu0 0.0
  %3449 = vmatpush1.msra.mxu0 0.0
  %3450 = vmatprep.subr.mxu0 0.0
  %3451 = vmatpush1.msra.mxu0 0.0
  %3452 = vmatprep.subr.mxu0 0.0
  %3453 = vmatpush1.msra.mxu0 0.0
  %3454 = vmatprep.subr.mxu0 0.0
  %3455 = vmatpush1.msra.mxu0 0.0
  %3456 = vmatprep.subr.mxu0 0.0
  %3457 = vmatpush1.msra.mxu0 0.0
  %3458 = vmatprep.subr.mxu0 0.0
  %3459 = vmatpush1.msra.mxu0 0.0
  %3460 = vmatprep.subr.mxu0 0.0
  %3461 = vmatpush1.msra.mxu0 0.0
  %3462 = vmatprep.subr.mxu0 0.0
  %3463 = vmatpush1.msra.mxu0 0.0
  %3464 = vmatprep.subr.mxu0 0.0
  %3465 = vmatpush1.msra.mxu0 0.0
  %3466 = vmatprep.subr.mxu0 0.0
  %3467 = vmatpush1.msra.mxu0 0.0
  %3468 = vmatprep.subr.mxu0 0.0
  %3469 = vmatpush1.msra.mxu0 0.0
  %3470 = vmatprep.subr.mxu0 0.0
  %3471 = vmatpush1.msra.mxu0 0.0
  %3472 = vmatprep.subr.mxu0 0.0
  %3473 = vmatpush1.msra.mxu0 0.0
  %3474 = vmatprep.subr.mxu0 0.0
  %3475 = vmatpush1.msra.mxu0 0.0
  %3476 = vmatprep.subr.mxu0 0.0
  %3477 = vmatpush1.msra.mxu0 0.0
  %3478 = vmatprep.subr.mxu0 0.0
  %3479 = vmatpush1.msra.mxu0 0.0
  %3480 = vmatprep.subr.mxu0 0.0
  %3481 = vmatpush1.msra.mxu0 0.0
  %3482 = vmatprep.subr.mxu0 0.0
  %3483 = vmatpush1.msra.mxu0 0.0
  %3484 = vmatprep.mubr.f32.mxu0 0.0
  %3485 = vmatmul.mubr.f32.gmra.mrb[0].mxu0 %v3063
  %v3486 = vpop.f32.mrb[0].mxu0
  %v3487 = vadd.f32 0.0, %v3486
  %v3488 = vpop.f32.mrb[0].mxu0
  %v3489 = vadd.f32 0.0, %v3488
  %3490 = vdwg.mxu0
  %v3491 = vlaneseq
  %v3492 = vshrl.u32 %v3491, 7
  %v3493 = vsub.s32 0, %v3492
  %v3494 = vrot.slane %v3132, %v3493
  %v3495 = vlaneseq
  %v3496 = vshrl.u32 %v3495, 7
  %v3497 = vsub.s32 0, %v3496
  %v3498 = vrot.slane %v3134, %v3497
  %v3499 = vlaneseq
  %v3500 = vshrl.u32 %v3499, 7
  %v3501 = vsub.s32 0, %v3500
  %v3502 = vrot.slane %v3203, %v3501
  %v3503 = vlaneseq
  %v3504 = vshrl.u32 %v3503, 7
  %v3505 = vsub.s32 0, %v3504
  %v3506 = vrot.slane %v3205, %v3505
  %v3507 = vlaneseq
  %v3508 = vshrl.u32 %v3507, 7
  %v3509 = vsub.s32 0, %v3508
  %v3510 = vrot.slane %v3274, %v3509
  %v3511 = vlaneseq
  %v3512 = vshrl.u32 %v3511, 7
  %v3513 = vsub.s32 0, %v3512
  %v3514 = vrot.slane %v3276, %v3513
  %v3515 = vlaneseq
  %v3516 = vshrl.u32 %v3515, 7
  %v3517 = vsub.s32 0, %v3516
  %v3518 = vrot.slane %v3345, %v3517
  %v3519 = vlaneseq
  %v3520 = vshrl.u32 %v3519, 7
  %v3521 = vsub.s32 0, %v3520
  %v3522 = vrot.slane %v3347, %v3521
  %v3523 = vlaneseq
  %v3524 = vshrl.u32 %v3523, 7
  %v3525 = vsub.s32 0, %v3524
  %v3526 = vrot.slane %v3416, %v3525
  %v3527 = vlaneseq
  %v3528 = vshrl.u32 %v3527, 7
  %v3529 = vsub.s32 0, %v3528
  %v3530 = vrot.slane %v3418, %v3529
  %v3531 = vlaneseq
  %v3532 = vshrl.u32 %v3531, 7
  %v3533 = vsub.s32 0, %v3532
  %v3534 = vrot.slane %v3487, %v3533
  %v3535 = vlaneseq
  %v3536 = vshrl.u32 %v3535, 7
  %v3537 = vsub.s32 0, %v3536
  %v3538 = vrot.slane %v3489, %v3537
  %v3539 = vadd.f32 %v3050, %v3494
  %v3540 = vadd.f32 %v3051, %v3498
  %v3541 = vadd.f32 %v3052, %v3502
  %v3542 = vadd.f32 %v3053, %v3506
  %v3543 = vadd.f32 %v3054, %v3510
  %v3544 = vadd.f32 %v3055, %v3514
  %v3545 = vadd.f32 %v3056, %v3518
  %v3546 = vadd.f32 %v3057, %v3522
  %v3547 = vadd.f32 %v3058, %v3526
  %v3548 = vadd.f32 %v3059, %v3530
  %v3549 = vadd.f32 %v3060, %v3534
  %v3550 = vadd.f32 %v3061, %v3538
  %v3551 = vmax.f32 %v3539, 0.0
  %v3552 = vmax.f32 %v3540, 0.0
  %v3553 = vmax.f32 %v3541, 0.0
  %v3554 = vmax.f32 %v3542, 0.0
  %v3555 = vmax.f32 %v3543, 0.0
  %v3556 = vmax.f32 %v3544, 0.0
  %v3557 = vmax.f32 %v3545, 0.0
  %v3558 = vmax.f32 %v3546, 0.0
  %v3559 = vmax.f32 %v3547, 0.0
  %v3560 = vmax.f32 %v3548, 0.0
  %v3561 = vmax.f32 %v3549, 0.0
  %v3562 = vmax.f32 %v3550, 0.0
  %v3566 = vrot.slane %v3554, 6
  %v3567 = vrot.slane %v3555, 6
  %v3568 = vrot.slane %v3556, 6
  %v3575 = vrot.slane %v3557, 4
  %v3576 = vrot.slane %v3558, 4
  %v3577 = vrot.slane %v3559, 4
  %v3584 = vrot.slane %v3560, 2
  %v3585 = vrot.slane %v3561, 2
  %v3586 = vrot.slane %v3562, 2
  %v3590 = vsel %vm1010, %v3551, %v3566
  %v3591 = vsel %vm1010, %v3552, %v3567
  %v3592 = vsel %vm1010, %v3553, %v3568
  %vm3593 = vcmask 1043456
  %v3594 = vsel %vm3593, %v3590, %v3575
  %v3595 = vsel %vm3593, %v3591, %v3576
  %v3596 = vsel %vm3593, %v3592, %v3577
  %vm3597 = vcmask 1045504
  %v3598 = vsel %vm3597, %v3594, %v3584
  %v3599 = vsel %vm3597, %v3595, %v3585
  %v3600 = vsel %vm3597, %v3596, %v3586
  %v3601 = vpack.c.bf16 %v3598, %v3598
  %v3602 = vpack.c.bf16 %v3599, %v3599
  %v3603 = vpack.c.bf16 %v3600, %v3600
  %v3604 = vld [vmem:[%s8] sm:$0xf]
  %vm3605 = vcmask 64512
  %v3607 = vsel %vm3605, %v3604, 0
  %v3610 = vsel %vm3593, %v3601, 0
  %v3613 = vsel %vm3593, %v3602, 0
  %v3616 = vsel %vm3593, %v3603, 0
  %3618 = vmatprep.subr.bf16.mxu0 %v3613
  %3619 = vmatpush1.bf16.msra.mxu0 %v3610
  %3620 = vmatprep.subr.bf16.mxu0 0
  %3621 = vmatpush1.bf16.msra.mxu0 0
  %3622 = vmatprep.subr.bf16.mxu0 0
  %3623 = vmatpush1.bf16.msra.mxu0 0
  %3624 = vmatprep.subr.bf16.mxu0 0
  %3625 = vmatpush1.bf16.msra.mxu0 0
  %3626 = vmatprep.subr.bf16.mxu0 0
  %3627 = vmatpush1.bf16.msra.mxu0 0
  %3628 = vmatprep.subr.bf16.mxu0 0
  %3629 = vmatpush1.bf16.msra.mxu0 0
  %3630 = vmatprep.subr.bf16.mxu0 0
  %3631 = vmatpush1.bf16.msra.mxu0 0
  %3632 = vmatprep.subr.bf16.mxu0 0
  %3633 = vmatpush1.bf16.msra.mxu0 0
  %3634 = vmatprep.subr.bf16.mxu0 0
  %3635 = vmatpush1.bf16.msra.mxu0 0
  %3636 = vmatprep.subr.bf16.mxu0 0
  %3637 = vmatpush1.bf16.msra.mxu0 0
  %3638 = vmatprep.subr.bf16.mxu0 0
  %3639 = vmatpush1.bf16.msra.mxu0 0
  %3640 = vmatprep.subr.bf16.mxu0 0
  %3641 = vmatpush1.bf16.msra.mxu0 0
  %3642 = vmatprep.subr.bf16.mxu0 0
  %3643 = vmatpush1.bf16.msra.mxu0 0
  %3644 = vmatprep.subr.bf16.mxu0 0
  %3645 = vmatpush1.bf16.msra.mxu0 0
  %3646 = vmatprep.subr.bf16.mxu0 0
  %3647 = vmatpush1.bf16.msra.mxu0 0
  %3648 = vmatprep.subr.bf16.mxu0 0
  %3649 = vmatpush1.bf16.msra.mxu0 0
  %3650 = vmatprep.mubr.bf16.mxu0 0
  %3651 = vmatmul.mubr.bf16.gmra.mrb[0].mxu0 %v3607
  %v3652 = vpop.f32.mrb[0].mxu0
  %v3653 = vadd.f32 0.0, %v3652
  %v3654 = vpop.f32.mrb[0].mxu0
  %v3655 = vadd.f32 0.0, %v3654
  %v3656 = vpop.f32.mrb[0].mxu0
  %v3657 = vpop.f32.mrb[0].mxu0
  %3658 = vdwg.mxu0
  %3659 = vmatprep.subr.bf16.mxu0 0
  %3660 = vmatpush1.bf16.msra.mxu0 %v3616
  %3661 = vmatprep.subr.bf16.mxu0 0
  %3662 = vmatpush1.bf16.msra.mxu0 0
  %3663 = vmatprep.subr.bf16.mxu0 0
  %3664 = vmatpush1.bf16.msra.mxu0 0
  %3665 = vmatprep.subr.bf16.mxu0 0
  %3666 = vmatpush1.bf16.msra.mxu0 0
  %3667 = vmatprep.subr.bf16.mxu0 0
  %3668 = vmatpush1.bf16.msra.mxu0 0
  %3669 = vmatprep.subr.bf16.mxu0 0
  %3670 = vmatpush1.bf16.msra.mxu0 0
  %3671 = vmatprep.subr.bf16.mxu0 0
  %3672 = vmatpush1.bf16.msra.mxu0 0
  %3673 = vmatprep.subr.bf16.mxu0 0
  %3674 = vmatpush1.bf16.msra.mxu0 0
  %3675 = vmatprep.subr.bf16.mxu0 0
  %3676 = vmatpush1.bf16.msra.mxu0 0
  %3677 = vmatprep.subr.bf16.mxu0 0
  %3678 = vmatpush1.bf16.msra.mxu0 0
  %3679 = vmatprep.subr.bf16.mxu0 0
  %3680 = vmatpush1.bf16.msra.mxu0 0
  %3681 = vmatprep.subr.bf16.mxu0 0
  %3682 = vmatpush1.bf16.msra.mxu0 0
  %3683 = vmatprep.subr.bf16.mxu0 0
  %3684 = vmatpush1.bf16.msra.mxu0 0
  %3685 = vmatprep.subr.bf16.mxu0 0
  %3686 = vmatpush1.bf16.msra.mxu0 0
  %3687 = vmatprep.subr.bf16.mxu0 0
  %3688 = vmatpush1.bf16.msra.mxu0 0
  %3689 = vmatprep.subr.bf16.mxu0 0
  %3690 = vmatpush1.bf16.msra.mxu0 0
  %3691 = vmatprep.mubr.bf16.mxu0 0
  %3692 = vmatmul.mubr.bf16.gmra.mrb[0].mxu0 %v3607
  %v3693 = vpop.f32.mrb[0].mxu0
  %v3694 = vadd.f32 0.0, %v3693
  %v3695 = vpop.f32.mrb[0].mxu0
  %v3696 = vpop.f32.mrb[0].mxu0
  %v3697 = vpop.f32.mrb[0].mxu0
  %3698 = vdwg.mxu0
  %v3699 = vpack.c.bf16 %v3653, %v3653
  %v3700 = vpack.c.bf16 %v3655, %v3655
  %v3701 = vpack.c.bf16 %v3694, %v3694
  %s3702 = scalar_lea.vmem %s8, 4
  %v3703 = vld [vmem:[%s3702] sm:$0xf]
  %v3705 = vsel %vm3605, %v3703, 0
  %3707 = vmatprep.subr.bf16.mxu0 %v3613
  %3708 = vmatpush1.bf16.msra.mxu0 %v3610
  %3709 = vmatprep.subr.bf16.mxu0 0
  %3710 = vmatpush1.bf16.msra.mxu0 0
  %3711 = vmatprep.subr.bf16.mxu0 0
  %3712 = vmatpush1.bf16.msra.mxu0 0
  %3713 = vmatprep.subr.bf16.mxu0 0
  %3714 = vmatpush1.bf16.msra.mxu0 0
  %3715 = vmatprep.subr.bf16.mxu0 0
  %3716 = vmatpush1.bf16.msra.mxu0 0
  %3717 = vmatprep.subr.bf16.mxu0 0
  %3718 = vmatpush1.bf16.msra.mxu0 0
  %3719 = vmatprep.subr.bf16.mxu0 0
  %3720 = vmatpush1.bf16.msra.mxu0 0
  %3721 = vmatprep.subr.bf16.mxu0 0
  %3722 = vmatpush1.bf16.msra.mxu0 0
  %3723 = vmatprep.subr.bf16.mxu0 0
  %3724 = vmatpush1.bf16.msra.mxu0 0
  %3725 = vmatprep.subr.bf16.mxu0 0
  %3726 = vmatpush1.bf16.msra.mxu0 0
  %3727 = vmatprep.subr.bf16.mxu0 0
  %3728 = vmatpush1.bf16.msra.mxu0 0
  %3729 = vmatprep.subr.bf16.mxu0 0
  %3730 = vmatpush1.bf16.msra.mxu0 0
  %3731 = vmatprep.subr.bf16.mxu0 0
  %3732 = vmatpush1.bf16.msra.mxu0 0
  %3733 = vmatprep.subr.bf16.mxu0 0
  %3734 = vmatpush1.bf16.msra.mxu0 0
  %3735 = vmatprep.subr.bf16.mxu0 0
  %3736 = vmatpush1.bf16.msra.mxu0 0
  %3737 = vmatprep.subr.bf16.mxu0 0
  %3738 = vmatpush1.bf16.msra.mxu0 0
  %3739 = vmatprep.mubr.bf16.mxu0 0
  %3740 = vmatmul.mubr.bf16.gmra.mrb[0].mxu0 %v3705
  %v3741 = vpop.f32.mrb[0].mxu0
  %v3742 = vadd.f32 0.0, %v3741
  %v3743 = vpop.f32.mrb[0].mxu0
  %v3744 = vadd.f32 0.0, %v3743
  %v3745 = vpop.f32.mrb[0].mxu0
  %v3746 = vpop.f32.mrb[0].mxu0
  %3747 = vdwg.mxu0
  %3748 = vmatprep.subr.bf16.mxu0 0
  %3749 = vmatpush1.bf16.msra.mxu0 %v3616
  %3750 = vmatprep.subr.bf16.mxu0 0
  %3751 = vmatpush1.bf16.msra.mxu0 0
  %3752 = vmatprep.subr.bf16.mxu0 0
  %3753 = vmatpush1.bf16.msra.mxu0 0
  %3754 = vmatprep.subr.bf16.mxu0 0
  %3755 = vmatpush1.bf16.msra.mxu0 0
  %3756 = vmatprep.subr.bf16.mxu0 0
  %3757 = vmatpush1.bf16.msra.mxu0 0
  %3758 = vmatprep.subr.bf16.mxu0 0
  %3759 = vmatpush1.bf16.msra.mxu0 0
  %3760 = vmatprep.subr.bf16.mxu0 0
  %3761 = vmatpush1.bf16.msra.mxu0 0
  %3762 = vmatprep.subr.bf16.mxu0 0
  %3763 = vmatpush1.bf16.msra.mxu0 0
  %3764 = vmatprep.subr.bf16.mxu0 0
  %3765 = vmatpush1.bf16.msra.mxu0 0
  %3766 = vmatprep.subr.bf16.mxu0 0
  %3767 = vmatpush1.bf16.msra.mxu0 0
  %3768 = vmatprep.subr.bf16.mxu0 0
  %3769 = vmatpush1.bf16.msra.mxu0 0
  %3770 = vmatprep.subr.bf16.mxu0 0
  %3771 = vmatpush1.bf16.msra.mxu0 0
  %3772 = vmatprep.subr.bf16.mxu0 0
  %3773 = vmatpush1.bf16.msra.mxu0 0
  %3774 = vmatprep.subr.bf16.mxu0 0
  %3775 = vmatpush1.bf16.msra.mxu0 0
  %3776 = vmatprep.subr.bf16.mxu0 0
  %3777 = vmatpush1.bf16.msra.mxu0 0
  %3778 = vmatprep.subr.bf16.mxu0 0
  %3779 = vmatpush1.bf16.msra.mxu0 0
  %3780 = vmatprep.mubr.bf16.mxu0 0
  %3781 = vmatmul.mubr.bf16.gmra.mrb[0].mxu0 %v3705
  %v3782 = vpop.f32.mrb[0].mxu0
  %v3783 = vadd.f32 0.0, %v3782
  %v3784 = vpop.f32.mrb[0].mxu0
  %v3785 = vpop.f32.mrb[0].mxu0
  %v3786 = vpop.f32.mrb[0].mxu0
  %3787 = vdwg.mxu0
  %v3788 = vpack.c.bf16 %v3742, %v3742
  %v3789 = vpack.c.bf16 %v3744, %v3744
  %v3790 = vpack.c.bf16 %v3783, %v3783
  %s3791 = scalar_lea.vmem %s8, 8
  %v3792 = vld [vmem:[%s3791] sm:$0xf]
  %v3794 = vsel %vm3605, %v3792, 0
  %3796 = vmatprep.subr.bf16.mxu0 %v3613
  %3797 = vmatpush1.bf16.msra.mxu0 %v3610
  %3798 = vmatprep.subr.bf16.mxu0 0
  %3799 = vmatpush1.bf16.msra.mxu0 0
  %3800 = vmatprep.subr.bf16.mxu0 0
  %3801 = vmatpush1.bf16.msra.mxu0 0
  %3802 = vmatprep.subr.bf16.mxu0 0
  %3803 = vmatpush1.bf16.msra.mxu0 0
  %3804 = vmatprep.subr.bf16.mxu0 0
  %3805 = vmatpush1.bf16.msra.mxu0 0
  %3806 = vmatprep.subr.bf16.mxu0 0
  %3807 = vmatpush1.bf16.msra.mxu0 0
  %3808 = vmatprep.subr.bf16.mxu0 0
  %3809 = vmatpush1.bf16.msra.mxu0 0
  %3810 = vmatprep.subr.bf16.mxu0 0
  %3811 = vmatpush1.bf16.msra.mxu0 0
  %3812 = vmatprep.subr.bf16.mxu0 0
  %3813 = vmatpush1.bf16.msra.mxu0 0
  %3814 = vmatprep.subr.bf16.mxu0 0
  %3815 = vmatpush1.bf16.msra.mxu0 0
  %3816 = vmatprep.subr.bf16.mxu0 0
  %3817 = vmatpush1.bf16.msra.mxu0 0
  %3818 = vmatprep.subr.bf16.mxu0 0
  %3819 = vmatpush1.bf16.msra.mxu0 0
  %3820 = vmatprep.subr.bf16.mxu0 0
  %3821 = vmatpush1.bf16.msra.mxu0 0
  %3822 = vmatprep.subr.bf16.mxu0 0
  %3823 = vmatpush1.bf16.msra.mxu0 0
  %3824 = vmatprep.subr.bf16.mxu0 0
  %3825 = vmatpush1.bf16.msra.mxu0 0
  %3826 = vmatprep.subr.bf16.mxu0 0
  %3827 = vmatpush1.bf16.msra.mxu0 0
  %3828 = vmatprep.mubr.bf16.mxu0 0
  %3829 = vmatmul.mubr.bf16.gmra.mrb[0].mxu0 %v3794
  %v3830 = vpop.f32.mrb[0].mxu0
  %v3831 = vadd.f32 0.0, %v3830
  %v3832 = vpop.f32.mrb[0].mxu0
  %v3833 = vadd.f32 0.0, %v3832
  %v3834 = vpop.f32.mrb[0].mxu0
  %v3835 = vpop.f32.mrb[0].mxu0
  %3836 = vdwg.mxu0
  %3837 = vmatprep.subr.bf16.mxu0 0
  %3838 = vmatpush1.bf16.msra.mxu0 %v3616
  %3839 = vmatprep.subr.bf16.mxu0 0
  %3840 = vmatpush1.bf16.msra.mxu0 0
  %3841 = vmatprep.subr.bf16.mxu0 0
  %3842 = vmatpush1.bf16.msra.mxu0 0
  %3843 = vmatprep.subr.bf16.mxu0 0
  %3844 = vmatpush1.bf16.msra.mxu0 0
  %3845 = vmatprep.subr.bf16.mxu0 0
  %3846 = vmatpush1.bf16.msra.mxu0 0
  %3847 = vmatprep.subr.bf16.mxu0 0
  %3848 = vmatpush1.bf16.msra.mxu0 0
  %3849 = vmatprep.subr.bf16.mxu0 0
  %3850 = vmatpush1.bf16.msra.mxu0 0
  %3851 = vmatprep.subr.bf16.mxu0 0
  %3852 = vmatpush1.bf16.msra.mxu0 0
  %3853 = vmatprep.subr.bf16.mxu0 0
  %3854 = vmatpush1.bf16.msra.mxu0 0
  %3855 = vmatprep.subr.bf16.mxu0 0
  %3856 = vmatpush1.bf16.msra.mxu0 0
  %3857 = vmatprep.subr.bf16.mxu0 0
  %3858 = vmatpush1.bf16.msra.mxu0 0
  %3859 = vmatprep.subr.bf16.mxu0 0
  %3860 = vmatpush1.bf16.msra.mxu0 0
  %3861 = vmatprep.subr.bf16.mxu0 0
  %3862 = vmatpush1.bf16.msra.mxu0 0
  %3863 = vmatprep.subr.bf16.mxu0 0
  %3864 = vmatpush1.bf16.msra.mxu0 0
  %3865 = vmatprep.subr.bf16.mxu0 0
  %3866 = vmatpush1.bf16.msra.mxu0 0
  %3867 = vmatprep.subr.bf16.mxu0 0
  %3868 = vmatpush1.bf16.msra.mxu0 0
  %3869 = vmatprep.mubr.bf16.mxu0 0
  %3870 = vmatmul.mubr.bf16.gmra.mrb[0].mxu0 %v3794
  %v3871 = vpop.f32.mrb[0].mxu0
  %v3872 = vadd.f32 0.0, %v3871
  %v3873 = vpop.f32.mrb[0].mxu0
  %v3874 = vpop.f32.mrb[0].mxu0
  %v3875 = vpop.f32.mrb[0].mxu0
  %3876 = vdwg.mxu0
  %v3877 = vpack.c.bf16 %v3831, %v3831
  %v3878 = vpack.c.bf16 %v3833, %v3833
  %v3879 = vpack.c.bf16 %v3872, %v3872
  %v3880 = vld [vmem:[%s9] sm:$0xff]
  %v3881 = vld [vmem:[%s9 + $0x8] sm:$0xf]
  %v3882 = vld [vmem:[%s9 + $0xc] sm:$0xff]
  %v3883 = vld [vmem:[%s9 + $0x14] sm:$0xf]
  %v3884 = vld [vmem:[%s9 + $0x18] sm:$0xff]
  %v3885 = vld [vmem:[%s9 + $0x20] sm:$0xf]
  %v3886 = vld [vmem:[%s9 + $0x24] sm:$0xff]
  %v3887 = vld [vmem:[%s9 + $0x2c] sm:$0xf]
  %v3888 = vld [vmem:[%s9 + $0x30] sm:$0xff]
  %v3889 = vld [vmem:[%s9 + $0x38] sm:$0xf]
  %v3890 = vld [vmem:[%s9 + $0x3c] sm:$0xff]
  %v3891 = vld [vmem:[%s9 + $0x44] sm:$0xf]
  %v3892 = vld [vmem:[%s9 + $0x48] sm:$0xff]
  %v3893 = vld [vmem:[%s9 + $0x50] sm:$0xf]
  %v3894 = vld [vmem:[%s9 + $0x54] sm:$0xff]
  %v3895 = vld [vmem:[%s9 + $0x5c] sm:$0xf]
  %v3896 = vld [vmem:[%s9 + $0x60] sm:$0xff]
  %v3897 = vld [vmem:[%s9 + $0x68] sm:$0xf]
  %v3898 = vld [vmem:[%s9 + $0x6c] sm:$0xff]
  %v3899 = vld [vmem:[%s9 + $0x74] sm:$0xf]
  %v3900 = vld [vmem:[%s9 + $0x78] sm:$0xff]
  %v3901 = vld [vmem:[%s9 + $0x80] sm:$0xf]
  %v3902 = vld [vmem:[%s9 + $0x84] sm:$0xff]
  %v3903 = vld [vmem:[%s9 + $0x8c] sm:$0xf]
  %v3904 = vld [vmem:[%s9 + $0x90] sm:$0xff]
  %v3905 = vld [vmem:[%s9 + $0x98] sm:$0xf]
  %v3906 = vld [vmem:[%s9 + $0x9c] sm:$0xff]
  %v3907 = vld [vmem:[%s9 + $0xa4] sm:$0xf]
  %v3908 = vld [vmem:[%s9 + $0xa8] sm:$0xff]
  %v3909 = vld [vmem:[%s9 + $0xb0] sm:$0xf]
  %v3910 = vld [vmem:[%s9 + $0xb4] sm:$0xff]
  %v3911 = vld [vmem:[%s9 + $0xbc] sm:$0xf]
  %v3912 = vld [vmem:[%s9 + $0xc0] sm:$0xff]
  %v3913 = vld [vmem:[%s9 + $0xc8] sm:$0xf]
  %v3914 = vld [vmem:[%s9 + $0xcc] sm:$0xff]
  %v3915 = vld [vmem:[%s9 + $0xd4] sm:$0xf]
  %v3916 = vld [vmem:[%s9 + $0xd8] sm:$0xff]
  %v3917 = vld [vmem:[%s9 + $0xe0] sm:$0xf]
  %v3918 = vld [vmem:[%s9 + $0xe4] sm:$0xff]
  %v3919 = vld [vmem:[%s9 + $0xec] sm:$0xf]
  %v3920 = vld [vmem:[%s9 + $0xf0] sm:$0xff]
  %v3921 = vld [vmem:[%s9 + $0xf8] sm:$0xf]
  %v3922 = vld [vmem:[%s9 + $0xfc] sm:$0xff]
  %v3923 = vld [vmem:[%s9 + $0x104] sm:$0xf]
  %v3924 = vld [vmem:[%s9 + $0x108] sm:$0xff]
  %v3925 = vld [vmem:[%s9 + $0x110] sm:$0xf]
  %v3926 = vld [vmem:[%s9 + $0x114] sm:$0xff]
  %v3927 = vld [vmem:[%s9 + $0x11c] sm:$0xf]
  %v3928 = vld [vmem:[%s9 + $0x120] sm:$0xff]
  %v3929 = vld [vmem:[%s9 + $0x128] sm:$0xf]
  %v3930 = vld [vmem:[%s9 + $0x12c] sm:$0xff]
  %v3931 = vld [vmem:[%s9 + $0x134] sm:$0xf]
  %v3932 = vld [vmem:[%s9 + $0x138] sm:$0xff]
  %v3933 = vld [vmem:[%s9 + $0x140] sm:$0xf]
  %v3934 = vld [vmem:[%s9 + $0x144] sm:$0xff]
  %v3935 = vld [vmem:[%s9 + $0x14c] sm:$0xf]
  %v3936 = vld [vmem:[%s9 + $0x150] sm:$0xff]
  %v3937 = vld [vmem:[%s9 + $0x158] sm:$0xf]
  %v3938 = vld [vmem:[%s9 + $0x15c] sm:$0xff]
  %v3939 = vld [vmem:[%s9 + $0x164] sm:$0xf]
  %v3940 = vld [vmem:[%s9 + $0x168] sm:$0xff]
  %v3941 = vld [vmem:[%s9 + $0x170] sm:$0xf]
  %v3942 = vld [vmem:[%s9 + $0x174] sm:$0xff]
  %v3943 = vld [vmem:[%s9 + $0x17c] sm:$0xf]
  %v3944 = vld [vmem:[%s9 + $0x180] sm:$0xff]
  %v3945 = vld [vmem:[%s9 + $0x188] sm:$0xf]
  %v3946 = vld [vmem:[%s9 + $0x18c] sm:$0xff]
  %v3947 = vld [vmem:[%s9 + $0x194] sm:$0xf]
  %v3948 = vld [vmem:[%s9 + $0x198] sm:$0xff]
  %v3949 = vld [vmem:[%s9 + $0x1a0] sm:$0xf]
  %v3950 = vld [vmem:[%s9 + $0x1a4] sm:$0xff]
  %v3951 = vld [vmem:[%s9 + $0x1ac] sm:$0xf]
  %v3952 = vld [vmem:[%s9 + $0x1b0] sm:$0xff]
  %v3953 = vld [vmem:[%s9 + $0x1b8] sm:$0xf]
  %v3954 = vld [vmem:[%s9 + $0x1bc] sm:$0xff]
  %v3955 = vld [vmem:[%s9 + $0x1c4] sm:$0xf]
  %v3956 = vld [vmem:[%s9 + $0x1c8] sm:$0xff]
  %v3957 = vld [vmem:[%s9 + $0x1d0] sm:$0xf]
  %v3958 = vld [vmem:[%s9 + $0x1d4] sm:$0xff]
  %v3959 = vld [vmem:[%s9 + $0x1dc] sm:$0xf]
  %v3960 = vld [vmem:[%s9 + $0x1e0] sm:$0xff]
  %v3961 = vld [vmem:[%s9 + $0x1e8] sm:$0xf]
  %v3962 = vld [vmem:[%s9 + $0x1ec] sm:$0xff]
  %v3963 = vld [vmem:[%s9 + $0x1f4] sm:$0xf]
  %v3964 = vld [vmem:[%s9 + $0x1f8] sm:$0xff]
  %v3965 = vld [vmem:[%s9 + $0x200] sm:$0xf]
  %v3966 = vld [vmem:[%s9 + $0x204] sm:$0xff]
  %v3967 = vld [vmem:[%s9 + $0x20c] sm:$0xf]
  %v3968 = vld [vmem:[%s9 + $0x210] sm:$0xff]
  %v3969 = vld [vmem:[%s9 + $0x218] sm:$0xf]
  %v3970 = vld [vmem:[%s9 + $0x21c] sm:$0xff]
  %v3971 = vld [vmem:[%s9 + $0x224] sm:$0xf]
  %v3972 = vld [vmem:[%s9 + $0x228] sm:$0xff]
  %v3973 = vld [vmem:[%s9 + $0x230] sm:$0xf]
  %v3974 = vld [vmem:[%s9 + $0x234] sm:$0xff]
  %v3975 = vld [vmem:[%s9 + $0x23c] sm:$0xf]
  %s3976 = scalar_lea.vmem %s9, 576
  %v3977 = vld [vmem:[%s3976] sm:$0xff]
  %v3978 = vld [vmem:[%s3976 + $0x8] sm:$0xf]
  %v3979 = vld [vmem:[%s3976 + $0xc] sm:$0xff]
  %v3980 = vld [vmem:[%s3976 + $0x14] sm:$0xf]
  %v3981 = vld [vmem:[%s3976 + $0x18] sm:$0xff]
  %v3982 = vld [vmem:[%s3976 + $0x20] sm:$0xf]
  %v3983 = vld [vmem:[%s3976 + $0x24] sm:$0xff]
  %v3984 = vld [vmem:[%s3976 + $0x2c] sm:$0xf]
  %v3985 = vld [vmem:[%s3976 + $0x30] sm:$0xff]
  %v3986 = vld [vmem:[%s3976 + $0x38] sm:$0xf]
  %v3987 = vld [vmem:[%s3976 + $0x3c] sm:$0xff]
  %v3988 = vld [vmem:[%s3976 + $0x44] sm:$0xf]
  %v3989 = vld [vmem:[%s3976 + $0x48] sm:$0xff]
  %v3990 = vld [vmem:[%s3976 + $0x50] sm:$0xf]
  %v3991 = vld [vmem:[%s3976 + $0x54] sm:$0xff]
  %v3992 = vld [vmem:[%s3976 + $0x5c] sm:$0xf]
  %v3993 = vld [vmem:[%s3976 + $0x60] sm:$0xff]
  %v3994 = vld [vmem:[%s3976 + $0x68] sm:$0xf]
  %v3995 = vld [vmem:[%s3976 + $0x6c] sm:$0xff]
  %v3996 = vld [vmem:[%s3976 + $0x74] sm:$0xf]
  %v3997 = vld [vmem:[%s3976 + $0x78] sm:$0xff]
  %v3998 = vld [vmem:[%s3976 + $0x80] sm:$0xf]
  %v3999 = vld [vmem:[%s3976 + $0x84] sm:$0xff]
  %v4000 = vld [vmem:[%s3976 + $0x8c] sm:$0xf]
  %v4001 = vld [vmem:[%s3976 + $0x90] sm:$0xff]
  %v4002 = vld [vmem:[%s3976 + $0x98] sm:$0xf]
  %v4003 = vld [vmem:[%s3976 + $0x9c] sm:$0xff]
  %v4004 = vld [vmem:[%s3976 + $0xa4] sm:$0xf]
  %v4005 = vld [vmem:[%s3976 + $0xa8] sm:$0xff]
  %v4006 = vld [vmem:[%s3976 + $0xb0] sm:$0xf]
  %v4007 = vld [vmem:[%s3976 + $0xb4] sm:$0xff]
  %v4008 = vld [vmem:[%s3976 + $0xbc] sm:$0xf]
  %v4009 = vld [vmem:[%s3976 + $0xc0] sm:$0xff]
  %v4010 = vld [vmem:[%s3976 + $0xc8] sm:$0xf]
  %v4011 = vld [vmem:[%s3976 + $0xcc] sm:$0xff]
  %v4012 = vld [vmem:[%s3976 + $0xd4] sm:$0xf]
  %v4013 = vld [vmem:[%s3976 + $0xd8] sm:$0xff]
  %v4014 = vld [vmem:[%s3976 + $0xe0] sm:$0xf]
  %v4015 = vld [vmem:[%s3976 + $0xe4] sm:$0xff]
  %v4016 = vld [vmem:[%s3976 + $0xec] sm:$0xf]
  %v4017 = vld [vmem:[%s3976 + $0xf0] sm:$0xff]
  %v4018 = vld [vmem:[%s3976 + $0xf8] sm:$0xf]
  %v4019 = vld [vmem:[%s3976 + $0xfc] sm:$0xff]
  %v4020 = vld [vmem:[%s3976 + $0x104] sm:$0xf]
  %v4021 = vld [vmem:[%s3976 + $0x108] sm:$0xff]
  %v4022 = vld [vmem:[%s3976 + $0x110] sm:$0xf]
  %v4023 = vld [vmem:[%s3976 + $0x114] sm:$0xff]
  %v4024 = vld [vmem:[%s3976 + $0x11c] sm:$0xf]
  %v4025 = vld [vmem:[%s3976 + $0x120] sm:$0xff]
  %v4026 = vld [vmem:[%s3976 + $0x128] sm:$0xf]
  %v4027 = vld [vmem:[%s3976 + $0x12c] sm:$0xff]
  %v4028 = vld [vmem:[%s3976 + $0x134] sm:$0xf]
  %v4029 = vld [vmem:[%s3976 + $0x138] sm:$0xff]
  %v4030 = vld [vmem:[%s3976 + $0x140] sm:$0xf]
  %v4031 = vld [vmem:[%s3976 + $0x144] sm:$0xff]
  %v4032 = vld [vmem:[%s3976 + $0x14c] sm:$0xf]
  %v4033 = vld [vmem:[%s3976 + $0x150] sm:$0xff]
  %v4034 = vld [vmem:[%s3976 + $0x158] sm:$0xf]
  %v4035 = vld [vmem:[%s3976 + $0x15c] sm:$0xff]
  %v4036 = vld [vmem:[%s3976 + $0x164] sm:$0xf]
  %v4037 = vld [vmem:[%s3976 + $0x168] sm:$0xff]
  %v4038 = vld [vmem:[%s3976 + $0x170] sm:$0xf]
  %v4039 = vld [vmem:[%s3976 + $0x174] sm:$0xff]
  %v4040 = vld [vmem:[%s3976 + $0x17c] sm:$0xf]
  %v4041 = vld [vmem:[%s3976 + $0x180] sm:$0xff]
  %v4042 = vld [vmem:[%s3976 + $0x188] sm:$0xf]
  %v4043 = vld [vmem:[%s3976 + $0x18c] sm:$0xff]
  %v4044 = vld [vmem:[%s3976 + $0x194] sm:$0xf]
  %v4045 = vld [vmem:[%s3976 + $0x198] sm:$0xff]
  %v4046 = vld [vmem:[%s3976 + $0x1a0] sm:$0xf]
  %v4047 = vld [vmem:[%s3976 + $0x1a4] sm:$0xff]
  %v4048 = vld [vmem:[%s3976 + $0x1ac] sm:$0xf]
  %v4049 = vld [vmem:[%s3976 + $0x1b0] sm:$0xff]
  %v4050 = vld [vmem:[%s3976 + $0x1b8] sm:$0xf]
  %v4051 = vld [vmem:[%s3976 + $0x1bc] sm:$0xff]
  %v4052 = vld [vmem:[%s3976 + $0x1c4] sm:$0xf]
  %v4053 = vld [vmem:[%s3976 + $0x1c8] sm:$0xff]
  %v4054 = vld [vmem:[%s3976 + $0x1d0] sm:$0xf]
  %v4055 = vld [vmem:[%s3976 + $0x1d4] sm:$0xff]
  %v4056 = vld [vmem:[%s3976 + $0x1dc] sm:$0xf]
  %v4057 = vld [vmem:[%s3976 + $0x1e0] sm:$0xff]
  %v4058 = vld [vmem:[%s3976 + $0x1e8] sm:$0xf]
  %v4059 = vld [vmem:[%s3976 + $0x1ec] sm:$0xff]
  %v4060 = vld [vmem:[%s3976 + $0x1f4] sm:$0xf]
  %v4061 = vld [vmem:[%s3976 + $0x1f8] sm:$0xff]
  %v4062 = vld [vmem:[%s3976 + $0x200] sm:$0xf]
  %v4063 = vld [vmem:[%s3976 + $0x204] sm:$0xff]
  %v4064 = vld [vmem:[%s3976 + $0x20c] sm:$0xf]
  %v4065 = vld [vmem:[%s3976 + $0x210] sm:$0xff]
  %v4066 = vld [vmem:[%s3976 + $0x218] sm:$0xf]
  %v4067 = vld [vmem:[%s3976 + $0x21c] sm:$0xff]
  %v4068 = vld [vmem:[%s3976 + $0x224] sm:$0xf]
  %v4069 = vld [vmem:[%s3976 + $0x228] sm:$0xff]
  %v4070 = vld [vmem:[%s3976 + $0x230] sm:$0xf]
  %v4071 = vld [vmem:[%s3976 + $0x234] sm:$0xff]
  %v4072 = vld [vmem:[%s3976 + $0x23c] sm:$0xf]
  %v4169 = vunpack.c.l.b16 %v3977
  %v4170 = vunpack.c.h.b16 %v3977
  %v4171 = vunpack.c.l.b16 %v3978
  %v4172 = vunpack.c.l.b16 %v3979
  %v4173 = vunpack.c.h.b16 %v3979
  %v4174 = vunpack.c.l.b16 %v3980
  %v4175 = vunpack.c.l.b16 %v3981
  %v4176 = vunpack.c.h.b16 %v3981
  %v4177 = vunpack.c.l.b16 %v3982
  %v4178 = vunpack.c.l.b16 %v3983
  %v4179 = vunpack.c.h.b16 %v3983
  %v4180 = vunpack.c.l.b16 %v3984
  %v4181 = vunpack.c.l.b16 %v3985
  %v4182 = vunpack.c.h.b16 %v3985
  %v4183 = vunpack.c.l.b16 %v3986
  %v4184 = vunpack.c.l.b16 %v3987
  %v4185 = vunpack.c.h.b16 %v3987
  %v4186 = vunpack.c.l.b16 %v3988
  %v4187 = vunpack.c.l.b16 %v3989
  %v4188 = vunpack.c.h.b16 %v3989
  %v4189 = vunpack.c.l.b16 %v3990
  %v4190 = vunpack.c.l.b16 %v3991
  %v4191 = vunpack.c.h.b16 %v3991
  %v4192 = vunpack.c.l.b16 %v3992
  %v4193 = vunpack.c.l.b16 %v3993
  %v4194 = vunpack.c.h.b16 %v3993
  %v4195 = vunpack.c.l.b16 %v3994
  %v4196 = vunpack.c.l.b16 %v3995
  %v4197 = vunpack.c.h.b16 %v3995
  %v4198 = vunpack.c.l.b16 %v3996
  %v4199 = vunpack.c.l.b16 %v3997
  %v4200 = vunpack.c.h.b16 %v3997
  %v4201 = vunpack.c.l.b16 %v3998
  %v4202 = vunpack.c.l.b16 %v3999
  %v4203 = vunpack.c.h.b16 %v3999
  %v4204 = vunpack.c.l.b16 %v4000
  %v4205 = vunpack.c.l.b16 %v4001
  %v4206 = vunpack.c.h.b16 %v4001
  %v4207 = vunpack.c.l.b16 %v4002
  %v4208 = vunpack.c.l.b16 %v4003
  %v4209 = vunpack.c.h.b16 %v4003
  %v4210 = vunpack.c.l.b16 %v4004
  %v4211 = vunpack.c.l.b16 %v4005
  %v4212 = vunpack.c.h.b16 %v4005
  %v4213 = vunpack.c.l.b16 %v4006
  %v4214 = vunpack.c.l.b16 %v4007
  %v4215 = vunpack.c.h.b16 %v4007
  %v4216 = vunpack.c.l.b16 %v4008
  %v4217 = vunpack.c.l.b16 %v4009
  %v4218 = vunpack.c.h.b16 %v4009
  %v4219 = vunpack.c.l.b16 %v4010
  %v4220 = vunpack.c.l.b16 %v4011
  %v4221 = vunpack.c.h.b16 %v4011
  %v4222 = vunpack.c.l.b16 %v4012
  %v4223 = vunpack.c.l.b16 %v4013
  %v4224 = vunpack.c.h.b16 %v4013
  %v4225 = vunpack.c.l.b16 %v4014
  %v4226 = vunpack.c.l.b16 %v4015
  %v4227 = vunpack.c.h.b16 %v4015
  %v4228 = vunpack.c.l.b16 %v4016
  %v4229 = vunpack.c.l.b16 %v4017
  %v4230 = vunpack.c.h.b16 %v4017
  %v4231 = vunpack.c.l.b16 %v4018
  %v4232 = vunpack.c.l.b16 %v4019
  %v4233 = vunpack.c.h.b16 %v4019
  %v4234 = vunpack.c.l.b16 %v4020
  %v4235 = vunpack.c.l.b16 %v4021
  %v4236 = vunpack.c.h.b16 %v4021
  %v4237 = vunpack.c.l.b16 %v4022
  %v4238 = vunpack.c.l.b16 %v4023
  %v4239 = vunpack.c.h.b16 %v4023
  %v4240 = vunpack.c.l.b16 %v4024
  %v4241 = vunpack.c.l.b16 %v4025
  %v4242 = vunpack.c.h.b16 %v4025
  %v4243 = vunpack.c.l.b16 %v4026
  %v4244 = vunpack.c.l.b16 %v4027
  %v4245 = vunpack.c.h.b16 %v4027
  %v4246 = vunpack.c.l.b16 %v4028
  %v4247 = vunpack.c.l.b16 %v4029
  %v4248 = vunpack.c.h.b16 %v4029
  %v4249 = vunpack.c.l.b16 %v4030
  %v4250 = vunpack.c.l.b16 %v4031
  %v4251 = vunpack.c.h.b16 %v4031
  %v4252 = vunpack.c.l.b16 %v4032
  %v4253 = vunpack.c.l.b16 %v4033
  %v4254 = vunpack.c.h.b16 %v4033
  %v4255 = vunpack.c.l.b16 %v4034
  %v4256 = vunpack.c.l.b16 %v4035
  %v4257 = vunpack.c.h.b16 %v4035
  %v4258 = vunpack.c.l.b16 %v4036
  %v4259 = vunpack.c.l.b16 %v4037
  %v4260 = vunpack.c.h.b16 %v4037
  %v4261 = vunpack.c.l.b16 %v4038
  %v4262 = vunpack.c.l.b16 %v4039
  %v4263 = vunpack.c.h.b16 %v4039
  %v4264 = vunpack.c.l.b16 %v4040
  %v4265 = vunpack.c.l.b16 %v4041
  %v4266 = vunpack.c.h.b16 %v4041
  %v4267 = vunpack.c.l.b16 %v4042
  %v4268 = vunpack.c.l.b16 %v4043
  %v4269 = vunpack.c.h.b16 %v4043
  %v4270 = vunpack.c.l.b16 %v4044
  %v4271 = vunpack.c.l.b16 %v4045
  %v4272 = vunpack.c.h.b16 %v4045
  %v4273 = vunpack.c.l.b16 %v4046
  %v4274 = vunpack.c.l.b16 %v4047
  %v4275 = vunpack.c.h.b16 %v4047
  %v4276 = vunpack.c.l.b16 %v4048
  %v4277 = vunpack.c.l.b16 %v4049
  %v4278 = vunpack.c.h.b16 %v4049
  %v4279 = vunpack.c.l.b16 %v4050
  %v4280 = vunpack.c.l.b16 %v4051
  %v4281 = vunpack.c.h.b16 %v4051
  %v4282 = vunpack.c.l.b16 %v4052
  %v4283 = vunpack.c.l.b16 %v4053
  %v4284 = vunpack.c.h.b16 %v4053
  %v4285 = vunpack.c.l.b16 %v4054
  %v4286 = vunpack.c.l.b16 %v4055
  %v4287 = vunpack.c.h.b16 %v4055
  %v4288 = vunpack.c.l.b16 %v4056
  %v4289 = vunpack.c.l.b16 %v4057
  %v4290 = vunpack.c.h.b16 %v4057
  %v4291 = vunpack.c.l.b16 %v4058
  %v4292 = vunpack.c.l.b16 %v4059
  %v4293 = vunpack.c.h.b16 %v4059
  %v4294 = vunpack.c.l.b16 %v4060
  %v4295 = vunpack.c.l.b16 %v4061
  %v4296 = vunpack.c.h.b16 %v4061
  %v4297 = vunpack.c.l.b16 %v4062
  %v4298 = vunpack.c.l.b16 %v4063
  %v4299 = vunpack.c.h.b16 %v4063
  %v4300 = vunpack.c.l.b16 %v4064
  %v4301 = vunpack.c.l.b16 %v4065
  %v4302 = vunpack.c.h.b16 %v4065
  %v4303 = vunpack.c.l.b16 %v4066
  %v4304 = vunpack.c.l.b16 %v4067
  %v4305 = vunpack.c.h.b16 %v4067
  %v4306 = vunpack.c.l.b16 %v4068
  %v4307 = vunpack.c.l.b16 %v4069
  %v4308 = vunpack.c.h.b16 %v4069
  %v4309 = vunpack.c.l.b16 %v4070
  %v4310 = vunpack.c.l.b16 %v4071
  %v4311 = vunpack.c.h.b16 %v4071
  %v4312 = vunpack.c.l.b16 %v4072
  %v4313 = vpack.c.b16 %v4172, %v4169
  %v4314 = vpack.c.b16 %v4173, %v4170
  %v4315 = vpack.c.b16 %v4174, %v4171
  %v4316 = vpack.c.b16 %v4178, %v4175
  %v4317 = vpack.c.b16 %v4179, %v4176
  %v4318 = vpack.c.b16 %v4180, %v4177
  %v4319 = vpack.c.b16 %v4184, %v4181
  %v4320 = vpack.c.b16 %v4185, %v4182
  %v4321 = vpack.c.b16 %v4186, %v4183
  %v4322 = vpack.c.b16 %v4190, %v4187
  %v4323 = vpack.c.b16 %v4191, %v4188
  %v4324 = vpack.c.b16 %v4192, %v4189
  %v4325 = vpack.c.b16 %v4196, %v4193
  %v4326 = vpack.c.b16 %v4197, %v4194
  %v4327 = vpack.c.b16 %v4198, %v4195
  %v4328 = vpack.c.b16 %v4202, %v4199
  %v4329 = vpack.c.b16 %v4203, %v4200
  %v4330 = vpack.c.b16 %v4204, %v4201
  %v4331 = vpack.c.b16 %v4208, %v4205
  %v4332 = vpack.c.b16 %v4209, %v4206
  %v4333 = vpack.c.b16 %v4210, %v4207
  %v4334 = vpack.c.b16 %v4214, %v4211
  %v4335 = vpack.c.b16 %v4215, %v4212
  %v4336 = vpack.c.b16 %v4216, %v4213
  %v4337 = vpack.c.b16 %v4220, %v4217
  %v4338 = vpack.c.b16 %v4221, %v4218
  %v4339 = vpack.c.b16 %v4222, %v4219
  %v4340 = vpack.c.b16 %v4226, %v4223
  %v4341 = vpack.c.b16 %v4227, %v4224
  %v4342 = vpack.c.b16 %v4228, %v4225
  %v4343 = vpack.c.b16 %v4232, %v4229
  %v4344 = vpack.c.b16 %v4233, %v4230
  %v4345 = vpack.c.b16 %v4234, %v4231
  %v4346 = vpack.c.b16 %v4238, %v4235
  %v4347 = vpack.c.b16 %v4239, %v4236
  %v4348 = vpack.c.b16 %v4240, %v4237
  %v4349 = vpack.c.b16 %v4244, %v4241
  %v4350 = vpack.c.b16 %v4245, %v4242
  %v4351 = vpack.c.b16 %v4246, %v4243
  %v4352 = vpack.c.b16 %v4250, %v4247
  %v4353 = vpack.c.b16 %v4251, %v4248
  %v4354 = vpack.c.b16 %v4252, %v4249
  %v4355 = vpack.c.b16 %v4256, %v4253
  %v4356 = vpack.c.b16 %v4257, %v4254
  %v4357 = vpack.c.b16 %v4258, %v4255
  %v4358 = vpack.c.b16 %v4262, %v4259
  %v4359 = vpack.c.b16 %v4263, %v4260
  %v4360 = vpack.c.b16 %v4264, %v4261
  %v4361 = vpack.c.b16 %v4268, %v4265
  %v4362 = vpack.c.b16 %v4269, %v4266
  %v4363 = vpack.c.b16 %v4270, %v4267
  %v4364 = vpack.c.b16 %v4274, %v4271
  %v4365 = vpack.c.b16 %v4275, %v4272
  %v4366 = vpack.c.b16 %v4276, %v4273
  %v4367 = vpack.c.b16 %v4280, %v4277
  %v4368 = vpack.c.b16 %v4281, %v4278
  %v4369 = vpack.c.b16 %v4282, %v4279
  %v4370 = vpack.c.b16 %v4286, %v4283
  %v4371 = vpack.c.b16 %v4287, %v4284
  %v4372 = vpack.c.b16 %v4288, %v4285
  %v4373 = vpack.c.b16 %v4292, %v4289
  %v4374 = vpack.c.b16 %v4293, %v4290
  %v4375 = vpack.c.b16 %v4294, %v4291
  %v4376 = vpack.c.b16 %v4298, %v4295
  %v4377 = vpack.c.b16 %v4299, %v4296
  %v4378 = vpack.c.b16 %v4300, %v4297
  %v4379 = vpack.c.b16 %v4304, %v4301
  %v4380 = vpack.c.b16 %v4305, %v4302
  %v4381 = vpack.c.b16 %v4306, %v4303
  %v4382 = vpack.c.b16 %v4310, %v4307
  %v4383 = vpack.c.b16 %v4311, %v4308
  %v4384 = vpack.c.b16 %v4312, %v4309
  %4457 = vmatprep.subr.bf16.mxu0 %v4314
  %4458 = vmatpush1.bf16.msra.mxu0 %v4313
  %4459 = vmatprep.subr.bf16.mxu0 %v4317
  %4460 = vmatpush1.bf16.msra.mxu0 %v4316
  %4461 = vmatprep.subr.bf16.mxu0 %v4320
  %4462 = vmatpush1.bf16.msra.mxu0 %v4319
  %4463 = vmatprep.subr.bf16.mxu0 %v4323
  %4464 = vmatpush1.bf16.msra.mxu0 %v4322
  %4465 = vmatprep.subr.bf16.mxu0 %v4326
  %4466 = vmatpush1.bf16.msra.mxu0 %v4325
  %4467 = vmatprep.subr.bf16.mxu0 %v4329
  %4468 = vmatpush1.bf16.msra.mxu0 %v4328
  %4469 = vmatprep.subr.bf16.mxu0 %v4332
  %4470 = vmatpush1.bf16.msra.mxu0 %v4331
  %4471 = vmatprep.subr.bf16.mxu0 %v4335
  %4472 = vmatpush1.bf16.msra.mxu0 %v4334
  %4473 = vmatprep.subr.bf16.mxu0 %v4338
  %4474 = vmatpush1.bf16.msra.mxu0 %v4337
  %4475 = vmatprep.subr.bf16.mxu0 %v4341
  %4476 = vmatpush1.bf16.msra.mxu0 %v4340
  %4477 = vmatprep.subr.bf16.mxu0 %v4344
  %4478 = vmatpush1.bf16.msra.mxu0 %v4343
  %4479 = vmatprep.subr.bf16.mxu0 %v4347
  %4480 = vmatpush1.bf16.msra.mxu0 %v4346
  %4481 = vmatprep.subr.bf16.mxu0 %v4350
  %4482 = vmatpush1.bf16.msra.mxu0 %v4349
  %4483 = vmatprep.subr.bf16.mxu0 %v4353
  %4484 = vmatpush1.bf16.msra.mxu0 %v4352
  %4485 = vmatprep.subr.bf16.mxu0 %v4356
  %4486 = vmatpush1.bf16.msra.mxu0 %v4355
  %4487 = vmatprep.subr.bf16.mxu0 %v4359
  %4488 = vmatpush1.bf16.msra.mxu0 %v4358
  %4489 = vmatprep.mubr.bf16.mxu0 %v3700
  %4490 = vmatmul.mubr.bf16.gmra.mrb[0].mxu0 %v3699
  %v4491 = vpop.f32.mrb[0].mxu0
  %v4492 = vadd.f32 0.0, %v4491
  %v4493 = vpop.f32.mrb[0].mxu0
  %v4494 = vadd.f32 0.0, %v4493
  %v4495 = vpop.f32.mrb[0].mxu0
  %v4496 = vpop.f32.mrb[0].mxu0
  %4497 = vdwg.mxu0
  %4498 = vmatprep.subr.bf16.mxu0 %v4362
  %4499 = vmatpush1.bf16.msra.mxu0 %v4361
  %4500 = vmatprep.subr.bf16.mxu0 %v4365
  %4501 = vmatpush1.bf16.msra.mxu0 %v4364
  %4502 = vmatprep.subr.bf16.mxu0 %v4368
  %4503 = vmatpush1.bf16.msra.mxu0 %v4367
  %4504 = vmatprep.subr.bf16.mxu0 %v4371
  %4505 = vmatpush1.bf16.msra.mxu0 %v4370
  %4506 = vmatprep.subr.bf16.mxu0 %v4374
  %4507 = vmatpush1.bf16.msra.mxu0 %v4373
  %4508 = vmatprep.subr.bf16.mxu0 %v4377
  %4509 = vmatpush1.bf16.msra.mxu0 %v4376
  %4510 = vmatprep.subr.bf16.mxu0 %v4380
  %4511 = vmatpush1.bf16.msra.mxu0 %v4379
  %4512 = vmatprep.subr.bf16.mxu0 %v4383
  %4513 = vmatpush1.bf16.msra.mxu0 %v4382
  %4514 = vmatprep.subr.bf16.mxu0 0
  %4515 = vmatpush1.bf16.msra.mxu0 0
  %4516 = vmatprep.subr.bf16.mxu0 0
  %4517 = vmatpush1.bf16.msra.mxu0 0
  %4518 = vmatprep.subr.bf16.mxu0 0
  %4519 = vmatpush1.bf16.msra.mxu0 0
  %4520 = vmatprep.subr.bf16.mxu0 0
  %4521 = vmatpush1.bf16.msra.mxu0 0
  %4522 = vmatprep.subr.bf16.mxu0 0
  %4523 = vmatpush1.bf16.msra.mxu0 0
  %4524 = vmatprep.subr.bf16.mxu0 0
  %4525 = vmatpush1.bf16.msra.mxu0 0
  %4526 = vmatprep.subr.bf16.mxu0 0
  %4527 = vmatpush1.bf16.msra.mxu0 0
  %4528 = vmatprep.subr.bf16.mxu0 0
  %4529 = vmatpush1.bf16.msra.mxu0 0
  %4530 = vmatprep.mubr.bf16.mxu0 0
  %4531 = vmatmul.mubr.bf16.gmra.mrb[0].mxu0 %v3701
  %v4532 = vpop.f32.mrb[0].mxu0
  %v4533 = vadd.f32 %v4492, %v4532
  %v4534 = vpop.f32.mrb[0].mxu0
  %v4535 = vadd.f32 %v4494, %v4534
  %v4536 = vpop.f32.mrb[0].mxu0
  %v4537 = vpop.f32.mrb[0].mxu0
  %4538 = vdwg.mxu0
  %4539 = vmatprep.subr.bf16.mxu0 0
  %4540 = vmatpush1.bf16.msra.mxu0 %v4315
  %4541 = vmatprep.subr.bf16.mxu0 0
  %4542 = vmatpush1.bf16.msra.mxu0 %v4318
  %4543 = vmatprep.subr.bf16.mxu0 0
  %4544 = vmatpush1.bf16.msra.mxu0 %v4321
  %4545 = vmatprep.subr.bf16.mxu0 0
  %4546 = vmatpush1.bf16.msra.mxu0 %v4324
  %4547 = vmatprep.subr.bf16.mxu0 0
  %4548 = vmatpush1.bf16.msra.mxu0 %v4327
  %4549 = vmatprep.subr.bf16.mxu0 0
  %4550 = vmatpush1.bf16.msra.mxu0 %v4330
  %4551 = vmatprep.subr.bf16.mxu0 0
  %4552 = vmatpush1.bf16.msra.mxu0 %v4333
  %4553 = vmatprep.subr.bf16.mxu0 0
  %4554 = vmatpush1.bf16.msra.mxu0 %v4336
  %4555 = vmatprep.subr.bf16.mxu0 0
  %4556 = vmatpush1.bf16.msra.mxu0 %v4339
  %4557 = vmatprep.subr.bf16.mxu0 0
  %4558 = vmatpush1.bf16.msra.mxu0 %v4342
  %4559 = vmatprep.subr.bf16.mxu0 0
  %4560 = vmatpush1.bf16.msra.mxu0 %v4345
  %4561 = vmatprep.subr.bf16.mxu0 0
  %4562 = vmatpush1.bf16.msra.mxu0 %v4348
  %4563 = vmatprep.subr.bf16.mxu0 0
  %4564 = vmatpush1.bf16.msra.mxu0 %v4351
  %4565 = vmatprep.subr.bf16.mxu0 0
  %4566 = vmatpush1.bf16.msra.mxu0 %v4354
  %4567 = vmatprep.subr.bf16.mxu0 0
  %4568 = vmatpush1.bf16.msra.mxu0 %v4357
  %4569 = vmatprep.subr.bf16.mxu0 0
  %4570 = vmatpush1.bf16.msra.mxu0 %v4360
  %4571 = vmatprep.mubr.bf16.mxu0 %v3700
  %4572 = vmatmul.mubr.bf16.gmra.mrb[0].mxu0 %v3699
  %v4573 = vpop.f32.mrb[0].mxu0
  %v4574 = vadd.f32 0.0, %v4573
  %v4575 = vpop.f32.mrb[0].mxu0
  %v4576 = vpop.f32.mrb[0].mxu0
  %v4577 = vpop.f32.mrb[0].mxu0
  %4578 = vdwg.mxu0
  %4579 = vmatprep.subr.bf16.mxu0 0
  %4580 = vmatpush1.bf16.msra.mxu0 %v4363
  %4581 = vmatprep.subr.bf16.mxu0 0
  %4582 = vmatpush1.bf16.msra.mxu0 %v4366
  %4583 = vmatprep.subr.bf16.mxu0 0
  %4584 = vmatpush1.bf16.msra.mxu0 %v4369
  %4585 = vmatprep.subr.bf16.mxu0 0
  %4586 = vmatpush1.bf16.msra.mxu0 %v4372
  %4587 = vmatprep.subr.bf16.mxu0 0
  %4588 = vmatpush1.bf16.msra.mxu0 %v4375
  %4589 = vmatprep.subr.bf16.mxu0 0
  %4590 = vmatpush1.bf16.msra.mxu0 %v4378
  %4591 = vmatprep.subr.bf16.mxu0 0
  %4592 = vmatpush1.bf16.msra.mxu0 %v4381
  %4593 = vmatprep.subr.bf16.mxu0 0
  %4594 = vmatpush1.bf16.msra.mxu0 %v4384
  %4595 = vmatprep.subr.bf16.mxu0 0
  %4596 = vmatpush1.bf16.msra.mxu0 0
  %4597 = vmatprep.subr.bf16.mxu0 0
  %4598 = vmatpush1.bf16.msra.mxu0 0
  %4599 = vmatprep.subr.bf16.mxu0 0
  %4600 = vmatpush1.bf16.msra.mxu0 0
  %4601 = vmatprep.subr.bf16.mxu0 0
  %4602 = vmatpush1.bf16.msra.mxu0 0
  %4603 = vmatprep.subr.bf16.mxu0 0
  %4604 = vmatpush1.bf16.msra.mxu0 0
  %4605 = vmatprep.subr.bf16.mxu0 0
  %4606 = vmatpush1.bf16.msra.mxu0 0
  %4607 = vmatprep.subr.bf16.mxu0 0
  %4608 = vmatpush1.bf16.msra.mxu0 0
  %4609 = vmatprep.subr.bf16.mxu0 0
  %4610 = vmatpush1.bf16.msra.mxu0 0
  %4611 = vmatprep.mubr.bf16.mxu0 0
  %4612 = vmatmul.mubr.bf16.gmra.mrb[0].mxu0 %v3701
  %v4613 = vpop.f32.mrb[0].mxu0
  %v4614 = vadd.f32 %v4574, %v4613
  %v4615 = vpop.f32.mrb[0].mxu0
  %v4616 = vpop.f32.mrb[0].mxu0
  %v4617 = vpop.f32.mrb[0].mxu0
  %4618 = vdwg.mxu0
  %v4715 = vunpack.c.l.b16 %v3880
  %v4716 = vunpack.c.h.b16 %v3880
  %v4717 = vunpack.c.l.b16 %v3881
  %v4718 = vunpack.c.l.b16 %v3882
  %v4719 = vunpack.c.h.b16 %v3882
  %v4720 = vunpack.c.l.b16 %v3883
  %v4721 = vunpack.c.l.b16 %v3884
  %v4722 = vunpack.c.h.b16 %v3884
  %v4723 = vunpack.c.l.b16 %v3885
  %v4724 = vunpack.c.l.b16 %v3886
  %v4725 = vunpack.c.h.b16 %v3886
  %v4726 = vunpack.c.l.b16 %v3887
  %v4727 = vunpack.c.l.b16 %v3888
  %v4728 = vunpack.c.h.b16 %v3888
  %v4729 = vunpack.c.l.b16 %v3889
  %v4730 = vunpack.c.l.b16 %v3890
  %v4731 = vunpack.c.h.b16 %v3890
  %v4732 = vunpack.c.l.b16 %v3891
  %v4733 = vunpack.c.l.b16 %v3892
  %v4734 = vunpack.c.h.b16 %v3892
  %v4735 = vunpack.c.l.b16 %v3893
  %v4736 = vunpack.c.l.b16 %v3894
  %v4737 = vunpack.c.h.b16 %v3894
  %v4738 = vunpack.c.l.b16 %v3895
  %v4739 = vunpack.c.l.b16 %v3896
  %v4740 = vunpack.c.h.b16 %v3896
  %v4741 = vunpack.c.l.b16 %v3897
  %v4742 = vunpack.c.l.b16 %v3898
  %v4743 = vunpack.c.h.b16 %v3898
  %v4744 = vunpack.c.l.b16 %v3899
  %v4745 = vunpack.c.l.b16 %v3900
  %v4746 = vunpack.c.h.b16 %v3900
  %v4747 = vunpack.c.l.b16 %v3901
  %v4748 = vunpack.c.l.b16 %v3902
  %v4749 = vunpack.c.h.b16 %v3902
  %v4750 = vunpack.c.l.b16 %v3903
  %v4751 = vunpack.c.l.b16 %v3904
  %v4752 = vunpack.c.h.b16 %v3904
  %v4753 = vunpack.c.l.b16 %v3905
  %v4754 = vunpack.c.l.b16 %v3906
  %v4755 = vunpack.c.h.b16 %v3906
  %v4756 = vunpack.c.l.b16 %v3907
  %v4757 = vunpack.c.l.b16 %v3908
  %v4758 = vunpack.c.h.b16 %v3908
  %v4759 = vunpack.c.l.b16 %v3909
  %v4760 = vunpack.c.l.b16 %v3910
  %v4761 = vunpack.c.h.b16 %v3910
  %v4762 = vunpack.c.l.b16 %v3911
  %v4763 = vunpack.c.l.b16 %v3912
  %v4764 = vunpack.c.h.b16 %v3912
  %v4765 = vunpack.c.l.b16 %v3913
  %v4766 = vunpack.c.l.b16 %v3914
  %v4767 = vunpack.c.h.b16 %v3914
  %v4768 = vunpack.c.l.b16 %v3915
  %v4769 = vunpack.c.l.b16 %v3916
  %v4770 = vunpack.c.h.b16 %v3916
  %v4771 = vunpack.c.l.b16 %v3917
  %v4772 = vunpack.c.l.b16 %v3918
  %v4773 = vunpack.c.h.b16 %v3918
  %v4774 = vunpack.c.l.b16 %v3919
  %v4775 = vunpack.c.l.b16 %v3920
  %v4776 = vunpack.c.h.b16 %v3920
  %v4777 = vunpack.c.l.b16 %v3921
  %v4778 = vunpack.c.l.b16 %v3922
  %v4779 = vunpack.c.h.b16 %v3922
  %v4780 = vunpack.c.l.b16 %v3923
  %v4781 = vunpack.c.l.b16 %v3924
  %v4782 = vunpack.c.h.b16 %v3924
  %v4783 = vunpack.c.l.b16 %v3925
  %v4784 = vunpack.c.l.b16 %v3926
  %v4785 = vunpack.c.h.b16 %v3926
  %v4786 = vunpack.c.l.b16 %v3927
  %v4787 = vunpack.c.l.b16 %v3928
  %v4788 = vunpack.c.h.b16 %v3928
  %v4789 = vunpack.c.l.b16 %v3929
  %v4790 = vunpack.c.l.b16 %v3930
  %v4791 = vunpack.c.h.b16 %v3930
  %v4792 = vunpack.c.l.b16 %v3931
  %v4793 = vunpack.c.l.b16 %v3932
  %v4794 = vunpack.c.h.b16 %v3932
  %v4795 = vunpack.c.l.b16 %v3933
  %v4796 = vunpack.c.l.b16 %v3934
  %v4797 = vunpack.c.h.b16 %v3934
  %v4798 = vunpack.c.l.b16 %v3935
  %v4799 = vunpack.c.l.b16 %v3936
  %v4800 = vunpack.c.h.b16 %v3936
  %v4801 = vunpack.c.l.b16 %v3937
  %v4802 = vunpack.c.l.b16 %v3938
  %v4803 = vunpack.c.h.b16 %v3938
  %v4804 = vunpack.c.l.b16 %v3939
  %v4805 = vunpack.c.l.b16 %v3940
  %v4806 = vunpack.c.h.b16 %v3940
  %v4807 = vunpack.c.l.b16 %v3941
  %v4808 = vunpack.c.l.b16 %v3942
  %v4809 = vunpack.c.h.b16 %v3942
  %v4810 = vunpack.c.l.b16 %v3943
  %v4811 = vunpack.c.l.b16 %v3944
  %v4812 = vunpack.c.h.b16 %v3944
  %v4813 = vunpack.c.l.b16 %v3945
  %v4814 = vunpack.c.l.b16 %v3946
  %v4815 = vunpack.c.h.b16 %v3946
  %v4816 = vunpack.c.l.b16 %v3947
  %v4817 = vunpack.c.l.b16 %v3948
  %v4818 = vunpack.c.h.b16 %v3948
  %v4819 = vunpack.c.l.b16 %v3949
  %v4820 = vunpack.c.l.b16 %v3950
  %v4821 = vunpack.c.h.b16 %v3950
  %v4822 = vunpack.c.l.b16 %v3951
  %v4823 = vunpack.c.l.b16 %v3952
  %v4824 = vunpack.c.h.b16 %v3952
  %v4825 = vunpack.c.l.b16 %v3953
  %v4826 = vunpack.c.l.b16 %v3954
  %v4827 = vunpack.c.h.b16 %v3954
  %v4828 = vunpack.c.l.b16 %v3955
  %v4829 = vunpack.c.l.b16 %v3956
  %v4830 = vunpack.c.h.b16 %v3956
  %v4831 = vunpack.c.l.b16 %v3957
  %v4832 = vunpack.c.l.b16 %v3958
  %v4833 = vunpack.c.h.b16 %v3958
  %v4834 = vunpack.c.l.b16 %v3959
  %v4835 = vunpack.c.l.b16 %v3960
  %v4836 = vunpack.c.h.b16 %v3960
  %v4837 = vunpack.c.l.b16 %v3961
  %v4838 = vunpack.c.l.b16 %v3962
  %v4839 = vunpack.c.h.b16 %v3962
  %v4840 = vunpack.c.l.b16 %v3963
  %v4841 = vunpack.c.l.b16 %v3964
  %v4842 = vunpack.c.h.b16 %v3964
  %v4843 = vunpack.c.l.b16 %v3965
  %v4844 = vunpack.c.l.b16 %v3966
  %v4845 = vunpack.c.h.b16 %v3966
  %v4846 = vunpack.c.l.b16 %v3967
  %v4847 = vunpack.c.l.b16 %v3968
  %v4848 = vunpack.c.h.b16 %v3968
  %v4849 = vunpack.c.l.b16 %v3969
  %v4850 = vunpack.c.l.b16 %v3970
  %v4851 = vunpack.c.h.b16 %v3970
  %v4852 = vunpack.c.l.b16 %v3971
  %v4853 = vunpack.c.l.b16 %v3972
  %v4854 = vunpack.c.h.b16 %v3972
  %v4855 = vunpack.c.l.b16 %v3973
  %v4856 = vunpack.c.l.b16 %v3974
  %v4857 = vunpack.c.h.b16 %v3974
  %v4858 = vunpack.c.l.b16 %v3975
  %v4859 = vpack.c.b16 %v4718, %v4715
  %v4860 = vpack.c.b16 %v4719, %v4716
  %v4861 = vpack.c.b16 %v4720, %v4717
  %v4862 = vpack.c.b16 %v4724, %v4721
  %v4863 = vpack.c.b16 %v4725, %v4722
  %v4864 = vpack.c.b16 %v4726, %v4723
  %v4865 = vpack.c.b16 %v4730, %v4727
  %v4866 = vpack.c.b16 %v4731, %v4728
  %v4867 = vpack.c.b16 %v4732, %v4729
  %v4868 = vpack.c.b16 %v4736, %v4733
  %v4869 = vpack.c.b16 %v4737, %v4734
  %v4870 = vpack.c.b16 %v4738, %v4735
  %v4871 = vpack.c.b16 %v4742, %v4739
  %v4872 = vpack.c.b16 %v4743, %v4740
  %v4873 = vpack.c.b16 %v4744, %v4741
  %v4874 = vpack.c.b16 %v4748, %v4745
  %v4875 = vpack.c.b16 %v4749, %v4746
  %v4876 = vpack.c.b16 %v4750, %v4747
  %v4877 = vpack.c.b16 %v4754, %v4751
  %v4878 = vpack.c.b16 %v4755, %v4752
  %v4879 = vpack.c.b16 %v4756, %v4753
  %v4880 = vpack.c.b16 %v4760, %v4757
  %v4881 = vpack.c.b16 %v4761, %v4758
  %v4882 = vpack.c.b16 %v4762, %v4759
  %v4883 = vpack.c.b16 %v4766, %v4763
  %v4884 = vpack.c.b16 %v4767, %v4764
  %v4885 = vpack.c.b16 %v4768, %v4765
  %v4886 = vpack.c.b16 %v4772, %v4769
  %v4887 = vpack.c.b16 %v4773, %v4770
  %v4888 = vpack.c.b16 %v4774, %v4771
  %v4889 = vpack.c.b16 %v4778, %v4775
  %v4890 = vpack.c.b16 %v4779, %v4776
  %v4891 = vpack.c.b16 %v4780, %v4777
  %v4892 = vpack.c.b16 %v4784, %v4781
  %v4893 = vpack.c.b16 %v4785, %v4782
  %v4894 = vpack.c.b16 %v4786, %v4783
  %v4895 = vpack.c.b16 %v4790, %v4787
  %v4896 = vpack.c.b16 %v4791, %v4788
  %v4897 = vpack.c.b16 %v4792, %v4789
  %v4898 = vpack.c.b16 %v4796, %v4793
  %v4899 = vpack.c.b16 %v4797, %v4794
  %v4900 = vpack.c.b16 %v4798, %v4795
  %v4901 = vpack.c.b16 %v4802, %v4799
  %v4902 = vpack.c.b16 %v4803, %v4800
  %v4903 = vpack.c.b16 %v4804, %v4801
  %v4904 = vpack.c.b16 %v4808, %v4805
  %v4905 = vpack.c.b16 %v4809, %v4806
  %v4906 = vpack.c.b16 %v4810, %v4807
  %v4907 = vpack.c.b16 %v4814, %v4811
  %v4908 = vpack.c.b16 %v4815, %v4812
  %v4909 = vpack.c.b16 %v4816, %v4813
  %v4910 = vpack.c.b16 %v4820, %v4817
  %v4911 = vpack.c.b16 %v4821, %v4818
  %v4912 = vpack.c.b16 %v4822, %v4819
  %v4913 = vpack.c.b16 %v4826, %v4823
  %v4914 = vpack.c.b16 %v4827, %v4824
  %v4915 = vpack.c.b16 %v4828, %v4825
  %v4916 = vpack.c.b16 %v4832, %v4829
  %v4917 = vpack.c.b16 %v4833, %v4830
  %v4918 = vpack.c.b16 %v4834, %v4831
  %v4919 = vpack.c.b16 %v4838, %v4835
  %v4920 = vpack.c.b16 %v4839, %v4836
  %v4921 = vpack.c.b16 %v4840, %v4837
  %v4922 = vpack.c.b16 %v4844, %v4841
  %v4923 = vpack.c.b16 %v4845, %v4842
  %v4924 = vpack.c.b16 %v4846, %v4843
  %v4925 = vpack.c.b16 %v4850, %v4847
  %v4926 = vpack.c.b16 %v4851, %v4848
  %v4927 = vpack.c.b16 %v4852, %v4849
  %v4928 = vpack.c.b16 %v4856, %v4853
  %v4929 = vpack.c.b16 %v4857, %v4854
  %v4930 = vpack.c.b16 %v4858, %v4855
  %5003 = vmatprep.subr.bf16.mxu0 %v4860
  %5004 = vmatpush1.bf16.msra.mxu0 %v4859
  %5005 = vmatprep.subr.bf16.mxu0 %v4863
  %5006 = vmatpush1.bf16.msra.mxu0 %v4862
  %5007 = vmatprep.subr.bf16.mxu0 %v4866
  %5008 = vmatpush1.bf16.msra.mxu0 %v4865
  %5009 = vmatprep.subr.bf16.mxu0 %v4869
  %5010 = vmatpush1.bf16.msra.mxu0 %v4868
  %5011 = vmatprep.subr.bf16.mxu0 %v4872
  %5012 = vmatpush1.bf16.msra.mxu0 %v4871
  %5013 = vmatprep.subr.bf16.mxu0 %v4875
  %5014 = vmatpush1.bf16.msra.mxu0 %v4874
  %5015 = vmatprep.subr.bf16.mxu0 %v4878
  %5016 = vmatpush1.bf16.msra.mxu0 %v4877
  %5017 = vmatprep.subr.bf16.mxu0 %v4881
  %5018 = vmatpush1.bf16.msra.mxu0 %v4880
  %5019 = vmatprep.subr.bf16.mxu0 %v4884
  %5020 = vmatpush1.bf16.msra.mxu0 %v4883
  %5021 = vmatprep.subr.bf16.mxu0 %v4887
  %5022 = vmatpush1.bf16.msra.mxu0 %v4886
  %5023 = vmatprep.subr.bf16.mxu0 %v4890
  %5024 = vmatpush1.bf16.msra.mxu0 %v4889
  %5025 = vmatprep.subr.bf16.mxu0 %v4893
  %5026 = vmatpush1.bf16.msra.mxu0 %v4892
  %5027 = vmatprep.subr.bf16.mxu0 %v4896
  %5028 = vmatpush1.bf16.msra.mxu0 %v4895
  %5029 = vmatprep.subr.bf16.mxu0 %v4899
  %5030 = vmatpush1.bf16.msra.mxu0 %v4898
  %5031 = vmatprep.subr.bf16.mxu0 %v4902
  %5032 = vmatpush1.bf16.msra.mxu0 %v4901
  %5033 = vmatprep.subr.bf16.mxu0 %v4905
  %5034 = vmatpush1.bf16.msra.mxu0 %v4904
  %5035 = vmatprep.mubr.bf16.mxu0 %v3789
  %5036 = vmatmul.mubr.bf16.gmra.mrb[0].mxu0 %v3788
  %v5037 = vpop.f32.mrb[0].mxu0
  %v5038 = vadd.f32 %v4533, %v5037
  %v5039 = vpop.f32.mrb[0].mxu0
  %v5040 = vadd.f32 %v4535, %v5039
  %v5041 = vpop.f32.mrb[0].mxu0
  %v5042 = vpop.f32.mrb[0].mxu0
  %5043 = vdwg.mxu0
  %5044 = vmatprep.subr.bf16.mxu0 %v4908
  %5045 = vmatpush1.bf16.msra.mxu0 %v4907
  %5046 = vmatprep.subr.bf16.mxu0 %v4911
  %5047 = vmatpush1.bf16.msra.mxu0 %v4910
  %5048 = vmatprep.subr.bf16.mxu0 %v4914
  %5049 = vmatpush1.bf16.msra.mxu0 %v4913
  %5050 = vmatprep.subr.bf16.mxu0 %v4917
  %5051 = vmatpush1.bf16.msra.mxu0 %v4916
  %5052 = vmatprep.subr.bf16.mxu0 %v4920
  %5053 = vmatpush1.bf16.msra.mxu0 %v4919
  %5054 = vmatprep.subr.bf16.mxu0 %v4923
  %5055 = vmatpush1.bf16.msra.mxu0 %v4922
  %5056 = vmatprep.subr.bf16.mxu0 %v4926
  %5057 = vmatpush1.bf16.msra.mxu0 %v4925
  %5058 = vmatprep.subr.bf16.mxu0 %v4929
  %5059 = vmatpush1.bf16.msra.mxu0 %v4928
  %5060 = vmatprep.subr.bf16.mxu0 0
  %5061 = vmatpush1.bf16.msra.mxu0 0
  %5062 = vmatprep.subr.bf16.mxu0 0
  %5063 = vmatpush1.bf16.msra.mxu0 0
  %5064 = vmatprep.subr.bf16.mxu0 0
  %5065 = vmatpush1.bf16.msra.mxu0 0
  %5066 = vmatprep.subr.bf16.mxu0 0
  %5067 = vmatpush1.bf16.msra.mxu0 0
  %5068 = vmatprep.subr.bf16.mxu0 0
  %5069 = vmatpush1.bf16.msra.mxu0 0
  %5070 = vmatprep.subr.bf16.mxu0 0
  %5071 = vmatpush1.bf16.msra.mxu0 0
  %5072 = vmatprep.subr.bf16.mxu0 0
  %5073 = vmatpush1.bf16.msra.mxu0 0
  %5074 = vmatprep.subr.bf16.mxu0 0
  %5075 = vmatpush1.bf16.msra.mxu0 0
  %5076 = vmatprep.mubr.bf16.mxu0 0
  %5077 = vmatmul.mubr.bf16.gmra.mrb[0].mxu0 %v3790
  %v5078 = vpop.f32.mrb[0].mxu0
  %v5079 = vadd.f32 %v5038, %v5078
  %v5080 = vpop.f32.mrb[0].mxu0
  %v5081 = vadd.f32 %v5040, %v5080
  %v5082 = vpop.f32.mrb[0].mxu0
  %v5083 = vpop.f32.mrb[0].mxu0
  %5084 = vdwg.mxu0
  %5085 = vmatprep.subr.bf16.mxu0 0
  %5086 = vmatpush1.bf16.msra.mxu0 %v4861
  %5087 = vmatprep.subr.bf16.mxu0 0
  %5088 = vmatpush1.bf16.msra.mxu0 %v4864
  %5089 = vmatprep.subr.bf16.mxu0 0
  %5090 = vmatpush1.bf16.msra.mxu0 %v4867
  %5091 = vmatprep.subr.bf16.mxu0 0
  %5092 = vmatpush1.bf16.msra.mxu0 %v4870
  %5093 = vmatprep.subr.bf16.mxu0 0
  %5094 = vmatpush1.bf16.msra.mxu0 %v4873
  %5095 = vmatprep.subr.bf16.mxu0 0
  %5096 = vmatpush1.bf16.msra.mxu0 %v4876
  %5097 = vmatprep.subr.bf16.mxu0 0
  %5098 = vmatpush1.bf16.msra.mxu0 %v4879
  %5099 = vmatprep.subr.bf16.mxu0 0
  %5100 = vmatpush1.bf16.msra.mxu0 %v4882
  %5101 = vmatprep.subr.bf16.mxu0 0
  %5102 = vmatpush1.bf16.msra.mxu0 %v4885
  %5103 = vmatprep.subr.bf16.mxu0 0
  %5104 = vmatpush1.bf16.msra.mxu0 %v4888
  %5105 = vmatprep.subr.bf16.mxu0 0
  %5106 = vmatpush1.bf16.msra.mxu0 %v4891
  %5107 = vmatprep.subr.bf16.mxu0 0
  %5108 = vmatpush1.bf16.msra.mxu0 %v4894
  %5109 = vmatprep.subr.bf16.mxu0 0
  %5110 = vmatpush1.bf16.msra.mxu0 %v4897
  %5111 = vmatprep.subr.bf16.mxu0 0
  %5112 = vmatpush1.bf16.msra.mxu0 %v4900
  %5113 = vmatprep.subr.bf16.mxu0 0
  %5114 = vmatpush1.bf16.msra.mxu0 %v4903
  %5115 = vmatprep.subr.bf16.mxu0 0
  %5116 = vmatpush1.bf16.msra.mxu0 %v4906
  %5117 = vmatprep.mubr.bf16.mxu0 %v3789
  %5118 = vmatmul.mubr.bf16.gmra.mrb[0].mxu0 %v3788
  %v5119 = vpop.f32.mrb[0].mxu0
  %v5120 = vadd.f32 %v4614, %v5119
  %v5121 = vpop.f32.mrb[0].mxu0
  %v5122 = vpop.f32.mrb[0].mxu0
  %v5123 = vpop.f32.mrb[0].mxu0
  %5124 = vdwg.mxu0
  %5125 = vmatprep.subr.bf16.mxu0 0
  %5126 = vmatpush1.bf16.msra.mxu0 %v4909
  %5127 = vmatprep.subr.bf16.mxu0 0
  %5128 = vmatpush1.bf16.msra.mxu0 %v4912
  %5129 = vmatprep.subr.bf16.mxu0 0
  %5130 = vmatpush1.bf16.msra.mxu0 %v4915
  %5131 = vmatprep.subr.bf16.mxu0 0
  %5132 = vmatpush1.bf16.msra.mxu0 %v4918
  %5133 = vmatprep.subr.bf16.mxu0 0
  %5134 = vmatpush1.bf16.msra.mxu0 %v4921
  %5135 = vmatprep.subr.bf16.mxu0 0
  %5136 = vmatpush1.bf16.msra.mxu0 %v4924
  %5137 = vmatprep.subr.bf16.mxu0 0
  %5138 = vmatpush1.bf16.msra.mxu0 %v4927
  %5139 = vmatprep.subr.bf16.mxu0 0
  %5140 = vmatpush1.bf16.msra.mxu0 %v4930
  %5141 = vmatprep.subr.bf16.mxu0 0
  %5142 = vmatpush1.bf16.msra.mxu0 0
  %5143 = vmatprep.subr.bf16.mxu0 0
  %5144 = vmatpush1.bf16.msra.mxu0 0
  %5145 = vmatprep.subr.bf16.mxu0 0
  %5146 = vmatpush1.bf16.msra.mxu0 0
  %5147 = vmatprep.subr.bf16.mxu0 0
  %5148 = vmatpush1.bf16.msra.mxu0 0
  %5149 = vmatprep.subr.bf16.mxu0 0
  %5150 = vmatpush1.bf16.msra.mxu0 0
  %5151 = vmatprep.subr.bf16.mxu0 0
  %5152 = vmatpush1.bf16.msra.mxu0 0
  %5153 = vmatprep.subr.bf16.mxu0 0
  %5154 = vmatpush1.bf16.msra.mxu0 0
  %5155 = vmatprep.subr.bf16.mxu0 0
  %5156 = vmatpush1.bf16.msra.mxu0 0
  %5157 = vmatprep.mubr.bf16.mxu0 0
  %5158 = vmatmul.mubr.bf16.gmra.mrb[0].mxu0 %v3790
  %v5159 = vpop.f32.mrb[0].mxu0
  %v5160 = vadd.f32 %v5120, %v5159
  %v5161 = vpop.f32.mrb[0].mxu0
  %v5162 = vpop.f32.mrb[0].mxu0
  %v5163 = vpop.f32.mrb[0].mxu0
  %5164 = vdwg.mxu0
  %s5165 = scalar_lea.vmem %s9, 1152
  %v5166 = vld [vmem:[%s5165] sm:$0xff]
  %v5167 = vld [vmem:[%s5165 + $0x8] sm:$0xf]
  %v5168 = vld [vmem:[%s5165 + $0xc] sm:$0xff]
  %v5169 = vld [vmem:[%s5165 + $0x14] sm:$0xf]
  %v5170 = vld [vmem:[%s5165 + $0x18] sm:$0xff]
  %v5171 = vld [vmem:[%s5165 + $0x20] sm:$0xf]
  %v5172 = vld [vmem:[%s5165 + $0x24] sm:$0xff]
  %v5173 = vld [vmem:[%s5165 + $0x2c] sm:$0xf]
  %v5174 = vld [vmem:[%s5165 + $0x30] sm:$0xff]
  %v5175 = vld [vmem:[%s5165 + $0x38] sm:$0xf]
  %v5176 = vld [vmem:[%s5165 + $0x3c] sm:$0xff]
  %v5177 = vld [vmem:[%s5165 + $0x44] sm:$0xf]
  %v5178 = vld [vmem:[%s5165 + $0x48] sm:$0xff]
  %v5179 = vld [vmem:[%s5165 + $0x50] sm:$0xf]
  %v5180 = vld [vmem:[%s5165 + $0x54] sm:$0xff]
  %v5181 = vld [vmem:[%s5165 + $0x5c] sm:$0xf]
  %v5182 = vld [vmem:[%s5165 + $0x60] sm:$0xff]
  %v5183 = vld [vmem:[%s5165 + $0x68] sm:$0xf]
  %v5184 = vld [vmem:[%s5165 + $0x6c] sm:$0xff]
  %v5185 = vld [vmem:[%s5165 + $0x74] sm:$0xf]
  %v5186 = vld [vmem:[%s5165 + $0x78] sm:$0xff]
  %v5187 = vld [vmem:[%s5165 + $0x80] sm:$0xf]
  %v5188 = vld [vmem:[%s5165 + $0x84] sm:$0xff]
  %v5189 = vld [vmem:[%s5165 + $0x8c] sm:$0xf]
  %v5190 = vld [vmem:[%s5165 + $0x90] sm:$0xff]
  %v5191 = vld [vmem:[%s5165 + $0x98] sm:$0xf]
  %v5192 = vld [vmem:[%s5165 + $0x9c] sm:$0xff]
  %v5193 = vld [vmem:[%s5165 + $0xa4] sm:$0xf]
  %v5194 = vld [vmem:[%s5165 + $0xa8] sm:$0xff]
  %v5195 = vld [vmem:[%s5165 + $0xb0] sm:$0xf]
  %v5196 = vld [vmem:[%s5165 + $0xb4] sm:$0xff]
  %v5197 = vld [vmem:[%s5165 + $0xbc] sm:$0xf]
  %v5198 = vld [vmem:[%s5165 + $0xc0] sm:$0xff]
  %v5199 = vld [vmem:[%s5165 + $0xc8] sm:$0xf]
  %v5200 = vld [vmem:[%s5165 + $0xcc] sm:$0xff]
  %v5201 = vld [vmem:[%s5165 + $0xd4] sm:$0xf]
  %v5202 = vld [vmem:[%s5165 + $0xd8] sm:$0xff]
  %v5203 = vld [vmem:[%s5165 + $0xe0] sm:$0xf]
  %v5204 = vld [vmem:[%s5165 + $0xe4] sm:$0xff]
  %v5205 = vld [vmem:[%s5165 + $0xec] sm:$0xf]
  %v5206 = vld [vmem:[%s5165 + $0xf0] sm:$0xff]
  %v5207 = vld [vmem:[%s5165 + $0xf8] sm:$0xf]
  %v5208 = vld [vmem:[%s5165 + $0xfc] sm:$0xff]
  %v5209 = vld [vmem:[%s5165 + $0x104] sm:$0xf]
  %v5210 = vld [vmem:[%s5165 + $0x108] sm:$0xff]
  %v5211 = vld [vmem:[%s5165 + $0x110] sm:$0xf]
  %v5212 = vld [vmem:[%s5165 + $0x114] sm:$0xff]
  %v5213 = vld [vmem:[%s5165 + $0x11c] sm:$0xf]
  %v5214 = vld [vmem:[%s5165 + $0x120] sm:$0xff]
  %v5215 = vld [vmem:[%s5165 + $0x128] sm:$0xf]
  %v5216 = vld [vmem:[%s5165 + $0x12c] sm:$0xff]
  %v5217 = vld [vmem:[%s5165 + $0x134] sm:$0xf]
  %v5218 = vld [vmem:[%s5165 + $0x138] sm:$0xff]
  %v5219 = vld [vmem:[%s5165 + $0x140] sm:$0xf]
  %v5220 = vld [vmem:[%s5165 + $0x144] sm:$0xff]
  %v5221 = vld [vmem:[%s5165 + $0x14c] sm:$0xf]
  %v5222 = vld [vmem:[%s5165 + $0x150] sm:$0xff]
  %v5223 = vld [vmem:[%s5165 + $0x158] sm:$0xf]
  %v5224 = vld [vmem:[%s5165 + $0x15c] sm:$0xff]
  %v5225 = vld [vmem:[%s5165 + $0x164] sm:$0xf]
  %v5226 = vld [vmem:[%s5165 + $0x168] sm:$0xff]
  %v5227 = vld [vmem:[%s5165 + $0x170] sm:$0xf]
  %v5228 = vld [vmem:[%s5165 + $0x174] sm:$0xff]
  %v5229 = vld [vmem:[%s5165 + $0x17c] sm:$0xf]
  %v5230 = vld [vmem:[%s5165 + $0x180] sm:$0xff]
  %v5231 = vld [vmem:[%s5165 + $0x188] sm:$0xf]
  %v5232 = vld [vmem:[%s5165 + $0x18c] sm:$0xff]
  %v5233 = vld [vmem:[%s5165 + $0x194] sm:$0xf]
  %v5234 = vld [vmem:[%s5165 + $0x198] sm:$0xff]
  %v5235 = vld [vmem:[%s5165 + $0x1a0] sm:$0xf]
  %v5236 = vld [vmem:[%s5165 + $0x1a4] sm:$0xff]
  %v5237 = vld [vmem:[%s5165 + $0x1ac] sm:$0xf]
  %v5238 = vld [vmem:[%s5165 + $0x1b0] sm:$0xff]
  %v5239 = vld [vmem:[%s5165 + $0x1b8] sm:$0xf]
  %v5240 = vld [vmem:[%s5165 + $0x1bc] sm:$0xff]
  %v5241 = vld [vmem:[%s5165 + $0x1c4] sm:$0xf]
  %v5242 = vld [vmem:[%s5165 + $0x1c8] sm:$0xff]
  %v5243 = vld [vmem:[%s5165 + $0x1d0] sm:$0xf]
  %v5244 = vld [vmem:[%s5165 + $0x1d4] sm:$0xff]
  %v5245 = vld [vmem:[%s5165 + $0x1dc] sm:$0xf]
  %v5246 = vld [vmem:[%s5165 + $0x1e0] sm:$0xff]
  %v5247 = vld [vmem:[%s5165 + $0x1e8] sm:$0xf]
  %v5248 = vld [vmem:[%s5165 + $0x1ec] sm:$0xff]
  %v5249 = vld [vmem:[%s5165 + $0x1f4] sm:$0xf]
  %v5250 = vld [vmem:[%s5165 + $0x1f8] sm:$0xff]
  %v5251 = vld [vmem:[%s5165 + $0x200] sm:$0xf]
  %v5252 = vld [vmem:[%s5165 + $0x204] sm:$0xff]
  %v5253 = vld [vmem:[%s5165 + $0x20c] sm:$0xf]
  %v5254 = vld [vmem:[%s5165 + $0x210] sm:$0xff]
  %v5255 = vld [vmem:[%s5165 + $0x218] sm:$0xf]
  %v5256 = vld [vmem:[%s5165 + $0x21c] sm:$0xff]
  %v5257 = vld [vmem:[%s5165 + $0x224] sm:$0xf]
  %v5258 = vld [vmem:[%s5165 + $0x228] sm:$0xff]
  %v5259 = vld [vmem:[%s5165 + $0x230] sm:$0xf]
  %v5260 = vld [vmem:[%s5165 + $0x234] sm:$0xff]
  %v5261 = vld [vmem:[%s5165 + $0x23c] sm:$0xf]
  %s5262 = scalar_lea.vmem %s9, 1728
  %v5263 = vld [vmem:[%s5262] sm:$0xff]
  %v5264 = vld [vmem:[%s5262 + $0x8] sm:$0xf]
  %v5265 = vld [vmem:[%s5262 + $0xc] sm:$0xff]
  %v5266 = vld [vmem:[%s5262 + $0x14] sm:$0xf]
  %v5267 = vld [vmem:[%s5262 + $0x18] sm:$0xff]
  %v5268 = vld [vmem:[%s5262 + $0x20] sm:$0xf]
  %v5269 = vld [vmem:[%s5262 + $0x24] sm:$0xff]
  %v5270 = vld [vmem:[%s5262 + $0x2c] sm:$0xf]
  %v5271 = vld [vmem:[%s5262 + $0x30] sm:$0xff]
  %v5272 = vld [vmem:[%s5262 + $0x38] sm:$0xf]
  %v5273 = vld [vmem:[%s5262 + $0x3c] sm:$0xff]
  %v5274 = vld [vmem:[%s5262 + $0x44] sm:$0xf]
  %v5275 = vld [vmem:[%s5262 + $0x48] sm:$0xff]
  %v5276 = vld [vmem:[%s5262 + $0x50] sm:$0xf]
  %v5277 = vld [vmem:[%s5262 + $0x54] sm:$0xff]
  %v5278 = vld [vmem:[%s5262 + $0x5c] sm:$0xf]
  %v5279 = vld [vmem:[%s5262 + $0x60] sm:$0xff]
  %v5280 = vld [vmem:[%s5262 + $0x68] sm:$0xf]
  %v5281 = vld [vmem:[%s5262 + $0x6c] sm:$0xff]
  %v5282 = vld [vmem:[%s5262 + $0x74] sm:$0xf]
  %v5283 = vld [vmem:[%s5262 + $0x78] sm:$0xff]
  %v5284 = vld [vmem:[%s5262 + $0x80] sm:$0xf]
  %v5285 = vld [vmem:[%s5262 + $0x84] sm:$0xff]
  %v5286 = vld [vmem:[%s5262 + $0x8c] sm:$0xf]
  %v5287 = vld [vmem:[%s5262 + $0x90] sm:$0xff]
  %v5288 = vld [vmem:[%s5262 + $0x98] sm:$0xf]
  %v5289 = vld [vmem:[%s5262 + $0x9c] sm:$0xff]
  %v5290 = vld [vmem:[%s5262 + $0xa4] sm:$0xf]
  %v5291 = vld [vmem:[%s5262 + $0xa8] sm:$0xff]
  %v5292 = vld [vmem:[%s5262 + $0xb0] sm:$0xf]
  %v5293 = vld [vmem:[%s5262 + $0xb4] sm:$0xff]
  %v5294 = vld [vmem:[%s5262 + $0xbc] sm:$0xf]
  %v5295 = vld [vmem:[%s5262 + $0xc0] sm:$0xff]
  %v5296 = vld [vmem:[%s5262 + $0xc8] sm:$0xf]
  %v5297 = vld [vmem:[%s5262 + $0xcc] sm:$0xff]
  %v5298 = vld [vmem:[%s5262 + $0xd4] sm:$0xf]
  %v5299 = vld [vmem:[%s5262 + $0xd8] sm:$0xff]
  %v5300 = vld [vmem:[%s5262 + $0xe0] sm:$0xf]
  %v5301 = vld [vmem:[%s5262 + $0xe4] sm:$0xff]
  %v5302 = vld [vmem:[%s5262 + $0xec] sm:$0xf]
  %v5303 = vld [vmem:[%s5262 + $0xf0] sm:$0xff]
  %v5304 = vld [vmem:[%s5262 + $0xf8] sm:$0xf]
  %v5305 = vld [vmem:[%s5262 + $0xfc] sm:$0xff]
  %v5306 = vld [vmem:[%s5262 + $0x104] sm:$0xf]
  %v5307 = vld [vmem:[%s5262 + $0x108] sm:$0xff]
  %v5308 = vld [vmem:[%s5262 + $0x110] sm:$0xf]
  %v5309 = vld [vmem:[%s5262 + $0x114] sm:$0xff]
  %v5310 = vld [vmem:[%s5262 + $0x11c] sm:$0xf]
  %v5311 = vld [vmem:[%s5262 + $0x120] sm:$0xff]
  %v5312 = vld [vmem:[%s5262 + $0x128] sm:$0xf]
  %v5313 = vld [vmem:[%s5262 + $0x12c] sm:$0xff]
  %v5314 = vld [vmem:[%s5262 + $0x134] sm:$0xf]
  %v5315 = vld [vmem:[%s5262 + $0x138] sm:$0xff]
  %v5316 = vld [vmem:[%s5262 + $0x140] sm:$0xf]
  %v5317 = vld [vmem:[%s5262 + $0x144] sm:$0xff]
  %v5318 = vld [vmem:[%s5262 + $0x14c] sm:$0xf]
  %v5319 = vld [vmem:[%s5262 + $0x150] sm:$0xff]
  %v5320 = vld [vmem:[%s5262 + $0x158] sm:$0xf]
  %v5321 = vld [vmem:[%s5262 + $0x15c] sm:$0xff]
  %v5322 = vld [vmem:[%s5262 + $0x164] sm:$0xf]
  %v5323 = vld [vmem:[%s5262 + $0x168] sm:$0xff]
  %v5324 = vld [vmem:[%s5262 + $0x170] sm:$0xf]
  %v5325 = vld [vmem:[%s5262 + $0x174] sm:$0xff]
  %v5326 = vld [vmem:[%s5262 + $0x17c] sm:$0xf]
  %v5327 = vld [vmem:[%s5262 + $0x180] sm:$0xff]
  %v5328 = vld [vmem:[%s5262 + $0x188] sm:$0xf]
  %v5329 = vld [vmem:[%s5262 + $0x18c] sm:$0xff]
  %v5330 = vld [vmem:[%s5262 + $0x194] sm:$0xf]
  %v5331 = vld [vmem:[%s5262 + $0x198] sm:$0xff]
  %v5332 = vld [vmem:[%s5262 + $0x1a0] sm:$0xf]
  %v5333 = vld [vmem:[%s5262 + $0x1a4] sm:$0xff]
  %v5334 = vld [vmem:[%s5262 + $0x1ac] sm:$0xf]
  %v5335 = vld [vmem:[%s5262 + $0x1b0] sm:$0xff]
  %v5336 = vld [vmem:[%s5262 + $0x1b8] sm:$0xf]
  %v5337 = vld [vmem:[%s5262 + $0x1bc] sm:$0xff]
  %v5338 = vld [vmem:[%s5262 + $0x1c4] sm:$0xf]
  %v5339 = vld [vmem:[%s5262 + $0x1c8] sm:$0xff]
  %v5340 = vld [vmem:[%s5262 + $0x1d0] sm:$0xf]
  %v5341 = vld [vmem:[%s5262 + $0x1d4] sm:$0xff]
  %v5342 = vld [vmem:[%s5262 + $0x1dc] sm:$0xf]
  %v5343 = vld [vmem:[%s5262 + $0x1e0] sm:$0xff]
  %v5344 = vld [vmem:[%s5262 + $0x1e8] sm:$0xf]
  %v5345 = vld [vmem:[%s5262 + $0x1ec] sm:$0xff]
  %v5346 = vld [vmem:[%s5262 + $0x1f4] sm:$0xf]
  %v5347 = vld [vmem:[%s5262 + $0x1f8] sm:$0xff]
  %v5348 = vld [vmem:[%s5262 + $0x200] sm:$0xf]
  %v5349 = vld [vmem:[%s5262 + $0x204] sm:$0xff]
  %v5350 = vld [vmem:[%s5262 + $0x20c] sm:$0xf]
  %v5351 = vld [vmem:[%s5262 + $0x210] sm:$0xff]
  %v5352 = vld [vmem:[%s5262 + $0x218] sm:$0xf]
  %v5353 = vld [vmem:[%s5262 + $0x21c] sm:$0xff]
  %v5354 = vld [vmem:[%s5262 + $0x224] sm:$0xf]
  %v5355 = vld [vmem:[%s5262 + $0x228] sm:$0xff]
  %v5356 = vld [vmem:[%s5262 + $0x230] sm:$0xf]
  %v5357 = vld [vmem:[%s5262 + $0x234] sm:$0xff]
  %v5358 = vld [vmem:[%s5262 + $0x23c] sm:$0xf]
  %v5455 = vunpack.c.l.b16 %v5263
  %v5456 = vunpack.c.h.b16 %v5263
  %v5457 = vunpack.c.l.b16 %v5264
  %v5458 = vunpack.c.l.b16 %v5265
  %v5459 = vunpack.c.h.b16 %v5265
  %v5460 = vunpack.c.l.b16 %v5266
  %v5461 = vunpack.c.l.b16 %v5267
  %v5462 = vunpack.c.h.b16 %v5267
  %v5463 = vunpack.c.l.b16 %v5268
  %v5464 = vunpack.c.l.b16 %v5269
  %v5465 = vunpack.c.h.b16 %v5269
  %v5466 = vunpack.c.l.b16 %v5270
  %v5467 = vunpack.c.l.b16 %v5271
  %v5468 = vunpack.c.h.b16 %v5271
  %v5469 = vunpack.c.l.b16 %v5272
  %v5470 = vunpack.c.l.b16 %v5273
  %v5471 = vunpack.c.h.b16 %v5273
  %v5472 = vunpack.c.l.b16 %v5274
  %v5473 = vunpack.c.l.b16 %v5275
  %v5474 = vunpack.c.h.b16 %v5275
  %v5475 = vunpack.c.l.b16 %v5276
  %v5476 = vunpack.c.l.b16 %v5277
  %v5477 = vunpack.c.h.b16 %v5277
  %v5478 = vunpack.c.l.b16 %v5278
  %v5479 = vunpack.c.l.b16 %v5279
  %v5480 = vunpack.c.h.b16 %v5279
  %v5481 = vunpack.c.l.b16 %v5280
  %v5482 = vunpack.c.l.b16 %v5281
  %v5483 = vunpack.c.h.b16 %v5281
  %v5484 = vunpack.c.l.b16 %v5282
  %v5485 = vunpack.c.l.b16 %v5283
  %v5486 = vunpack.c.h.b16 %v5283
  %v5487 = vunpack.c.l.b16 %v5284
  %v5488 = vunpack.c.l.b16 %v5285
  %v5489 = vunpack.c.h.b16 %v5285
  %v5490 = vunpack.c.l.b16 %v5286
  %v5491 = vunpack.c.l.b16 %v5287
  %v5492 = vunpack.c.h.b16 %v5287
  %v5493 = vunpack.c.l.b16 %v5288
  %v5494 = vunpack.c.l.b16 %v5289
  %v5495 = vunpack.c.h.b16 %v5289
  %v5496 = vunpack.c.l.b16 %v5290
  %v5497 = vunpack.c.l.b16 %v5291
  %v5498 = vunpack.c.h.b16 %v5291
  %v5499 = vunpack.c.l.b16 %v5292
  %v5500 = vunpack.c.l.b16 %v5293
  %v5501 = vunpack.c.h.b16 %v5293
  %v5502 = vunpack.c.l.b16 %v5294
  %v5503 = vunpack.c.l.b16 %v5295
  %v5504 = vunpack.c.h.b16 %v5295
  %v5505 = vunpack.c.l.b16 %v5296
  %v5506 = vunpack.c.l.b16 %v5297
  %v5507 = vunpack.c.h.b16 %v5297
  %v5508 = vunpack.c.l.b16 %v5298
  %v5509 = vunpack.c.l.b16 %v5299
  %v5510 = vunpack.c.h.b16 %v5299
  %v5511 = vunpack.c.l.b16 %v5300
  %v5512 = vunpack.c.l.b16 %v5301
  %v5513 = vunpack.c.h.b16 %v5301
  %v5514 = vunpack.c.l.b16 %v5302
  %v5515 = vunpack.c.l.b16 %v5303
  %v5516 = vunpack.c.h.b16 %v5303
  %v5517 = vunpack.c.l.b16 %v5304
  %v5518 = vunpack.c.l.b16 %v5305
  %v5519 = vunpack.c.h.b16 %v5305
  %v5520 = vunpack.c.l.b16 %v5306
  %v5521 = vunpack.c.l.b16 %v5307
  %v5522 = vunpack.c.h.b16 %v5307
  %v5523 = vunpack.c.l.b16 %v5308
  %v5524 = vunpack.c.l.b16 %v5309
  %v5525 = vunpack.c.h.b16 %v5309
  %v5526 = vunpack.c.l.b16 %v5310
  %v5527 = vunpack.c.l.b16 %v5311
  %v5528 = vunpack.c.h.b16 %v5311
  %v5529 = vunpack.c.l.b16 %v5312
  %v5530 = vunpack.c.l.b16 %v5313
  %v5531 = vunpack.c.h.b16 %v5313
  %v5532 = vunpack.c.l.b16 %v5314
  %v5533 = vunpack.c.l.b16 %v5315
  %v5534 = vunpack.c.h.b16 %v5315
  %v5535 = vunpack.c.l.b16 %v5316
  %v5536 = vunpack.c.l.b16 %v5317
  %v5537 = vunpack.c.h.b16 %v5317
  %v5538 = vunpack.c.l.b16 %v5318
  %v5539 = vunpack.c.l.b16 %v5319
  %v5540 = vunpack.c.h.b16 %v5319
  %v5541 = vunpack.c.l.b16 %v5320
  %v5542 = vunpack.c.l.b16 %v5321
  %v5543 = vunpack.c.h.b16 %v5321
  %v5544 = vunpack.c.l.b16 %v5322
  %v5545 = vunpack.c.l.b16 %v5323
  %v5546 = vunpack.c.h.b16 %v5323
  %v5547 = vunpack.c.l.b16 %v5324
  %v5548 = vunpack.c.l.b16 %v5325
  %v5549 = vunpack.c.h.b16 %v5325
  %v5550 = vunpack.c.l.b16 %v5326
  %v5551 = vunpack.c.l.b16 %v5327
  %v5552 = vunpack.c.h.b16 %v5327
  %v5553 = vunpack.c.l.b16 %v5328
  %v5554 = vunpack.c.l.b16 %v5329
  %v5555 = vunpack.c.h.b16 %v5329
  %v5556 = vunpack.c.l.b16 %v5330
  %v5557 = vunpack.c.l.b16 %v5331
  %v5558 = vunpack.c.h.b16 %v5331
  %v5559 = vunpack.c.l.b16 %v5332
  %v5560 = vunpack.c.l.b16 %v5333
  %v5561 = vunpack.c.h.b16 %v5333
  %v5562 = vunpack.c.l.b16 %v5334
  %v5563 = vunpack.c.l.b16 %v5335
  %v5564 = vunpack.c.h.b16 %v5335
  %v5565 = vunpack.c.l.b16 %v5336
  %v5566 = vunpack.c.l.b16 %v5337
  %v5567 = vunpack.c.h.b16 %v5337
  %v5568 = vunpack.c.l.b16 %v5338
  %v5569 = vunpack.c.l.b16 %v5339
  %v5570 = vunpack.c.h.b16 %v5339
  %v5571 = vunpack.c.l.b16 %v5340
  %v5572 = vunpack.c.l.b16 %v5341
  %v5573 = vunpack.c.h.b16 %v5341
  %v5574 = vunpack.c.l.b16 %v5342
  %v5575 = vunpack.c.l.b16 %v5343
  %v5576 = vunpack.c.h.b16 %v5343
  %v5577 = vunpack.c.l.b16 %v5344
  %v5578 = vunpack.c.l.b16 %v5345
  %v5579 = vunpack.c.h.b16 %v5345
  %v5580 = vunpack.c.l.b16 %v5346
  %v5581 = vunpack.c.l.b16 %v5347
  %v5582 = vunpack.c.h.b16 %v5347
  %v5583 = vunpack.c.l.b16 %v5348
  %v5584 = vunpack.c.l.b16 %v5349
  %v5585 = vunpack.c.h.b16 %v5349
  %v5586 = vunpack.c.l.b16 %v5350
  %v5587 = vunpack.c.l.b16 %v5351
  %v5588 = vunpack.c.h.b16 %v5351
  %v5589 = vunpack.c.l.b16 %v5352
  %v5590 = vunpack.c.l.b16 %v5353
  %v5591 = vunpack.c.h.b16 %v5353
  %v5592 = vunpack.c.l.b16 %v5354
  %v5593 = vunpack.c.l.b16 %v5355
  %v5594 = vunpack.c.h.b16 %v5355
  %v5595 = vunpack.c.l.b16 %v5356
  %v5596 = vunpack.c.l.b16 %v5357
  %v5597 = vunpack.c.h.b16 %v5357
  %v5598 = vunpack.c.l.b16 %v5358
  %v5599 = vpack.c.b16 %v5458, %v5455
  %v5600 = vpack.c.b16 %v5459, %v5456
  %v5601 = vpack.c.b16 %v5460, %v5457
  %v5602 = vpack.c.b16 %v5464, %v5461
  %v5603 = vpack.c.b16 %v5465, %v5462
  %v5604 = vpack.c.b16 %v5466, %v5463
  %v5605 = vpack.c.b16 %v5470, %v5467
  %v5606 = vpack.c.b16 %v5471, %v5468
  %v5607 = vpack.c.b16 %v5472, %v5469
  %v5608 = vpack.c.b16 %v5476, %v5473
  %v5609 = vpack.c.b16 %v5477, %v5474
  %v5610 = vpack.c.b16 %v5478, %v5475
  %v5611 = vpack.c.b16 %v5482, %v5479
  %v5612 = vpack.c.b16 %v5483, %v5480
  %v5613 = vpack.c.b16 %v5484, %v5481
  %v5614 = vpack.c.b16 %v5488, %v5485
  %v5615 = vpack.c.b16 %v5489, %v5486
  %v5616 = vpack.c.b16 %v5490, %v5487
  %v5617 = vpack.c.b16 %v5494, %v5491
  %v5618 = vpack.c.b16 %v5495, %v5492
  %v5619 = vpack.c.b16 %v5496, %v5493
  %v5620 = vpack.c.b16 %v5500, %v5497
  %v5621 = vpack.c.b16 %v5501, %v5498
  %v5622 = vpack.c.b16 %v5502, %v5499
  %v5623 = vpack.c.b16 %v5506, %v5503
  %v5624 = vpack.c.b16 %v5507, %v5504
  %v5625 = vpack.c.b16 %v5508, %v5505
  %v5626 = vpack.c.b16 %v5512, %v5509
  %v5627 = vpack.c.b16 %v5513, %v5510
  %v5628 = vpack.c.b16 %v5514, %v5511
  %v5629 = vpack.c.b16 %v5518, %v5515
  %v5630 = vpack.c.b16 %v5519, %v5516
  %v5631 = vpack.c.b16 %v5520, %v5517
  %v5632 = vpack.c.b16 %v5524, %v5521
  %v5633 = vpack.c.b16 %v5525, %v5522
  %v5634 = vpack.c.b16 %v5526, %v5523
  %v5635 = vpack.c.b16 %v5530, %v5527
  %v5636 = vpack.c.b16 %v5531, %v5528
  %v5637 = vpack.c.b16 %v5532, %v5529
  %v5638 = vpack.c.b16 %v5536, %v5533
  %v5639 = vpack.c.b16 %v5537, %v5534
  %v5640 = vpack.c.b16 %v5538, %v5535
  %v5641 = vpack.c.b16 %v5542, %v5539
  %v5642 = vpack.c.b16 %v5543, %v5540
  %v5643 = vpack.c.b16 %v5544, %v5541
  %v5644 = vpack.c.b16 %v5548, %v5545
  %v5645 = vpack.c.b16 %v5549, %v5546
  %v5646 = vpack.c.b16 %v5550, %v5547
  %v5647 = vpack.c.b16 %v5554, %v5551
  %v5648 = vpack.c.b16 %v5555, %v5552
  %v5649 = vpack.c.b16 %v5556, %v5553
  %v5650 = vpack.c.b16 %v5560, %v5557
  %v5651 = vpack.c.b16 %v5561, %v5558
  %v5652 = vpack.c.b16 %v5562, %v5559
  %v5653 = vpack.c.b16 %v5566, %v5563
  %v5654 = vpack.c.b16 %v5567, %v5564
  %v5655 = vpack.c.b16 %v5568, %v5565
  %v5656 = vpack.c.b16 %v5572, %v5569
  %v5657 = vpack.c.b16 %v5573, %v5570
  %v5658 = vpack.c.b16 %v5574, %v5571
  %v5659 = vpack.c.b16 %v5578, %v5575
  %v5660 = vpack.c.b16 %v5579, %v5576
  %v5661 = vpack.c.b16 %v5580, %v5577
  %v5662 = vpack.c.b16 %v5584, %v5581
  %v5663 = vpack.c.b16 %v5585, %v5582
  %v5664 = vpack.c.b16 %v5586, %v5583
  %v5665 = vpack.c.b16 %v5590, %v5587
  %v5666 = vpack.c.b16 %v5591, %v5588
  %v5667 = vpack.c.b16 %v5592, %v5589
  %v5668 = vpack.c.b16 %v5596, %v5593
  %v5669 = vpack.c.b16 %v5597, %v5594
  %v5670 = vpack.c.b16 %v5598, %v5595
  %5743 = vmatprep.subr.bf16.mxu0 %v5600
  %5744 = vmatpush1.bf16.msra.mxu0 %v5599
  %5745 = vmatprep.subr.bf16.mxu0 %v5603
  %5746 = vmatpush1.bf16.msra.mxu0 %v5602
  %5747 = vmatprep.subr.bf16.mxu0 %v5606
  %5748 = vmatpush1.bf16.msra.mxu0 %v5605
  %5749 = vmatprep.subr.bf16.mxu0 %v5609
  %5750 = vmatpush1.bf16.msra.mxu0 %v5608
  %5751 = vmatprep.subr.bf16.mxu0 %v5612
  %5752 = vmatpush1.bf16.msra.mxu0 %v5611
  %5753 = vmatprep.subr.bf16.mxu0 %v5615
  %5754 = vmatpush1.bf16.msra.mxu0 %v5614
  %5755 = vmatprep.subr.bf16.mxu0 %v5618
  %5756 = vmatpush1.bf16.msra.mxu0 %v5617
  %5757 = vmatprep.subr.bf16.mxu0 %v5621
  %5758 = vmatpush1.bf16.msra.mxu0 %v5620
  %5759 = vmatprep.subr.bf16.mxu0 %v5624
  %5760 = vmatpush1.bf16.msra.mxu0 %v5623
  %5761 = vmatprep.subr.bf16.mxu0 %v5627
  %5762 = vmatpush1.bf16.msra.mxu0 %v5626
  %5763 = vmatprep.subr.bf16.mxu0 %v5630
  %5764 = vmatpush1.bf16.msra.mxu0 %v5629
  %5765 = vmatprep.subr.bf16.mxu0 %v5633
  %5766 = vmatpush1.bf16.msra.mxu0 %v5632
  %5767 = vmatprep.subr.bf16.mxu0 %v5636
  %5768 = vmatpush1.bf16.msra.mxu0 %v5635
  %5769 = vmatprep.subr.bf16.mxu0 %v5639
  %5770 = vmatpush1.bf16.msra.mxu0 %v5638
  %5771 = vmatprep.subr.bf16.mxu0 %v5642
  %5772 = vmatpush1.bf16.msra.mxu0 %v5641
  %5773 = vmatprep.subr.bf16.mxu0 %v5645
  %5774 = vmatpush1.bf16.msra.mxu0 %v5644
  %5775 = vmatprep.mubr.bf16.mxu0 %v3878
  %5776 = vmatmul.mubr.bf16.gmra.mrb[0].mxu0 %v3877
  %v5777 = vpop.f32.mrb[0].mxu0
  %v5778 = vadd.f32 0.0, %v5777
  %v5779 = vpop.f32.mrb[0].mxu0
  %v5780 = vadd.f32 0.0, %v5779
  %v5781 = vpop.f32.mrb[0].mxu0
  %v5782 = vpop.f32.mrb[0].mxu0
  %5783 = vdwg.mxu0
  %5784 = vmatprep.subr.bf16.mxu0 %v5648
  %5785 = vmatpush1.bf16.msra.mxu0 %v5647
  %5786 = vmatprep.subr.bf16.mxu0 %v5651
  %5787 = vmatpush1.bf16.msra.mxu0 %v5650
  %5788 = vmatprep.subr.bf16.mxu0 %v5654
  %5789 = vmatpush1.bf16.msra.mxu0 %v5653
  %5790 = vmatprep.subr.bf16.mxu0 %v5657
  %5791 = vmatpush1.bf16.msra.mxu0 %v5656
  %5792 = vmatprep.subr.bf16.mxu0 %v5660
  %5793 = vmatpush1.bf16.msra.mxu0 %v5659
  %5794 = vmatprep.subr.bf16.mxu0 %v5663
  %5795 = vmatpush1.bf16.msra.mxu0 %v5662
  %5796 = vmatprep.subr.bf16.mxu0 %v5666
  %5797 = vmatpush1.bf16.msra.mxu0 %v5665
  %5798 = vmatprep.subr.bf16.mxu0 %v5669
  %5799 = vmatpush1.bf16.msra.mxu0 %v5668
  %5800 = vmatprep.subr.bf16.mxu0 0
  %5801 = vmatpush1.bf16.msra.mxu0 0
  %5802 = vmatprep.subr.bf16.mxu0 0
  %5803 = vmatpush1.bf16.msra.mxu0 0
  %5804 = vmatprep.subr.bf16.mxu0 0
  %5805 = vmatpush1.bf16.msra.mxu0 0
  %5806 = vmatprep.subr.bf16.mxu0 0
  %5807 = vmatpush1.bf16.msra.mxu0 0
  %5808 = vmatprep.subr.bf16.mxu0 0
  %5809 = vmatpush1.bf16.msra.mxu0 0
  %5810 = vmatprep.subr.bf16.mxu0 0
  %5811 = vmatpush1.bf16.msra.mxu0 0
  %5812 = vmatprep.subr.bf16.mxu0 0
  %5813 = vmatpush1.bf16.msra.mxu0 0
  %5814 = vmatprep.subr.bf16.mxu0 0
  %5815 = vmatpush1.bf16.msra.mxu0 0
  %5816 = vmatprep.mubr.bf16.mxu0 0
  %5817 = vmatmul.mubr.bf16.gmra.mrb[0].mxu0 %v3879
  %v5818 = vpop.f32.mrb[0].mxu0
  %v5819 = vadd.f32 %v5778, %v5818
  %v5820 = vpop.f32.mrb[0].mxu0
  %v5821 = vadd.f32 %v5780, %v5820
  %v5822 = vpop.f32.mrb[0].mxu0
  %v5823 = vpop.f32.mrb[0].mxu0
  %5824 = vdwg.mxu0
  %5825 = vmatprep.subr.bf16.mxu0 0
  %5826 = vmatpush1.bf16.msra.mxu0 %v5601
  %5827 = vmatprep.subr.bf16.mxu0 0
  %5828 = vmatpush1.bf16.msra.mxu0 %v5604
  %5829 = vmatprep.subr.bf16.mxu0 0
  %5830 = vmatpush1.bf16.msra.mxu0 %v5607
  %5831 = vmatprep.subr.bf16.mxu0 0
  %5832 = vmatpush1.bf16.msra.mxu0 %v5610
  %5833 = vmatprep.subr.bf16.mxu0 0
  %5834 = vmatpush1.bf16.msra.mxu0 %v5613
  %5835 = vmatprep.subr.bf16.mxu0 0
  %5836 = vmatpush1.bf16.msra.mxu0 %v5616
  %5837 = vmatprep.subr.bf16.mxu0 0
  %5838 = vmatpush1.bf16.msra.mxu0 %v5619
  %5839 = vmatprep.subr.bf16.mxu0 0
  %5840 = vmatpush1.bf16.msra.mxu0 %v5622
  %5841 = vmatprep.subr.bf16.mxu0 0
  %5842 = vmatpush1.bf16.msra.mxu0 %v5625
  %5843 = vmatprep.subr.bf16.mxu0 0
  %5844 = vmatpush1.bf16.msra.mxu0 %v5628
  %5845 = vmatprep.subr.bf16.mxu0 0
  %5846 = vmatpush1.bf16.msra.mxu0 %v5631
  %5847 = vmatprep.subr.bf16.mxu0 0
  %5848 = vmatpush1.bf16.msra.mxu0 %v5634
  %5849 = vmatprep.subr.bf16.mxu0 0
  %5850 = vmatpush1.bf16.msra.mxu0 %v5637
  %5851 = vmatprep.subr.bf16.mxu0 0
  %5852 = vmatpush1.bf16.msra.mxu0 %v5640
  %5853 = vmatprep.subr.bf16.mxu0 0
  %5854 = vmatpush1.bf16.msra.mxu0 %v5643
  %5855 = vmatprep.subr.bf16.mxu0 0
  %5856 = vmatpush1.bf16.msra.mxu0 %v5646
  %5857 = vmatprep.mubr.bf16.mxu0 %v3878
  %5858 = vmatmul.mubr.bf16.gmra.mrb[0].mxu0 %v3877
  %v5859 = vpop.f32.mrb[0].mxu0
  %v5860 = vadd.f32 0.0, %v5859
  %v5861 = vpop.f32.mrb[0].mxu0
  %v5862 = vpop.f32.mrb[0].mxu0
  %v5863 = vpop.f32.mrb[0].mxu0
  %5864 = vdwg.mxu0
  %5865 = vmatprep.subr.bf16.mxu0 0
  %5866 = vmatpush1.bf16.msra.mxu0 %v5649
  %5867 = vmatprep.subr.bf16.mxu0 0
  %5868 = vmatpush1.bf16.msra.mxu0 %v5652
  %5869 = vmatprep.subr.bf16.mxu0 0
  %5870 = vmatpush1.bf16.msra.mxu0 %v5655
  %5871 = vmatprep.subr.bf16.mxu0 0
  %5872 = vmatpush1.bf16.msra.mxu0 %v5658
  %5873 = vmatprep.subr.bf16.mxu0 0
  %5874 = vmatpush1.bf16.msra.mxu0 %v5661
  %5875 = vmatprep.subr.bf16.mxu0 0
  %5876 = vmatpush1.bf16.msra.mxu0 %v5664
  %5877 = vmatprep.subr.bf16.mxu0 0
  %5878 = vmatpush1.bf16.msra.mxu0 %v5667
  %5879 = vmatprep.subr.bf16.mxu0 0
  %5880 = vmatpush1.bf16.msra.mxu0 %v5670
  %5881 = vmatprep.subr.bf16.mxu0 0
  %5882 = vmatpush1.bf16.msra.mxu0 0
  %5883 = vmatprep.subr.bf16.mxu0 0
  %5884 = vmatpush1.bf16.msra.mxu0 0
  %5885 = vmatprep.subr.bf16.mxu0 0
  %5886 = vmatpush1.bf16.msra.mxu0 0
  %5887 = vmatprep.subr.bf16.mxu0 0
  %5888 = vmatpush1.bf16.msra.mxu0 0
  %5889 = vmatprep.subr.bf16.mxu0 0
  %5890 = vmatpush1.bf16.msra.mxu0 0
  %5891 = vmatprep.subr.bf16.mxu0 0
  %5892 = vmatpush1.bf16.msra.mxu0 0
  %5893 = vmatprep.subr.bf16.mxu0 0
  %5894 = vmatpush1.bf16.msra.mxu0 0
  %5895 = vmatprep.subr.bf16.mxu0 0
  %5896 = vmatpush1.bf16.msra.mxu0 0
  %5897 = vmatprep.mubr.bf16.mxu0 0
  %5898 = vmatmul.mubr.bf16.gmra.mrb[0].mxu0 %v3879
  %v5899 = vpop.f32.mrb[0].mxu0
  %v5900 = vadd.f32 %v5860, %v5899
  %v5901 = vpop.f32.mrb[0].mxu0
  %v5902 = vpop.f32.mrb[0].mxu0
  %v5903 = vpop.f32.mrb[0].mxu0
  %5904 = vdwg.mxu0
  %v6001 = vunpack.c.l.b16 %v5166
  %v6002 = vunpack.c.h.b16 %v5166
  %v6003 = vunpack.c.l.b16 %v5167
  %v6004 = vunpack.c.l.b16 %v5168
  %v6005 = vunpack.c.h.b16 %v5168
  %v6006 = vunpack.c.l.b16 %v5169
  %v6007 = vunpack.c.l.b16 %v5170
  %v6008 = vunpack.c.h.b16 %v5170
  %v6009 = vunpack.c.l.b16 %v5171
  %v6010 = vunpack.c.l.b16 %v5172
  %v6011 = vunpack.c.h.b16 %v5172
  %v6012 = vunpack.c.l.b16 %v5173
  %v6013 = vunpack.c.l.b16 %v5174
  %v6014 = vunpack.c.h.b16 %v5174
  %v6015 = vunpack.c.l.b16 %v5175
  %v6016 = vunpack.c.l.b16 %v5176
  %v6017 = vunpack.c.h.b16 %v5176
  %v6018 = vunpack.c.l.b16 %v5177
  %v6019 = vunpack.c.l.b16 %v5178
  %v6020 = vunpack.c.h.b16 %v5178
  %v6021 = vunpack.c.l.b16 %v5179
  %v6022 = vunpack.c.l.b16 %v5180
  %v6023 = vunpack.c.h.b16 %v5180
  %v6024 = vunpack.c.l.b16 %v5181
  %v6025 = vunpack.c.l.b16 %v5182
  %v6026 = vunpack.c.h.b16 %v5182
  %v6027 = vunpack.c.l.b16 %v5183
  %v6028 = vunpack.c.l.b16 %v5184
  %v6029 = vunpack.c.h.b16 %v5184
  %v6030 = vunpack.c.l.b16 %v5185
  %v6031 = vunpack.c.l.b16 %v5186
  %v6032 = vunpack.c.h.b16 %v5186
  %v6033 = vunpack.c.l.b16 %v5187
  %v6034 = vunpack.c.l.b16 %v5188
  %v6035 = vunpack.c.h.b16 %v5188
  %v6036 = vunpack.c.l.b16 %v5189
  %v6037 = vunpack.c.l.b16 %v5190
  %v6038 = vunpack.c.h.b16 %v5190
  %v6039 = vunpack.c.l.b16 %v5191
  %v6040 = vunpack.c.l.b16 %v5192
  %v6041 = vunpack.c.h.b16 %v5192
  %v6042 = vunpack.c.l.b16 %v5193
  %v6043 = vunpack.c.l.b16 %v5194
  %v6044 = vunpack.c.h.b16 %v5194
  %v6045 = vunpack.c.l.b16 %v5195
  %v6046 = vunpack.c.l.b16 %v5196
  %v6047 = vunpack.c.h.b16 %v5196
  %v6048 = vunpack.c.l.b16 %v5197
  %v6049 = vunpack.c.l.b16 %v5198
  %v6050 = vunpack.c.h.b16 %v5198
  %v6051 = vunpack.c.l.b16 %v5199
  %v6052 = vunpack.c.l.b16 %v5200
  %v6053 = vunpack.c.h.b16 %v5200
  %v6054 = vunpack.c.l.b16 %v5201
  %v6055 = vunpack.c.l.b16 %v5202
  %v6056 = vunpack.c.h.b16 %v5202
  %v6057 = vunpack.c.l.b16 %v5203
  %v6058 = vunpack.c.l.b16 %v5204
  %v6059 = vunpack.c.h.b16 %v5204
  %v6060 = vunpack.c.l.b16 %v5205
  %v6061 = vunpack.c.l.b16 %v5206
  %v6062 = vunpack.c.h.b16 %v5206
  %v6063 = vunpack.c.l.b16 %v5207
  %v6064 = vunpack.c.l.b16 %v5208
  %v6065 = vunpack.c.h.b16 %v5208
  %v6066 = vunpack.c.l.b16 %v5209
  %v6067 = vunpack.c.l.b16 %v5210
  %v6068 = vunpack.c.h.b16 %v5210
  %v6069 = vunpack.c.l.b16 %v5211
  %v6070 = vunpack.c.l.b16 %v5212
  %v6071 = vunpack.c.h.b16 %v5212
  %v6072 = vunpack.c.l.b16 %v5213
  %v6073 = vunpack.c.l.b16 %v5214
  %v6074 = vunpack.c.h.b16 %v5214
  %v6075 = vunpack.c.l.b16 %v5215
  %v6076 = vunpack.c.l.b16 %v5216
  %v6077 = vunpack.c.h.b16 %v5216
  %v6078 = vunpack.c.l.b16 %v5217
  %v6079 = vunpack.c.l.b16 %v5218
  %v6080 = vunpack.c.h.b16 %v5218
  %v6081 = vunpack.c.l.b16 %v5219
  %v6082 = vunpack.c.l.b16 %v5220
  %v6083 = vunpack.c.h.b16 %v5220
  %v6084 = vunpack.c.l.b16 %v5221
  %v6085 = vunpack.c.l.b16 %v5222
  %v6086 = vunpack.c.h.b16 %v5222
  %v6087 = vunpack.c.l.b16 %v5223
  %v6088 = vunpack.c.l.b16 %v5224
  %v6089 = vunpack.c.h.b16 %v5224
  %v6090 = vunpack.c.l.b16 %v5225
  %v6091 = vunpack.c.l.b16 %v5226
  %v6092 = vunpack.c.h.b16 %v5226
  %v6093 = vunpack.c.l.b16 %v5227
  %v6094 = vunpack.c.l.b16 %v5228
  %v6095 = vunpack.c.h.b16 %v5228
  %v6096 = vunpack.c.l.b16 %v5229
  %v6097 = vunpack.c.l.b16 %v5230
  %v6098 = vunpack.c.h.b16 %v5230
  %v6099 = vunpack.c.l.b16 %v5231
  %v6100 = vunpack.c.l.b16 %v5232
  %v6101 = vunpack.c.h.b16 %v5232
  %v6102 = vunpack.c.l.b16 %v5233
  %v6103 = vunpack.c.l.b16 %v5234
  %v6104 = vunpack.c.h.b16 %v5234
  %v6105 = vunpack.c.l.b16 %v5235
  %v6106 = vunpack.c.l.b16 %v5236
  %v6107 = vunpack.c.h.b16 %v5236
  %v6108 = vunpack.c.l.b16 %v5237
  %v6109 = vunpack.c.l.b16 %v5238
  %v6110 = vunpack.c.h.b16 %v5238
  %v6111 = vunpack.c.l.b16 %v5239
  %v6112 = vunpack.c.l.b16 %v5240
  %v6113 = vunpack.c.h.b16 %v5240
  %v6114 = vunpack.c.l.b16 %v5241
  %v6115 = vunpack.c.l.b16 %v5242
  %v6116 = vunpack.c.h.b16 %v5242
  %v6117 = vunpack.c.l.b16 %v5243
  %v6118 = vunpack.c.l.b16 %v5244
  %v6119 = vunpack.c.h.b16 %v5244
  %v6120 = vunpack.c.l.b16 %v5245
  %v6121 = vunpack.c.l.b16 %v5246
  %v6122 = vunpack.c.h.b16 %v5246
  %v6123 = vunpack.c.l.b16 %v5247
  %v6124 = vunpack.c.l.b16 %v5248
  %v6125 = vunpack.c.h.b16 %v5248
  %v6126 = vunpack.c.l.b16 %v5249
  %v6127 = vunpack.c.l.b16 %v5250
  %v6128 = vunpack.c.h.b16 %v5250
  %v6129 = vunpack.c.l.b16 %v5251
  %v6130 = vunpack.c.l.b16 %v5252
  %v6131 = vunpack.c.h.b16 %v5252
  %v6132 = vunpack.c.l.b16 %v5253
  %v6133 = vunpack.c.l.b16 %v5254
  %v6134 = vunpack.c.h.b16 %v5254
  %v6135 = vunpack.c.l.b16 %v5255
  %v6136 = vunpack.c.l.b16 %v5256
  %v6137 = vunpack.c.h.b16 %v5256
  %v6138 = vunpack.c.l.b16 %v5257
  %v6139 = vunpack.c.l.b16 %v5258
  %v6140 = vunpack.c.h.b16 %v5258
  %v6141 = vunpack.c.l.b16 %v5259
  %v6142 = vunpack.c.l.b16 %v5260
  %v6143 = vunpack.c.h.b16 %v5260
  %v6144 = vunpack.c.l.b16 %v5261
  %v6145 = vpack.c.b16 %v6004, %v6001
  %v6146 = vpack.c.b16 %v6005, %v6002
  %v6147 = vpack.c.b16 %v6006, %v6003
  %v6148 = vpack.c.b16 %v6010, %v6007
  %v6149 = vpack.c.b16 %v6011, %v6008
  %v6150 = vpack.c.b16 %v6012, %v6009
  %v6151 = vpack.c.b16 %v6016, %v6013
  %v6152 = vpack.c.b16 %v6017, %v6014
  %v6153 = vpack.c.b16 %v6018, %v6015
  %v6154 = vpack.c.b16 %v6022, %v6019
  %v6155 = vpack.c.b16 %v6023, %v6020
  %v6156 = vpack.c.b16 %v6024, %v6021
  %v6157 = vpack.c.b16 %v6028, %v6025
  %v6158 = vpack.c.b16 %v6029, %v6026
  %v6159 = vpack.c.b16 %v6030, %v6027
  %v6160 = vpack.c.b16 %v6034, %v6031
  %v6161 = vpack.c.b16 %v6035, %v6032
  %v6162 = vpack.c.b16 %v6036, %v6033
  %v6163 = vpack.c.b16 %v6040, %v6037
  %v6164 = vpack.c.b16 %v6041, %v6038
  %v6165 = vpack.c.b16 %v6042, %v6039
  %v6166 = vpack.c.b16 %v6046, %v6043
  %v6167 = vpack.c.b16 %v6047, %v6044
  %v6168 = vpack.c.b16 %v6048, %v6045
  %v6169 = vpack.c.b16 %v6052, %v6049
  %v6170 = vpack.c.b16 %v6053, %v6050
  %v6171 = vpack.c.b16 %v6054, %v6051
  %v6172 = vpack.c.b16 %v6058, %v6055
  %v6173 = vpack.c.b16 %v6059, %v6056
  %v6174 = vpack.c.b16 %v6060, %v6057
  %v6175 = vpack.c.b16 %v6064, %v6061
  %v6176 = vpack.c.b16 %v6065, %v6062
  %v6177 = vpack.c.b16 %v6066, %v6063
  %v6178 = vpack.c.b16 %v6070, %v6067
  %v6179 = vpack.c.b16 %v6071, %v6068
  %v6180 = vpack.c.b16 %v6072, %v6069
  %v6181 = vpack.c.b16 %v6076, %v6073
  %v6182 = vpack.c.b16 %v6077, %v6074
  %v6183 = vpack.c.b16 %v6078, %v6075
  %v6184 = vpack.c.b16 %v6082, %v6079
  %v6185 = vpack.c.b16 %v6083, %v6080
  %v6186 = vpack.c.b16 %v6084, %v6081
  %v6187 = vpack.c.b16 %v6088, %v6085
  %v6188 = vpack.c.b16 %v6089, %v6086
  %v6189 = vpack.c.b16 %v6090, %v6087
  %v6190 = vpack.c.b16 %v6094, %v6091
  %v6191 = vpack.c.b16 %v6095, %v6092
  %v6192 = vpack.c.b16 %v6096, %v6093
  %v6193 = vpack.c.b16 %v6100, %v6097
  %v6194 = vpack.c.b16 %v6101, %v6098
  %v6195 = vpack.c.b16 %v6102, %v6099
  %v6196 = vpack.c.b16 %v6106, %v6103
  %v6197 = vpack.c.b16 %v6107, %v6104
  %v6198 = vpack.c.b16 %v6108, %v6105
  %v6199 = vpack.c.b16 %v6112, %v6109
  %v6200 = vpack.c.b16 %v6113, %v6110
  %v6201 = vpack.c.b16 %v6114, %v6111
  %v6202 = vpack.c.b16 %v6118, %v6115
  %v6203 = vpack.c.b16 %v6119, %v6116
  %v6204 = vpack.c.b16 %v6120, %v6117
  %v6205 = vpack.c.b16 %v6124, %v6121
  %v6206 = vpack.c.b16 %v6125, %v6122
  %v6207 = vpack.c.b16 %v6126, %v6123
  %v6208 = vpack.c.b16 %v6130, %v6127
  %v6209 = vpack.c.b16 %v6131, %v6128
  %v6210 = vpack.c.b16 %v6132, %v6129
  %v6211 = vpack.c.b16 %v6136, %v6133
  %v6212 = vpack.c.b16 %v6137, %v6134
  %v6213 = vpack.c.b16 %v6138, %v6135
  %v6214 = vpack.c.b16 %v6142, %v6139
  %v6215 = vpack.c.b16 %v6143, %v6140
  %v6216 = vpack.c.b16 %v6144, %v6141
  %6289 = vmatprep.subr.bf16.mxu0 %v6146
  %6290 = vmatpush1.bf16.msra.mxu0 %v6145
  %6291 = vmatprep.subr.bf16.mxu0 %v6149
  %6292 = vmatpush1.bf16.msra.mxu0 %v6148
  %6293 = vmatprep.subr.bf16.mxu0 %v6152
  %6294 = vmatpush1.bf16.msra.mxu0 %v6151
  %6295 = vmatprep.subr.bf16.mxu0 %v6155
  %6296 = vmatpush1.bf16.msra.mxu0 %v6154
  %6297 = vmatprep.subr.bf16.mxu0 %v6158
  %6298 = vmatpush1.bf16.msra.mxu0 %v6157
  %6299 = vmatprep.subr.bf16.mxu0 %v6161
  %6300 = vmatpush1.bf16.msra.mxu0 %v6160
  %6301 = vmatprep.subr.bf16.mxu0 %v6164
  %6302 = vmatpush1.bf16.msra.mxu0 %v6163
  %6303 = vmatprep.subr.bf16.mxu0 %v6167
  %6304 = vmatpush1.bf16.msra.mxu0 %v6166
  %6305 = vmatprep.subr.bf16.mxu0 %v6170
  %6306 = vmatpush1.bf16.msra.mxu0 %v6169
  %6307 = vmatprep.subr.bf16.mxu0 %v6173
  %6308 = vmatpush1.bf16.msra.mxu0 %v6172
  %6309 = vmatprep.subr.bf16.mxu0 %v6176
  %6310 = vmatpush1.bf16.msra.mxu0 %v6175
  %6311 = vmatprep.subr.bf16.mxu0 %v6179
  %6312 = vmatpush1.bf16.msra.mxu0 %v6178
  %6313 = vmatprep.subr.bf16.mxu0 %v6182
  %6314 = vmatpush1.bf16.msra.mxu0 %v6181
  %6315 = vmatprep.subr.bf16.mxu0 %v6185
  %6316 = vmatpush1.bf16.msra.mxu0 %v6184
  %6317 = vmatprep.subr.bf16.mxu0 %v6188
  %6318 = vmatpush1.bf16.msra.mxu0 %v6187
  %6319 = vmatprep.subr.bf16.mxu0 %v6191
  %6320 = vmatpush1.bf16.msra.mxu0 %v6190
  %6321 = vmatprep.mubr.bf16.mxu0 %v3789
  %6322 = vmatmul.mubr.bf16.gmra.mrb[0].mxu0 %v3788
  %v6323 = vpop.f32.mrb[0].mxu0
  %v6324 = vadd.f32 %v5819, %v6323
  %v6325 = vpop.f32.mrb[0].mxu0
  %v6326 = vadd.f32 %v5821, %v6325
  %v6327 = vpop.f32.mrb[0].mxu0
  %v6328 = vpop.f32.mrb[0].mxu0
  %6329 = vdwg.mxu0
  %6330 = vmatprep.subr.bf16.mxu0 %v6194
  %6331 = vmatpush1.bf16.msra.mxu0 %v6193
  %6332 = vmatprep.subr.bf16.mxu0 %v6197
  %6333 = vmatpush1.bf16.msra.mxu0 %v6196
  %6334 = vmatprep.subr.bf16.mxu0 %v6200
  %6335 = vmatpush1.bf16.msra.mxu0 %v6199
  %6336 = vmatprep.subr.bf16.mxu0 %v6203
  %6337 = vmatpush1.bf16.msra.mxu0 %v6202
  %6338 = vmatprep.subr.bf16.mxu0 %v6206
  %6339 = vmatpush1.bf16.msra.mxu0 %v6205
  %6340 = vmatprep.subr.bf16.mxu0 %v6209
  %6341 = vmatpush1.bf16.msra.mxu0 %v6208
  %6342 = vmatprep.subr.bf16.mxu0 %v6212
  %6343 = vmatpush1.bf16.msra.mxu0 %v6211
  %6344 = vmatprep.subr.bf16.mxu0 %v6215
  %6345 = vmatpush1.bf16.msra.mxu0 %v6214
  %6346 = vmatprep.subr.bf16.mxu0 0
  %6347 = vmatpush1.bf16.msra.mxu0 0
  %6348 = vmatprep.subr.bf16.mxu0 0
  %6349 = vmatpush1.bf16.msra.mxu0 0
  %6350 = vmatprep.subr.bf16.mxu0 0
  %6351 = vmatpush1.bf16.msra.mxu0 0
  %6352 = vmatprep.subr.bf16.mxu0 0
  %6353 = vmatpush1.bf16.msra.mxu0 0
  %6354 = vmatprep.subr.bf16.mxu0 0
  %6355 = vmatpush1.bf16.msra.mxu0 0
  %6356 = vmatprep.subr.bf16.mxu0 0
  %6357 = vmatpush1.bf16.msra.mxu0 0
  %6358 = vmatprep.subr.bf16.mxu0 0
  %6359 = vmatpush1.bf16.msra.mxu0 0
  %6360 = vmatprep.subr.bf16.mxu0 0
  %6361 = vmatpush1.bf16.msra.mxu0 0
  %6362 = vmatprep.mubr.bf16.mxu0 0
  %6363 = vmatmul.mubr.bf16.gmra.mrb[0].mxu0 %v3790
  %v6364 = vpop.f32.mrb[0].mxu0
  %v6365 = vadd.f32 %v6324, %v6364
  %v6366 = vpop.f32.mrb[0].mxu0
  %v6367 = vadd.f32 %v6326, %v6366
  %v6368 = vpop.f32.mrb[0].mxu0
  %v6369 = vpop.f32.mrb[0].mxu0
  %6370 = vdwg.mxu0
  %6371 = vmatprep.subr.bf16.mxu0 0
  %6372 = vmatpush1.bf16.msra.mxu0 %v6147
  %6373 = vmatprep.subr.bf16.mxu0 0
  %6374 = vmatpush1.bf16.msra.mxu0 %v6150
  %6375 = vmatprep.subr.bf16.mxu0 0
  %6376 = vmatpush1.bf16.msra.mxu0 %v6153
  %6377 = vmatprep.subr.bf16.mxu0 0
  %6378 = vmatpush1.bf16.msra.mxu0 %v6156
  %6379 = vmatprep.subr.bf16.mxu0 0
  %6380 = vmatpush1.bf16.msra.mxu0 %v6159
  %6381 = vmatprep.subr.bf16.mxu0 0
  %6382 = vmatpush1.bf16.msra.mxu0 %v6162
  %6383 = vmatprep.subr.bf16.mxu0 0
  %6384 = vmatpush1.bf16.msra.mxu0 %v6165
  %6385 = vmatprep.subr.bf16.mxu0 0
  %6386 = vmatpush1.bf16.msra.mxu0 %v6168
  %6387 = vmatprep.subr.bf16.mxu0 0
  %6388 = vmatpush1.bf16.msra.mxu0 %v6171
  %6389 = vmatprep.subr.bf16.mxu0 0
  %6390 = vmatpush1.bf16.msra.mxu0 %v6174
  %6391 = vmatprep.subr.bf16.mxu0 0
  %6392 = vmatpush1.bf16.msra.mxu0 %v6177
  %6393 = vmatprep.subr.bf16.mxu0 0
  %6394 = vmatpush1.bf16.msra.mxu0 %v6180
  %6395 = vmatprep.subr.bf16.mxu0 0
  %6396 = vmatpush1.bf16.msra.mxu0 %v6183
  %6397 = vmatprep.subr.bf16.mxu0 0
  %6398 = vmatpush1.bf16.msra.mxu0 %v6186
  %6399 = vmatprep.subr.bf16.mxu0 0
  %6400 = vmatpush1.bf16.msra.mxu0 %v6189
  %6401 = vmatprep.subr.bf16.mxu0 0
  %6402 = vmatpush1.bf16.msra.mxu0 %v6192
  %6403 = vmatprep.mubr.bf16.mxu0 %v3789
  %6404 = vmatmul.mubr.bf16.gmra.mrb[0].mxu0 %v3788
  %v6405 = vpop.f32.mrb[0].mxu0
  %v6406 = vadd.f32 %v5900, %v6405
  %v6407 = vpop.f32.mrb[0].mxu0
  %v6408 = vpop.f32.mrb[0].mxu0
  %v6409 = vpop.f32.mrb[0].mxu0
  %6410 = vdwg.mxu0
  %6411 = vmatprep.subr.bf16.mxu0 0
  %6412 = vmatpush1.bf16.msra.mxu0 %v6195
  %6413 = vmatprep.subr.bf16.mxu0 0
  %6414 = vmatpush1.bf16.msra.mxu0 %v6198
  %6415 = vmatprep.subr.bf16.mxu0 0
  %6416 = vmatpush1.bf16.msra.mxu0 %v6201
  %6417 = vmatprep.subr.bf16.mxu0 0
  %6418 = vmatpush1.bf16.msra.mxu0 %v6204
  %6419 = vmatprep.subr.bf16.mxu0 0
  %6420 = vmatpush1.bf16.msra.mxu0 %v6207
  %6421 = vmatprep.subr.bf16.mxu0 0
  %6422 = vmatpush1.bf16.msra.mxu0 %v6210
  %6423 = vmatprep.subr.bf16.mxu0 0
  %6424 = vmatpush1.bf16.msra.mxu0 %v6213
  %6425 = vmatprep.subr.bf16.mxu0 0
  %6426 = vmatpush1.bf16.msra.mxu0 %v6216
  %6427 = vmatprep.subr.bf16.mxu0 0
  %6428 = vmatpush1.bf16.msra.mxu0 0
  %6429 = vmatprep.subr.bf16.mxu0 0
  %6430 = vmatpush1.bf16.msra.mxu0 0
  %6431 = vmatprep.subr.bf16.mxu0 0
  %6432 = vmatpush1.bf16.msra.mxu0 0
  %6433 = vmatprep.subr.bf16.mxu0 0
  %6434 = vmatpush1.bf16.msra.mxu0 0
  %6435 = vmatprep.subr.bf16.mxu0 0
  %6436 = vmatpush1.bf16.msra.mxu0 0
  %6437 = vmatprep.subr.bf16.mxu0 0
  %6438 = vmatpush1.bf16.msra.mxu0 0
  %6439 = vmatprep.subr.bf16.mxu0 0
  %6440 = vmatpush1.bf16.msra.mxu0 0
  %6441 = vmatprep.subr.bf16.mxu0 0
  %6442 = vmatpush1.bf16.msra.mxu0 0
  %6443 = vmatprep.mubr.bf16.mxu0 0
  %6444 = vmatmul.mubr.bf16.gmra.mrb[0].mxu0 %v3790
  %v6445 = vpop.f32.mrb[0].mxu0
  %v6446 = vadd.f32 %v6406, %v6445
  %v6447 = vpop.f32.mrb[0].mxu0
  %v6448 = vpop.f32.mrb[0].mxu0
  %v6449 = vpop.f32.mrb[0].mxu0
  %6450 = vdwg.mxu0
  %v6451 = vrot.slane %v5079, 4
  %v6452 = vadd.f32 %v5079, %v6451
  %v6453 = vrot.slane %v6452, 2
  %v6454 = vadd.f32 %v6452, %v6453
  %v6455 = vrot.slane %v6454, 1
  %v6456 = vadd.f32 %v6454, %v6455
  %v6457 = vrot.slane %v5081, 4
  %v6458 = vadd.f32 %v5081, %v6457
  %v6459 = vrot.slane %v6458, 2
  %v6460 = vadd.f32 %v6458, %v6459
  %v6461 = vrot.slane %v6460, 1
  %v6462 = vadd.f32 %v6460, %v6461
  %v6463 = vsel %vm2572, %v5160, 0.0
  %v6464 = vrot.slane %v6463, 4
  %v6465 = vadd.f32 %v6463, %v6464
  %v6466 = vrot.slane %v6465, 2
  %v6467 = vadd.f32 %v6465, %v6466
  %v6468 = vrot.slane %v6467, 1
  %v6469 = vadd.f32 %v6467, %v6468
  %v6470 = vrot.slane %v6365, 4
  %v6471 = vadd.f32 %v6365, %v6470
  %v6472 = vrot.slane %v6471, 2
  %v6473 = vadd.f32 %v6471, %v6472
  %v6474 = vrot.slane %v6473, 1
  %v6475 = vadd.f32 %v6473, %v6474
  %v6476 = vrot.slane %v6367, 4
  %v6477 = vadd.f32 %v6367, %v6476
  %v6478 = vrot.slane %v6477, 2
  %v6479 = vadd.f32 %v6477, %v6478
  %v6480 = vrot.slane %v6479, 1
  %v6481 = vadd.f32 %v6479, %v6480
  %v6482 = vsel %vm2572, %v6446, 0.0
  %v6483 = vrot.slane %v6482, 4
  %v6484 = vadd.f32 %v6482, %v6483
  %v6485 = vrot.slane %v6484, 2
  %v6486 = vadd.f32 %v6484, %v6485
  %v6487 = vrot.slane %v6486, 1
  %v6488 = vadd.f32 %v6486, %v6487
  %v6489 = vadd.f32 %v6456, %v6475
  %v6490 = vadd.f32 %v6462, %v6481
  %v6491 = vadd.f32 %v6469, %v6488
  %v6492 = vmul.f32 %v5079, %v5079
  %v6493 = vmul.f32 %v5081, %v5081
  %v6494 = vmul.f32 %v5160, %v5160
  %v6495 = vrot.slane %v6492, 4
  %v6496 = vadd.f32 %v6492, %v6495
  %v6497 = vrot.slane %v6496, 2
  %v6498 = vadd.f32 %v6496, %v6497
  %v6499 = vrot.slane %v6498, 1
  %v6500 = vadd.f32 %v6498, %v6499
  %v6501 = vrot.slane %v6493, 4
  %v6502 = vadd.f32 %v6493, %v6501
  %v6503 = vrot.slane %v6502, 2
  %v6504 = vadd.f32 %v6502, %v6503
  %v6505 = vrot.slane %v6504, 1
  %v6506 = vadd.f32 %v6504, %v6505
  %v6507 = vsel %vm2572, %v6494, 0.0
  %v6508 = vrot.slane %v6507, 4
  %v6509 = vadd.f32 %v6507, %v6508
  %v6510 = vrot.slane %v6509, 2
  %v6511 = vadd.f32 %v6509, %v6510
  %v6512 = vrot.slane %v6511, 1
  %v6513 = vadd.f32 %v6511, %v6512
  %v6514 = vmul.f32 %v6365, %v6365
  %v6515 = vmul.f32 %v6367, %v6367
  %v6516 = vmul.f32 %v6446, %v6446
  %v6517 = vrot.slane %v6514, 4
  %v6518 = vadd.f32 %v6514, %v6517
  %v6519 = vrot.slane %v6518, 2
  %v6520 = vadd.f32 %v6518, %v6519
  %v6521 = vrot.slane %v6520, 1
  %v6522 = vadd.f32 %v6520, %v6521
  %v6523 = vrot.slane %v6515, 4
  %v6524 = vadd.f32 %v6515, %v6523
  %v6525 = vrot.slane %v6524, 2
  %v6526 = vadd.f32 %v6524, %v6525
  %v6527 = vrot.slane %v6526, 1
  %v6528 = vadd.f32 %v6526, %v6527
  %v6529 = vsel %vm2572, %v6516, 0.0
  %v6530 = vrot.slane %v6529, 4
  %v6531 = vadd.f32 %v6529, %v6530
  %v6532 = vrot.slane %v6531, 2
  %v6533 = vadd.f32 %v6531, %v6532
  %v6534 = vrot.slane %v6533, 1
  %v6535 = vadd.f32 %v6533, %v6534
  %v6536 = vadd.f32 %v6500, %v6522
  %v6537 = vadd.f32 %v6506, %v6528
  %v6538 = vadd.f32 %v6513, %v6535
  %v6539 = vld [vmem:[%s10] sm:$0xf]
  %v6540 = vld [vmem:[%s10 + $0x4] sm:$0xf]
  %v6541 = vld [vmem:[%s10 + $0x8] sm:$0xf]
  %v6542 = vld [vmem:[%s10 + $0xc] sm:$0xf]
  %v6543 = vld [vmem:[%s10 + $0x10] sm:$0xf]
  %v6544 = vld [vmem:[%s10 + $0x14] sm:$0xf]
  %v6545 = vld [vmem:[%s10 + $0x18] sm:$0xf]
  %v6546 = vld [vmem:[%s10 + $0x1c] sm:$0xf]
  %v6547 = vld [vmem:[%s10 + $0x20] sm:$0xf]
  %v6548 = vld [vmem:[%s10 + $0x24] sm:$0xf]
  %v6549 = vld [vmem:[%s10 + $0x28] sm:$0xf]
  %v6550 = vld [vmem:[%s10 + $0x2c] sm:$0xf]
  %v6551 = vld [vmem:[%s10 + $0x30] sm:$0xf]
  %v6552 = vld [vmem:[%s10 + $0x34] sm:$0xf]
  %v6553 = vld [vmem:[%s10 + $0x38] sm:$0xf]
  %v6554 = vld [vmem:[%s10 + $0x3c] sm:$0xf]
  %v6555 = vld [vmem:[%s10 + $0x40] sm:$0xf]
  %v6556 = vld [vmem:[%s10 + $0x44] sm:$0xf]
  %v6557 = vld [vmem:[%s10 + $0x48] sm:$0xf]
  %v6558 = vld [vmem:[%s10 + $0x4c] sm:$0xf]
  %v6559 = vld [vmem:[%s10 + $0x50] sm:$0xf]
  %v6560 = vld [vmem:[%s10 + $0x54] sm:$0xf]
  %v6561 = vld [vmem:[%s10 + $0x58] sm:$0xf]
  %v6562 = vld [vmem:[%s10 + $0x5c] sm:$0xf]
  %v6563 = vld [vmem:[%s10 + $0x60] sm:$0xf]
  %v6564 = vld [vmem:[%s10 + $0x64] sm:$0xf]
  %v6565 = vld [vmem:[%s10 + $0x68] sm:$0xf]
  %v6566 = vld [vmem:[%s10 + $0x6c] sm:$0xf]
  %v6567 = vld [vmem:[%s10 + $0x70] sm:$0xf]
  %v6568 = vld [vmem:[%s10 + $0x74] sm:$0xf]
  %v6569 = vld [vmem:[%s10 + $0x78] sm:$0xf]
  %v6570 = vld [vmem:[%s10 + $0x7c] sm:$0xf]
  %v6571 = vld [vmem:[%s10 + $0x80] sm:$0xf]
  %v6572 = vld [vmem:[%s10 + $0x84] sm:$0xf]
  %v6573 = vld [vmem:[%s10 + $0x88] sm:$0xf]
  %v6574 = vld [vmem:[%s10 + $0x8c] sm:$0xf]
  %v6575 = vld [vmem:[%s10 + $0x90] sm:$0xf]
  %v6576 = vld [vmem:[%s10 + $0x94] sm:$0xf]
  %v6577 = vld [vmem:[%s10 + $0x98] sm:$0xf]
  %v6578 = vld [vmem:[%s10 + $0x9c] sm:$0xf]
  %v6579 = vunpack.c.l.bf16 %v6539
  %v6580 = vunpack.c.l.bf16 %v6540
  %v6581 = vunpack.c.l.bf16 %v6541
  %v6582 = vunpack.c.l.bf16 %v6542
  %v6583 = vunpack.c.l.bf16 %v6543
  %v6584 = vunpack.c.l.bf16 %v6544
  %v6585 = vunpack.c.l.bf16 %v6545
  %v6586 = vunpack.c.l.bf16 %v6546
  %v6587 = vunpack.c.l.bf16 %v6547
  %v6588 = vunpack.c.l.bf16 %v6548
  %v6589 = vunpack.c.l.bf16 %v6549
  %v6590 = vunpack.c.l.bf16 %v6550
  %v6591 = vunpack.c.l.bf16 %v6551
  %v6592 = vunpack.c.l.bf16 %v6552
  %v6593 = vunpack.c.l.bf16 %v6553
  %v6594 = vunpack.c.l.bf16 %v6554
  %v6595 = vunpack.c.l.bf16 %v6555
  %v6596 = vunpack.c.l.bf16 %v6556
  %v6597 = vunpack.c.l.bf16 %v6557
  %v6598 = vunpack.c.l.bf16 %v6558
  %v6599 = vunpack.c.l.bf16 %v6559
  %v6600 = vunpack.c.l.bf16 %v6560
  %v6601 = vunpack.c.l.bf16 %v6561
  %v6602 = vunpack.c.l.bf16 %v6562
  %v6603 = vunpack.c.l.bf16 %v6563
  %v6604 = vunpack.c.l.bf16 %v6564
  %v6605 = vunpack.c.l.bf16 %v6565
  %v6606 = vunpack.c.l.bf16 %v6566
  %v6607 = vunpack.c.l.bf16 %v6567
  %v6608 = vunpack.c.l.bf16 %v6568
  %v6609 = vunpack.c.l.bf16 %v6569
  %v6610 = vunpack.c.l.bf16 %v6570
  %v6611 = vunpack.c.l.bf16 %v6571
  %v6612 = vunpack.c.l.bf16 %v6572
  %v6613 = vunpack.c.l.bf16 %v6573
  %v6614 = vunpack.c.l.bf16 %v6574
  %v6615 = vunpack.c.l.bf16 %v6575
  %v6616 = vunpack.c.l.bf16 %v6576
  %v6617 = vunpack.c.l.bf16 %v6577
  %v6618 = vunpack.c.l.bf16 %v6578
  %v6619 = vld [vmem:[%s11] sm:$0xff]
  %v6620 = vld [vmem:[%s11 + $0x8] sm:$0xf]
  %v6621 = vld [vmem:[%s11 + $0xc] sm:$0xff]
  %v6622 = vld [vmem:[%s11 + $0x14] sm:$0xf]
  %v6623 = vld [vmem:[%s11 + $0x18] sm:$0xff]
  %v6624 = vld [vmem:[%s11 + $0x20] sm:$0xf]
  %v6625 = vld [vmem:[%s11 + $0x24] sm:$0xff]
  %v6626 = vld [vmem:[%s11 + $0x2c] sm:$0xf]
  %v6627 = vunpack.c.l.bf16 %v6619
  %v6628 = vunpack.c.h.bf16 %v6619
  %v6629 = vunpack.c.l.bf16 %v6620
  %v6630 = vunpack.c.l.bf16 %v6621
  %v6631 = vunpack.c.h.bf16 %v6621
  %v6632 = vunpack.c.l.bf16 %v6622
  %v6633 = vunpack.c.l.bf16 %v6623
  %v6634 = vunpack.c.h.bf16 %v6623
  %v6635 = vunpack.c.l.bf16 %v6624
  %v6636 = vunpack.c.l.bf16 %v6625
  %v6637 = vunpack.c.h.bf16 %v6625
  %v6638 = vunpack.c.l.bf16 %v6626
  %v6640 = vsel %vm2572, %v6491, 0
  %6642 = vmatprep.subr.mxu0 0.0
  %6643 = vmatpush1.msra.mxu0 %v6579
  %6644 = vmatprep.subr.mxu0 0.0
  %6645 = vmatpush1.msra.mxu0 %v6580
  %6646 = vmatprep.subr.mxu0 0.0
  %6647 = vmatpush1.msra.mxu0 %v6581
  %6648 = vmatprep.subr.mxu0 0.0
  %6649 = vmatpush1.msra.mxu0 %v6582
  %6650 = vmatprep.subr.mxu0 0.0
  %6651 = vmatpush1.msra.mxu0 %v6583
  %6652 = vmatprep.subr.mxu0 0.0
  %6653 = vmatpush1.msra.mxu0 %v6584
  %6654 = vmatprep.subr.mxu0 0.0
  %6655 = vmatpush1.msra.mxu0 %v6585
  %6656 = vmatprep.subr.mxu0 0.0
  %6657 = vmatpush1.msra.mxu0 %v6586
  %6658 = vmatprep.subr.mxu0 0.0
  %6659 = vmatpush1.msra.mxu0 %v6587
  %6660 = vmatprep.subr.mxu0 0.0
  %6661 = vmatpush1.msra.mxu0 %v6588
  %6662 = vmatprep.subr.mxu0 0.0
  %6663 = vmatpush1.msra.mxu0 %v6589
  %6664 = vmatprep.subr.mxu0 0.0
  %6665 = vmatpush1.msra.mxu0 %v6590
  %6666 = vmatprep.subr.mxu0 0.0
  %6667 = vmatpush1.msra.mxu0 %v6591
  %6668 = vmatprep.subr.mxu0 0.0
  %6669 = vmatpush1.msra.mxu0 %v6592
  %6670 = vmatprep.subr.mxu0 0.0
  %6671 = vmatpush1.msra.mxu0 %v6593
  %6672 = vmatprep.subr.mxu0 0.0
  %6673 = vmatpush1.msra.mxu0 %v6594
  %6674 = vmatprep.subr.mxu0 0.0
  %6675 = vmatpush1.msra.mxu0 %v6595
  %6676 = vmatprep.subr.mxu0 0.0
  %6677 = vmatpush1.msra.mxu0 %v6596
  %6678 = vmatprep.subr.mxu0 0.0
  %6679 = vmatpush1.msra.mxu0 %v6597
  %6680 = vmatprep.subr.mxu0 0.0
  %6681 = vmatpush1.msra.mxu0 %v6598
  %6682 = vmatprep.subr.mxu0 0.0
  %6683 = vmatpush1.msra.mxu0 %v6599
  %6684 = vmatprep.subr.mxu0 0.0
  %6685 = vmatpush1.msra.mxu0 %v6600
  %6686 = vmatprep.subr.mxu0 0.0
  %6687 = vmatpush1.msra.mxu0 %v6601
  %6688 = vmatprep.subr.mxu0 0.0
  %6689 = vmatpush1.msra.mxu0 %v6602
  %6690 = vmatprep.subr.mxu0 0.0
  %6691 = vmatpush1.msra.mxu0 %v6603
  %6692 = vmatprep.subr.mxu0 0.0
  %6693 = vmatpush1.msra.mxu0 %v6604
  %6694 = vmatprep.subr.mxu0 0.0
  %6695 = vmatpush1.msra.mxu0 %v6605
  %6696 = vmatprep.subr.mxu0 0.0
  %6697 = vmatpush1.msra.mxu0 %v6606
  %6698 = vmatprep.subr.mxu0 0.0
  %6699 = vmatpush1.msra.mxu0 %v6607
  %6700 = vmatprep.subr.mxu0 0.0
  %6701 = vmatpush1.msra.mxu0 %v6608
  %6702 = vmatprep.subr.mxu0 0.0
  %6703 = vmatpush1.msra.mxu0 %v6609
  %6704 = vmatprep.subr.mxu0 0.0
  %6705 = vmatpush1.msra.mxu0 %v6610
  %6706 = vmatprep.mubr.f32.mxu0 %v6490
  %6707 = vmatmul.mubr.f32.gmra.mrb[0].mxu0 %v6489
  %v6708 = vpop.f32.mrb[0].mxu0
  %v6709 = vadd.f32 0.0, %v6708
  %v6710 = vpop.f32.mrb[0].mxu0
  %6711 = vdwg.mxu0
  %6712 = vmatprep.subr.mxu0 0.0
  %6713 = vmatpush1.msra.mxu0 %v6611
  %6714 = vmatprep.subr.mxu0 0.0
  %6715 = vmatpush1.msra.mxu0 %v6612
  %6716 = vmatprep.subr.mxu0 0.0
  %6717 = vmatpush1.msra.mxu0 %v6613
  %6718 = vmatprep.subr.mxu0 0.0
  %6719 = vmatpush1.msra.mxu0 %v6614
  %6720 = vmatprep.subr.mxu0 0.0
  %6721 = vmatpush1.msra.mxu0 %v6615
  %6722 = vmatprep.subr.mxu0 0.0
  %6723 = vmatpush1.msra.mxu0 %v6616
  %6724 = vmatprep.subr.mxu0 0.0
  %6725 = vmatpush1.msra.mxu0 %v6617
  %6726 = vmatprep.subr.mxu0 0.0
  %6727 = vmatpush1.msra.mxu0 %v6618
  %6728 = vmatprep.subr.mxu0 0.0
  %6729 = vmatpush1.msra.mxu0 0.0
  %6730 = vmatprep.subr.mxu0 0.0
  %6731 = vmatpush1.msra.mxu0 0.0
  %6732 = vmatprep.subr.mxu0 0.0
  %6733 = vmatpush1.msra.mxu0 0.0
  %6734 = vmatprep.subr.mxu0 0.0
  %6735 = vmatpush1.msra.mxu0 0.0
  %6736 = vmatprep.subr.mxu0 0.0
  %6737 = vmatpush1.msra.mxu0 0.0
  %6738 = vmatprep.subr.mxu0 0.0
  %6739 = vmatpush1.msra.mxu0 0.0
  %6740 = vmatprep.subr.mxu0 0.0
  %6741 = vmatpush1.msra.mxu0 0.0
  %6742 = vmatprep.subr.mxu0 0.0
  %6743 = vmatpush1.msra.mxu0 0.0
  %6744 = vmatprep.subr.mxu0 0.0
  %6745 = vmatpush1.msra.mxu0 0.0
  %6746 = vmatprep.subr.mxu0 0.0
  %6747 = vmatpush1.msra.mxu0 0.0
  %6748 = vmatprep.subr.mxu0 0.0
  %6749 = vmatpush1.msra.mxu0 0.0
  %6750 = vmatprep.subr.mxu0 0.0
  %6751 = vmatpush1.msra.mxu0 0.0
  %6752 = vmatprep.subr.mxu0 0.0
  %6753 = vmatpush1.msra.mxu0 0.0
  %6754 = vmatprep.subr.mxu0 0.0
  %6755 = vmatpush1.msra.mxu0 0.0
  %6756 = vmatprep.subr.mxu0 0.0
  %6757 = vmatpush1.msra.mxu0 0.0
  %6758 = vmatprep.subr.mxu0 0.0
  %6759 = vmatpush1.msra.mxu0 0.0
  %6760 = vmatprep.subr.mxu0 0.0
  %6761 = vmatpush1.msra.mxu0 0.0
  %6762 = vmatprep.subr.mxu0 0.0
  %6763 = vmatpush1.msra.mxu0 0.0
  %6764 = vmatprep.subr.mxu0 0.0
  %6765 = vmatpush1.msra.mxu0 0.0
  %6766 = vmatprep.subr.mxu0 0.0
  %6767 = vmatpush1.msra.mxu0 0.0
  %6768 = vmatprep.subr.mxu0 0.0
  %6769 = vmatpush1.msra.mxu0 0.0
  %6770 = vmatprep.subr.mxu0 0.0
  %6771 = vmatpush1.msra.mxu0 0.0
  %6772 = vmatprep.subr.mxu0 0.0
  %6773 = vmatpush1.msra.mxu0 0.0
  %6774 = vmatprep.subr.mxu0 0.0
  %6775 = vmatpush1.msra.mxu0 0.0
  %6776 = vmatprep.mubr.f32.mxu0 0.0
  %6777 = vmatmul.mubr.f32.gmra.mrb[0].mxu0 %v6640
  %v6778 = vpop.f32.mrb[0].mxu0
  %v6779 = vadd.f32 %v6709, %v6778
  %v6780 = vpop.f32.mrb[0].mxu0
  %6781 = vdwg.mxu0
  %v6783 = vsel %vm2572, %v6538, 0
  %6785 = vmatprep.subr.mxu0 0.0
  %6786 = vmatpush1.msra.mxu0 %v6579
  %6787 = vmatprep.subr.mxu0 0.0
  %6788 = vmatpush1.msra.mxu0 %v6580
  %6789 = vmatprep.subr.mxu0 0.0
  %6790 = vmatpush1.msra.mxu0 %v6581
  %6791 = vmatprep.subr.mxu0 0.0
  %6792 = vmatpush1.msra.mxu0 %v6582
  %6793 = vmatprep.subr.mxu0 0.0
  %6794 = vmatpush1.msra.mxu0 %v6583
  %6795 = vmatprep.subr.mxu0 0.0
  %6796 = vmatpush1.msra.mxu0 %v6584
  %6797 = vmatprep.subr.mxu0 0.0
  %6798 = vmatpush1.msra.mxu0 %v6585
  %6799 = vmatprep.subr.mxu0 0.0
  %6800 = vmatpush1.msra.mxu0 %v6586
  %6801 = vmatprep.subr.mxu0 0.0
  %6802 = vmatpush1.msra.mxu0 %v6587
  %6803 = vmatprep.subr.mxu0 0.0
  %6804 = vmatpush1.msra.mxu0 %v6588
  %6805 = vmatprep.subr.mxu0 0.0
  %6806 = vmatpush1.msra.mxu0 %v6589
  %6807 = vmatprep.subr.mxu0 0.0
  %6808 = vmatpush1.msra.mxu0 %v6590
  %6809 = vmatprep.subr.mxu0 0.0
  %6810 = vmatpush1.msra.mxu0 %v6591
  %6811 = vmatprep.subr.mxu0 0.0
  %6812 = vmatpush1.msra.mxu0 %v6592
  %6813 = vmatprep.subr.mxu0 0.0
  %6814 = vmatpush1.msra.mxu0 %v6593
  %6815 = vmatprep.subr.mxu0 0.0
  %6816 = vmatpush1.msra.mxu0 %v6594
  %6817 = vmatprep.subr.mxu0 0.0
  %6818 = vmatpush1.msra.mxu0 %v6595
  %6819 = vmatprep.subr.mxu0 0.0
  %6820 = vmatpush1.msra.mxu0 %v6596
  %6821 = vmatprep.subr.mxu0 0.0
  %6822 = vmatpush1.msra.mxu0 %v6597
  %6823 = vmatprep.subr.mxu0 0.0
  %6824 = vmatpush1.msra.mxu0 %v6598
  %6825 = vmatprep.subr.mxu0 0.0
  %6826 = vmatpush1.msra.mxu0 %v6599
  %6827 = vmatprep.subr.mxu0 0.0
  %6828 = vmatpush1.msra.mxu0 %v6600
  %6829 = vmatprep.subr.mxu0 0.0
  %6830 = vmatpush1.msra.mxu0 %v6601
  %6831 = vmatprep.subr.mxu0 0.0
  %6832 = vmatpush1.msra.mxu0 %v6602
  %6833 = vmatprep.subr.mxu0 0.0
  %6834 = vmatpush1.msra.mxu0 %v6603
  %6835 = vmatprep.subr.mxu0 0.0
  %6836 = vmatpush1.msra.mxu0 %v6604
  %6837 = vmatprep.subr.mxu0 0.0
  %6838 = vmatpush1.msra.mxu0 %v6605
  %6839 = vmatprep.subr.mxu0 0.0
  %6840 = vmatpush1.msra.mxu0 %v6606
  %6841 = vmatprep.subr.mxu0 0.0
  %6842 = vmatpush1.msra.mxu0 %v6607
  %6843 = vmatprep.subr.mxu0 0.0
  %6844 = vmatpush1.msra.mxu0 %v6608
  %6845 = vmatprep.subr.mxu0 0.0
  %6846 = vmatpush1.msra.mxu0 %v6609
  %6847 = vmatprep.subr.mxu0 0.0
  %6848 = vmatpush1.msra.mxu0 %v6610
  %6849 = vmatprep.mubr.f32.mxu0 %v6537
  %6850 = vmatmul.mubr.f32.gmra.mrb[0].mxu0 %v6536
  %v6851 = vpop.f32.mrb[0].mxu0
  %v6852 = vadd.f32 0.0, %v6851
  %v6853 = vpop.f32.mrb[0].mxu0
  %6854 = vdwg.mxu0
  %6855 = vmatprep.subr.mxu0 0.0
  %6856 = vmatpush1.msra.mxu0 %v6611
  %6857 = vmatprep.subr.mxu0 0.0
  %6858 = vmatpush1.msra.mxu0 %v6612
  %6859 = vmatprep.subr.mxu0 0.0
  %6860 = vmatpush1.msra.mxu0 %v6613
  %6861 = vmatprep.subr.mxu0 0.0
  %6862 = vmatpush1.msra.mxu0 %v6614
  %6863 = vmatprep.subr.mxu0 0.0
  %6864 = vmatpush1.msra.mxu0 %v6615
  %6865 = vmatprep.subr.mxu0 0.0
  %6866 = vmatpush1.msra.mxu0 %v6616
  %6867 = vmatprep.subr.mxu0 0.0
  %6868 = vmatpush1.msra.mxu0 %v6617
  %6869 = vmatprep.subr.mxu0 0.0
  %6870 = vmatpush1.msra.mxu0 %v6618
  %6871 = vmatprep.subr.mxu0 0.0
  %6872 = vmatpush1.msra.mxu0 0.0
  %6873 = vmatprep.subr.mxu0 0.0
  %6874 = vmatpush1.msra.mxu0 0.0
  %6875 = vmatprep.subr.mxu0 0.0
  %6876 = vmatpush1.msra.mxu0 0.0
  %6877 = vmatprep.subr.mxu0 0.0
  %6878 = vmatpush1.msra.mxu0 0.0
  %6879 = vmatprep.subr.mxu0 0.0
  %6880 = vmatpush1.msra.mxu0 0.0
  %6881 = vmatprep.subr.mxu0 0.0
  %6882 = vmatpush1.msra.mxu0 0.0
  %6883 = vmatprep.subr.mxu0 0.0
  %6884 = vmatpush1.msra.mxu0 0.0
  %6885 = vmatprep.subr.mxu0 0.0
  %6886 = vmatpush1.msra.mxu0 0.0
  %6887 = vmatprep.subr.mxu0 0.0
  %6888 = vmatpush1.msra.mxu0 0.0
  %6889 = vmatprep.subr.mxu0 0.0
  %6890 = vmatpush1.msra.mxu0 0.0
  %6891 = vmatprep.subr.mxu0 0.0
  %6892 = vmatpush1.msra.mxu0 0.0
  %6893 = vmatprep.subr.mxu0 0.0
  %6894 = vmatpush1.msra.mxu0 0.0
  %6895 = vmatprep.subr.mxu0 0.0
  %6896 = vmatpush1.msra.mxu0 0.0
  %6897 = vmatprep.subr.mxu0 0.0
  %6898 = vmatpush1.msra.mxu0 0.0
  %6899 = vmatprep.subr.mxu0 0.0
  %6900 = vmatpush1.msra.mxu0 0.0
  %6901 = vmatprep.subr.mxu0 0.0
  %6902 = vmatpush1.msra.mxu0 0.0
  %6903 = vmatprep.subr.mxu0 0.0
  %6904 = vmatpush1.msra.mxu0 0.0
  %6905 = vmatprep.subr.mxu0 0.0
  %6906 = vmatpush1.msra.mxu0 0.0
  %6907 = vmatprep.subr.mxu0 0.0
  %6908 = vmatpush1.msra.mxu0 0.0
  %6909 = vmatprep.subr.mxu0 0.0
  %6910 = vmatpush1.msra.mxu0 0.0
  %6911 = vmatprep.subr.mxu0 0.0
  %6912 = vmatpush1.msra.mxu0 0.0
  %6913 = vmatprep.subr.mxu0 0.0
  %6914 = vmatpush1.msra.mxu0 0.0
  %6915 = vmatprep.subr.mxu0 0.0
  %6916 = vmatpush1.msra.mxu0 0.0
  %6917 = vmatprep.subr.mxu0 0.0
  %6918 = vmatpush1.msra.mxu0 0.0
  %6919 = vmatprep.mubr.f32.mxu0 0.0
  %6920 = vmatmul.mubr.f32.gmra.mrb[0].mxu0 %v6783
  %v6921 = vpop.f32.mrb[0].mxu0
  %v6922 = vadd.f32 %v6852, %v6921
  %v6923 = vpop.f32.mrb[0].mxu0
  %6924 = vdwg.mxu0
  %v6925 = vld [vmem:[%s12] sm:$0x1]
  %v6926 = vld [vmem:[%s13] sm:$0x1]
  %v6927 = vrcp.pop 128.0
  %v6928 = vmul.f32 %v6779, %v6927
  %v6929 = vmul.f32 %v6922, %v6927
  %v6930 = vmul.f32 %v6928, %v6928
  %v6931 = vsub.f32 %v6929, %v6930
  %v6932 = vmax.f32 %v6931, 0.0
  %v6933 = vadd.f32 %v6932, 1e-05
  %v6934 = vrsqrt.pop %v6933
  %v6935 = vmul.f32 %v6925, %v6934
  %v6936 = vmul.f32 %v6928, %v6935
  %v6937 = vsub.f32 %v6926, %v6936
  %vm6938 = vcmask 261120
  %v6940 = vsel %vm6938, %v6935, 0
  %6942 = vmatprep.subr.mxu0 %v6628
  %6943 = vmatpush1.msra.mxu0 %v6627
  %6944 = vmatprep.subr.mxu0 %v6631
  %6945 = vmatpush1.msra.mxu0 %v6630
  %6946 = vmatprep.subr.mxu0 %v6634
  %6947 = vmatpush1.msra.mxu0 %v6633
  %6948 = vmatprep.subr.mxu0 %v6637
  %6949 = vmatpush1.msra.mxu0 %v6636
  %6950 = vmatprep.subr.mxu0 0.0
  %6951 = vmatpush1.msra.mxu0 0.0
  %6952 = vmatprep.subr.mxu0 0.0
  %6953 = vmatpush1.msra.mxu0 0.0
  %6954 = vmatprep.subr.mxu0 0.0
  %6955 = vmatpush1.msra.mxu0 0.0
  %6956 = vmatprep.subr.mxu0 0.0
  %6957 = vmatpush1.msra.mxu0 0.0
  %6958 = vmatprep.subr.mxu0 0.0
  %6959 = vmatpush1.msra.mxu0 0.0
  %6960 = vmatprep.subr.mxu0 0.0
  %6961 = vmatpush1.msra.mxu0 0.0
  %6962 = vmatprep.subr.mxu0 0.0
  %6963 = vmatpush1.msra.mxu0 0.0
  %6964 = vmatprep.subr.mxu0 0.0
  %6965 = vmatpush1.msra.mxu0 0.0
  %6966 = vmatprep.subr.mxu0 0.0
  %6967 = vmatpush1.msra.mxu0 0.0
  %6968 = vmatprep.subr.mxu0 0.0
  %6969 = vmatpush1.msra.mxu0 0.0
  %6970 = vmatprep.subr.mxu0 0.0
  %6971 = vmatpush1.msra.mxu0 0.0
  %6972 = vmatprep.subr.mxu0 0.0
  %6973 = vmatpush1.msra.mxu0 0.0
  %6974 = vmatprep.subr.mxu0 0.0
  %6975 = vmatpush1.msra.mxu0 0.0
  %6976 = vmatprep.subr.mxu0 0.0
  %6977 = vmatpush1.msra.mxu0 0.0
  %6978 = vmatprep.subr.mxu0 0.0
  %6979 = vmatpush1.msra.mxu0 0.0
  %6980 = vmatprep.subr.mxu0 0.0
  %6981 = vmatpush1.msra.mxu0 0.0
  %6982 = vmatprep.subr.mxu0 0.0
  %6983 = vmatpush1.msra.mxu0 0.0
  %6984 = vmatprep.subr.mxu0 0.0
  %6985 = vmatpush1.msra.mxu0 0.0
  %6986 = vmatprep.subr.mxu0 0.0
  %6987 = vmatpush1.msra.mxu0 0.0
  %6988 = vmatprep.subr.mxu0 0.0
  %6989 = vmatpush1.msra.mxu0 0.0
  %6990 = vmatprep.subr.mxu0 0.0
  %6991 = vmatpush1.msra.mxu0 0.0
  %6992 = vmatprep.subr.mxu0 0.0
  %6993 = vmatpush1.msra.mxu0 0.0
  %6994 = vmatprep.subr.mxu0 0.0
  %6995 = vmatpush1.msra.mxu0 0.0
  %6996 = vmatprep.subr.mxu0 0.0
  %6997 = vmatpush1.msra.mxu0 0.0
  %6998 = vmatprep.subr.mxu0 0.0
  %6999 = vmatpush1.msra.mxu0 0.0
  %7000 = vmatprep.subr.mxu0 0.0
  %7001 = vmatpush1.msra.mxu0 0.0
  %7002 = vmatprep.subr.mxu0 0.0
  %7003 = vmatpush1.msra.mxu0 0.0
  %7004 = vmatprep.subr.mxu0 0.0
  %7005 = vmatpush1.msra.mxu0 0.0
  %7006 = vmatprep.mubr.f32.mxu0 0.0
  %7007 = vmatmul.mubr.f32.gmra.mrb[0].mxu0 %v6940
  %v7008 = vpop.f32.mrb[0].mxu0
  %v7009 = vadd.f32 0.0, %v7008
  %v7010 = vpop.f32.mrb[0].mxu0
  %v7011 = vadd.f32 0.0, %v7010
  %7012 = vdwg.mxu0
  %7013 = vmatprep.subr.mxu0 0.0
  %7014 = vmatpush1.msra.mxu0 %v6629
  %7015 = vmatprep.subr.mxu0 0.0
  %7016 = vmatpush1.msra.mxu0 %v6632
  %7017 = vmatprep.subr.mxu0 0.0
  %7018 = vmatpush1.msra.mxu0 %v6635
  %7019 = vmatprep.subr.mxu0 0.0
  %7020 = vmatpush1.msra.mxu0 %v6638
  %7021 = vmatprep.subr.mxu0 0.0
  %7022 = vmatpush1.msra.mxu0 0.0
  %7023 = vmatprep.subr.mxu0 0.0
  %7024 = vmatpush1.msra.mxu0 0.0
  %7025 = vmatprep.subr.mxu0 0.0
  %7026 = vmatpush1.msra.mxu0 0.0
  %7027 = vmatprep.subr.mxu0 0.0
  %7028 = vmatpush1.msra.mxu0 0.0
  %7029 = vmatprep.subr.mxu0 0.0
  %7030 = vmatpush1.msra.mxu0 0.0
  %7031 = vmatprep.subr.mxu0 0.0
  %7032 = vmatpush1.msra.mxu0 0.0
  %7033 = vmatprep.subr.mxu0 0.0
  %7034 = vmatpush1.msra.mxu0 0.0
  %7035 = vmatprep.subr.mxu0 0.0
  %7036 = vmatpush1.msra.mxu0 0.0
  %7037 = vmatprep.subr.mxu0 0.0
  %7038 = vmatpush1.msra.mxu0 0.0
  %7039 = vmatprep.subr.mxu0 0.0
  %7040 = vmatpush1.msra.mxu0 0.0
  %7041 = vmatprep.subr.mxu0 0.0
  %7042 = vmatpush1.msra.mxu0 0.0
  %7043 = vmatprep.subr.mxu0 0.0
  %7044 = vmatpush1.msra.mxu0 0.0
  %7045 = vmatprep.subr.mxu0 0.0
  %7046 = vmatpush1.msra.mxu0 0.0
  %7047 = vmatprep.subr.mxu0 0.0
  %7048 = vmatpush1.msra.mxu0 0.0
  %7049 = vmatprep.subr.mxu0 0.0
  %7050 = vmatpush1.msra.mxu0 0.0
  %7051 = vmatprep.subr.mxu0 0.0
  %7052 = vmatpush1.msra.mxu0 0.0
  %7053 = vmatprep.subr.mxu0 0.0
  %7054 = vmatpush1.msra.mxu0 0.0
  %7055 = vmatprep.subr.mxu0 0.0
  %7056 = vmatpush1.msra.mxu0 0.0
  %7057 = vmatprep.subr.mxu0 0.0
  %7058 = vmatpush1.msra.mxu0 0.0
  %7059 = vmatprep.subr.mxu0 0.0
  %7060 = vmatpush1.msra.mxu0 0.0
  %7061 = vmatprep.subr.mxu0 0.0
  %7062 = vmatpush1.msra.mxu0 0.0
  %7063 = vmatprep.subr.mxu0 0.0
  %7064 = vmatpush1.msra.mxu0 0.0
  %7065 = vmatprep.subr.mxu0 0.0
  %7066 = vmatpush1.msra.mxu0 0.0
  %7067 = vmatprep.subr.mxu0 0.0
  %7068 = vmatpush1.msra.mxu0 0.0
  %7069 = vmatprep.subr.mxu0 0.0
  %7070 = vmatpush1.msra.mxu0 0.0
  %7071 = vmatprep.subr.mxu0 0.0
  %7072 = vmatpush1.msra.mxu0 0.0
  %7073 = vmatprep.subr.mxu0 0.0
  %7074 = vmatpush1.msra.mxu0 0.0
  %7075 = vmatprep.subr.mxu0 0.0
  %7076 = vmatpush1.msra.mxu0 0.0
  %7077 = vmatprep.mubr.f32.mxu0 0.0
  %7078 = vmatmul.mubr.f32.gmra.mrb[0].mxu0 %v6940
  %v7079 = vpop.f32.mrb[0].mxu0
  %v7080 = vadd.f32 0.0, %v7079
  %v7081 = vpop.f32.mrb[0].mxu0
  %7082 = vdwg.mxu0
  %v7084 = vsel %vm6938, %v6937, 0
  %7086 = vmatprep.subr.mxu0 %v6628
  %7087 = vmatpush1.msra.mxu0 %v6627
  %7088 = vmatprep.subr.mxu0 %v6631
  %7089 = vmatpush1.msra.mxu0 %v6630
  %7090 = vmatprep.subr.mxu0 %v6634
  %7091 = vmatpush1.msra.mxu0 %v6633
  %7092 = vmatprep.subr.mxu0 %v6637
  %7093 = vmatpush1.msra.mxu0 %v6636
  %7094 = vmatprep.subr.mxu0 0.0
  %7095 = vmatpush1.msra.mxu0 0.0
  %7096 = vmatprep.subr.mxu0 0.0
  %7097 = vmatpush1.msra.mxu0 0.0
  %7098 = vmatprep.subr.mxu0 0.0
  %7099 = vmatpush1.msra.mxu0 0.0
  %7100 = vmatprep.subr.mxu0 0.0
  %7101 = vmatpush1.msra.mxu0 0.0
  %7102 = vmatprep.subr.mxu0 0.0
  %7103 = vmatpush1.msra.mxu0 0.0
  %7104 = vmatprep.subr.mxu0 0.0
  %7105 = vmatpush1.msra.mxu0 0.0
  %7106 = vmatprep.subr.mxu0 0.0
  %7107 = vmatpush1.msra.mxu0 0.0
  %7108 = vmatprep.subr.mxu0 0.0
  %7109 = vmatpush1.msra.mxu0 0.0
  %7110 = vmatprep.subr.mxu0 0.0
  %7111 = vmatpush1.msra.mxu0 0.0
  %7112 = vmatprep.subr.mxu0 0.0
  %7113 = vmatpush1.msra.mxu0 0.0
  %7114 = vmatprep.subr.mxu0 0.0
  %7115 = vmatpush1.msra.mxu0 0.0
  %7116 = vmatprep.subr.mxu0 0.0
  %7117 = vmatpush1.msra.mxu0 0.0
  %7118 = vmatprep.subr.mxu0 0.0
  %7119 = vmatpush1.msra.mxu0 0.0
  %7120 = vmatprep.subr.mxu0 0.0
  %7121 = vmatpush1.msra.mxu0 0.0
  %7122 = vmatprep.subr.mxu0 0.0
  %7123 = vmatpush1.msra.mxu0 0.0
  %7124 = vmatprep.subr.mxu0 0.0
  %7125 = vmatpush1.msra.mxu0 0.0
  %7126 = vmatprep.subr.mxu0 0.0
  %7127 = vmatpush1.msra.mxu0 0.0
  %7128 = vmatprep.subr.mxu0 0.0
  %7129 = vmatpush1.msra.mxu0 0.0
  %7130 = vmatprep.subr.mxu0 0.0
  %7131 = vmatpush1.msra.mxu0 0.0
  %7132 = vmatprep.subr.mxu0 0.0
  %7133 = vmatpush1.msra.mxu0 0.0
  %7134 = vmatprep.subr.mxu0 0.0
  %7135 = vmatpush1.msra.mxu0 0.0
  %7136 = vmatprep.subr.mxu0 0.0
  %7137 = vmatpush1.msra.mxu0 0.0
  %7138 = vmatprep.subr.mxu0 0.0
  %7139 = vmatpush1.msra.mxu0 0.0
  %7140 = vmatprep.subr.mxu0 0.0
  %7141 = vmatpush1.msra.mxu0 0.0
  %7142 = vmatprep.subr.mxu0 0.0
  %7143 = vmatpush1.msra.mxu0 0.0
  %7144 = vmatprep.subr.mxu0 0.0
  %7145 = vmatpush1.msra.mxu0 0.0
  %7146 = vmatprep.subr.mxu0 0.0
  %7147 = vmatpush1.msra.mxu0 0.0
  %7148 = vmatprep.subr.mxu0 0.0
  %7149 = vmatpush1.msra.mxu0 0.0
  %7150 = vmatprep.mubr.f32.mxu0 0.0
  %7151 = vmatmul.mubr.f32.gmra.mrb[0].mxu0 %v7084
  %v7152 = vpop.f32.mrb[0].mxu0
  %v7153 = vadd.f32 0.0, %v7152
  %v7154 = vpop.f32.mrb[0].mxu0
  %v7155 = vadd.f32 0.0, %v7154
  %7156 = vdwg.mxu0
  %7157 = vmatprep.subr.mxu0 0.0
  %7158 = vmatpush1.msra.mxu0 %v6629
  %7159 = vmatprep.subr.mxu0 0.0
  %7160 = vmatpush1.msra.mxu0 %v6632
  %7161 = vmatprep.subr.mxu0 0.0
  %7162 = vmatpush1.msra.mxu0 %v6635
  %7163 = vmatprep.subr.mxu0 0.0
  %7164 = vmatpush1.msra.mxu0 %v6638
  %7165 = vmatprep.subr.mxu0 0.0
  %7166 = vmatpush1.msra.mxu0 0.0
  %7167 = vmatprep.subr.mxu0 0.0
  %7168 = vmatpush1.msra.mxu0 0.0
  %7169 = vmatprep.subr.mxu0 0.0
  %7170 = vmatpush1.msra.mxu0 0.0
  %7171 = vmatprep.subr.mxu0 0.0
  %7172 = vmatpush1.msra.mxu0 0.0
  %7173 = vmatprep.subr.mxu0 0.0
  %7174 = vmatpush1.msra.mxu0 0.0
  %7175 = vmatprep.subr.mxu0 0.0
  %7176 = vmatpush1.msra.mxu0 0.0
  %7177 = vmatprep.subr.mxu0 0.0
  %7178 = vmatpush1.msra.mxu0 0.0
  %7179 = vmatprep.subr.mxu0 0.0
  %7180 = vmatpush1.msra.mxu0 0.0
  %7181 = vmatprep.subr.mxu0 0.0
  %7182 = vmatpush1.msra.mxu0 0.0
  %7183 = vmatprep.subr.mxu0 0.0
  %7184 = vmatpush1.msra.mxu0 0.0
  %7185 = vmatprep.subr.mxu0 0.0
  %7186 = vmatpush1.msra.mxu0 0.0
  %7187 = vmatprep.subr.mxu0 0.0
  %7188 = vmatpush1.msra.mxu0 0.0
  %7189 = vmatprep.subr.mxu0 0.0
  %7190 = vmatpush1.msra.mxu0 0.0
  %7191 = vmatprep.subr.mxu0 0.0
  %7192 = vmatpush1.msra.mxu0 0.0
  %7193 = vmatprep.subr.mxu0 0.0
  %7194 = vmatpush1.msra.mxu0 0.0
  %7195 = vmatprep.subr.mxu0 0.0
  %7196 = vmatpush1.msra.mxu0 0.0
  %7197 = vmatprep.subr.mxu0 0.0
  %7198 = vmatpush1.msra.mxu0 0.0
  %7199 = vmatprep.subr.mxu0 0.0
  %7200 = vmatpush1.msra.mxu0 0.0
  %7201 = vmatprep.subr.mxu0 0.0
  %7202 = vmatpush1.msra.mxu0 0.0
  %7203 = vmatprep.subr.mxu0 0.0
  %7204 = vmatpush1.msra.mxu0 0.0
  %7205 = vmatprep.subr.mxu0 0.0
  %7206 = vmatpush1.msra.mxu0 0.0
  %7207 = vmatprep.subr.mxu0 0.0
  %7208 = vmatpush1.msra.mxu0 0.0
  %7209 = vmatprep.subr.mxu0 0.0
  %7210 = vmatpush1.msra.mxu0 0.0
  %7211 = vmatprep.subr.mxu0 0.0
  %7212 = vmatpush1.msra.mxu0 0.0
  %7213 = vmatprep.subr.mxu0 0.0
  %7214 = vmatpush1.msra.mxu0 0.0
  %7215 = vmatprep.subr.mxu0 0.0
  %7216 = vmatpush1.msra.mxu0 0.0
  %7217 = vmatprep.subr.mxu0 0.0
  %7218 = vmatpush1.msra.mxu0 0.0
  %7219 = vmatprep.subr.mxu0 0.0
  %7220 = vmatpush1.msra.mxu0 0.0
  %7221 = vmatprep.mubr.f32.mxu0 0.0
  %7222 = vmatmul.mubr.f32.gmra.mrb[0].mxu0 %v7084
  %v7223 = vpop.f32.mrb[0].mxu0
  %v7224 = vadd.f32 0.0, %v7223
  %v7225 = vpop.f32.mrb[0].mxu0
  %7226 = vdwg.mxu0
  %v7227 = vlaneseq
  %v7228 = vshrl.u32 %v7227, 7
  %v7229 = vsub.s32 0, %v7228
  %v7230 = vrot.slane %v7009, %v7229
  %v7231 = vlaneseq
  %v7232 = vshrl.u32 %v7231, 7
  %v7233 = vsub.s32 0, %v7232
  %v7234 = vrot.slane %v7011, %v7233
  %v7235 = vlaneseq
  %v7236 = vshrl.u32 %v7235, 7
  %v7237 = vsub.s32 0, %v7236
  %v7238 = vrot.slane %v7080, %v7237
  %v7239 = vmul.f32 %v5079, %v7230
  %v7240 = vmul.f32 %v5081, %v7234
  %v7241 = vmul.f32 %v5160, %v7238
  %v7242 = vlaneseq
  %v7243 = vshrl.u32 %v7242, 7
  %v7244 = vsub.s32 0, %v7243
  %v7245 = vrot.slane %v7153, %v7244
  %v7246 = vlaneseq
  %v7247 = vshrl.u32 %v7246, 7
  %v7248 = vsub.s32 0, %v7247
  %v7249 = vrot.slane %v7155, %v7248
  %v7250 = vlaneseq
  %v7251 = vshrl.u32 %v7250, 7
  %v7252 = vsub.s32 0, %v7251
  %v7253 = vrot.slane %v7224, %v7252
  %v7254 = vadd.f32 %v7239, %v7245
  %v7255 = vadd.f32 %v7240, %v7249
  %v7256 = vadd.f32 %v7241, %v7253
  %v7257 = vmax.f32 %v7254, 0.0
  %v7258 = vmax.f32 %v7255, 0.0
  %v7259 = vmax.f32 %v7256, 0.0
  %v7260 = vpack.c.bf16 %v7257, %v7257
  %v7261 = vpack.c.bf16 %v7258, %v7258
  %v7262 = vpack.c.bf16 %v7259, %v7259
  %v7263 = vmul.f32 %v6365, %v7230
  %v7264 = vmul.f32 %v6367, %v7234
  %v7265 = vmul.f32 %v6446, %v7238
  %v7266 = vadd.f32 %v7263, %v7245
  %v7267 = vadd.f32 %v7264, %v7249
  %v7268 = vadd.f32 %v7265, %v7253
  %v7269 = vmax.f32 %v7266, 0.0
  %v7270 = vmax.f32 %v7267, 0.0
  %v7271 = vmax.f32 %v7268, 0.0
  %v7272 = vpack.c.bf16 %v7269, %v7269
  %v7273 = vpack.c.bf16 %v7270, %v7270
  %v7274 = vpack.c.bf16 %v7271, %v7271
  %v7275 = vld [vmem:[%s14] sm:$0xf]
  %v7276 = vld [vmem:[%s14 + $0x4] sm:$0xf]
  %s7277 = scalar_lea.vmem %s14, 8
  %v7278 = vld [vmem:[%s7277] sm:$0xf]
  %v7279 = vld [vmem:[%s7277 + $0x4] sm:$0xf]
  %v7282 = vunpack.c.l.b16 %v7278
  %v7283 = vunpack.c.l.b16 %v7279
  %v7284 = vpack.c.b16 %v7283, %v7282
  %v7286 = vsel %vm3605, %v7284, 0
  %v7289 = vsel %vm3593, %v7272, 0
  %v7292 = vsel %vm3593, %v7273, 0
  %v7295 = vsel %vm3593, %v7274, 0
  %7297 = vmatprep.subr.bf16.mxu0 %v7292
  %7298 = vmatpush1.bf16.msra.mxu0 %v7289
  %7299 = vmatprep.subr.bf16.mxu0 0
  %7300 = vmatpush1.bf16.msra.mxu0 0
  %7301 = vmatprep.subr.bf16.mxu0 0
  %7302 = vmatpush1.bf16.msra.mxu0 0
  %7303 = vmatprep.subr.bf16.mxu0 0
  %7304 = vmatpush1.bf16.msra.mxu0 0
  %7305 = vmatprep.subr.bf16.mxu0 0
  %7306 = vmatpush1.bf16.msra.mxu0 0
  %7307 = vmatprep.subr.bf16.mxu0 0
  %7308 = vmatpush1.bf16.msra.mxu0 0
  %7309 = vmatprep.subr.bf16.mxu0 0
  %7310 = vmatpush1.bf16.msra.mxu0 0
  %7311 = vmatprep.subr.bf16.mxu0 0
  %7312 = vmatpush1.bf16.msra.mxu0 0
  %7313 = vmatprep.subr.bf16.mxu0 0
  %7314 = vmatpush1.bf16.msra.mxu0 0
  %7315 = vmatprep.subr.bf16.mxu0 0
  %7316 = vmatpush1.bf16.msra.mxu0 0
  %7317 = vmatprep.subr.bf16.mxu0 0
  %7318 = vmatpush1.bf16.msra.mxu0 0
  %7319 = vmatprep.subr.bf16.mxu0 0
  %7320 = vmatpush1.bf16.msra.mxu0 0
  %7321 = vmatprep.subr.bf16.mxu0 0
  %7322 = vmatpush1.bf16.msra.mxu0 0
  %7323 = vmatprep.subr.bf16.mxu0 0
  %7324 = vmatpush1.bf16.msra.mxu0 0
  %7325 = vmatprep.subr.bf16.mxu0 0
  %7326 = vmatpush1.bf16.msra.mxu0 0
  %7327 = vmatprep.subr.bf16.mxu0 0
  %7328 = vmatpush1.bf16.msra.mxu0 0
  %7329 = vmatprep.mubr.bf16.mxu0 0
  %7330 = vmatmul.mubr.bf16.gmra.mrb[0].mxu0 %v7286
  %v7331 = vpop.f32.mrb[0].mxu0
  %v7332 = vadd.f32 0.0, %v7331
  %v7333 = vpop.f32.mrb[0].mxu0
  %v7334 = vadd.f32 0.0, %v7333
  %v7335 = vpop.f32.mrb[0].mxu0
  %v7336 = vadd.f32 0.0, %v7335
  %v7337 = vpop.f32.mrb[0].mxu0
  %v7338 = vadd.f32 0.0, %v7337
  %7339 = vdwg.mxu0
  %7340 = vmatprep.subr.bf16.mxu0 0
  %7341 = vmatpush1.bf16.msra.mxu0 %v7295
  %7342 = vmatprep.subr.bf16.mxu0 0
  %7343 = vmatpush1.bf16.msra.mxu0 0
  %7344 = vmatprep.subr.bf16.mxu0 0
  %7345 = vmatpush1.bf16.msra.mxu0 0
  %7346 = vmatprep.subr.bf16.mxu0 0
  %7347 = vmatpush1.bf16.msra.mxu0 0
  %7348 = vmatprep.subr.bf16.mxu0 0
  %7349 = vmatpush1.bf16.msra.mxu0 0
  %7350 = vmatprep.subr.bf16.mxu0 0
  %7351 = vmatpush1.bf16.msra.mxu0 0
  %7352 = vmatprep.subr.bf16.mxu0 0
  %7353 = vmatpush1.bf16.msra.mxu0 0
  %7354 = vmatprep.subr.bf16.mxu0 0
  %7355 = vmatpush1.bf16.msra.mxu0 0
  %7356 = vmatprep.subr.bf16.mxu0 0
  %7357 = vmatpush1.bf16.msra.mxu0 0
  %7358 = vmatprep.subr.bf16.mxu0 0
  %7359 = vmatpush1.bf16.msra.mxu0 0
  %7360 = vmatprep.subr.bf16.mxu0 0
  %7361 = vmatpush1.bf16.msra.mxu0 0
  %7362 = vmatprep.subr.bf16.mxu0 0
  %7363 = vmatpush1.bf16.msra.mxu0 0
  %7364 = vmatprep.subr.bf16.mxu0 0
  %7365 = vmatpush1.bf16.msra.mxu0 0
  %7366 = vmatprep.subr.bf16.mxu0 0
  %7367 = vmatpush1.bf16.msra.mxu0 0
  %7368 = vmatprep.subr.bf16.mxu0 0
  %7369 = vmatpush1.bf16.msra.mxu0 0
  %7370 = vmatprep.subr.bf16.mxu0 0
  %7371 = vmatpush1.bf16.msra.mxu0 0
  %7372 = vmatprep.mubr.bf16.mxu0 0
  %7373 = vmatmul.mubr.bf16.gmra.mrb[0].mxu0 %v7286
  %v7374 = vpop.f32.mrb[0].mxu0
  %v7375 = vadd.f32 0.0, %v7374
  %v7376 = vpop.f32.mrb[0].mxu0
  %v7377 = vpop.f32.mrb[0].mxu0
  %v7378 = vadd.f32 0.0, %v7377
  %v7379 = vpop.f32.mrb[0].mxu0
  %7380 = vdwg.mxu0
  %v7383 = vunpack.c.l.b16 %v7275
  %v7384 = vunpack.c.l.b16 %v7276
  %v7385 = vpack.c.b16 %v7384, %v7383
  %v7387 = vsel %vm3605, %v7385, 0
  %v7390 = vsel %vm3593, %v7260, 0
  %v7393 = vsel %vm3593, %v7261, 0
  %v7396 = vsel %vm3593, %v7262, 0
  %7398 = vmatprep.subr.bf16.mxu0 %v7393
  %7399 = vmatpush1.bf16.msra.mxu0 %v7390
  %7400 = vmatprep.subr.bf16.mxu0 0
  %7401 = vmatpush1.bf16.msra.mxu0 0
  %7402 = vmatprep.subr.bf16.mxu0 0
  %7403 = vmatpush1.bf16.msra.mxu0 0
  %7404 = vmatprep.subr.bf16.mxu0 0
  %7405 = vmatpush1.bf16.msra.mxu0 0
  %7406 = vmatprep.subr.bf16.mxu0 0
  %7407 = vmatpush1.bf16.msra.mxu0 0
  %7408 = vmatprep.subr.bf16.mxu0 0
  %7409 = vmatpush1.bf16.msra.mxu0 0
  %7410 = vmatprep.subr.bf16.mxu0 0
  %7411 = vmatpush1.bf16.msra.mxu0 0
  %7412 = vmatprep.subr.bf16.mxu0 0
  %7413 = vmatpush1.bf16.msra.mxu0 0
  %7414 = vmatprep.subr.bf16.mxu0 0
  %7415 = vmatpush1.bf16.msra.mxu0 0
  %7416 = vmatprep.subr.bf16.mxu0 0
  %7417 = vmatpush1.bf16.msra.mxu0 0
  %7418 = vmatprep.subr.bf16.mxu0 0
  %7419 = vmatpush1.bf16.msra.mxu0 0
  %7420 = vmatprep.subr.bf16.mxu0 0
  %7421 = vmatpush1.bf16.msra.mxu0 0
  %7422 = vmatprep.subr.bf16.mxu0 0
  %7423 = vmatpush1.bf16.msra.mxu0 0
  %7424 = vmatprep.subr.bf16.mxu0 0
  %7425 = vmatpush1.bf16.msra.mxu0 0
  %7426 = vmatprep.subr.bf16.mxu0 0
  %7427 = vmatpush1.bf16.msra.mxu0 0
  %7428 = vmatprep.subr.bf16.mxu0 0
  %7429 = vmatpush1.bf16.msra.mxu0 0
  %7430 = vmatprep.mubr.bf16.mxu0 0
  %7431 = vmatmul.mubr.bf16.gmra.mrb[0].mxu0 %v7387
  %v7432 = vpop.f32.mrb[0].mxu0
  %v7433 = vadd.f32 %v7332, %v7432
  %v7434 = vpop.f32.mrb[0].mxu0
  %v7435 = vadd.f32 %v7334, %v7434
  %v7436 = vpop.f32.mrb[0].mxu0
  %v7437 = vadd.f32 %v7336, %v7436
  %v7438 = vpop.f32.mrb[0].mxu0
  %v7439 = vadd.f32 %v7338, %v7438
  %7440 = vdwg.mxu0
  %7441 = vmatprep.subr.bf16.mxu0 0
  %7442 = vmatpush1.bf16.msra.mxu0 %v7396
  %7443 = vmatprep.subr.bf16.mxu0 0
  %7444 = vmatpush1.bf16.msra.mxu0 0
  %7445 = vmatprep.subr.bf16.mxu0 0
  %7446 = vmatpush1.bf16.msra.mxu0 0
  %7447 = vmatprep.subr.bf16.mxu0 0
  %7448 = vmatpush1.bf16.msra.mxu0 0
  %7449 = vmatprep.subr.bf16.mxu0 0
  %7450 = vmatpush1.bf16.msra.mxu0 0
  %7451 = vmatprep.subr.bf16.mxu0 0
  %7452 = vmatpush1.bf16.msra.mxu0 0
  %7453 = vmatprep.subr.bf16.mxu0 0
  %7454 = vmatpush1.bf16.msra.mxu0 0
  %7455 = vmatprep.subr.bf16.mxu0 0
  %7456 = vmatpush1.bf16.msra.mxu0 0
  %7457 = vmatprep.subr.bf16.mxu0 0
  %7458 = vmatpush1.bf16.msra.mxu0 0
  %7459 = vmatprep.subr.bf16.mxu0 0
  %7460 = vmatpush1.bf16.msra.mxu0 0
  %7461 = vmatprep.subr.bf16.mxu0 0
  %7462 = vmatpush1.bf16.msra.mxu0 0
  %7463 = vmatprep.subr.bf16.mxu0 0
  %7464 = vmatpush1.bf16.msra.mxu0 0
  %7465 = vmatprep.subr.bf16.mxu0 0
  %7466 = vmatpush1.bf16.msra.mxu0 0
  %7467 = vmatprep.subr.bf16.mxu0 0
  %7468 = vmatpush1.bf16.msra.mxu0 0
  %7469 = vmatprep.subr.bf16.mxu0 0
  %7470 = vmatpush1.bf16.msra.mxu0 0
  %7471 = vmatprep.subr.bf16.mxu0 0
  %7472 = vmatpush1.bf16.msra.mxu0 0
  %7473 = vmatprep.mubr.bf16.mxu0 0
  %7474 = vmatmul.mubr.bf16.gmra.mrb[0].mxu0 %v7387
  %v7475 = vpop.f32.mrb[0].mxu0
  %v7476 = vadd.f32 %v7375, %v7475
  %v7477 = vpop.f32.mrb[0].mxu0
  %v7478 = vpop.f32.mrb[0].mxu0
  %v7479 = vadd.f32 %v7378, %v7478
  %v7480 = vpop.f32.mrb[0].mxu0
  %7481 = vdwg.mxu0
  %v7482 = vpack.c.bf16 %v7437, %v7433
  %v7483 = vpack.c.bf16 %v7439, %v7435
  %v7484 = vpack.c.bf16 %v7479, %v7476
  %s7485 = scalar_lea.vmem %s14, 16
  %v7486 = vld [vmem:[%s7485] sm:$0xf]
  %v7487 = vld [vmem:[%s7485 + $0x4] sm:$0xf]
  %s7488 = scalar_lea.vmem %s14, 24
  %v7489 = vld [vmem:[%s7488] sm:$0xf]
  %v7490 = vld [vmem:[%s7488 + $0x4] sm:$0xf]
  %v7493 = vunpack.c.l.b16 %v7489
  %v7494 = vunpack.c.l.b16 %v7490
  %v7495 = vpack.c.b16 %v7494, %v7493
  %v7497 = vsel %vm3605, %v7495, 0
  %7499 = vmatprep.subr.bf16.mxu0 %v7292
  %7500 = vmatpush1.bf16.msra.mxu0 %v7289
  %7501 = vmatprep.subr.bf16.mxu0 0
  %7502 = vmatpush1.bf16.msra.mxu0 0
  %7503 = vmatprep.subr.bf16.mxu0 0
  %7504 = vmatpush1.bf16.msra.mxu0 0
  %7505 = vmatprep.subr.bf16.mxu0 0
  %7506 = vmatpush1.bf16.msra.mxu0 0
  %7507 = vmatprep.subr.bf16.mxu0 0
  %7508 = vmatpush1.bf16.msra.mxu0 0
  %7509 = vmatprep.subr.bf16.mxu0 0
  %7510 = vmatpush1.bf16.msra.mxu0 0
  %7511 = vmatprep.subr.bf16.mxu0 0
  %7512 = vmatpush1.bf16.msra.mxu0 0
  %7513 = vmatprep.subr.bf16.mxu0 0
  %7514 = vmatpush1.bf16.msra.mxu0 0
  %7515 = vmatprep.subr.bf16.mxu0 0
  %7516 = vmatpush1.bf16.msra.mxu0 0
  %7517 = vmatprep.subr.bf16.mxu0 0
  %7518 = vmatpush1.bf16.msra.mxu0 0
  %7519 = vmatprep.subr.bf16.mxu0 0
  %7520 = vmatpush1.bf16.msra.mxu0 0
  %7521 = vmatprep.subr.bf16.mxu0 0
  %7522 = vmatpush1.bf16.msra.mxu0 0
  %7523 = vmatprep.subr.bf16.mxu0 0
  %7524 = vmatpush1.bf16.msra.mxu0 0
  %7525 = vmatprep.subr.bf16.mxu0 0
  %7526 = vmatpush1.bf16.msra.mxu0 0
  %7527 = vmatprep.subr.bf16.mxu0 0
  %7528 = vmatpush1.bf16.msra.mxu0 0
  %7529 = vmatprep.subr.bf16.mxu0 0
  %7530 = vmatpush1.bf16.msra.mxu0 0
  %7531 = vmatprep.mubr.bf16.mxu0 0
  %7532 = vmatmul.mubr.bf16.gmra.mrb[0].mxu0 %v7497
  %v7533 = vpop.f32.mrb[0].mxu0
  %v7534 = vadd.f32 0.0, %v7533
  %v7535 = vpop.f32.mrb[0].mxu0
  %v7536 = vadd.f32 0.0, %v7535
  %v7537 = vpop.f32.mrb[0].mxu0
  %v7538 = vadd.f32 0.0, %v7537
  %v7539 = vpop.f32.mrb[0].mxu0
  %v7540 = vadd.f32 0.0, %v7539
  %7541 = vdwg.mxu0
  %7542 = vmatprep.subr.bf16.mxu0 0
  %7543 = vmatpush1.bf16.msra.mxu0 %v7295
  %7544 = vmatprep.subr.bf16.mxu0 0
  %7545 = vmatpush1.bf16.msra.mxu0 0
  %7546 = vmatprep.subr.bf16.mxu0 0
  %7547 = vmatpush1.bf16.msra.mxu0 0
  %7548 = vmatprep.subr.bf16.mxu0 0
  %7549 = vmatpush1.bf16.msra.mxu0 0
  %7550 = vmatprep.subr.bf16.mxu0 0
  %7551 = vmatpush1.bf16.msra.mxu0 0
  %7552 = vmatprep.subr.bf16.mxu0 0
  %7553 = vmatpush1.bf16.msra.mxu0 0
  %7554 = vmatprep.subr.bf16.mxu0 0
  %7555 = vmatpush1.bf16.msra.mxu0 0
  %7556 = vmatprep.subr.bf16.mxu0 0
  %7557 = vmatpush1.bf16.msra.mxu0 0
  %7558 = vmatprep.subr.bf16.mxu0 0
  %7559 = vmatpush1.bf16.msra.mxu0 0
  %7560 = vmatprep.subr.bf16.mxu0 0
  %7561 = vmatpush1.bf16.msra.mxu0 0
  %7562 = vmatprep.subr.bf16.mxu0 0
  %7563 = vmatpush1.bf16.msra.mxu0 0
  %7564 = vmatprep.subr.bf16.mxu0 0
  %7565 = vmatpush1.bf16.msra.mxu0 0
  %7566 = vmatprep.subr.bf16.mxu0 0
  %7567 = vmatpush1.bf16.msra.mxu0 0
  %7568 = vmatprep.subr.bf16.mxu0 0
  %7569 = vmatpush1.bf16.msra.mxu0 0
  %7570 = vmatprep.subr.bf16.mxu0 0
  %7571 = vmatpush1.bf16.msra.mxu0 0
  %7572 = vmatprep.subr.bf16.mxu0 0
  %7573 = vmatpush1.bf16.msra.mxu0 0
  %7574 = vmatprep.mubr.bf16.mxu0 0
  %7575 = vmatmul.mubr.bf16.gmra.mrb[0].mxu0 %v7497
  %v7576 = vpop.f32.mrb[0].mxu0
  %v7577 = vadd.f32 0.0, %v7576
  %v7578 = vpop.f32.mrb[0].mxu0
  %v7579 = vpop.f32.mrb[0].mxu0
  %v7580 = vadd.f32 0.0, %v7579
  %v7581 = vpop.f32.mrb[0].mxu0
  %7582 = vdwg.mxu0
  %v7585 = vunpack.c.l.b16 %v7486
  %v7586 = vunpack.c.l.b16 %v7487
  %v7587 = vpack.c.b16 %v7586, %v7585
  %v7589 = vsel %vm3605, %v7587, 0
  %7591 = vmatprep.subr.bf16.mxu0 %v7393
  %7592 = vmatpush1.bf16.msra.mxu0 %v7390
  %7593 = vmatprep.subr.bf16.mxu0 0
  %7594 = vmatpush1.bf16.msra.mxu0 0
  %7595 = vmatprep.subr.bf16.mxu0 0
  %7596 = vmatpush1.bf16.msra.mxu0 0
  %7597 = vmatprep.subr.bf16.mxu0 0
  %7598 = vmatpush1.bf16.msra.mxu0 0
  %7599 = vmatprep.subr.bf16.mxu0 0
  %7600 = vmatpush1.bf16.msra.mxu0 0
  %7601 = vmatprep.subr.bf16.mxu0 0
  %7602 = vmatpush1.bf16.msra.mxu0 0
  %7603 = vmatprep.subr.bf16.mxu0 0
  %7604 = vmatpush1.bf16.msra.mxu0 0
  %7605 = vmatprep.subr.bf16.mxu0 0
  %7606 = vmatpush1.bf16.msra.mxu0 0
  %7607 = vmatprep.subr.bf16.mxu0 0
  %7608 = vmatpush1.bf16.msra.mxu0 0
  %7609 = vmatprep.subr.bf16.mxu0 0
  %7610 = vmatpush1.bf16.msra.mxu0 0
  %7611 = vmatprep.subr.bf16.mxu0 0
  %7612 = vmatpush1.bf16.msra.mxu0 0
  %7613 = vmatprep.subr.bf16.mxu0 0
  %7614 = vmatpush1.bf16.msra.mxu0 0
  %7615 = vmatprep.subr.bf16.mxu0 0
  %7616 = vmatpush1.bf16.msra.mxu0 0
  %7617 = vmatprep.subr.bf16.mxu0 0
  %7618 = vmatpush1.bf16.msra.mxu0 0
  %7619 = vmatprep.subr.bf16.mxu0 0
  %7620 = vmatpush1.bf16.msra.mxu0 0
  %7621 = vmatprep.subr.bf16.mxu0 0
  %7622 = vmatpush1.bf16.msra.mxu0 0
  %7623 = vmatprep.mubr.bf16.mxu0 0
  %7624 = vmatmul.mubr.bf16.gmra.mrb[0].mxu0 %v7589
  %v7625 = vpop.f32.mrb[0].mxu0
  %v7626 = vadd.f32 %v7534, %v7625
  %v7627 = vpop.f32.mrb[0].mxu0
  %v7628 = vadd.f32 %v7536, %v7627
  %v7629 = vpop.f32.mrb[0].mxu0
  %v7630 = vadd.f32 %v7538, %v7629
  %v7631 = vpop.f32.mrb[0].mxu0
  %v7632 = vadd.f32 %v7540, %v7631
  %7633 = vdwg.mxu0
  %7634 = vmatprep.subr.bf16.mxu0 0
  %7635 = vmatpush1.bf16.msra.mxu0 %v7396
  %7636 = vmatprep.subr.bf16.mxu0 0
  %7637 = vmatpush1.bf16.msra.mxu0 0
  %7638 = vmatprep.subr.bf16.mxu0 0
  %7639 = vmatpush1.bf16.msra.mxu0 0
  %7640 = vmatprep.subr.bf16.mxu0 0
  %7641 = vmatpush1.bf16.msra.mxu0 0
  %7642 = vmatprep.subr.bf16.mxu0 0
  %7643 = vmatpush1.bf16.msra.mxu0 0
  %7644 = vmatprep.subr.bf16.mxu0 0
  %7645 = vmatpush1.bf16.msra.mxu0 0
  %7646 = vmatprep.subr.bf16.mxu0 0
  %7647 = vmatpush1.bf16.msra.mxu0 0
  %7648 = vmatprep.subr.bf16.mxu0 0
  %7649 = vmatpush1.bf16.msra.mxu0 0
  %7650 = vmatprep.subr.bf16.mxu0 0
  %7651 = vmatpush1.bf16.msra.mxu0 0
  %7652 = vmatprep.subr.bf16.mxu0 0
  %7653 = vmatpush1.bf16.msra.mxu0 0
  %7654 = vmatprep.subr.bf16.mxu0 0
  %7655 = vmatpush1.bf16.msra.mxu0 0
  %7656 = vmatprep.subr.bf16.mxu0 0
  %7657 = vmatpush1.bf16.msra.mxu0 0
  %7658 = vmatprep.subr.bf16.mxu0 0
  %7659 = vmatpush1.bf16.msra.mxu0 0
  %7660 = vmatprep.subr.bf16.mxu0 0
  %7661 = vmatpush1.bf16.msra.mxu0 0
  %7662 = vmatprep.subr.bf16.mxu0 0
  %7663 = vmatpush1.bf16.msra.mxu0 0
  %7664 = vmatprep.subr.bf16.mxu0 0
  %7665 = vmatpush1.bf16.msra.mxu0 0
  %7666 = vmatprep.mubr.bf16.mxu0 0
  %7667 = vmatmul.mubr.bf16.gmra.mrb[0].mxu0 %v7589
  %v7668 = vpop.f32.mrb[0].mxu0
  %v7669 = vadd.f32 %v7577, %v7668
  %v7670 = vpop.f32.mrb[0].mxu0
  %v7671 = vpop.f32.mrb[0].mxu0
  %v7672 = vadd.f32 %v7580, %v7671
  %v7673 = vpop.f32.mrb[0].mxu0
  %7674 = vdwg.mxu0
  %v7675 = vpack.c.bf16 %v7630, %v7626
  %v7676 = vpack.c.bf16 %v7632, %v7628
  %v7677 = vpack.c.bf16 %v7672, %v7669
  %s7678 = scalar_lea.vmem %s14, 32
  %v7679 = vld [vmem:[%s7678] sm:$0xf]
  %v7680 = vld [vmem:[%s7678 + $0x4] sm:$0xf]
  %s7681 = scalar_lea.vmem %s14, 40
  %v7682 = vld [vmem:[%s7681] sm:$0xf]
  %v7683 = vld [vmem:[%s7681 + $0x4] sm:$0xf]
  %v7686 = vunpack.c.l.b16 %v7682
  %v7687 = vunpack.c.l.b16 %v7683
  %v7688 = vpack.c.b16 %v7687, %v7686
  %v7690 = vsel %vm3605, %v7688, 0
  %7692 = vmatprep.subr.bf16.mxu0 %v7292
  %7693 = vmatpush1.bf16.msra.mxu0 %v7289
  %7694 = vmatprep.subr.bf16.mxu0 0
  %7695 = vmatpush1.bf16.msra.mxu0 0
  %7696 = vmatprep.subr.bf16.mxu0 0
  %7697 = vmatpush1.bf16.msra.mxu0 0
  %7698 = vmatprep.subr.bf16.mxu0 0
  %7699 = vmatpush1.bf16.msra.mxu0 0
  %7700 = vmatprep.subr.bf16.mxu0 0
  %7701 = vmatpush1.bf16.msra.mxu0 0
  %7702 = vmatprep.subr.bf16.mxu0 0
  %7703 = vmatpush1.bf16.msra.mxu0 0
  %7704 = vmatprep.subr.bf16.mxu0 0
  %7705 = vmatpush1.bf16.msra.mxu0 0
  %7706 = vmatprep.subr.bf16.mxu0 0
  %7707 = vmatpush1.bf16.msra.mxu0 0
  %7708 = vmatprep.subr.bf16.mxu0 0
  %7709 = vmatpush1.bf16.msra.mxu0 0
  %7710 = vmatprep.subr.bf16.mxu0 0
  %7711 = vmatpush1.bf16.msra.mxu0 0
  %7712 = vmatprep.subr.bf16.mxu0 0
  %7713 = vmatpush1.bf16.msra.mxu0 0
  %7714 = vmatprep.subr.bf16.mxu0 0
  %7715 = vmatpush1.bf16.msra.mxu0 0
  %7716 = vmatprep.subr.bf16.mxu0 0
  %7717 = vmatpush1.bf16.msra.mxu0 0
  %7718 = vmatprep.subr.bf16.mxu0 0
  %7719 = vmatpush1.bf16.msra.mxu0 0
  %7720 = vmatprep.subr.bf16.mxu0 0
  %7721 = vmatpush1.bf16.msra.mxu0 0
  %7722 = vmatprep.subr.bf16.mxu0 0
  %7723 = vmatpush1.bf16.msra.mxu0 0
  %7724 = vmatprep.mubr.bf16.mxu0 0
  %7725 = vmatmul.mubr.bf16.gmra.mrb[0].mxu0 %v7690
  %v7726 = vpop.f32.mrb[0].mxu0
  %v7727 = vadd.f32 0.0, %v7726
  %v7728 = vpop.f32.mrb[0].mxu0
  %v7729 = vadd.f32 0.0, %v7728
  %v7730 = vpop.f32.mrb[0].mxu0
  %v7731 = vadd.f32 0.0, %v7730
  %v7732 = vpop.f32.mrb[0].mxu0
  %v7733 = vadd.f32 0.0, %v7732
  %7734 = vdwg.mxu0
  %7735 = vmatprep.subr.bf16.mxu0 0
  %7736 = vmatpush1.bf16.msra.mxu0 %v7295
  %7737 = vmatprep.subr.bf16.mxu0 0
  %7738 = vmatpush1.bf16.msra.mxu0 0
  %7739 = vmatprep.subr.bf16.mxu0 0
  %7740 = vmatpush1.bf16.msra.mxu0 0
  %7741 = vmatprep.subr.bf16.mxu0 0
  %7742 = vmatpush1.bf16.msra.mxu0 0
  %7743 = vmatprep.subr.bf16.mxu0 0
  %7744 = vmatpush1.bf16.msra.mxu0 0
  %7745 = vmatprep.subr.bf16.mxu0 0
  %7746 = vmatpush1.bf16.msra.mxu0 0
  %7747 = vmatprep.subr.bf16.mxu0 0
  %7748 = vmatpush1.bf16.msra.mxu0 0
  %7749 = vmatprep.subr.bf16.mxu0 0
  %7750 = vmatpush1.bf16.msra.mxu0 0
  %7751 = vmatprep.subr.bf16.mxu0 0
  %7752 = vmatpush1.bf16.msra.mxu0 0
  %7753 = vmatprep.subr.bf16.mxu0 0
  %7754 = vmatpush1.bf16.msra.mxu0 0
  %7755 = vmatprep.subr.bf16.mxu0 0
  %7756 = vmatpush1.bf16.msra.mxu0 0
  %7757 = vmatprep.subr.bf16.mxu0 0
  %7758 = vmatpush1.bf16.msra.mxu0 0
  %7759 = vmatprep.subr.bf16.mxu0 0
  %7760 = vmatpush1.bf16.msra.mxu0 0
  %7761 = vmatprep.subr.bf16.mxu0 0
  %7762 = vmatpush1.bf16.msra.mxu0 0
  %7763 = vmatprep.subr.bf16.mxu0 0
  %7764 = vmatpush1.bf16.msra.mxu0 0
  %7765 = vmatprep.subr.bf16.mxu0 0
  %7766 = vmatpush1.bf16.msra.mxu0 0
  %7767 = vmatprep.mubr.bf16.mxu0 0
  %7768 = vmatmul.mubr.bf16.gmra.mrb[0].mxu0 %v7690
  %v7769 = vpop.f32.mrb[0].mxu0
  %v7770 = vadd.f32 0.0, %v7769
  %v7771 = vpop.f32.mrb[0].mxu0
  %v7772 = vpop.f32.mrb[0].mxu0
  %v7773 = vadd.f32 0.0, %v7772
  %v7774 = vpop.f32.mrb[0].mxu0
  %7775 = vdwg.mxu0
  %v7778 = vunpack.c.l.b16 %v7679
  %v7779 = vunpack.c.l.b16 %v7680
  %v7780 = vpack.c.b16 %v7779, %v7778
  %v7782 = vsel %vm3605, %v7780, 0
  %7784 = vmatprep.subr.bf16.mxu0 %v7393
  %7785 = vmatpush1.bf16.msra.mxu0 %v7390
  %7786 = vmatprep.subr.bf16.mxu0 0
  %7787 = vmatpush1.bf16.msra.mxu0 0
  %7788 = vmatprep.subr.bf16.mxu0 0
  %7789 = vmatpush1.bf16.msra.mxu0 0
  %7790 = vmatprep.subr.bf16.mxu0 0
  %7791 = vmatpush1.bf16.msra.mxu0 0
  %7792 = vmatprep.subr.bf16.mxu0 0
  %7793 = vmatpush1.bf16.msra.mxu0 0
  %7794 = vmatprep.subr.bf16.mxu0 0
  %7795 = vmatpush1.bf16.msra.mxu0 0
  %7796 = vmatprep.subr.bf16.mxu0 0
  %7797 = vmatpush1.bf16.msra.mxu0 0
  %7798 = vmatprep.subr.bf16.mxu0 0
  %7799 = vmatpush1.bf16.msra.mxu0 0
  %7800 = vmatprep.subr.bf16.mxu0 0
  %7801 = vmatpush1.bf16.msra.mxu0 0
  %7802 = vmatprep.subr.bf16.mxu0 0
  %7803 = vmatpush1.bf16.msra.mxu0 0
  %7804 = vmatprep.subr.bf16.mxu0 0
  %7805 = vmatpush1.bf16.msra.mxu0 0
  %7806 = vmatprep.subr.bf16.mxu0 0
  %7807 = vmatpush1.bf16.msra.mxu0 0
  %7808 = vmatprep.subr.bf16.mxu0 0
  %7809 = vmatpush1.bf16.msra.mxu0 0
  %7810 = vmatprep.subr.bf16.mxu0 0
  %7811 = vmatpush1.bf16.msra.mxu0 0
  %7812 = vmatprep.subr.bf16.mxu0 0
  %7813 = vmatpush1.bf16.msra.mxu0 0
  %7814 = vmatprep.subr.bf16.mxu0 0
  %7815 = vmatpush1.bf16.msra.mxu0 0
  %7816 = vmatprep.mubr.bf16.mxu0 0
  %7817 = vmatmul.mubr.bf16.gmra.mrb[0].mxu0 %v7782
  %v7818 = vpop.f32.mrb[0].mxu0
  %v7819 = vadd.f32 %v7727, %v7818
  %v7820 = vpop.f32.mrb[0].mxu0
  %v7821 = vadd.f32 %v7729, %v7820
  %v7822 = vpop.f32.mrb[0].mxu0
  %v7823 = vadd.f32 %v7731, %v7822
  %v7824 = vpop.f32.mrb[0].mxu0
  %v7825 = vadd.f32 %v7733, %v7824
  %7826 = vdwg.mxu0
  %7827 = vmatprep.subr.bf16.mxu0 0
  %7828 = vmatpush1.bf16.msra.mxu0 %v7396
  %7829 = vmatprep.subr.bf16.mxu0 0
  %7830 = vmatpush1.bf16.msra.mxu0 0
  %7831 = vmatprep.subr.bf16.mxu0 0
  %7832 = vmatpush1.bf16.msra.mxu0 0
  %7833 = vmatprep.subr.bf16.mxu0 0
  %7834 = vmatpush1.bf16.msra.mxu0 0
  %7835 = vmatprep.subr.bf16.mxu0 0
  %7836 = vmatpush1.bf16.msra.mxu0 0
  %7837 = vmatprep.subr.bf16.mxu0 0
  %7838 = vmatpush1.bf16.msra.mxu0 0
  %7839 = vmatprep.subr.bf16.mxu0 0
  %7840 = vmatpush1.bf16.msra.mxu0 0
  %7841 = vmatprep.subr.bf16.mxu0 0
  %7842 = vmatpush1.bf16.msra.mxu0 0
  %7843 = vmatprep.subr.bf16.mxu0 0
  %7844 = vmatpush1.bf16.msra.mxu0 0
  %7845 = vmatprep.subr.bf16.mxu0 0
  %7846 = vmatpush1.bf16.msra.mxu0 0
  %7847 = vmatprep.subr.bf16.mxu0 0
  %7848 = vmatpush1.bf16.msra.mxu0 0
  %7849 = vmatprep.subr.bf16.mxu0 0
  %7850 = vmatpush1.bf16.msra.mxu0 0
  %7851 = vmatprep.subr.bf16.mxu0 0
  %7852 = vmatpush1.bf16.msra.mxu0 0
  %7853 = vmatprep.subr.bf16.mxu0 0
  %7854 = vmatpush1.bf16.msra.mxu0 0
  %7855 = vmatprep.subr.bf16.mxu0 0
  %7856 = vmatpush1.bf16.msra.mxu0 0
  %7857 = vmatprep.subr.bf16.mxu0 0
  %7858 = vmatpush1.bf16.msra.mxu0 0
  %7859 = vmatprep.mubr.bf16.mxu0 0
  %7860 = vmatmul.mubr.bf16.gmra.mrb[0].mxu0 %v7782
  %v7861 = vpop.f32.mrb[0].mxu0
  %v7862 = vadd.f32 %v7770, %v7861
  %v7863 = vpop.f32.mrb[0].mxu0
  %v7864 = vpop.f32.mrb[0].mxu0
  %v7865 = vadd.f32 %v7773, %v7864
  %v7866 = vpop.f32.mrb[0].mxu0
  %7867 = vdwg.mxu0
  %v7868 = vpack.c.bf16 %v7823, %v7819
  %v7869 = vpack.c.bf16 %v7825, %v7821
  %v7870 = vpack.c.bf16 %v7865, %v7862
  %v7871 = vld [vmem:[%s15] sm:$0xff]
  %v7872 = vld [vmem:[%s15 + $0x8] sm:$0xf]
  %v7873 = vld [vmem:[%s15 + $0xc] sm:$0xff]
  %v7874 = vld [vmem:[%s15 + $0x14] sm:$0xf]
  %v7875 = vld [vmem:[%s15 + $0x18] sm:$0xff]
  %v7876 = vld [vmem:[%s15 + $0x20] sm:$0xf]
  %v7877 = vld [vmem:[%s15 + $0x24] sm:$0xff]
  %v7878 = vld [vmem:[%s15 + $0x2c] sm:$0xf]
  %v7879 = vld [vmem:[%s15 + $0x30] sm:$0xff]
  %v7880 = vld [vmem:[%s15 + $0x38] sm:$0xf]
  %v7881 = vld [vmem:[%s15 + $0x3c] sm:$0xff]
  %v7882 = vld [vmem:[%s15 + $0x44] sm:$0xf]
  %v7883 = vld [vmem:[%s15 + $0x48] sm:$0xff]
  %v7884 = vld [vmem:[%s15 + $0x50] sm:$0xf]
  %v7885 = vld [vmem:[%s15 + $0x54] sm:$0xff]
  %v7886 = vld [vmem:[%s15 + $0x5c] sm:$0xf]
  %v7887 = vld [vmem:[%s15 + $0x60] sm:$0xff]
  %v7888 = vld [vmem:[%s15 + $0x68] sm:$0xf]
  %v7889 = vld [vmem:[%s15 + $0x6c] sm:$0xff]
  %v7890 = vld [vmem:[%s15 + $0x74] sm:$0xf]
  %v7891 = vld [vmem:[%s15 + $0x78] sm:$0xff]
  %v7892 = vld [vmem:[%s15 + $0x80] sm:$0xf]
  %v7893 = vld [vmem:[%s15 + $0x84] sm:$0xff]
  %v7894 = vld [vmem:[%s15 + $0x8c] sm:$0xf]
  %v7895 = vld [vmem:[%s15 + $0x90] sm:$0xff]
  %v7896 = vld [vmem:[%s15 + $0x98] sm:$0xf]
  %v7897 = vld [vmem:[%s15 + $0x9c] sm:$0xff]
  %v7898 = vld [vmem:[%s15 + $0xa4] sm:$0xf]
  %v7899 = vld [vmem:[%s15 + $0xa8] sm:$0xff]
  %v7900 = vld [vmem:[%s15 + $0xb0] sm:$0xf]
  %v7901 = vld [vmem:[%s15 + $0xb4] sm:$0xff]
  %v7902 = vld [vmem:[%s15 + $0xbc] sm:$0xf]
  %v7903 = vld [vmem:[%s15 + $0xc0] sm:$0xff]
  %v7904 = vld [vmem:[%s15 + $0xc8] sm:$0xf]
  %v7905 = vld [vmem:[%s15 + $0xcc] sm:$0xff]
  %v7906 = vld [vmem:[%s15 + $0xd4] sm:$0xf]
  %v7907 = vld [vmem:[%s15 + $0xd8] sm:$0xff]
  %v7908 = vld [vmem:[%s15 + $0xe0] sm:$0xf]
  %v7909 = vld [vmem:[%s15 + $0xe4] sm:$0xff]
  %v7910 = vld [vmem:[%s15 + $0xec] sm:$0xf]
  %v7911 = vld [vmem:[%s15 + $0xf0] sm:$0xff]
  %v7912 = vld [vmem:[%s15 + $0xf8] sm:$0xf]
  %v7913 = vld [vmem:[%s15 + $0xfc] sm:$0xff]
  %v7914 = vld [vmem:[%s15 + $0x104] sm:$0xf]
  %v7915 = vld [vmem:[%s15 + $0x108] sm:$0xff]
  %v7916 = vld [vmem:[%s15 + $0x110] sm:$0xf]
  %v7917 = vld [vmem:[%s15 + $0x114] sm:$0xff]
  %v7918 = vld [vmem:[%s15 + $0x11c] sm:$0xf]
  %v7919 = vld [vmem:[%s15 + $0x120] sm:$0xff]
  %v7920 = vld [vmem:[%s15 + $0x128] sm:$0xf]
  %v7921 = vld [vmem:[%s15 + $0x12c] sm:$0xff]
  %v7922 = vld [vmem:[%s15 + $0x134] sm:$0xf]
  %v7923 = vld [vmem:[%s15 + $0x138] sm:$0xff]
  %v7924 = vld [vmem:[%s15 + $0x140] sm:$0xf]
  %v7925 = vld [vmem:[%s15 + $0x144] sm:$0xff]
  %v7926 = vld [vmem:[%s15 + $0x14c] sm:$0xf]
  %v7927 = vld [vmem:[%s15 + $0x150] sm:$0xff]
  %v7928 = vld [vmem:[%s15 + $0x158] sm:$0xf]
  %v7929 = vld [vmem:[%s15 + $0x15c] sm:$0xff]
  %v7930 = vld [vmem:[%s15 + $0x164] sm:$0xf]
  %v7931 = vld [vmem:[%s15 + $0x168] sm:$0xff]
  %v7932 = vld [vmem:[%s15 + $0x170] sm:$0xf]
  %v7933 = vld [vmem:[%s15 + $0x174] sm:$0xff]
  %v7934 = vld [vmem:[%s15 + $0x17c] sm:$0xf]
  %v7935 = vld [vmem:[%s15 + $0x180] sm:$0xff]
  %v7936 = vld [vmem:[%s15 + $0x188] sm:$0xf]
  %v7937 = vld [vmem:[%s15 + $0x18c] sm:$0xff]
  %v7938 = vld [vmem:[%s15 + $0x194] sm:$0xf]
  %v7939 = vld [vmem:[%s15 + $0x198] sm:$0xff]
  %v7940 = vld [vmem:[%s15 + $0x1a0] sm:$0xf]
  %v7941 = vld [vmem:[%s15 + $0x1a4] sm:$0xff]
  %v7942 = vld [vmem:[%s15 + $0x1ac] sm:$0xf]
  %v7943 = vld [vmem:[%s15 + $0x1b0] sm:$0xff]
  %v7944 = vld [vmem:[%s15 + $0x1b8] sm:$0xf]
  %v7945 = vld [vmem:[%s15 + $0x1bc] sm:$0xff]
  %v7946 = vld [vmem:[%s15 + $0x1c4] sm:$0xf]
  %v7947 = vld [vmem:[%s15 + $0x1c8] sm:$0xff]
  %v7948 = vld [vmem:[%s15 + $0x1d0] sm:$0xf]
  %v7949 = vld [vmem:[%s15 + $0x1d4] sm:$0xff]
  %v7950 = vld [vmem:[%s15 + $0x1dc] sm:$0xf]
  %s7951 = scalar_lea.vmem %s15, 480
  %v7952 = vld [vmem:[%s7951] sm:$0xff]
  %v7953 = vld [vmem:[%s7951 + $0x8] sm:$0xf]
  %v7954 = vld [vmem:[%s7951 + $0xc] sm:$0xff]
  %v7955 = vld [vmem:[%s7951 + $0x14] sm:$0xf]
  %v7956 = vld [vmem:[%s7951 + $0x18] sm:$0xff]
  %v7957 = vld [vmem:[%s7951 + $0x20] sm:$0xf]
  %v7958 = vld [vmem:[%s7951 + $0x24] sm:$0xff]
  %v7959 = vld [vmem:[%s7951 + $0x2c] sm:$0xf]
  %v7960 = vld [vmem:[%s7951 + $0x30] sm:$0xff]
  %v7961 = vld [vmem:[%s7951 + $0x38] sm:$0xf]
  %v7962 = vld [vmem:[%s7951 + $0x3c] sm:$0xff]
  %v7963 = vld [vmem:[%s7951 + $0x44] sm:$0xf]
  %v7964 = vld [vmem:[%s7951 + $0x48] sm:$0xff]
  %v7965 = vld [vmem:[%s7951 + $0x50] sm:$0xf]
  %v7966 = vld [vmem:[%s7951 + $0x54] sm:$0xff]
  %v7967 = vld [vmem:[%s7951 + $0x5c] sm:$0xf]
  %v7968 = vld [vmem:[%s7951 + $0x60] sm:$0xff]
  %v7969 = vld [vmem:[%s7951 + $0x68] sm:$0xf]
  %v7970 = vld [vmem:[%s7951 + $0x6c] sm:$0xff]
  %v7971 = vld [vmem:[%s7951 + $0x74] sm:$0xf]
  %v7972 = vld [vmem:[%s7951 + $0x78] sm:$0xff]
  %v7973 = vld [vmem:[%s7951 + $0x80] sm:$0xf]
  %v7974 = vld [vmem:[%s7951 + $0x84] sm:$0xff]
  %v7975 = vld [vmem:[%s7951 + $0x8c] sm:$0xf]
  %v7976 = vld [vmem:[%s7951 + $0x90] sm:$0xff]
  %v7977 = vld [vmem:[%s7951 + $0x98] sm:$0xf]
  %v7978 = vld [vmem:[%s7951 + $0x9c] sm:$0xff]
  %v7979 = vld [vmem:[%s7951 + $0xa4] sm:$0xf]
  %v7980 = vld [vmem:[%s7951 + $0xa8] sm:$0xff]
  %v7981 = vld [vmem:[%s7951 + $0xb0] sm:$0xf]
  %v7982 = vld [vmem:[%s7951 + $0xb4] sm:$0xff]
  %v7983 = vld [vmem:[%s7951 + $0xbc] sm:$0xf]
  %v7984 = vld [vmem:[%s7951 + $0xc0] sm:$0xff]
  %v7985 = vld [vmem:[%s7951 + $0xc8] sm:$0xf]
  %v7986 = vld [vmem:[%s7951 + $0xcc] sm:$0xff]
  %v7987 = vld [vmem:[%s7951 + $0xd4] sm:$0xf]
  %v7988 = vld [vmem:[%s7951 + $0xd8] sm:$0xff]
  %v7989 = vld [vmem:[%s7951 + $0xe0] sm:$0xf]
  %v7990 = vld [vmem:[%s7951 + $0xe4] sm:$0xff]
  %v7991 = vld [vmem:[%s7951 + $0xec] sm:$0xf]
  %v7992 = vld [vmem:[%s7951 + $0xf0] sm:$0xff]
  %v7993 = vld [vmem:[%s7951 + $0xf8] sm:$0xf]
  %v7994 = vld [vmem:[%s7951 + $0xfc] sm:$0xff]
  %v7995 = vld [vmem:[%s7951 + $0x104] sm:$0xf]
  %v7996 = vld [vmem:[%s7951 + $0x108] sm:$0xff]
  %v7997 = vld [vmem:[%s7951 + $0x110] sm:$0xf]
  %v7998 = vld [vmem:[%s7951 + $0x114] sm:$0xff]
  %v7999 = vld [vmem:[%s7951 + $0x11c] sm:$0xf]
  %v8000 = vld [vmem:[%s7951 + $0x120] sm:$0xff]
  %v8001 = vld [vmem:[%s7951 + $0x128] sm:$0xf]
  %v8002 = vld [vmem:[%s7951 + $0x12c] sm:$0xff]
  %v8003 = vld [vmem:[%s7951 + $0x134] sm:$0xf]
  %v8004 = vld [vmem:[%s7951 + $0x138] sm:$0xff]
  %v8005 = vld [vmem:[%s7951 + $0x140] sm:$0xf]
  %v8006 = vld [vmem:[%s7951 + $0x144] sm:$0xff]
  %v8007 = vld [vmem:[%s7951 + $0x14c] sm:$0xf]
  %v8008 = vld [vmem:[%s7951 + $0x150] sm:$0xff]
  %v8009 = vld [vmem:[%s7951 + $0x158] sm:$0xf]
  %v8010 = vld [vmem:[%s7951 + $0x15c] sm:$0xff]
  %v8011 = vld [vmem:[%s7951 + $0x164] sm:$0xf]
  %v8012 = vld [vmem:[%s7951 + $0x168] sm:$0xff]
  %v8013 = vld [vmem:[%s7951 + $0x170] sm:$0xf]
  %v8014 = vld [vmem:[%s7951 + $0x174] sm:$0xff]
  %v8015 = vld [vmem:[%s7951 + $0x17c] sm:$0xf]
  %v8016 = vld [vmem:[%s7951 + $0x180] sm:$0xff]
  %v8017 = vld [vmem:[%s7951 + $0x188] sm:$0xf]
  %v8018 = vld [vmem:[%s7951 + $0x18c] sm:$0xff]
  %v8019 = vld [vmem:[%s7951 + $0x194] sm:$0xf]
  %v8020 = vld [vmem:[%s7951 + $0x198] sm:$0xff]
  %v8021 = vld [vmem:[%s7951 + $0x1a0] sm:$0xf]
  %v8022 = vld [vmem:[%s7951 + $0x1a4] sm:$0xff]
  %v8023 = vld [vmem:[%s7951 + $0x1ac] sm:$0xf]
  %v8024 = vld [vmem:[%s7951 + $0x1b0] sm:$0xff]
  %v8025 = vld [vmem:[%s7951 + $0x1b8] sm:$0xf]
  %v8026 = vld [vmem:[%s7951 + $0x1bc] sm:$0xff]
  %v8027 = vld [vmem:[%s7951 + $0x1c4] sm:$0xf]
  %v8028 = vld [vmem:[%s7951 + $0x1c8] sm:$0xff]
  %v8029 = vld [vmem:[%s7951 + $0x1d0] sm:$0xf]
  %v8030 = vld [vmem:[%s7951 + $0x1d4] sm:$0xff]
  %v8031 = vld [vmem:[%s7951 + $0x1dc] sm:$0xf]
  %v8112 = vunpack.c.l.b16 %v7952
  %v8113 = vunpack.c.h.b16 %v7952
  %v8114 = vunpack.c.l.b16 %v7953
  %v8115 = vunpack.c.l.b16 %v7954
  %v8116 = vunpack.c.h.b16 %v7954
  %v8117 = vunpack.c.l.b16 %v7955
  %v8118 = vunpack.c.l.b16 %v7956
  %v8119 = vunpack.c.h.b16 %v7956
  %v8120 = vunpack.c.l.b16 %v7957
  %v8121 = vunpack.c.l.b16 %v7958
  %v8122 = vunpack.c.h.b16 %v7958
  %v8123 = vunpack.c.l.b16 %v7959
  %v8124 = vunpack.c.l.b16 %v7960
  %v8125 = vunpack.c.h.b16 %v7960
  %v8126 = vunpack.c.l.b16 %v7961
  %v8127 = vunpack.c.l.b16 %v7962
  %v8128 = vunpack.c.h.b16 %v7962
  %v8129 = vunpack.c.l.b16 %v7963
  %v8130 = vunpack.c.l.b16 %v7964
  %v8131 = vunpack.c.h.b16 %v7964
  %v8132 = vunpack.c.l.b16 %v7965
  %v8133 = vunpack.c.l.b16 %v7966
  %v8134 = vunpack.c.h.b16 %v7966
  %v8135 = vunpack.c.l.b16 %v7967
  %v8136 = vunpack.c.l.b16 %v7968
  %v8137 = vunpack.c.h.b16 %v7968
  %v8138 = vunpack.c.l.b16 %v7969
  %v8139 = vunpack.c.l.b16 %v7970
  %v8140 = vunpack.c.h.b16 %v7970
  %v8141 = vunpack.c.l.b16 %v7971
  %v8142 = vunpack.c.l.b16 %v7972
  %v8143 = vunpack.c.h.b16 %v7972
  %v8144 = vunpack.c.l.b16 %v7973
  %v8145 = vunpack.c.l.b16 %v7974
  %v8146 = vunpack.c.h.b16 %v7974
  %v8147 = vunpack.c.l.b16 %v7975
  %v8148 = vunpack.c.l.b16 %v7976
  %v8149 = vunpack.c.h.b16 %v7976
  %v8150 = vunpack.c.l.b16 %v7977
  %v8151 = vunpack.c.l.b16 %v7978
  %v8152 = vunpack.c.h.b16 %v7978
  %v8153 = vunpack.c.l.b16 %v7979
  %v8154 = vunpack.c.l.b16 %v7980
  %v8155 = vunpack.c.h.b16 %v7980
  %v8156 = vunpack.c.l.b16 %v7981
  %v8157 = vunpack.c.l.b16 %v7982
  %v8158 = vunpack.c.h.b16 %v7982
  %v8159 = vunpack.c.l.b16 %v7983
  %v8160 = vunpack.c.l.b16 %v7984
  %v8161 = vunpack.c.h.b16 %v7984
  %v8162 = vunpack.c.l.b16 %v7985
  %v8163 = vunpack.c.l.b16 %v7986
  %v8164 = vunpack.c.h.b16 %v7986
  %v8165 = vunpack.c.l.b16 %v7987
  %v8166 = vunpack.c.l.b16 %v7988
  %v8167 = vunpack.c.h.b16 %v7988
  %v8168 = vunpack.c.l.b16 %v7989
  %v8169 = vunpack.c.l.b16 %v7990
  %v8170 = vunpack.c.h.b16 %v7990
  %v8171 = vunpack.c.l.b16 %v7991
  %v8172 = vunpack.c.l.b16 %v7992
  %v8173 = vunpack.c.h.b16 %v7992
  %v8174 = vunpack.c.l.b16 %v7993
  %v8175 = vunpack.c.l.b16 %v7994
  %v8176 = vunpack.c.h.b16 %v7994
  %v8177 = vunpack.c.l.b16 %v7995
  %v8178 = vunpack.c.l.b16 %v7996
  %v8179 = vunpack.c.h.b16 %v7996
  %v8180 = vunpack.c.l.b16 %v7997
  %v8181 = vunpack.c.l.b16 %v7998
  %v8182 = vunpack.c.h.b16 %v7998
  %v8183 = vunpack.c.l.b16 %v7999
  %v8184 = vunpack.c.l.b16 %v8000
  %v8185 = vunpack.c.h.b16 %v8000
  %v8186 = vunpack.c.l.b16 %v8001
  %v8187 = vunpack.c.l.b16 %v8002
  %v8188 = vunpack.c.h.b16 %v8002
  %v8189 = vunpack.c.l.b16 %v8003
  %v8190 = vunpack.c.l.b16 %v8004
  %v8191 = vunpack.c.h.b16 %v8004
  %v8192 = vunpack.c.l.b16 %v8005
  %v8193 = vunpack.c.l.b16 %v8006
  %v8194 = vunpack.c.h.b16 %v8006
  %v8195 = vunpack.c.l.b16 %v8007
  %v8196 = vunpack.c.l.b16 %v8008
  %v8197 = vunpack.c.h.b16 %v8008
  %v8198 = vunpack.c.l.b16 %v8009
  %v8199 = vunpack.c.l.b16 %v8010
  %v8200 = vunpack.c.h.b16 %v8010
  %v8201 = vunpack.c.l.b16 %v8011
  %v8202 = vunpack.c.l.b16 %v8012
  %v8203 = vunpack.c.h.b16 %v8012
  %v8204 = vunpack.c.l.b16 %v8013
  %v8205 = vunpack.c.l.b16 %v8014
  %v8206 = vunpack.c.h.b16 %v8014
  %v8207 = vunpack.c.l.b16 %v8015
  %v8208 = vunpack.c.l.b16 %v8016
  %v8209 = vunpack.c.h.b16 %v8016
  %v8210 = vunpack.c.l.b16 %v8017
  %v8211 = vunpack.c.l.b16 %v8018
  %v8212 = vunpack.c.h.b16 %v8018
  %v8213 = vunpack.c.l.b16 %v8019
  %v8214 = vunpack.c.l.b16 %v8020
  %v8215 = vunpack.c.h.b16 %v8020
  %v8216 = vunpack.c.l.b16 %v8021
  %v8217 = vunpack.c.l.b16 %v8022
  %v8218 = vunpack.c.h.b16 %v8022
  %v8219 = vunpack.c.l.b16 %v8023
  %v8220 = vunpack.c.l.b16 %v8024
  %v8221 = vunpack.c.h.b16 %v8024
  %v8222 = vunpack.c.l.b16 %v8025
  %v8223 = vunpack.c.l.b16 %v8026
  %v8224 = vunpack.c.h.b16 %v8026
  %v8225 = vunpack.c.l.b16 %v8027
  %v8226 = vunpack.c.l.b16 %v8028
  %v8227 = vunpack.c.h.b16 %v8028
  %v8228 = vunpack.c.l.b16 %v8029
  %v8229 = vunpack.c.l.b16 %v8030
  %v8230 = vunpack.c.h.b16 %v8030
  %v8231 = vunpack.c.l.b16 %v8031
  %v8232 = vpack.c.b16 %v8115, %v8112
  %v8233 = vpack.c.b16 %v8116, %v8113
  %v8234 = vpack.c.b16 %v8117, %v8114
  %v8235 = vpack.c.b16 %v8121, %v8118
  %v8236 = vpack.c.b16 %v8122, %v8119
  %v8237 = vpack.c.b16 %v8123, %v8120
  %v8238 = vpack.c.b16 %v8127, %v8124
  %v8239 = vpack.c.b16 %v8128, %v8125
  %v8240 = vpack.c.b16 %v8129, %v8126
  %v8241 = vpack.c.b16 %v8133, %v8130
  %v8242 = vpack.c.b16 %v8134, %v8131
  %v8243 = vpack.c.b16 %v8135, %v8132
  %v8244 = vpack.c.b16 %v8139, %v8136
  %v8245 = vpack.c.b16 %v8140, %v8137
  %v8246 = vpack.c.b16 %v8141, %v8138
  %v8247 = vpack.c.b16 %v8145, %v8142
  %v8248 = vpack.c.b16 %v8146, %v8143
  %v8249 = vpack.c.b16 %v8147, %v8144
  %v8250 = vpack.c.b16 %v8151, %v8148
  %v8251 = vpack.c.b16 %v8152, %v8149
  %v8252 = vpack.c.b16 %v8153, %v8150
  %v8253 = vpack.c.b16 %v8157, %v8154
  %v8254 = vpack.c.b16 %v8158, %v8155
  %v8255 = vpack.c.b16 %v8159, %v8156
  %v8256 = vpack.c.b16 %v8163, %v8160
  %v8257 = vpack.c.b16 %v8164, %v8161
  %v8258 = vpack.c.b16 %v8165, %v8162
  %v8259 = vpack.c.b16 %v8169, %v8166
  %v8260 = vpack.c.b16 %v8170, %v8167
  %v8261 = vpack.c.b16 %v8171, %v8168
  %v8262 = vpack.c.b16 %v8175, %v8172
  %v8263 = vpack.c.b16 %v8176, %v8173
  %v8264 = vpack.c.b16 %v8177, %v8174
  %v8265 = vpack.c.b16 %v8181, %v8178
  %v8266 = vpack.c.b16 %v8182, %v8179
  %v8267 = vpack.c.b16 %v8183, %v8180
  %v8268 = vpack.c.b16 %v8187, %v8184
  %v8269 = vpack.c.b16 %v8188, %v8185
  %v8270 = vpack.c.b16 %v8189, %v8186
  %v8271 = vpack.c.b16 %v8193, %v8190
  %v8272 = vpack.c.b16 %v8194, %v8191
  %v8273 = vpack.c.b16 %v8195, %v8192
  %v8274 = vpack.c.b16 %v8199, %v8196
  %v8275 = vpack.c.b16 %v8200, %v8197
  %v8276 = vpack.c.b16 %v8201, %v8198
  %v8277 = vpack.c.b16 %v8205, %v8202
  %v8278 = vpack.c.b16 %v8206, %v8203
  %v8279 = vpack.c.b16 %v8207, %v8204
  %v8280 = vpack.c.b16 %v8211, %v8208
  %v8281 = vpack.c.b16 %v8212, %v8209
  %v8282 = vpack.c.b16 %v8213, %v8210
  %v8283 = vpack.c.b16 %v8217, %v8214
  %v8284 = vpack.c.b16 %v8218, %v8215
  %v8285 = vpack.c.b16 %v8219, %v8216
  %v8286 = vpack.c.b16 %v8223, %v8220
  %v8287 = vpack.c.b16 %v8224, %v8221
  %v8288 = vpack.c.b16 %v8225, %v8222
  %v8289 = vpack.c.b16 %v8229, %v8226
  %v8290 = vpack.c.b16 %v8230, %v8227
  %v8291 = vpack.c.b16 %v8231, %v8228
  %v8353 = vsel %vm2572, %v7484, 0
  %8355 = vmatprep.subr.bf16.mxu0 %v8233
  %8356 = vmatpush1.bf16.msra.mxu0 %v8232
  %8357 = vmatprep.subr.bf16.mxu0 %v8236
  %8358 = vmatpush1.bf16.msra.mxu0 %v8235
  %8359 = vmatprep.subr.bf16.mxu0 %v8239
  %8360 = vmatpush1.bf16.msra.mxu0 %v8238
  %8361 = vmatprep.subr.bf16.mxu0 %v8242
  %8362 = vmatpush1.bf16.msra.mxu0 %v8241
  %8363 = vmatprep.subr.bf16.mxu0 %v8245
  %8364 = vmatpush1.bf16.msra.mxu0 %v8244
  %8365 = vmatprep.subr.bf16.mxu0 %v8248
  %8366 = vmatpush1.bf16.msra.mxu0 %v8247
  %8367 = vmatprep.subr.bf16.mxu0 %v8251
  %8368 = vmatpush1.bf16.msra.mxu0 %v8250
  %8369 = vmatprep.subr.bf16.mxu0 %v8254
  %8370 = vmatpush1.bf16.msra.mxu0 %v8253
  %8371 = vmatprep.subr.bf16.mxu0 %v8257
  %8372 = vmatpush1.bf16.msra.mxu0 %v8256
  %8373 = vmatprep.subr.bf16.mxu0 %v8260
  %8374 = vmatpush1.bf16.msra.mxu0 %v8259
  %8375 = vmatprep.subr.bf16.mxu0 %v8263
  %8376 = vmatpush1.bf16.msra.mxu0 %v8262
  %8377 = vmatprep.subr.bf16.mxu0 %v8266
  %8378 = vmatpush1.bf16.msra.mxu0 %v8265
  %8379 = vmatprep.subr.bf16.mxu0 %v8269
  %8380 = vmatpush1.bf16.msra.mxu0 %v8268
  %8381 = vmatprep.subr.bf16.mxu0 %v8272
  %8382 = vmatpush1.bf16.msra.mxu0 %v8271
  %8383 = vmatprep.subr.bf16.mxu0 %v8275
  %8384 = vmatpush1.bf16.msra.mxu0 %v8274
  %8385 = vmatprep.subr.bf16.mxu0 %v8278
  %8386 = vmatpush1.bf16.msra.mxu0 %v8277
  %8387 = vmatprep.mubr.bf16.mxu0 %v7483
  %8388 = vmatmul.mubr.bf16.gmra.mrb[0].mxu0 %v7482
  %v8389 = vpop.f32.mrb[0].mxu0
  %v8390 = vadd.f32 0.0, %v8389
  %v8391 = vpop.f32.mrb[0].mxu0
  %v8392 = vadd.f32 0.0, %v8391
  %v8393 = vpop.f32.mrb[0].mxu0
  %v8394 = vadd.f32 0.0, %v8393
  %v8395 = vpop.f32.mrb[0].mxu0
  %v8396 = vadd.f32 0.0, %v8395
  %8397 = vdwg.mxu0
  %8398 = vmatprep.subr.bf16.mxu0 %v8281
  %8399 = vmatpush1.bf16.msra.mxu0 %v8280
  %8400 = vmatprep.subr.bf16.mxu0 %v8284
  %8401 = vmatpush1.bf16.msra.mxu0 %v8283
  %8402 = vmatprep.subr.bf16.mxu0 %v8287
  %8403 = vmatpush1.bf16.msra.mxu0 %v8286
  %8404 = vmatprep.subr.bf16.mxu0 %v8290
  %8405 = vmatpush1.bf16.msra.mxu0 %v8289
  %8406 = vmatprep.subr.bf16.mxu0 0
  %8407 = vmatpush1.bf16.msra.mxu0 0
  %8408 = vmatprep.subr.bf16.mxu0 0
  %8409 = vmatpush1.bf16.msra.mxu0 0
  %8410 = vmatprep.subr.bf16.mxu0 0
  %8411 = vmatpush1.bf16.msra.mxu0 0
  %8412 = vmatprep.subr.bf16.mxu0 0
  %8413 = vmatpush1.bf16.msra.mxu0 0
  %8414 = vmatprep.subr.bf16.mxu0 0
  %8415 = vmatpush1.bf16.msra.mxu0 0
  %8416 = vmatprep.subr.bf16.mxu0 0
  %8417 = vmatpush1.bf16.msra.mxu0 0
  %8418 = vmatprep.subr.bf16.mxu0 0
  %8419 = vmatpush1.bf16.msra.mxu0 0
  %8420 = vmatprep.subr.bf16.mxu0 0
  %8421 = vmatpush1.bf16.msra.mxu0 0
  %8422 = vmatprep.subr.bf16.mxu0 0
  %8423 = vmatpush1.bf16.msra.mxu0 0
  %8424 = vmatprep.subr.bf16.mxu0 0
  %8425 = vmatpush1.bf16.msra.mxu0 0
  %8426 = vmatprep.subr.bf16.mxu0 0
  %8427 = vmatpush1.bf16.msra.mxu0 0
  %8428 = vmatprep.subr.bf16.mxu0 0
  %8429 = vmatpush1.bf16.msra.mxu0 0
  %8430 = vmatprep.mubr.bf16.mxu0 0
  %8431 = vmatmul.mubr.bf16.gmra.mrb[0].mxu0 %v8353
  %v8432 = vpop.f32.mrb[0].mxu0
  %v8433 = vadd.f32 %v8390, %v8432
  %v8434 = vpop.f32.mrb[0].mxu0
  %v8435 = vadd.f32 %v8392, %v8434
  %v8436 = vpop.f32.mrb[0].mxu0
  %v8437 = vadd.f32 %v8394, %v8436
  %v8438 = vpop.f32.mrb[0].mxu0
  %v8439 = vadd.f32 %v8396, %v8438
  %8440 = vdwg.mxu0
  %8441 = vmatprep.subr.bf16.mxu0 0
  %8442 = vmatpush1.bf16.msra.mxu0 %v8234
  %8443 = vmatprep.subr.bf16.mxu0 0
  %8444 = vmatpush1.bf16.msra.mxu0 %v8237
  %8445 = vmatprep.subr.bf16.mxu0 0
  %8446 = vmatpush1.bf16.msra.mxu0 %v8240
  %8447 = vmatprep.subr.bf16.mxu0 0
  %8448 = vmatpush1.bf16.msra.mxu0 %v8243
  %8449 = vmatprep.subr.bf16.mxu0 0
  %8450 = vmatpush1.bf16.msra.mxu0 %v8246
  %8451 = vmatprep.subr.bf16.mxu0 0
  %8452 = vmatpush1.bf16.msra.mxu0 %v8249
  %8453 = vmatprep.subr.bf16.mxu0 0
  %8454 = vmatpush1.bf16.msra.mxu0 %v8252
  %8455 = vmatprep.subr.bf16.mxu0 0
  %8456 = vmatpush1.bf16.msra.mxu0 %v8255
  %8457 = vmatprep.subr.bf16.mxu0 0
  %8458 = vmatpush1.bf16.msra.mxu0 %v8258
  %8459 = vmatprep.subr.bf16.mxu0 0
  %8460 = vmatpush1.bf16.msra.mxu0 %v8261
  %8461 = vmatprep.subr.bf16.mxu0 0
  %8462 = vmatpush1.bf16.msra.mxu0 %v8264
  %8463 = vmatprep.subr.bf16.mxu0 0
  %8464 = vmatpush1.bf16.msra.mxu0 %v8267
  %8465 = vmatprep.subr.bf16.mxu0 0
  %8466 = vmatpush1.bf16.msra.mxu0 %v8270
  %8467 = vmatprep.subr.bf16.mxu0 0
  %8468 = vmatpush1.bf16.msra.mxu0 %v8273
  %8469 = vmatprep.subr.bf16.mxu0 0
  %8470 = vmatpush1.bf16.msra.mxu0 %v8276
  %8471 = vmatprep.subr.bf16.mxu0 0
  %8472 = vmatpush1.bf16.msra.mxu0 %v8279
  %8473 = vmatprep.mubr.bf16.mxu0 %v7483
  %8474 = vmatmul.mubr.bf16.gmra.mrb[0].mxu0 %v7482
  %v8475 = vpop.f32.mrb[0].mxu0
  %v8476 = vadd.f32 0.0, %v8475
  %v8477 = vpop.f32.mrb[0].mxu0
  %v8478 = vpop.f32.mrb[0].mxu0
  %v8479 = vadd.f32 0.0, %v8478
  %v8480 = vpop.f32.mrb[0].mxu0
  %8481 = vdwg.mxu0
  %8482 = vmatprep.subr.bf16.mxu0 0
  %8483 = vmatpush1.bf16.msra.mxu0 %v8282
  %8484 = vmatprep.subr.bf16.mxu0 0
  %8485 = vmatpush1.bf16.msra.mxu0 %v8285
  %8486 = vmatprep.subr.bf16.mxu0 0
  %8487 = vmatpush1.bf16.msra.mxu0 %v8288
  %8488 = vmatprep.subr.bf16.mxu0 0
  %8489 = vmatpush1.bf16.msra.mxu0 %v8291
  %8490 = vmatprep.subr.bf16.mxu0 0
  %8491 = vmatpush1.bf16.msra.mxu0 0
  %8492 = vmatprep.subr.bf16.mxu0 0
  %8493 = vmatpush1.bf16.msra.mxu0 0
  %8494 = vmatprep.subr.bf16.mxu0 0
  %8495 = vmatpush1.bf16.msra.mxu0 0
  %8496 = vmatprep.subr.bf16.mxu0 0
  %8497 = vmatpush1.bf16.msra.mxu0 0
  %8498 = vmatprep.subr.bf16.mxu0 0
  %8499 = vmatpush1.bf16.msra.mxu0 0
  %8500 = vmatprep.subr.bf16.mxu0 0
  %8501 = vmatpush1.bf16.msra.mxu0 0
  %8502 = vmatprep.subr.bf16.mxu0 0
  %8503 = vmatpush1.bf16.msra.mxu0 0
  %8504 = vmatprep.subr.bf16.mxu0 0
  %8505 = vmatpush1.bf16.msra.mxu0 0
  %8506 = vmatprep.subr.bf16.mxu0 0
  %8507 = vmatpush1.bf16.msra.mxu0 0
  %8508 = vmatprep.subr.bf16.mxu0 0
  %8509 = vmatpush1.bf16.msra.mxu0 0
  %8510 = vmatprep.subr.bf16.mxu0 0
  %8511 = vmatpush1.bf16.msra.mxu0 0
  %8512 = vmatprep.subr.bf16.mxu0 0
  %8513 = vmatpush1.bf16.msra.mxu0 0
  %8514 = vmatprep.mubr.bf16.mxu0 0
  %8515 = vmatmul.mubr.bf16.gmra.mrb[0].mxu0 %v8353
  %v8516 = vpop.f32.mrb[0].mxu0
  %v8517 = vadd.f32 %v8476, %v8516
  %v8518 = vpop.f32.mrb[0].mxu0
  %v8519 = vpop.f32.mrb[0].mxu0
  %v8520 = vadd.f32 %v8479, %v8519
  %v8521 = vpop.f32.mrb[0].mxu0
  %8522 = vdwg.mxu0
  %v8603 = vunpack.c.l.b16 %v7871
  %v8604 = vunpack.c.h.b16 %v7871
  %v8605 = vunpack.c.l.b16 %v7872
  %v8606 = vunpack.c.l.b16 %v7873
  %v8607 = vunpack.c.h.b16 %v7873
  %v8608 = vunpack.c.l.b16 %v7874
  %v8609 = vunpack.c.l.b16 %v7875
  %v8610 = vunpack.c.h.b16 %v7875
  %v8611 = vunpack.c.l.b16 %v7876
  %v8612 = vunpack.c.l.b16 %v7877
  %v8613 = vunpack.c.h.b16 %v7877
  %v8614 = vunpack.c.l.b16 %v7878
  %v8615 = vunpack.c.l.b16 %v7879
  %v8616 = vunpack.c.h.b16 %v7879
  %v8617 = vunpack.c.l.b16 %v7880
  %v8618 = vunpack.c.l.b16 %v7881
  %v8619 = vunpack.c.h.b16 %v7881
  %v8620 = vunpack.c.l.b16 %v7882
  %v8621 = vunpack.c.l.b16 %v7883
  %v8622 = vunpack.c.h.b16 %v7883
  %v8623 = vunpack.c.l.b16 %v7884
  %v8624 = vunpack.c.l.b16 %v7885
  %v8625 = vunpack.c.h.b16 %v7885
  %v8626 = vunpack.c.l.b16 %v7886
  %v8627 = vunpack.c.l.b16 %v7887
  %v8628 = vunpack.c.h.b16 %v7887
  %v8629 = vunpack.c.l.b16 %v7888
  %v8630 = vunpack.c.l.b16 %v7889
  %v8631 = vunpack.c.h.b16 %v7889
  %v8632 = vunpack.c.l.b16 %v7890
  %v8633 = vunpack.c.l.b16 %v7891
  %v8634 = vunpack.c.h.b16 %v7891
  %v8635 = vunpack.c.l.b16 %v7892
  %v8636 = vunpack.c.l.b16 %v7893
  %v8637 = vunpack.c.h.b16 %v7893
  %v8638 = vunpack.c.l.b16 %v7894
  %v8639 = vunpack.c.l.b16 %v7895
  %v8640 = vunpack.c.h.b16 %v7895
  %v8641 = vunpack.c.l.b16 %v7896
  %v8642 = vunpack.c.l.b16 %v7897
  %v8643 = vunpack.c.h.b16 %v7897
  %v8644 = vunpack.c.l.b16 %v7898
  %v8645 = vunpack.c.l.b16 %v7899
  %v8646 = vunpack.c.h.b16 %v7899
  %v8647 = vunpack.c.l.b16 %v7900
  %v8648 = vunpack.c.l.b16 %v7901
  %v8649 = vunpack.c.h.b16 %v7901
  %v8650 = vunpack.c.l.b16 %v7902
  %v8651 = vunpack.c.l.b16 %v7903
  %v8652 = vunpack.c.h.b16 %v7903
  %v8653 = vunpack.c.l.b16 %v7904
  %v8654 = vunpack.c.l.b16 %v7905
  %v8655 = vunpack.c.h.b16 %v7905
  %v8656 = vunpack.c.l.b16 %v7906
  %v8657 = vunpack.c.l.b16 %v7907
  %v8658 = vunpack.c.h.b16 %v7907
  %v8659 = vunpack.c.l.b16 %v7908
  %v8660 = vunpack.c.l.b16 %v7909
  %v8661 = vunpack.c.h.b16 %v7909
  %v8662 = vunpack.c.l.b16 %v7910
  %v8663 = vunpack.c.l.b16 %v7911
  %v8664 = vunpack.c.h.b16 %v7911
  %v8665 = vunpack.c.l.b16 %v7912
  %v8666 = vunpack.c.l.b16 %v7913
  %v8667 = vunpack.c.h.b16 %v7913
  %v8668 = vunpack.c.l.b16 %v7914
  %v8669 = vunpack.c.l.b16 %v7915
  %v8670 = vunpack.c.h.b16 %v7915
  %v8671 = vunpack.c.l.b16 %v7916
  %v8672 = vunpack.c.l.b16 %v7917
  %v8673 = vunpack.c.h.b16 %v7917
  %v8674 = vunpack.c.l.b16 %v7918
  %v8675 = vunpack.c.l.b16 %v7919
  %v8676 = vunpack.c.h.b16 %v7919
  %v8677 = vunpack.c.l.b16 %v7920
  %v8678 = vunpack.c.l.b16 %v7921
  %v8679 = vunpack.c.h.b16 %v7921
  %v8680 = vunpack.c.l.b16 %v7922
  %v8681 = vunpack.c.l.b16 %v7923
  %v8682 = vunpack.c.h.b16 %v7923
  %v8683 = vunpack.c.l.b16 %v7924
  %v8684 = vunpack.c.l.b16 %v7925
  %v8685 = vunpack.c.h.b16 %v7925
  %v8686 = vunpack.c.l.b16 %v7926
  %v8687 = vunpack.c.l.b16 %v7927
  %v8688 = vunpack.c.h.b16 %v7927
  %v8689 = vunpack.c.l.b16 %v7928
  %v8690 = vunpack.c.l.b16 %v7929
  %v8691 = vunpack.c.h.b16 %v7929
  %v8692 = vunpack.c.l.b16 %v7930
  %v8693 = vunpack.c.l.b16 %v7931
  %v8694 = vunpack.c.h.b16 %v7931
  %v8695 = vunpack.c.l.b16 %v7932
  %v8696 = vunpack.c.l.b16 %v7933
  %v8697 = vunpack.c.h.b16 %v7933
  %v8698 = vunpack.c.l.b16 %v7934
  %v8699 = vunpack.c.l.b16 %v7935
  %v8700 = vunpack.c.h.b16 %v7935
  %v8701 = vunpack.c.l.b16 %v7936
  %v8702 = vunpack.c.l.b16 %v7937
  %v8703 = vunpack.c.h.b16 %v7937
  %v8704 = vunpack.c.l.b16 %v7938
  %v8705 = vunpack.c.l.b16 %v7939
  %v8706 = vunpack.c.h.b16 %v7939
  %v8707 = vunpack.c.l.b16 %v7940
  %v8708 = vunpack.c.l.b16 %v7941
  %v8709 = vunpack.c.h.b16 %v7941
  %v8710 = vunpack.c.l.b16 %v7942
  %v8711 = vunpack.c.l.b16 %v7943
  %v8712 = vunpack.c.h.b16 %v7943
  %v8713 = vunpack.c.l.b16 %v7944
  %v8714 = vunpack.c.l.b16 %v7945
  %v8715 = vunpack.c.h.b16 %v7945
  %v8716 = vunpack.c.l.b16 %v7946
  %v8717 = vunpack.c.l.b16 %v7947
  %v8718 = vunpack.c.h.b16 %v7947
  %v8719 = vunpack.c.l.b16 %v7948
  %v8720 = vunpack.c.l.b16 %v7949
  %v8721 = vunpack.c.h.b16 %v7949
  %v8722 = vunpack.c.l.b16 %v7950
  %v8723 = vpack.c.b16 %v8606, %v8603
  %v8724 = vpack.c.b16 %v8607, %v8604
  %v8725 = vpack.c.b16 %v8608, %v8605
  %v8726 = vpack.c.b16 %v8612, %v8609
  %v8727 = vpack.c.b16 %v8613, %v8610
  %v8728 = vpack.c.b16 %v8614, %v8611
  %v8729 = vpack.c.b16 %v8618, %v8615
  %v8730 = vpack.c.b16 %v8619, %v8616
  %v8731 = vpack.c.b16 %v8620, %v8617
  %v8732 = vpack.c.b16 %v8624, %v8621
  %v8733 = vpack.c.b16 %v8625, %v8622
  %v8734 = vpack.c.b16 %v8626, %v8623
  %v8735 = vpack.c.b16 %v8630, %v8627
  %v8736 = vpack.c.b16 %v8631, %v8628
  %v8737 = vpack.c.b16 %v8632, %v8629
  %v8738 = vpack.c.b16 %v8636, %v8633
  %v8739 = vpack.c.b16 %v8637, %v8634
  %v8740 = vpack.c.b16 %v8638, %v8635
  %v8741 = vpack.c.b16 %v8642, %v8639
  %v8742 = vpack.c.b16 %v8643, %v8640
  %v8743 = vpack.c.b16 %v8644, %v8641
  %v8744 = vpack.c.b16 %v8648, %v8645
  %v8745 = vpack.c.b16 %v8649, %v8646
  %v8746 = vpack.c.b16 %v8650, %v8647
  %v8747 = vpack.c.b16 %v8654, %v8651
  %v8748 = vpack.c.b16 %v8655, %v8652
  %v8749 = vpack.c.b16 %v8656, %v8653
  %v8750 = vpack.c.b16 %v8660, %v8657
  %v8751 = vpack.c.b16 %v8661, %v8658
  %v8752 = vpack.c.b16 %v8662, %v8659
  %v8753 = vpack.c.b16 %v8666, %v8663
  %v8754 = vpack.c.b16 %v8667, %v8664
  %v8755 = vpack.c.b16 %v8668, %v8665
  %v8756 = vpack.c.b16 %v8672, %v8669
  %v8757 = vpack.c.b16 %v8673, %v8670
  %v8758 = vpack.c.b16 %v8674, %v8671
  %v8759 = vpack.c.b16 %v8678, %v8675
  %v8760 = vpack.c.b16 %v8679, %v8676
  %v8761 = vpack.c.b16 %v8680, %v8677
  %v8762 = vpack.c.b16 %v8684, %v8681
  %v8763 = vpack.c.b16 %v8685, %v8682
  %v8764 = vpack.c.b16 %v8686, %v8683
  %v8765 = vpack.c.b16 %v8690, %v8687
  %v8766 = vpack.c.b16 %v8691, %v8688
  %v8767 = vpack.c.b16 %v8692, %v8689
  %v8768 = vpack.c.b16 %v8696, %v8693
  %v8769 = vpack.c.b16 %v8697, %v8694
  %v8770 = vpack.c.b16 %v8698, %v8695
  %v8771 = vpack.c.b16 %v8702, %v8699
  %v8772 = vpack.c.b16 %v8703, %v8700
  %v8773 = vpack.c.b16 %v8704, %v8701
  %v8774 = vpack.c.b16 %v8708, %v8705
  %v8775 = vpack.c.b16 %v8709, %v8706
  %v8776 = vpack.c.b16 %v8710, %v8707
  %v8777 = vpack.c.b16 %v8714, %v8711
  %v8778 = vpack.c.b16 %v8715, %v8712
  %v8779 = vpack.c.b16 %v8716, %v8713
  %v8780 = vpack.c.b16 %v8720, %v8717
  %v8781 = vpack.c.b16 %v8721, %v8718
  %v8782 = vpack.c.b16 %v8722, %v8719
  %v8844 = vsel %vm2572, %v7677, 0
  %8846 = vmatprep.subr.bf16.mxu0 %v8724
  %8847 = vmatpush1.bf16.msra.mxu0 %v8723
  %8848 = vmatprep.subr.bf16.mxu0 %v8727
  %8849 = vmatpush1.bf16.msra.mxu0 %v8726
  %8850 = vmatprep.subr.bf16.mxu0 %v8730
  %8851 = vmatpush1.bf16.msra.mxu0 %v8729
  %8852 = vmatprep.subr.bf16.mxu0 %v8733
  %8853 = vmatpush1.bf16.msra.mxu0 %v8732
  %8854 = vmatprep.subr.bf16.mxu0 %v8736
  %8855 = vmatpush1.bf16.msra.mxu0 %v8735
  %8856 = vmatprep.subr.bf16.mxu0 %v8739
  %8857 = vmatpush1.bf16.msra.mxu0 %v8738
  %8858 = vmatprep.subr.bf16.mxu0 %v8742
  %8859 = vmatpush1.bf16.msra.mxu0 %v8741
  %8860 = vmatprep.subr.bf16.mxu0 %v8745
  %8861 = vmatpush1.bf16.msra.mxu0 %v8744
  %8862 = vmatprep.subr.bf16.mxu0 %v8748
  %8863 = vmatpush1.bf16.msra.mxu0 %v8747
  %8864 = vmatprep.subr.bf16.mxu0 %v8751
  %8865 = vmatpush1.bf16.msra.mxu0 %v8750
  %8866 = vmatprep.subr.bf16.mxu0 %v8754
  %8867 = vmatpush1.bf16.msra.mxu0 %v8753
  %8868 = vmatprep.subr.bf16.mxu0 %v8757
  %8869 = vmatpush1.bf16.msra.mxu0 %v8756
  %8870 = vmatprep.subr.bf16.mxu0 %v8760
  %8871 = vmatpush1.bf16.msra.mxu0 %v8759
  %8872 = vmatprep.subr.bf16.mxu0 %v8763
  %8873 = vmatpush1.bf16.msra.mxu0 %v8762
  %8874 = vmatprep.subr.bf16.mxu0 %v8766
  %8875 = vmatpush1.bf16.msra.mxu0 %v8765
  %8876 = vmatprep.subr.bf16.mxu0 %v8769
  %8877 = vmatpush1.bf16.msra.mxu0 %v8768
  %8878 = vmatprep.mubr.bf16.mxu0 %v7676
  %8879 = vmatmul.mubr.bf16.gmra.mrb[0].mxu0 %v7675
  %v8880 = vpop.f32.mrb[0].mxu0
  %v8881 = vadd.f32 %v8433, %v8880
  %v8882 = vpop.f32.mrb[0].mxu0
  %v8883 = vadd.f32 %v8435, %v8882
  %v8884 = vpop.f32.mrb[0].mxu0
  %v8885 = vadd.f32 %v8437, %v8884
  %v8886 = vpop.f32.mrb[0].mxu0
  %v8887 = vadd.f32 %v8439, %v8886
  %8888 = vdwg.mxu0
  %8889 = vmatprep.subr.bf16.mxu0 %v8772
  %8890 = vmatpush1.bf16.msra.mxu0 %v8771
  %8891 = vmatprep.subr.bf16.mxu0 %v8775
  %8892 = vmatpush1.bf16.msra.mxu0 %v8774
  %8893 = vmatprep.subr.bf16.mxu0 %v8778
  %8894 = vmatpush1.bf16.msra.mxu0 %v8777
  %8895 = vmatprep.subr.bf16.mxu0 %v8781
  %8896 = vmatpush1.bf16.msra.mxu0 %v8780
  %8897 = vmatprep.subr.bf16.mxu0 0
  %8898 = vmatpush1.bf16.msra.mxu0 0
  %8899 = vmatprep.subr.bf16.mxu0 0
  %8900 = vmatpush1.bf16.msra.mxu0 0
  %8901 = vmatprep.subr.bf16.mxu0 0
  %8902 = vmatpush1.bf16.msra.mxu0 0
  %8903 = vmatprep.subr.bf16.mxu0 0
  %8904 = vmatpush1.bf16.msra.mxu0 0
  %8905 = vmatprep.subr.bf16.mxu0 0
  %8906 = vmatpush1.bf16.msra.mxu0 0
  %8907 = vmatprep.subr.bf16.mxu0 0
  %8908 = vmatpush1.bf16.msra.mxu0 0
  %8909 = vmatprep.subr.bf16.mxu0 0
  %8910 = vmatpush1.bf16.msra.mxu0 0
  %8911 = vmatprep.subr.bf16.mxu0 0
  %8912 = vmatpush1.bf16.msra.mxu0 0
  %8913 = vmatprep.subr.bf16.mxu0 0
  %8914 = vmatpush1.bf16.msra.mxu0 0
  %8915 = vmatprep.subr.bf16.mxu0 0
  %8916 = vmatpush1.bf16.msra.mxu0 0
  %8917 = vmatprep.subr.bf16.mxu0 0
  %8918 = vmatpush1.bf16.msra.mxu0 0
  %8919 = vmatprep.subr.bf16.mxu0 0
  %8920 = vmatpush1.bf16.msra.mxu0 0
  %8921 = vmatprep.mubr.bf16.mxu0 0
  %8922 = vmatmul.mubr.bf16.gmra.mrb[0].mxu0 %v8844
  %v8923 = vpop.f32.mrb[0].mxu0
  %v8924 = vadd.f32 %v8881, %v8923
  %v8925 = vpop.f32.mrb[0].mxu0
  %v8926 = vadd.f32 %v8883, %v8925
  %v8927 = vpop.f32.mrb[0].mxu0
  %v8928 = vadd.f32 %v8885, %v8927
  %v8929 = vpop.f32.mrb[0].mxu0
  %v8930 = vadd.f32 %v8887, %v8929
  %8931 = vdwg.mxu0
  %8932 = vmatprep.subr.bf16.mxu0 0
  %8933 = vmatpush1.bf16.msra.mxu0 %v8725
  %8934 = vmatprep.subr.bf16.mxu0 0
  %8935 = vmatpush1.bf16.msra.mxu0 %v8728
  %8936 = vmatprep.subr.bf16.mxu0 0
  %8937 = vmatpush1.bf16.msra.mxu0 %v8731
  %8938 = vmatprep.subr.bf16.mxu0 0
  %8939 = vmatpush1.bf16.msra.mxu0 %v8734
  %8940 = vmatprep.subr.bf16.mxu0 0
  %8941 = vmatpush1.bf16.msra.mxu0 %v8737
  %8942 = vmatprep.subr.bf16.mxu0 0
  %8943 = vmatpush1.bf16.msra.mxu0 %v8740
  %8944 = vmatprep.subr.bf16.mxu0 0
  %8945 = vmatpush1.bf16.msra.mxu0 %v8743
  %8946 = vmatprep.subr.bf16.mxu0 0
  %8947 = vmatpush1.bf16.msra.mxu0 %v8746
  %8948 = vmatprep.subr.bf16.mxu0 0
  %8949 = vmatpush1.bf16.msra.mxu0 %v8749
  %8950 = vmatprep.subr.bf16.mxu0 0
  %8951 = vmatpush1.bf16.msra.mxu0 %v8752
  %8952 = vmatprep.subr.bf16.mxu0 0
  %8953 = vmatpush1.bf16.msra.mxu0 %v8755
  %8954 = vmatprep.subr.bf16.mxu0 0
  %8955 = vmatpush1.bf16.msra.mxu0 %v8758
  %8956 = vmatprep.subr.bf16.mxu0 0
  %8957 = vmatpush1.bf16.msra.mxu0 %v8761
  %8958 = vmatprep.subr.bf16.mxu0 0
  %8959 = vmatpush1.bf16.msra.mxu0 %v8764
  %8960 = vmatprep.subr.bf16.mxu0 0
  %8961 = vmatpush1.bf16.msra.mxu0 %v8767
  %8962 = vmatprep.subr.bf16.mxu0 0
  %8963 = vmatpush1.bf16.msra.mxu0 %v8770
  %8964 = vmatprep.mubr.bf16.mxu0 %v7676
  %8965 = vmatmul.mubr.bf16.gmra.mrb[0].mxu0 %v7675
  %v8966 = vpop.f32.mrb[0].mxu0
  %v8967 = vadd.f32 %v8517, %v8966
  %v8968 = vpop.f32.mrb[0].mxu0
  %v8969 = vpop.f32.mrb[0].mxu0
  %v8970 = vadd.f32 %v8520, %v8969
  %v8971 = vpop.f32.mrb[0].mxu0
  %8972 = vdwg.mxu0
  %8973 = vmatprep.subr.bf16.mxu0 0
  %8974 = vmatpush1.bf16.msra.mxu0 %v8773
  %8975 = vmatprep.subr.bf16.mxu0 0
  %8976 = vmatpush1.bf16.msra.mxu0 %v8776
  %8977 = vmatprep.subr.bf16.mxu0 0
  %8978 = vmatpush1.bf16.msra.mxu0 %v8779
  %8979 = vmatprep.subr.bf16.mxu0 0
  %8980 = vmatpush1.bf16.msra.mxu0 %v8782
  %8981 = vmatprep.subr.bf16.mxu0 0
  %8982 = vmatpush1.bf16.msra.mxu0 0
  %8983 = vmatprep.subr.bf16.mxu0 0
  %8984 = vmatpush1.bf16.msra.mxu0 0
  %8985 = vmatprep.subr.bf16.mxu0 0
  %8986 = vmatpush1.bf16.msra.mxu0 0
  %8987 = vmatprep.subr.bf16.mxu0 0
  %8988 = vmatpush1.bf16.msra.mxu0 0
  %8989 = vmatprep.subr.bf16.mxu0 0
  %8990 = vmatpush1.bf16.msra.mxu0 0
  %8991 = vmatprep.subr.bf16.mxu0 0
  %8992 = vmatpush1.bf16.msra.mxu0 0
  %8993 = vmatprep.subr.bf16.mxu0 0
  %8994 = vmatpush1.bf16.msra.mxu0 0
  %8995 = vmatprep.subr.bf16.mxu0 0
  %8996 = vmatpush1.bf16.msra.mxu0 0
  %8997 = vmatprep.subr.bf16.mxu0 0
  %8998 = vmatpush1.bf16.msra.mxu0 0
  %8999 = vmatprep.subr.bf16.mxu0 0
  %9000 = vmatpush1.bf16.msra.mxu0 0
  %9001 = vmatprep.subr.bf16.mxu0 0
  %9002 = vmatpush1.bf16.msra.mxu0 0
  %9003 = vmatprep.subr.bf16.mxu0 0
  %9004 = vmatpush1.bf16.msra.mxu0 0
  %9005 = vmatprep.mubr.bf16.mxu0 0
  %9006 = vmatmul.mubr.bf16.gmra.mrb[0].mxu0 %v8844
  %v9007 = vpop.f32.mrb[0].mxu0
  %v9008 = vadd.f32 %v8967, %v9007
  %v9009 = vpop.f32.mrb[0].mxu0
  %v9010 = vpop.f32.mrb[0].mxu0
  %v9011 = vadd.f32 %v8970, %v9010
  %v9012 = vpop.f32.mrb[0].mxu0
  %9013 = vdwg.mxu0
  %s9014 = scalar_lea.vmem %s15, 960
  %v9015 = vld [vmem:[%s9014] sm:$0xff]
  %v9016 = vld [vmem:[%s9014 + $0x8] sm:$0xf]
  %v9017 = vld [vmem:[%s9014 + $0xc] sm:$0xff]
  %v9018 = vld [vmem:[%s9014 + $0x14] sm:$0xf]
  %v9019 = vld [vmem:[%s9014 + $0x18] sm:$0xff]
  %v9020 = vld [vmem:[%s9014 + $0x20] sm:$0xf]
  %v9021 = vld [vmem:[%s9014 + $0x24] sm:$0xff]
  %v9022 = vld [vmem:[%s9014 + $0x2c] sm:$0xf]
  %v9023 = vld [vmem:[%s9014 + $0x30] sm:$0xff]
  %v9024 = vld [vmem:[%s9014 + $0x38] sm:$0xf]
  %v9025 = vld [vmem:[%s9014 + $0x3c] sm:$0xff]
  %v9026 = vld [vmem:[%s9014 + $0x44] sm:$0xf]
  %v9027 = vld [vmem:[%s9014 + $0x48] sm:$0xff]
  %v9028 = vld [vmem:[%s9014 + $0x50] sm:$0xf]
  %v9029 = vld [vmem:[%s9014 + $0x54] sm:$0xff]
  %v9030 = vld [vmem:[%s9014 + $0x5c] sm:$0xf]
  %v9031 = vld [vmem:[%s9014 + $0x60] sm:$0xff]
  %v9032 = vld [vmem:[%s9014 + $0x68] sm:$0xf]
  %v9033 = vld [vmem:[%s9014 + $0x6c] sm:$0xff]
  %v9034 = vld [vmem:[%s9014 + $0x74] sm:$0xf]
  %v9035 = vld [vmem:[%s9014 + $0x78] sm:$0xff]
  %v9036 = vld [vmem:[%s9014 + $0x80] sm:$0xf]
  %v9037 = vld [vmem:[%s9014 + $0x84] sm:$0xff]
  %v9038 = vld [vmem:[%s9014 + $0x8c] sm:$0xf]
  %v9039 = vld [vmem:[%s9014 + $0x90] sm:$0xff]
  %v9040 = vld [vmem:[%s9014 + $0x98] sm:$0xf]
  %v9041 = vld [vmem:[%s9014 + $0x9c] sm:$0xff]
  %v9042 = vld [vmem:[%s9014 + $0xa4] sm:$0xf]
  %v9043 = vld [vmem:[%s9014 + $0xa8] sm:$0xff]
  %v9044 = vld [vmem:[%s9014 + $0xb0] sm:$0xf]
  %v9045 = vld [vmem:[%s9014 + $0xb4] sm:$0xff]
  %v9046 = vld [vmem:[%s9014 + $0xbc] sm:$0xf]
  %v9047 = vld [vmem:[%s9014 + $0xc0] sm:$0xff]
  %v9048 = vld [vmem:[%s9014 + $0xc8] sm:$0xf]
  %v9049 = vld [vmem:[%s9014 + $0xcc] sm:$0xff]
  %v9050 = vld [vmem:[%s9014 + $0xd4] sm:$0xf]
  %v9051 = vld [vmem:[%s9014 + $0xd8] sm:$0xff]
  %v9052 = vld [vmem:[%s9014 + $0xe0] sm:$0xf]
  %v9053 = vld [vmem:[%s9014 + $0xe4] sm:$0xff]
  %v9054 = vld [vmem:[%s9014 + $0xec] sm:$0xf]
  %v9055 = vld [vmem:[%s9014 + $0xf0] sm:$0xff]
  %v9056 = vld [vmem:[%s9014 + $0xf8] sm:$0xf]
  %v9057 = vld [vmem:[%s9014 + $0xfc] sm:$0xff]
  %v9058 = vld [vmem:[%s9014 + $0x104] sm:$0xf]
  %v9059 = vld [vmem:[%s9014 + $0x108] sm:$0xff]
  %v9060 = vld [vmem:[%s9014 + $0x110] sm:$0xf]
  %v9061 = vld [vmem:[%s9014 + $0x114] sm:$0xff]
  %v9062 = vld [vmem:[%s9014 + $0x11c] sm:$0xf]
  %v9063 = vld [vmem:[%s9014 + $0x120] sm:$0xff]
  %v9064 = vld [vmem:[%s9014 + $0x128] sm:$0xf]
  %v9065 = vld [vmem:[%s9014 + $0x12c] sm:$0xff]
  %v9066 = vld [vmem:[%s9014 + $0x134] sm:$0xf]
  %v9067 = vld [vmem:[%s9014 + $0x138] sm:$0xff]
  %v9068 = vld [vmem:[%s9014 + $0x140] sm:$0xf]
  %v9069 = vld [vmem:[%s9014 + $0x144] sm:$0xff]
  %v9070 = vld [vmem:[%s9014 + $0x14c] sm:$0xf]
  %v9071 = vld [vmem:[%s9014 + $0x150] sm:$0xff]
  %v9072 = vld [vmem:[%s9014 + $0x158] sm:$0xf]
  %v9073 = vld [vmem:[%s9014 + $0x15c] sm:$0xff]
  %v9074 = vld [vmem:[%s9014 + $0x164] sm:$0xf]
  %v9075 = vld [vmem:[%s9014 + $0x168] sm:$0xff]
  %v9076 = vld [vmem:[%s9014 + $0x170] sm:$0xf]
  %v9077 = vld [vmem:[%s9014 + $0x174] sm:$0xff]
  %v9078 = vld [vmem:[%s9014 + $0x17c] sm:$0xf]
  %v9079 = vld [vmem:[%s9014 + $0x180] sm:$0xff]
  %v9080 = vld [vmem:[%s9014 + $0x188] sm:$0xf]
  %v9081 = vld [vmem:[%s9014 + $0x18c] sm:$0xff]
  %v9082 = vld [vmem:[%s9014 + $0x194] sm:$0xf]
  %v9083 = vld [vmem:[%s9014 + $0x198] sm:$0xff]
  %v9084 = vld [vmem:[%s9014 + $0x1a0] sm:$0xf]
  %v9085 = vld [vmem:[%s9014 + $0x1a4] sm:$0xff]
  %v9086 = vld [vmem:[%s9014 + $0x1ac] sm:$0xf]
  %v9087 = vld [vmem:[%s9014 + $0x1b0] sm:$0xff]
  %v9088 = vld [vmem:[%s9014 + $0x1b8] sm:$0xf]
  %v9089 = vld [vmem:[%s9014 + $0x1bc] sm:$0xff]
  %v9090 = vld [vmem:[%s9014 + $0x1c4] sm:$0xf]
  %v9091 = vld [vmem:[%s9014 + $0x1c8] sm:$0xff]
  %v9092 = vld [vmem:[%s9014 + $0x1d0] sm:$0xf]
  %v9093 = vld [vmem:[%s9014 + $0x1d4] sm:$0xff]
  %v9094 = vld [vmem:[%s9014 + $0x1dc] sm:$0xf]
  %s9095 = scalar_lea.vmem %s15, 1440
  %v9096 = vld [vmem:[%s9095] sm:$0xff]
  %v9097 = vld [vmem:[%s9095 + $0x8] sm:$0xf]
  %v9098 = vld [vmem:[%s9095 + $0xc] sm:$0xff]
  %v9099 = vld [vmem:[%s9095 + $0x14] sm:$0xf]
  %v9100 = vld [vmem:[%s9095 + $0x18] sm:$0xff]
  %v9101 = vld [vmem:[%s9095 + $0x20] sm:$0xf]
  %v9102 = vld [vmem:[%s9095 + $0x24] sm:$0xff]
  %v9103 = vld [vmem:[%s9095 + $0x2c] sm:$0xf]
  %v9104 = vld [vmem:[%s9095 + $0x30] sm:$0xff]
  %v9105 = vld [vmem:[%s9095 + $0x38] sm:$0xf]
  %v9106 = vld [vmem:[%s9095 + $0x3c] sm:$0xff]
  %v9107 = vld [vmem:[%s9095 + $0x44] sm:$0xf]
  %v9108 = vld [vmem:[%s9095 + $0x48] sm:$0xff]
  %v9109 = vld [vmem:[%s9095 + $0x50] sm:$0xf]
  %v9110 = vld [vmem:[%s9095 + $0x54] sm:$0xff]
  %v9111 = vld [vmem:[%s9095 + $0x5c] sm:$0xf]
  %v9112 = vld [vmem:[%s9095 + $0x60] sm:$0xff]
  %v9113 = vld [vmem:[%s9095 + $0x68] sm:$0xf]
  %v9114 = vld [vmem:[%s9095 + $0x6c] sm:$0xff]
  %v9115 = vld [vmem:[%s9095 + $0x74] sm:$0xf]
  %v9116 = vld [vmem:[%s9095 + $0x78] sm:$0xff]
  %v9117 = vld [vmem:[%s9095 + $0x80] sm:$0xf]
  %v9118 = vld [vmem:[%s9095 + $0x84] sm:$0xff]
  %v9119 = vld [vmem:[%s9095 + $0x8c] sm:$0xf]
  %v9120 = vld [vmem:[%s9095 + $0x90] sm:$0xff]
  %v9121 = vld [vmem:[%s9095 + $0x98] sm:$0xf]
  %v9122 = vld [vmem:[%s9095 + $0x9c] sm:$0xff]
  %v9123 = vld [vmem:[%s9095 + $0xa4] sm:$0xf]
  %v9124 = vld [vmem:[%s9095 + $0xa8] sm:$0xff]
  %v9125 = vld [vmem:[%s9095 + $0xb0] sm:$0xf]
  %v9126 = vld [vmem:[%s9095 + $0xb4] sm:$0xff]
  %v9127 = vld [vmem:[%s9095 + $0xbc] sm:$0xf]
  %v9128 = vld [vmem:[%s9095 + $0xc0] sm:$0xff]
  %v9129 = vld [vmem:[%s9095 + $0xc8] sm:$0xf]
  %v9130 = vld [vmem:[%s9095 + $0xcc] sm:$0xff]
  %v9131 = vld [vmem:[%s9095 + $0xd4] sm:$0xf]
  %v9132 = vld [vmem:[%s9095 + $0xd8] sm:$0xff]
  %v9133 = vld [vmem:[%s9095 + $0xe0] sm:$0xf]
  %v9134 = vld [vmem:[%s9095 + $0xe4] sm:$0xff]
  %v9135 = vld [vmem:[%s9095 + $0xec] sm:$0xf]
  %v9136 = vld [vmem:[%s9095 + $0xf0] sm:$0xff]
  %v9137 = vld [vmem:[%s9095 + $0xf8] sm:$0xf]
  %v9138 = vld [vmem:[%s9095 + $0xfc] sm:$0xff]
  %v9139 = vld [vmem:[%s9095 + $0x104] sm:$0xf]
  %v9140 = vld [vmem:[%s9095 + $0x108] sm:$0xff]
  %v9141 = vld [vmem:[%s9095 + $0x110] sm:$0xf]
  %v9142 = vld [vmem:[%s9095 + $0x114] sm:$0xff]
  %v9143 = vld [vmem:[%s9095 + $0x11c] sm:$0xf]
  %v9144 = vld [vmem:[%s9095 + $0x120] sm:$0xff]
  %v9145 = vld [vmem:[%s9095 + $0x128] sm:$0xf]
  %v9146 = vld [vmem:[%s9095 + $0x12c] sm:$0xff]
  %v9147 = vld [vmem:[%s9095 + $0x134] sm:$0xf]
  %v9148 = vld [vmem:[%s9095 + $0x138] sm:$0xff]
  %v9149 = vld [vmem:[%s9095 + $0x140] sm:$0xf]
  %v9150 = vld [vmem:[%s9095 + $0x144] sm:$0xff]
  %v9151 = vld [vmem:[%s9095 + $0x14c] sm:$0xf]
  %v9152 = vld [vmem:[%s9095 + $0x150] sm:$0xff]
  %v9153 = vld [vmem:[%s9095 + $0x158] sm:$0xf]
  %v9154 = vld [vmem:[%s9095 + $0x15c] sm:$0xff]
  %v9155 = vld [vmem:[%s9095 + $0x164] sm:$0xf]
  %v9156 = vld [vmem:[%s9095 + $0x168] sm:$0xff]
  %v9157 = vld [vmem:[%s9095 + $0x170] sm:$0xf]
  %v9158 = vld [vmem:[%s9095 + $0x174] sm:$0xff]
  %v9159 = vld [vmem:[%s9095 + $0x17c] sm:$0xf]
  %v9160 = vld [vmem:[%s9095 + $0x180] sm:$0xff]
  %v9161 = vld [vmem:[%s9095 + $0x188] sm:$0xf]
  %v9162 = vld [vmem:[%s9095 + $0x18c] sm:$0xff]
  %v9163 = vld [vmem:[%s9095 + $0x194] sm:$0xf]
  %v9164 = vld [vmem:[%s9095 + $0x198] sm:$0xff]
  %v9165 = vld [vmem:[%s9095 + $0x1a0] sm:$0xf]
  %v9166 = vld [vmem:[%s9095 + $0x1a4] sm:$0xff]
  %v9167 = vld [vmem:[%s9095 + $0x1ac] sm:$0xf]
  %v9168 = vld [vmem:[%s9095 + $0x1b0] sm:$0xff]
  %v9169 = vld [vmem:[%s9095 + $0x1b8] sm:$0xf]
  %v9170 = vld [vmem:[%s9095 + $0x1bc] sm:$0xff]
  %v9171 = vld [vmem:[%s9095 + $0x1c4] sm:$0xf]
  %v9172 = vld [vmem:[%s9095 + $0x1c8] sm:$0xff]
  %v9173 = vld [vmem:[%s9095 + $0x1d0] sm:$0xf]
  %v9174 = vld [vmem:[%s9095 + $0x1d4] sm:$0xff]
  %v9175 = vld [vmem:[%s9095 + $0x1dc] sm:$0xf]
  %v9256 = vunpack.c.l.b16 %v9096
  %v9257 = vunpack.c.h.b16 %v9096
  %v9258 = vunpack.c.l.b16 %v9097
  %v9259 = vunpack.c.l.b16 %v9098
  %v9260 = vunpack.c.h.b16 %v9098
  %v9261 = vunpack.c.l.b16 %v9099
  %v9262 = vunpack.c.l.b16 %v9100
  %v9263 = vunpack.c.h.b16 %v9100
  %v9264 = vunpack.c.l.b16 %v9101
  %v9265 = vunpack.c.l.b16 %v9102
  %v9266 = vunpack.c.h.b16 %v9102
  %v9267 = vunpack.c.l.b16 %v9103
  %v9268 = vunpack.c.l.b16 %v9104
  %v9269 = vunpack.c.h.b16 %v9104
  %v9270 = vunpack.c.l.b16 %v9105
  %v9271 = vunpack.c.l.b16 %v9106
  %v9272 = vunpack.c.h.b16 %v9106
  %v9273 = vunpack.c.l.b16 %v9107
  %v9274 = vunpack.c.l.b16 %v9108
  %v9275 = vunpack.c.h.b16 %v9108
  %v9276 = vunpack.c.l.b16 %v9109
  %v9277 = vunpack.c.l.b16 %v9110
  %v9278 = vunpack.c.h.b16 %v9110
  %v9279 = vunpack.c.l.b16 %v9111
  %v9280 = vunpack.c.l.b16 %v9112
  %v9281 = vunpack.c.h.b16 %v9112
  %v9282 = vunpack.c.l.b16 %v9113
  %v9283 = vunpack.c.l.b16 %v9114
  %v9284 = vunpack.c.h.b16 %v9114
  %v9285 = vunpack.c.l.b16 %v9115
  %v9286 = vunpack.c.l.b16 %v9116
  %v9287 = vunpack.c.h.b16 %v9116
  %v9288 = vunpack.c.l.b16 %v9117
  %v9289 = vunpack.c.l.b16 %v9118
  %v9290 = vunpack.c.h.b16 %v9118
  %v9291 = vunpack.c.l.b16 %v9119
  %v9292 = vunpack.c.l.b16 %v9120
  %v9293 = vunpack.c.h.b16 %v9120
  %v9294 = vunpack.c.l.b16 %v9121
  %v9295 = vunpack.c.l.b16 %v9122
  %v9296 = vunpack.c.h.b16 %v9122
  %v9297 = vunpack.c.l.b16 %v9123
  %v9298 = vunpack.c.l.b16 %v9124
  %v9299 = vunpack.c.h.b16 %v9124
  %v9300 = vunpack.c.l.b16 %v9125
  %v9301 = vunpack.c.l.b16 %v9126
  %v9302 = vunpack.c.h.b16 %v9126
  %v9303 = vunpack.c.l.b16 %v9127
  %v9304 = vunpack.c.l.b16 %v9128
  %v9305 = vunpack.c.h.b16 %v9128
  %v9306 = vunpack.c.l.b16 %v9129
  %v9307 = vunpack.c.l.b16 %v9130
  %v9308 = vunpack.c.h.b16 %v9130
  %v9309 = vunpack.c.l.b16 %v9131
  %v9310 = vunpack.c.l.b16 %v9132
  %v9311 = vunpack.c.h.b16 %v9132
  %v9312 = vunpack.c.l.b16 %v9133
  %v9313 = vunpack.c.l.b16 %v9134
  %v9314 = vunpack.c.h.b16 %v9134
  %v9315 = vunpack.c.l.b16 %v9135
  %v9316 = vunpack.c.l.b16 %v9136
  %v9317 = vunpack.c.h.b16 %v9136
  %v9318 = vunpack.c.l.b16 %v9137
  %v9319 = vunpack.c.l.b16 %v9138
  %v9320 = vunpack.c.h.b16 %v9138
  %v9321 = vunpack.c.l.b16 %v9139
  %v9322 = vunpack.c.l.b16 %v9140
  %v9323 = vunpack.c.h.b16 %v9140
  %v9324 = vunpack.c.l.b16 %v9141
  %v9325 = vunpack.c.l.b16 %v9142
  %v9326 = vunpack.c.h.b16 %v9142
  %v9327 = vunpack.c.l.b16 %v9143
  %v9328 = vunpack.c.l.b16 %v9144
  %v9329 = vunpack.c.h.b16 %v9144
  %v9330 = vunpack.c.l.b16 %v9145
  %v9331 = vunpack.c.l.b16 %v9146
  %v9332 = vunpack.c.h.b16 %v9146
  %v9333 = vunpack.c.l.b16 %v9147
  %v9334 = vunpack.c.l.b16 %v9148
  %v9335 = vunpack.c.h.b16 %v9148
  %v9336 = vunpack.c.l.b16 %v9149
  %v9337 = vunpack.c.l.b16 %v9150
  %v9338 = vunpack.c.h.b16 %v9150
  %v9339 = vunpack.c.l.b16 %v9151
  %v9340 = vunpack.c.l.b16 %v9152
  %v9341 = vunpack.c.h.b16 %v9152
  %v9342 = vunpack.c.l.b16 %v9153
  %v9343 = vunpack.c.l.b16 %v9154
  %v9344 = vunpack.c.h.b16 %v9154
  %v9345 = vunpack.c.l.b16 %v9155
  %v9346 = vunpack.c.l.b16 %v9156
  %v9347 = vunpack.c.h.b16 %v9156
  %v9348 = vunpack.c.l.b16 %v9157
  %v9349 = vunpack.c.l.b16 %v9158
  %v9350 = vunpack.c.h.b16 %v9158
  %v9351 = vunpack.c.l.b16 %v9159
  %v9352 = vunpack.c.l.b16 %v9160
  %v9353 = vunpack.c.h.b16 %v9160
  %v9354 = vunpack.c.l.b16 %v9161
  %v9355 = vunpack.c.l.b16 %v9162
  %v9356 = vunpack.c.h.b16 %v9162
  %v9357 = vunpack.c.l.b16 %v9163
  %v9358 = vunpack.c.l.b16 %v9164
  %v9359 = vunpack.c.h.b16 %v9164
  %v9360 = vunpack.c.l.b16 %v9165
  %v9361 = vunpack.c.l.b16 %v9166
  %v9362 = vunpack.c.h.b16 %v9166
  %v9363 = vunpack.c.l.b16 %v9167
  %v9364 = vunpack.c.l.b16 %v9168
  %v9365 = vunpack.c.h.b16 %v9168
  %v9366 = vunpack.c.l.b16 %v9169
  %v9367 = vunpack.c.l.b16 %v9170
  %v9368 = vunpack.c.h.b16 %v9170
  %v9369 = vunpack.c.l.b16 %v9171
  %v9370 = vunpack.c.l.b16 %v9172
  %v9371 = vunpack.c.h.b16 %v9172
  %v9372 = vunpack.c.l.b16 %v9173
  %v9373 = vunpack.c.l.b16 %v9174
  %v9374 = vunpack.c.h.b16 %v9174
  %v9375 = vunpack.c.l.b16 %v9175
  %v9376 = vpack.c.b16 %v9259, %v9256
  %v9377 = vpack.c.b16 %v9260, %v9257
  %v9378 = vpack.c.b16 %v9261, %v9258
  %v9379 = vpack.c.b16 %v9265, %v9262
  %v9380 = vpack.c.b16 %v9266, %v9263
  %v9381 = vpack.c.b16 %v9267, %v9264
  %v9382 = vpack.c.b16 %v9271, %v9268
  %v9383 = vpack.c.b16 %v9272, %v9269
  %v9384 = vpack.c.b16 %v9273, %v9270
  %v9385 = vpack.c.b16 %v9277, %v9274
  %v9386 = vpack.c.b16 %v9278, %v9275
  %v9387 = vpack.c.b16 %v9279, %v9276
  %v9388 = vpack.c.b16 %v9283, %v9280
  %v9389 = vpack.c.b16 %v9284, %v9281
  %v9390 = vpack.c.b16 %v9285, %v9282
  %v9391 = vpack.c.b16 %v9289, %v9286
  %v9392 = vpack.c.b16 %v9290, %v9287
  %v9393 = vpack.c.b16 %v9291, %v9288
  %v9394 = vpack.c.b16 %v9295, %v9292
  %v9395 = vpack.c.b16 %v9296, %v9293
  %v9396 = vpack.c.b16 %v9297, %v9294
  %v9397 = vpack.c.b16 %v9301, %v9298
  %v9398 = vpack.c.b16 %v9302, %v9299
  %v9399 = vpack.c.b16 %v9303, %v9300
  %v9400 = vpack.c.b16 %v9307, %v9304
  %v9401 = vpack.c.b16 %v9308, %v9305
  %v9402 = vpack.c.b16 %v9309, %v9306
  %v9403 = vpack.c.b16 %v9313, %v9310
  %v9404 = vpack.c.b16 %v9314, %v9311
  %v9405 = vpack.c.b16 %v9315, %v9312
  %v9406 = vpack.c.b16 %v9319, %v9316
  %v9407 = vpack.c.b16 %v9320, %v9317
  %v9408 = vpack.c.b16 %v9321, %v9318
  %v9409 = vpack.c.b16 %v9325, %v9322
  %v9410 = vpack.c.b16 %v9326, %v9323
  %v9411 = vpack.c.b16 %v9327, %v9324
  %v9412 = vpack.c.b16 %v9331, %v9328
  %v9413 = vpack.c.b16 %v9332, %v9329
  %v9414 = vpack.c.b16 %v9333, %v9330
  %v9415 = vpack.c.b16 %v9337, %v9334
  %v9416 = vpack.c.b16 %v9338, %v9335
  %v9417 = vpack.c.b16 %v9339, %v9336
  %v9418 = vpack.c.b16 %v9343, %v9340
  %v9419 = vpack.c.b16 %v9344, %v9341
  %v9420 = vpack.c.b16 %v9345, %v9342
  %v9421 = vpack.c.b16 %v9349, %v9346
  %v9422 = vpack.c.b16 %v9350, %v9347
  %v9423 = vpack.c.b16 %v9351, %v9348
  %v9424 = vpack.c.b16 %v9355, %v9352
  %v9425 = vpack.c.b16 %v9356, %v9353
  %v9426 = vpack.c.b16 %v9357, %v9354
  %v9427 = vpack.c.b16 %v9361, %v9358
  %v9428 = vpack.c.b16 %v9362, %v9359
  %v9429 = vpack.c.b16 %v9363, %v9360
  %v9430 = vpack.c.b16 %v9367, %v9364
  %v9431 = vpack.c.b16 %v9368, %v9365
  %v9432 = vpack.c.b16 %v9369, %v9366
  %v9433 = vpack.c.b16 %v9373, %v9370
  %v9434 = vpack.c.b16 %v9374, %v9371
  %v9435 = vpack.c.b16 %v9375, %v9372
  %v9497 = vsel %vm2572, %v7870, 0
  %9499 = vmatprep.subr.bf16.mxu0 %v9377
  %9500 = vmatpush1.bf16.msra.mxu0 %v9376
  %9501 = vmatprep.subr.bf16.mxu0 %v9380
  %9502 = vmatpush1.bf16.msra.mxu0 %v9379
  %9503 = vmatprep.subr.bf16.mxu0 %v9383
  %9504 = vmatpush1.bf16.msra.mxu0 %v9382
  %9505 = vmatprep.subr.bf16.mxu0 %v9386
  %9506 = vmatpush1.bf16.msra.mxu0 %v9385
  %9507 = vmatprep.subr.bf16.mxu0 %v9389
  %9508 = vmatpush1.bf16.msra.mxu0 %v9388
  %9509 = vmatprep.subr.bf16.mxu0 %v9392
  %9510 = vmatpush1.bf16.msra.mxu0 %v9391
  %9511 = vmatprep.subr.bf16.mxu0 %v9395
  %9512 = vmatpush1.bf16.msra.mxu0 %v9394
  %9513 = vmatprep.subr.bf16.mxu0 %v9398
  %9514 = vmatpush1.bf16.msra.mxu0 %v9397
  %9515 = vmatprep.subr.bf16.mxu0 %v9401
  %9516 = vmatpush1.bf16.msra.mxu0 %v9400
  %9517 = vmatprep.subr.bf16.mxu0 %v9404
  %9518 = vmatpush1.bf16.msra.mxu0 %v9403
  %9519 = vmatprep.subr.bf16.mxu0 %v9407
  %9520 = vmatpush1.bf16.msra.mxu0 %v9406
  %9521 = vmatprep.subr.bf16.mxu0 %v9410
  %9522 = vmatpush1.bf16.msra.mxu0 %v9409
  %9523 = vmatprep.subr.bf16.mxu0 %v9413
  %9524 = vmatpush1.bf16.msra.mxu0 %v9412
  %9525 = vmatprep.subr.bf16.mxu0 %v9416
  %9526 = vmatpush1.bf16.msra.mxu0 %v9415
  %9527 = vmatprep.subr.bf16.mxu0 %v9419
  %9528 = vmatpush1.bf16.msra.mxu0 %v9418
  %9529 = vmatprep.subr.bf16.mxu0 %v9422
  %9530 = vmatpush1.bf16.msra.mxu0 %v9421
  %9531 = vmatprep.mubr.bf16.mxu0 %v7869
  %9532 = vmatmul.mubr.bf16.gmra.mrb[0].mxu0 %v7868
  %v9533 = vpop.f32.mrb[0].mxu0
  %v9534 = vadd.f32 0.0, %v9533
  %v9535 = vpop.f32.mrb[0].mxu0
  %v9536 = vadd.f32 0.0, %v9535
  %v9537 = vpop.f32.mrb[0].mxu0
  %v9538 = vadd.f32 0.0, %v9537
  %v9539 = vpop.f32.mrb[0].mxu0
  %v9540 = vadd.f32 0.0, %v9539
  %9541 = vdwg.mxu0
  %9542 = vmatprep.subr.bf16.mxu0 %v9425
  %9543 = vmatpush1.bf16.msra.mxu0 %v9424
  %9544 = vmatprep.subr.bf16.mxu0 %v9428
  %9545 = vmatpush1.bf16.msra.mxu0 %v9427
  %9546 = vmatprep.subr.bf16.mxu0 %v9431
  %9547 = vmatpush1.bf16.msra.mxu0 %v9430
  %9548 = vmatprep.subr.bf16.mxu0 %v9434
  %9549 = vmatpush1.bf16.msra.mxu0 %v9433
  %9550 = vmatprep.subr.bf16.mxu0 0
  %9551 = vmatpush1.bf16.msra.mxu0 0
  %9552 = vmatprep.subr.bf16.mxu0 0
  %9553 = vmatpush1.bf16.msra.mxu0 0
  %9554 = vmatprep.subr.bf16.mxu0 0
  %9555 = vmatpush1.bf16.msra.mxu0 0
  %9556 = vmatprep.subr.bf16.mxu0 0
  %9557 = vmatpush1.bf16.msra.mxu0 0
  %9558 = vmatprep.subr.bf16.mxu0 0
  %9559 = vmatpush1.bf16.msra.mxu0 0
  %9560 = vmatprep.subr.bf16.mxu0 0
  %9561 = vmatpush1.bf16.msra.mxu0 0
  %9562 = vmatprep.subr.bf16.mxu0 0
  %9563 = vmatpush1.bf16.msra.mxu0 0
  %9564 = vmatprep.subr.bf16.mxu0 0
  %9565 = vmatpush1.bf16.msra.mxu0 0
  %9566 = vmatprep.subr.bf16.mxu0 0
  %9567 = vmatpush1.bf16.msra.mxu0 0
  %9568 = vmatprep.subr.bf16.mxu0 0
  %9569 = vmatpush1.bf16.msra.mxu0 0
  %9570 = vmatprep.subr.bf16.mxu0 0
  %9571 = vmatpush1.bf16.msra.mxu0 0
  %9572 = vmatprep.subr.bf16.mxu0 0
  %9573 = vmatpush1.bf16.msra.mxu0 0
  %9574 = vmatprep.mubr.bf16.mxu0 0
  %9575 = vmatmul.mubr.bf16.gmra.mrb[0].mxu0 %v9497
  %v9576 = vpop.f32.mrb[0].mxu0
  %v9577 = vadd.f32 %v9534, %v9576
  %v9578 = vpop.f32.mrb[0].mxu0
  %v9579 = vadd.f32 %v9536, %v9578
  %v9580 = vpop.f32.mrb[0].mxu0
  %v9581 = vadd.f32 %v9538, %v9580
  %v9582 = vpop.f32.mrb[0].mxu0
  %v9583 = vadd.f32 %v9540, %v9582
  %9584 = vdwg.mxu0
  %9585 = vmatprep.subr.bf16.mxu0 0
  %9586 = vmatpush1.bf16.msra.mxu0 %v9378
  %9587 = vmatprep.subr.bf16.mxu0 0
  %9588 = vmatpush1.bf16.msra.mxu0 %v9381
  %9589 = vmatprep.subr.bf16.mxu0 0
  %9590 = vmatpush1.bf16.msra.mxu0 %v9384
  %9591 = vmatprep.subr.bf16.mxu0 0
  %9592 = vmatpush1.bf16.msra.mxu0 %v9387
  %9593 = vmatprep.subr.bf16.mxu0 0
  %9594 = vmatpush1.bf16.msra.mxu0 %v9390
  %9595 = vmatprep.subr.bf16.mxu0 0
  %9596 = vmatpush1.bf16.msra.mxu0 %v9393
  %9597 = vmatprep.subr.bf16.mxu0 0
  %9598 = vmatpush1.bf16.msra.mxu0 %v9396
  %9599 = vmatprep.subr.bf16.mxu0 0
  %9600 = vmatpush1.bf16.msra.mxu0 %v9399
  %9601 = vmatprep.subr.bf16.mxu0 0
  %9602 = vmatpush1.bf16.msra.mxu0 %v9402
  %9603 = vmatprep.subr.bf16.mxu0 0
  %9604 = vmatpush1.bf16.msra.mxu0 %v9405
  %9605 = vmatprep.subr.bf16.mxu0 0
  %9606 = vmatpush1.bf16.msra.mxu0 %v9408
  %9607 = vmatprep.subr.bf16.mxu0 0
  %9608 = vmatpush1.bf16.msra.mxu0 %v9411
  %9609 = vmatprep.subr.bf16.mxu0 0
  %9610 = vmatpush1.bf16.msra.mxu0 %v9414
  %9611 = vmatprep.subr.bf16.mxu0 0
  %9612 = vmatpush1.bf16.msra.mxu0 %v9417
  %9613 = vmatprep.subr.bf16.mxu0 0
  %9614 = vmatpush1.bf16.msra.mxu0 %v9420
  %9615 = vmatprep.subr.bf16.mxu0 0
  %9616 = vmatpush1.bf16.msra.mxu0 %v9423
  %9617 = vmatprep.mubr.bf16.mxu0 %v7869
  %9618 = vmatmul.mubr.bf16.gmra.mrb[0].mxu0 %v7868
  %v9619 = vpop.f32.mrb[0].mxu0
  %v9620 = vadd.f32 0.0, %v9619
  %v9621 = vpop.f32.mrb[0].mxu0
  %v9622 = vpop.f32.mrb[0].mxu0
  %v9623 = vadd.f32 0.0, %v9622
  %v9624 = vpop.f32.mrb[0].mxu0
  %9625 = vdwg.mxu0
  %9626 = vmatprep.subr.bf16.mxu0 0
  %9627 = vmatpush1.bf16.msra.mxu0 %v9426
  %9628 = vmatprep.subr.bf16.mxu0 0
  %9629 = vmatpush1.bf16.msra.mxu0 %v9429
  %9630 = vmatprep.subr.bf16.mxu0 0
  %9631 = vmatpush1.bf16.msra.mxu0 %v9432
  %9632 = vmatprep.subr.bf16.mxu0 0
  %9633 = vmatpush1.bf16.msra.mxu0 %v9435
  %9634 = vmatprep.subr.bf16.mxu0 0
  %9635 = vmatpush1.bf16.msra.mxu0 0
  %9636 = vmatprep.subr.bf16.mxu0 0
  %9637 = vmatpush1.bf16.msra.mxu0 0
  %9638 = vmatprep.subr.bf16.mxu0 0
  %9639 = vmatpush1.bf16.msra.mxu0 0
  %9640 = vmatprep.subr.bf16.mxu0 0
  %9641 = vmatpush1.bf16.msra.mxu0 0
  %9642 = vmatprep.subr.bf16.mxu0 0
  %9643 = vmatpush1.bf16.msra.mxu0 0
  %9644 = vmatprep.subr.bf16.mxu0 0
  %9645 = vmatpush1.bf16.msra.mxu0 0
  %9646 = vmatprep.subr.bf16.mxu0 0
  %9647 = vmatpush1.bf16.msra.mxu0 0
  %9648 = vmatprep.subr.bf16.mxu0 0
  %9649 = vmatpush1.bf16.msra.mxu0 0
  %9650 = vmatprep.subr.bf16.mxu0 0
  %9651 = vmatpush1.bf16.msra.mxu0 0
  %9652 = vmatprep.subr.bf16.mxu0 0
  %9653 = vmatpush1.bf16.msra.mxu0 0
  %9654 = vmatprep.subr.bf16.mxu0 0
  %9655 = vmatpush1.bf16.msra.mxu0 0
  %9656 = vmatprep.subr.bf16.mxu0 0
  %9657 = vmatpush1.bf16.msra.mxu0 0
  %9658 = vmatprep.mubr.bf16.mxu0 0
  %9659 = vmatmul.mubr.bf16.gmra.mrb[0].mxu0 %v9497
  %v9660 = vpop.f32.mrb[0].mxu0
  %v9661 = vadd.f32 %v9620, %v9660
  %v9662 = vpop.f32.mrb[0].mxu0
  %v9663 = vpop.f32.mrb[0].mxu0
  %v9664 = vadd.f32 %v9623, %v9663
  %v9665 = vpop.f32.mrb[0].mxu0
  %9666 = vdwg.mxu0
  %v9747 = vunpack.c.l.b16 %v9015
  %v9748 = vunpack.c.h.b16 %v9015
  %v9749 = vunpack.c.l.b16 %v9016
  %v9750 = vunpack.c.l.b16 %v9017
  %v9751 = vunpack.c.h.b16 %v9017
  %v9752 = vunpack.c.l.b16 %v9018
  %v9753 = vunpack.c.l.b16 %v9019
  %v9754 = vunpack.c.h.b16 %v9019
  %v9755 = vunpack.c.l.b16 %v9020
  %v9756 = vunpack.c.l.b16 %v9021
  %v9757 = vunpack.c.h.b16 %v9021
  %v9758 = vunpack.c.l.b16 %v9022
  %v9759 = vunpack.c.l.b16 %v9023
  %v9760 = vunpack.c.h.b16 %v9023
  %v9761 = vunpack.c.l.b16 %v9024
  %v9762 = vunpack.c.l.b16 %v9025
  %v9763 = vunpack.c.h.b16 %v9025
  %v9764 = vunpack.c.l.b16 %v9026
  %v9765 = vunpack.c.l.b16 %v9027
  %v9766 = vunpack.c.h.b16 %v9027
  %v9767 = vunpack.c.l.b16 %v9028
  %v9768 = vunpack.c.l.b16 %v9029
  %v9769 = vunpack.c.h.b16 %v9029
  %v9770 = vunpack.c.l.b16 %v9030
  %v9771 = vunpack.c.l.b16 %v9031
  %v9772 = vunpack.c.h.b16 %v9031
  %v9773 = vunpack.c.l.b16 %v9032
  %v9774 = vunpack.c.l.b16 %v9033
  %v9775 = vunpack.c.h.b16 %v9033
  %v9776 = vunpack.c.l.b16 %v9034
  %v9777 = vunpack.c.l.b16 %v9035
  %v9778 = vunpack.c.h.b16 %v9035
  %v9779 = vunpack.c.l.b16 %v9036
  %v9780 = vunpack.c.l.b16 %v9037
  %v9781 = vunpack.c.h.b16 %v9037
  %v9782 = vunpack.c.l.b16 %v9038
  %v9783 = vunpack.c.l.b16 %v9039
  %v9784 = vunpack.c.h.b16 %v9039
  %v9785 = vunpack.c.l.b16 %v9040
  %v9786 = vunpack.c.l.b16 %v9041
  %v9787 = vunpack.c.h.b16 %v9041
  %v9788 = vunpack.c.l.b16 %v9042
  %v9789 = vunpack.c.l.b16 %v9043
  %v9790 = vunpack.c.h.b16 %v9043
  %v9791 = vunpack.c.l.b16 %v9044
  %v9792 = vunpack.c.l.b16 %v9045
  %v9793 = vunpack.c.h.b16 %v9045
  %v9794 = vunpack.c.l.b16 %v9046
  %v9795 = vunpack.c.l.b16 %v9047
  %v9796 = vunpack.c.h.b16 %v9047
  %v9797 = vunpack.c.l.b16 %v9048
  %v9798 = vunpack.c.l.b16 %v9049
  %v9799 = vunpack.c.h.b16 %v9049
  %v9800 = vunpack.c.l.b16 %v9050
  %v9801 = vunpack.c.l.b16 %v9051
  %v9802 = vunpack.c.h.b16 %v9051
  %v9803 = vunpack.c.l.b16 %v9052
  %v9804 = vunpack.c.l.b16 %v9053
  %v9805 = vunpack.c.h.b16 %v9053
  %v9806 = vunpack.c.l.b16 %v9054
  %v9807 = vunpack.c.l.b16 %v9055
  %v9808 = vunpack.c.h.b16 %v9055
  %v9809 = vunpack.c.l.b16 %v9056
  %v9810 = vunpack.c.l.b16 %v9057
  %v9811 = vunpack.c.h.b16 %v9057
  %v9812 = vunpack.c.l.b16 %v9058
  %v9813 = vunpack.c.l.b16 %v9059
  %v9814 = vunpack.c.h.b16 %v9059
  %v9815 = vunpack.c.l.b16 %v9060
  %v9816 = vunpack.c.l.b16 %v9061
  %v9817 = vunpack.c.h.b16 %v9061
  %v9818 = vunpack.c.l.b16 %v9062
  %v9819 = vunpack.c.l.b16 %v9063
  %v9820 = vunpack.c.h.b16 %v9063
  %v9821 = vunpack.c.l.b16 %v9064
  %v9822 = vunpack.c.l.b16 %v9065
  %v9823 = vunpack.c.h.b16 %v9065
  %v9824 = vunpack.c.l.b16 %v9066
  %v9825 = vunpack.c.l.b16 %v9067
  %v9826 = vunpack.c.h.b16 %v9067
  %v9827 = vunpack.c.l.b16 %v9068
  %v9828 = vunpack.c.l.b16 %v9069
  %v9829 = vunpack.c.h.b16 %v9069
  %v9830 = vunpack.c.l.b16 %v9070
  %v9831 = vunpack.c.l.b16 %v9071
  %v9832 = vunpack.c.h.b16 %v9071
  %v9833 = vunpack.c.l.b16 %v9072
  %v9834 = vunpack.c.l.b16 %v9073
  %v9835 = vunpack.c.h.b16 %v9073
  %v9836 = vunpack.c.l.b16 %v9074
  %v9837 = vunpack.c.l.b16 %v9075
  %v9838 = vunpack.c.h.b16 %v9075
  %v9839 = vunpack.c.l.b16 %v9076
  %v9840 = vunpack.c.l.b16 %v9077
  %v9841 = vunpack.c.h.b16 %v9077
  %v9842 = vunpack.c.l.b16 %v9078
  %v9843 = vunpack.c.l.b16 %v9079
  %v9844 = vunpack.c.h.b16 %v9079
  %v9845 = vunpack.c.l.b16 %v9080
  %v9846 = vunpack.c.l.b16 %v9081
  %v9847 = vunpack.c.h.b16 %v9081
  %v9848 = vunpack.c.l.b16 %v9082
  %v9849 = vunpack.c.l.b16 %v9083
  %v9850 = vunpack.c.h.b16 %v9083
  %v9851 = vunpack.c.l.b16 %v9084
  %v9852 = vunpack.c.l.b16 %v9085
  %v9853 = vunpack.c.h.b16 %v9085
  %v9854 = vunpack.c.l.b16 %v9086
  %v9855 = vunpack.c.l.b16 %v9087
  %v9856 = vunpack.c.h.b16 %v9087
  %v9857 = vunpack.c.l.b16 %v9088
  %v9858 = vunpack.c.l.b16 %v9089
  %v9859 = vunpack.c.h.b16 %v9089
  %v9860 = vunpack.c.l.b16 %v9090
  %v9861 = vunpack.c.l.b16 %v9091
  %v9862 = vunpack.c.h.b16 %v9091
  %v9863 = vunpack.c.l.b16 %v9092
  %v9864 = vunpack.c.l.b16 %v9093
  %v9865 = vunpack.c.h.b16 %v9093
  %v9866 = vunpack.c.l.b16 %v9094
  %v9867 = vpack.c.b16 %v9750, %v9747
  %v9868 = vpack.c.b16 %v9751, %v9748
  %v9869 = vpack.c.b16 %v9752, %v9749
  %v9870 = vpack.c.b16 %v9756, %v9753
  %v9871 = vpack.c.b16 %v9757, %v9754
  %v9872 = vpack.c.b16 %v9758, %v9755
  %v9873 = vpack.c.b16 %v9762, %v9759
  %v9874 = vpack.c.b16 %v9763, %v9760
  %v9875 = vpack.c.b16 %v9764, %v9761
  %v9876 = vpack.c.b16 %v9768, %v9765
  %v9877 = vpack.c.b16 %v9769, %v9766
  %v9878 = vpack.c.b16 %v9770, %v9767
  %v9879 = vpack.c.b16 %v9774, %v9771
  %v9880 = vpack.c.b16 %v9775, %v9772
  %v9881 = vpack.c.b16 %v9776, %v9773
  %v9882 = vpack.c.b16 %v9780, %v9777
  %v9883 = vpack.c.b16 %v9781, %v9778
  %v9884 = vpack.c.b16 %v9782, %v9779
  %v9885 = vpack.c.b16 %v9786, %v9783
  %v9886 = vpack.c.b16 %v9787, %v9784
  %v9887 = vpack.c.b16 %v9788, %v9785
  %v9888 = vpack.c.b16 %v9792, %v9789
  %v9889 = vpack.c.b16 %v9793, %v9790
  %v9890 = vpack.c.b16 %v9794, %v9791
  %v9891 = vpack.c.b16 %v9798, %v9795
  %v9892 = vpack.c.b16 %v9799, %v9796
  %v9893 = vpack.c.b16 %v9800, %v9797
  %v9894 = vpack.c.b16 %v9804, %v9801
  %v9895 = vpack.c.b16 %v9805, %v9802
  %v9896 = vpack.c.b16 %v9806, %v9803
  %v9897 = vpack.c.b16 %v9810, %v9807
  %v9898 = vpack.c.b16 %v9811, %v9808
  %v9899 = vpack.c.b16 %v9812, %v9809
  %v9900 = vpack.c.b16 %v9816, %v9813
  %v9901 = vpack.c.b16 %v9817, %v9814
  %v9902 = vpack.c.b16 %v9818, %v9815
  %v9903 = vpack.c.b16 %v9822, %v9819
  %v9904 = vpack.c.b16 %v9823, %v9820
  %v9905 = vpack.c.b16 %v9824, %v9821
  %v9906 = vpack.c.b16 %v9828, %v9825
  %v9907 = vpack.c.b16 %v9829, %v9826
  %v9908 = vpack.c.b16 %v9830, %v9827
  %v9909 = vpack.c.b16 %v9834, %v9831
  %v9910 = vpack.c.b16 %v9835, %v9832
  %v9911 = vpack.c.b16 %v9836, %v9833
  %v9912 = vpack.c.b16 %v9840, %v9837
  %v9913 = vpack.c.b16 %v9841, %v9838
  %v9914 = vpack.c.b16 %v9842, %v9839
  %v9915 = vpack.c.b16 %v9846, %v9843
  %v9916 = vpack.c.b16 %v9847, %v9844
  %v9917 = vpack.c.b16 %v9848, %v9845
  %v9918 = vpack.c.b16 %v9852, %v9849
  %v9919 = vpack.c.b16 %v9853, %v9850
  %v9920 = vpack.c.b16 %v9854, %v9851
  %v9921 = vpack.c.b16 %v9858, %v9855
  %v9922 = vpack.c.b16 %v9859, %v9856
  %v9923 = vpack.c.b16 %v9860, %v9857
  %v9924 = vpack.c.b16 %v9864, %v9861
  %v9925 = vpack.c.b16 %v9865, %v9862
  %v9926 = vpack.c.b16 %v9866, %v9863
  %9987 = vmatprep.subr.bf16.mxu0 %v9868
  %9988 = vmatpush1.bf16.msra.mxu0 %v9867
  %9989 = vmatprep.subr.bf16.mxu0 %v9871
  %9990 = vmatpush1.bf16.msra.mxu0 %v9870
  %9991 = vmatprep.subr.bf16.mxu0 %v9874
  %9992 = vmatpush1.bf16.msra.mxu0 %v9873
  %9993 = vmatprep.subr.bf16.mxu0 %v9877
  %9994 = vmatpush1.bf16.msra.mxu0 %v9876
  %9995 = vmatprep.subr.bf16.mxu0 %v9880
  %9996 = vmatpush1.bf16.msra.mxu0 %v9879
  %9997 = vmatprep.subr.bf16.mxu0 %v9883
  %9998 = vmatpush1.bf16.msra.mxu0 %v9882
  %9999 = vmatprep.subr.bf16.mxu0 %v9886
  %10000 = vmatpush1.bf16.msra.mxu0 %v9885
  %10001 = vmatprep.subr.bf16.mxu0 %v9889
  %10002 = vmatpush1.bf16.msra.mxu0 %v9888
  %10003 = vmatprep.subr.bf16.mxu0 %v9892
  %10004 = vmatpush1.bf16.msra.mxu0 %v9891
  %10005 = vmatprep.subr.bf16.mxu0 %v9895
  %10006 = vmatpush1.bf16.msra.mxu0 %v9894
  %10007 = vmatprep.subr.bf16.mxu0 %v9898
  %10008 = vmatpush1.bf16.msra.mxu0 %v9897
  %10009 = vmatprep.subr.bf16.mxu0 %v9901
  %10010 = vmatpush1.bf16.msra.mxu0 %v9900
  %10011 = vmatprep.subr.bf16.mxu0 %v9904
  %10012 = vmatpush1.bf16.msra.mxu0 %v9903
  %10013 = vmatprep.subr.bf16.mxu0 %v9907
  %10014 = vmatpush1.bf16.msra.mxu0 %v9906
  %10015 = vmatprep.subr.bf16.mxu0 %v9910
  %10016 = vmatpush1.bf16.msra.mxu0 %v9909
  %10017 = vmatprep.subr.bf16.mxu0 %v9913
  %10018 = vmatpush1.bf16.msra.mxu0 %v9912
  %10019 = vmatprep.mubr.bf16.mxu0 %v7676
  %10020 = vmatmul.mubr.bf16.gmra.mrb[0].mxu0 %v7675
  %v10021 = vpop.f32.mrb[0].mxu0
  %v10022 = vadd.f32 %v9577, %v10021
  %v10023 = vpop.f32.mrb[0].mxu0
  %v10024 = vadd.f32 %v9579, %v10023
  %v10025 = vpop.f32.mrb[0].mxu0
  %v10026 = vadd.f32 %v9581, %v10025
  %v10027 = vpop.f32.mrb[0].mxu0
  %v10028 = vadd.f32 %v9583, %v10027
  %10029 = vdwg.mxu0
  %10030 = vmatprep.subr.bf16.mxu0 %v9916
  %10031 = vmatpush1.bf16.msra.mxu0 %v9915
  %10032 = vmatprep.subr.bf16.mxu0 %v9919
  %10033 = vmatpush1.bf16.msra.mxu0 %v9918
  %10034 = vmatprep.subr.bf16.mxu0 %v9922
  %10035 = vmatpush1.bf16.msra.mxu0 %v9921
  %10036 = vmatprep.subr.bf16.mxu0 %v9925
  %10037 = vmatpush1.bf16.msra.mxu0 %v9924
  %10038 = vmatprep.subr.bf16.mxu0 0
  %10039 = vmatpush1.bf16.msra.mxu0 0
  %10040 = vmatprep.subr.bf16.mxu0 0
  %10041 = vmatpush1.bf16.msra.mxu0 0
  %10042 = vmatprep.subr.bf16.mxu0 0
  %10043 = vmatpush1.bf16.msra.mxu0 0
  %10044 = vmatprep.subr.bf16.mxu0 0
  %10045 = vmatpush1.bf16.msra.mxu0 0
  %10046 = vmatprep.subr.bf16.mxu0 0
  %10047 = vmatpush1.bf16.msra.mxu0 0
  %10048 = vmatprep.subr.bf16.mxu0 0
  %10049 = vmatpush1.bf16.msra.mxu0 0
  %10050 = vmatprep.subr.bf16.mxu0 0
  %10051 = vmatpush1.bf16.msra.mxu0 0
  %10052 = vmatprep.subr.bf16.mxu0 0
  %10053 = vmatpush1.bf16.msra.mxu0 0
  %10054 = vmatprep.subr.bf16.mxu0 0
  %10055 = vmatpush1.bf16.msra.mxu0 0
  %10056 = vmatprep.subr.bf16.mxu0 0
  %10057 = vmatpush1.bf16.msra.mxu0 0
  %10058 = vmatprep.subr.bf16.mxu0 0
  %10059 = vmatpush1.bf16.msra.mxu0 0
  %10060 = vmatprep.subr.bf16.mxu0 0
  %10061 = vmatpush1.bf16.msra.mxu0 0
  %10062 = vmatprep.mubr.bf16.mxu0 0
  %10063 = vmatmul.mubr.bf16.gmra.mrb[0].mxu0 %v8844
  %v10064 = vpop.f32.mrb[0].mxu0
  %v10065 = vadd.f32 %v10022, %v10064
  %v10066 = vpop.f32.mrb[0].mxu0
  %v10067 = vadd.f32 %v10024, %v10066
  %v10068 = vpop.f32.mrb[0].mxu0
  %v10069 = vadd.f32 %v10026, %v10068
  %v10070 = vpop.f32.mrb[0].mxu0
  %v10071 = vadd.f32 %v10028, %v10070
  %10072 = vdwg.mxu0
  %10073 = vmatprep.subr.bf16.mxu0 0
  %10074 = vmatpush1.bf16.msra.mxu0 %v9869
  %10075 = vmatprep.subr.bf16.mxu0 0
  %10076 = vmatpush1.bf16.msra.mxu0 %v9872
  %10077 = vmatprep.subr.bf16.mxu0 0
  %10078 = vmatpush1.bf16.msra.mxu0 %v9875
  %10079 = vmatprep.subr.bf16.mxu0 0
  %10080 = vmatpush1.bf16.msra.mxu0 %v9878
  %10081 = vmatprep.subr.bf16.mxu0 0
  %10082 = vmatpush1.bf16.msra.mxu0 %v9881
  %10083 = vmatprep.subr.bf16.mxu0 0
  %10084 = vmatpush1.bf16.msra.mxu0 %v9884
  %10085 = vmatprep.subr.bf16.mxu0 0
  %10086 = vmatpush1.bf16.msra.mxu0 %v9887
  %10087 = vmatprep.subr.bf16.mxu0 0
  %10088 = vmatpush1.bf16.msra.mxu0 %v9890
  %10089 = vmatprep.subr.bf16.mxu0 0
  %10090 = vmatpush1.bf16.msra.mxu0 %v9893
  %10091 = vmatprep.subr.bf16.mxu0 0
  %10092 = vmatpush1.bf16.msra.mxu0 %v9896
  %10093 = vmatprep.subr.bf16.mxu0 0
  %10094 = vmatpush1.bf16.msra.mxu0 %v9899
  %10095 = vmatprep.subr.bf16.mxu0 0
  %10096 = vmatpush1.bf16.msra.mxu0 %v9902
  %10097 = vmatprep.subr.bf16.mxu0 0
  %10098 = vmatpush1.bf16.msra.mxu0 %v9905
  %10099 = vmatprep.subr.bf16.mxu0 0
  %10100 = vmatpush1.bf16.msra.mxu0 %v9908
  %10101 = vmatprep.subr.bf16.mxu0 0
  %10102 = vmatpush1.bf16.msra.mxu0 %v9911
  %10103 = vmatprep.subr.bf16.mxu0 0
  %10104 = vmatpush1.bf16.msra.mxu0 %v9914
  %10105 = vmatprep.mubr.bf16.mxu0 %v7676
  %10106 = vmatmul.mubr.bf16.gmra.mrb[0].mxu0 %v7675
  %v10107 = vpop.f32.mrb[0].mxu0
  %v10108 = vadd.f32 %v9661, %v10107
  %v10109 = vpop.f32.mrb[0].mxu0
  %v10110 = vpop.f32.mrb[0].mxu0
  %v10111 = vadd.f32 %v9664, %v10110
  %v10112 = vpop.f32.mrb[0].mxu0
  %10113 = vdwg.mxu0
  %10114 = vmatprep.subr.bf16.mxu0 0
  %10115 = vmatpush1.bf16.msra.mxu0 %v9917
  %10116 = vmatprep.subr.bf16.mxu0 0
  %10117 = vmatpush1.bf16.msra.mxu0 %v9920
  %10118 = vmatprep.subr.bf16.mxu0 0
  %10119 = vmatpush1.bf16.msra.mxu0 %v9923
  %10120 = vmatprep.subr.bf16.mxu0 0
  %10121 = vmatpush1.bf16.msra.mxu0 %v9926
  %10122 = vmatprep.subr.bf16.mxu0 0
  %10123 = vmatpush1.bf16.msra.mxu0 0
  %10124 = vmatprep.subr.bf16.mxu0 0
  %10125 = vmatpush1.bf16.msra.mxu0 0
  %10126 = vmatprep.subr.bf16.mxu0 0
  %10127 = vmatpush1.bf16.msra.mxu0 0
  %10128 = vmatprep.subr.bf16.mxu0 0
  %10129 = vmatpush1.bf16.msra.mxu0 0
  %10130 = vmatprep.subr.bf16.mxu0 0
  %10131 = vmatpush1.bf16.msra.mxu0 0
  %10132 = vmatprep.subr.bf16.mxu0 0
  %10133 = vmatpush1.bf16.msra.mxu0 0
  %10134 = vmatprep.subr.bf16.mxu0 0
  %10135 = vmatpush1.bf16.msra.mxu0 0
  %10136 = vmatprep.subr.bf16.mxu0 0
  %10137 = vmatpush1.bf16.msra.mxu0 0
  %10138 = vmatprep.subr.bf16.mxu0 0
  %10139 = vmatpush1.bf16.msra.mxu0 0
  %10140 = vmatprep.subr.bf16.mxu0 0
  %10141 = vmatpush1.bf16.msra.mxu0 0
  %10142 = vmatprep.subr.bf16.mxu0 0
  %10143 = vmatpush1.bf16.msra.mxu0 0
  %10144 = vmatprep.subr.bf16.mxu0 0
  %10145 = vmatpush1.bf16.msra.mxu0 0
  %10146 = vmatprep.mubr.bf16.mxu0 0
  %10147 = vmatmul.mubr.bf16.gmra.mrb[0].mxu0 %v8844
  %v10148 = vpop.f32.mrb[0].mxu0
  %v10149 = vadd.f32 %v10108, %v10148
  %v10150 = vpop.f32.mrb[0].mxu0
  %v10151 = vpop.f32.mrb[0].mxu0
  %v10152 = vadd.f32 %v10111, %v10151
  %v10153 = vpop.f32.mrb[0].mxu0
  %10154 = vdwg.mxu0
  %v10155 = vadd.f32 %v8924, %v8928
  %v10156 = vrot.slane %v10155, 4
  %v10157 = vadd.f32 %v10155, %v10156
  %v10158 = vrot.slane %v10157, 2
  %v10159 = vadd.f32 %v10157, %v10158
  %v10160 = vrot.slane %v10159, 1
  %v10161 = vadd.f32 %v10159, %v10160
  %v10162 = vadd.f32 %v8926, %v8930
  %v10163 = vrot.slane %v10162, 4
  %v10164 = vadd.f32 %v10162, %v10163
  %v10165 = vrot.slane %v10164, 2
  %v10166 = vadd.f32 %v10164, %v10165
  %v10167 = vrot.slane %v10166, 1
  %v10168 = vadd.f32 %v10166, %v10167
  %v10169 = vsel %vm6938, %v9008, 0.0
  %v10170 = vsel %vm6938, %v9011, 0.0
  %v10171 = vadd.f32 %v10169, %v10170
  %v10172 = vrot.slane %v10171, 4
  %v10173 = vadd.f32 %v10171, %v10172
  %v10174 = vrot.slane %v10173, 2
  %v10175 = vadd.f32 %v10173, %v10174
  %v10176 = vrot.slane %v10175, 1
  %v10177 = vadd.f32 %v10175, %v10176
  %v10178 = vadd.f32 %v10065, %v10069
  %v10179 = vrot.slane %v10178, 4
  %v10180 = vadd.f32 %v10178, %v10179
  %v10181 = vrot.slane %v10180, 2
  %v10182 = vadd.f32 %v10180, %v10181
  %v10183 = vrot.slane %v10182, 1
  %v10184 = vadd.f32 %v10182, %v10183
  %v10185 = vadd.f32 %v10067, %v10071
  %v10186 = vrot.slane %v10185, 4
  %v10187 = vadd.f32 %v10185, %v10186
  %v10188 = vrot.slane %v10187, 2
  %v10189 = vadd.f32 %v10187, %v10188
  %v10190 = vrot.slane %v10189, 1
  %v10191 = vadd.f32 %v10189, %v10190
  %v10192 = vsel %vm6938, %v10149, 0.0
  %v10193 = vsel %vm6938, %v10152, 0.0
  %v10194 = vadd.f32 %v10192, %v10193
  %v10195 = vrot.slane %v10194, 4
  %v10196 = vadd.f32 %v10194, %v10195
  %v10197 = vrot.slane %v10196, 2
  %v10198 = vadd.f32 %v10196, %v10197
  %v10199 = vrot.slane %v10198, 1
  %v10200 = vadd.f32 %v10198, %v10199
  %v10201 = vadd.f32 %v10161, %v10184
  %v10202 = vadd.f32 %v10168, %v10191
  %v10203 = vadd.f32 %v10177, %v10200
  %v10204 = vmul.f32 %v8924, %v8924
  %v10205 = vmul.f32 %v8926, %v8926
  %v10206 = vmul.f32 %v9008, %v9008
  %v10207 = vmul.f32 %v8928, %v8928
  %v10208 = vmul.f32 %v8930, %v8930
  %v10209 = vmul.f32 %v9011, %v9011
  %v10210 = vadd.f32 %v10204, %v10207
  %v10211 = vrot.slane %v10210, 4
  %v10212 = vadd.f32 %v10210, %v10211
  %v10213 = vrot.slane %v10212, 2
  %v10214 = vadd.f32 %v10212, %v10213
  %v10215 = vrot.slane %v10214, 1
  %v10216 = vadd.f32 %v10214, %v10215
  %v10217 = vadd.f32 %v10205, %v10208
  %v10218 = vrot.slane %v10217, 4
  %v10219 = vadd.f32 %v10217, %v10218
  %v10220 = vrot.slane %v10219, 2
  %v10221 = vadd.f32 %v10219, %v10220
  %v10222 = vrot.slane %v10221, 1
  %v10223 = vadd.f32 %v10221, %v10222
  %v10224 = vsel %vm6938, %v10206, 0.0
  %v10225 = vsel %vm6938, %v10209, 0.0
  %v10226 = vadd.f32 %v10224, %v10225
  %v10227 = vrot.slane %v10226, 4
  %v10228 = vadd.f32 %v10226, %v10227
  %v10229 = vrot.slane %v10228, 2
  %v10230 = vadd.f32 %v10228, %v10229
  %v10231 = vrot.slane %v10230, 1
  %v10232 = vadd.f32 %v10230, %v10231
  %v10233 = vmul.f32 %v10065, %v10065
  %v10234 = vmul.f32 %v10067, %v10067
  %v10235 = vmul.f32 %v10149, %v10149
  %v10236 = vmul.f32 %v10069, %v10069
  %v10237 = vmul.f32 %v10071, %v10071
  %v10238 = vmul.f32 %v10152, %v10152
  %v10239 = vadd.f32 %v10233, %v10236
  %v10240 = vrot.slane %v10239, 4
  %v10241 = vadd.f32 %v10239, %v10240
  %v10242 = vrot.slane %v10241, 2
  %v10243 = vadd.f32 %v10241, %v10242
  %v10244 = vrot.slane %v10243, 1
  %v10245 = vadd.f32 %v10243, %v10244
  %v10246 = vadd.f32 %v10234, %v10237
  %v10247 = vrot.slane %v10246, 4
  %v10248 = vadd.f32 %v10246, %v10247
  %v10249 = vrot.slane %v10248, 2
  %v10250 = vadd.f32 %v10248, %v10249
  %v10251 = vrot.slane %v10250, 1
  %v10252 = vadd.f32 %v10250, %v10251
  %v10253 = vsel %vm6938, %v10235, 0.0
  %v10254 = vsel %vm6938, %v10238, 0.0
  %v10255 = vadd.f32 %v10253, %v10254
  %v10256 = vrot.slane %v10255, 4
  %v10257 = vadd.f32 %v10255, %v10256
  %v10258 = vrot.slane %v10257, 2
  %v10259 = vadd.f32 %v10257, %v10258
  %v10260 = vrot.slane %v10259, 1
  %v10261 = vadd.f32 %v10259, %v10260
  %v10262 = vadd.f32 %v10216, %v10245
  %v10263 = vadd.f32 %v10223, %v10252
  %v10264 = vadd.f32 %v10232, %v10261
  %v10265 = vld [vmem:[%s16] sm:$0xf]
  %v10266 = vld [vmem:[%s16 + $0x4] sm:$0xf]
  %v10267 = vld [vmem:[%s16 + $0x8] sm:$0xf]
  %v10268 = vld [vmem:[%s16 + $0xc] sm:$0xf]
  %v10269 = vld [vmem:[%s16 + $0x10] sm:$0xf]
  %v10270 = vld [vmem:[%s16 + $0x14] sm:$0xf]
  %v10271 = vld [vmem:[%s16 + $0x18] sm:$0xf]
  %v10272 = vld [vmem:[%s16 + $0x1c] sm:$0xf]
  %v10273 = vld [vmem:[%s16 + $0x20] sm:$0xf]
  %v10274 = vld [vmem:[%s16 + $0x24] sm:$0xf]
  %v10275 = vld [vmem:[%s16 + $0x28] sm:$0xf]
  %v10276 = vld [vmem:[%s16 + $0x2c] sm:$0xf]
  %v10277 = vld [vmem:[%s16 + $0x30] sm:$0xf]
  %v10278 = vld [vmem:[%s16 + $0x34] sm:$0xf]
  %v10279 = vld [vmem:[%s16 + $0x38] sm:$0xf]
  %v10280 = vld [vmem:[%s16 + $0x3c] sm:$0xf]
  %v10281 = vld [vmem:[%s16 + $0x40] sm:$0xf]
  %v10282 = vld [vmem:[%s16 + $0x44] sm:$0xf]
  %v10283 = vld [vmem:[%s16 + $0x48] sm:$0xf]
  %v10284 = vld [vmem:[%s16 + $0x4c] sm:$0xf]
  %v10285 = vld [vmem:[%s16 + $0x50] sm:$0xf]
  %v10286 = vld [vmem:[%s16 + $0x54] sm:$0xf]
  %v10287 = vld [vmem:[%s16 + $0x58] sm:$0xf]
  %v10288 = vld [vmem:[%s16 + $0x5c] sm:$0xf]
  %v10289 = vld [vmem:[%s16 + $0x60] sm:$0xf]
  %v10290 = vld [vmem:[%s16 + $0x64] sm:$0xf]
  %v10291 = vld [vmem:[%s16 + $0x68] sm:$0xf]
  %v10292 = vld [vmem:[%s16 + $0x6c] sm:$0xf]
  %v10293 = vld [vmem:[%s16 + $0x70] sm:$0xf]
  %v10294 = vld [vmem:[%s16 + $0x74] sm:$0xf]
  %v10295 = vld [vmem:[%s16 + $0x78] sm:$0xf]
  %v10296 = vld [vmem:[%s16 + $0x7c] sm:$0xf]
  %v10297 = vld [vmem:[%s16 + $0x80] sm:$0xf]
  %v10298 = vld [vmem:[%s16 + $0x84] sm:$0xf]
  %v10299 = vld [vmem:[%s16 + $0x88] sm:$0xf]
  %v10300 = vld [vmem:[%s16 + $0x8c] sm:$0xf]
  %v10301 = vunpack.c.l.bf16 %v10265
  %v10302 = vunpack.c.l.bf16 %v10266
  %v10303 = vunpack.c.l.bf16 %v10267
  %v10304 = vunpack.c.l.bf16 %v10268
  %v10305 = vunpack.c.l.bf16 %v10269
  %v10306 = vunpack.c.l.bf16 %v10270
  %v10307 = vunpack.c.l.bf16 %v10271
  %v10308 = vunpack.c.l.bf16 %v10272
  %v10309 = vunpack.c.l.bf16 %v10273
  %v10310 = vunpack.c.l.bf16 %v10274
  %v10311 = vunpack.c.l.bf16 %v10275
  %v10312 = vunpack.c.l.bf16 %v10276
  %v10313 = vunpack.c.l.bf16 %v10277
  %v10314 = vunpack.c.l.bf16 %v10278
  %v10315 = vunpack.c.l.bf16 %v10279
  %v10316 = vunpack.c.l.bf16 %v10280
  %v10317 = vunpack.c.l.bf16 %v10281
  %v10318 = vunpack.c.l.bf16 %v10282
  %v10319 = vunpack.c.l.bf16 %v10283
  %v10320 = vunpack.c.l.bf16 %v10284
  %v10321 = vunpack.c.l.bf16 %v10285
  %v10322 = vunpack.c.l.bf16 %v10286
  %v10323 = vunpack.c.l.bf16 %v10287
  %v10324 = vunpack.c.l.bf16 %v10288
  %v10325 = vunpack.c.l.bf16 %v10289
  %v10326 = vunpack.c.l.bf16 %v10290
  %v10327 = vunpack.c.l.bf16 %v10291
  %v10328 = vunpack.c.l.bf16 %v10292
  %v10329 = vunpack.c.l.bf16 %v10293
  %v10330 = vunpack.c.l.bf16 %v10294
  %v10331 = vunpack.c.l.bf16 %v10295
  %v10332 = vunpack.c.l.bf16 %v10296
  %v10333 = vunpack.c.l.bf16 %v10297
  %v10334 = vunpack.c.l.bf16 %v10298
  %v10335 = vunpack.c.l.bf16 %v10299
  %v10336 = vunpack.c.l.bf16 %v10300
  %v10337 = vld [vmem:[%s17] sm:$0xff]
  %v10338 = vld [vmem:[%s17 + $0x8] sm:$0xf]
  %v10339 = vld [vmem:[%s17 + $0xc] sm:$0xff]
  %v10340 = vld [vmem:[%s17 + $0x14] sm:$0xf]
  %v10341 = vunpack.c.l.bf16 %v10337
  %v10342 = vunpack.c.h.bf16 %v10337
  %v10343 = vunpack.c.l.bf16 %v10338
  %v10344 = vunpack.c.l.bf16 %v10339
  %v10345 = vunpack.c.h.bf16 %v10339
  %v10346 = vunpack.c.l.bf16 %v10340
  %v10348 = vsel %vm6938, %v10203, 0
  %10350 = vmatprep.subr.mxu0 0.0
  %10351 = vmatpush1.msra.mxu0 %v10301
  %10352 = vmatprep.subr.mxu0 0.0
  %10353 = vmatpush1.msra.mxu0 %v10302
  %10354 = vmatprep.subr.mxu0 0.0
  %10355 = vmatpush1.msra.mxu0 %v10303
  %10356 = vmatprep.subr.mxu0 0.0
  %10357 = vmatpush1.msra.mxu0 %v10304
  %10358 = vmatprep.subr.mxu0 0.0
  %10359 = vmatpush1.msra.mxu0 %v10305
  %10360 = vmatprep.subr.mxu0 0.0
  %10361 = vmatpush1.msra.mxu0 %v10306
  %10362 = vmatprep.subr.mxu0 0.0
  %10363 = vmatpush1.msra.mxu0 %v10307
  %10364 = vmatprep.subr.mxu0 0.0
  %10365 = vmatpush1.msra.mxu0 %v10308
  %10366 = vmatprep.subr.mxu0 0.0
  %10367 = vmatpush1.msra.mxu0 %v10309
  %10368 = vmatprep.subr.mxu0 0.0
  %10369 = vmatpush1.msra.mxu0 %v10310
  %10370 = vmatprep.subr.mxu0 0.0
  %10371 = vmatpush1.msra.mxu0 %v10311
  %10372 = vmatprep.subr.mxu0 0.0
  %10373 = vmatpush1.msra.mxu0 %v10312
  %10374 = vmatprep.subr.mxu0 0.0
  %10375 = vmatpush1.msra.mxu0 %v10313
  %10376 = vmatprep.subr.mxu0 0.0
  %10377 = vmatpush1.msra.mxu0 %v10314
  %10378 = vmatprep.subr.mxu0 0.0
  %10379 = vmatpush1.msra.mxu0 %v10315
  %10380 = vmatprep.subr.mxu0 0.0
  %10381 = vmatpush1.msra.mxu0 %v10316
  %10382 = vmatprep.subr.mxu0 0.0
  %10383 = vmatpush1.msra.mxu0 %v10317
  %10384 = vmatprep.subr.mxu0 0.0
  %10385 = vmatpush1.msra.mxu0 %v10318
  %10386 = vmatprep.subr.mxu0 0.0
  %10387 = vmatpush1.msra.mxu0 %v10319
  %10388 = vmatprep.subr.mxu0 0.0
  %10389 = vmatpush1.msra.mxu0 %v10320
  %10390 = vmatprep.subr.mxu0 0.0
  %10391 = vmatpush1.msra.mxu0 %v10321
  %10392 = vmatprep.subr.mxu0 0.0
  %10393 = vmatpush1.msra.mxu0 %v10322
  %10394 = vmatprep.subr.mxu0 0.0
  %10395 = vmatpush1.msra.mxu0 %v10323
  %10396 = vmatprep.subr.mxu0 0.0
  %10397 = vmatpush1.msra.mxu0 %v10324
  %10398 = vmatprep.subr.mxu0 0.0
  %10399 = vmatpush1.msra.mxu0 %v10325
  %10400 = vmatprep.subr.mxu0 0.0
  %10401 = vmatpush1.msra.mxu0 %v10326
  %10402 = vmatprep.subr.mxu0 0.0
  %10403 = vmatpush1.msra.mxu0 %v10327
  %10404 = vmatprep.subr.mxu0 0.0
  %10405 = vmatpush1.msra.mxu0 %v10328
  %10406 = vmatprep.subr.mxu0 0.0
  %10407 = vmatpush1.msra.mxu0 %v10329
  %10408 = vmatprep.subr.mxu0 0.0
  %10409 = vmatpush1.msra.mxu0 %v10330
  %10410 = vmatprep.subr.mxu0 0.0
  %10411 = vmatpush1.msra.mxu0 %v10331
  %10412 = vmatprep.subr.mxu0 0.0
  %10413 = vmatpush1.msra.mxu0 %v10332
  %10414 = vmatprep.mubr.f32.mxu0 %v10202
  %10415 = vmatmul.mubr.f32.gmra.mrb[0].mxu0 %v10201
  %v10416 = vpop.f32.mrb[0].mxu0
  %v10417 = vadd.f32 0.0, %v10416
  %v10418 = vpop.f32.mrb[0].mxu0
  %10419 = vdwg.mxu0
  %10420 = vmatprep.subr.mxu0 0.0
  %10421 = vmatpush1.msra.mxu0 %v10333
  %10422 = vmatprep.subr.mxu0 0.0
  %10423 = vmatpush1.msra.mxu0 %v10334
  %10424 = vmatprep.subr.mxu0 0.0
  %10425 = vmatpush1.msra.mxu0 %v10335
  %10426 = vmatprep.subr.mxu0 0.0
  %10427 = vmatpush1.msra.mxu0 %v10336
  %10428 = vmatprep.subr.mxu0 0.0
  %10429 = vmatpush1.msra.mxu0 0.0
  %10430 = vmatprep.subr.mxu0 0.0
  %10431 = vmatpush1.msra.mxu0 0.0
  %10432 = vmatprep.subr.mxu0 0.0
  %10433 = vmatpush1.msra.mxu0 0.0
  %10434 = vmatprep.subr.mxu0 0.0
  %10435 = vmatpush1.msra.mxu0 0.0
  %10436 = vmatprep.subr.mxu0 0.0
  %10437 = vmatpush1.msra.mxu0 0.0
  %10438 = vmatprep.subr.mxu0 0.0
  %10439 = vmatpush1.msra.mxu0 0.0
  %10440 = vmatprep.subr.mxu0 0.0
  %10441 = vmatpush1.msra.mxu0 0.0
  %10442 = vmatprep.subr.mxu0 0.0
  %10443 = vmatpush1.msra.mxu0 0.0
  %10444 = vmatprep.subr.mxu0 0.0
  %10445 = vmatpush1.msra.mxu0 0.0
  %10446 = vmatprep.subr.mxu0 0.0
  %10447 = vmatpush1.msra.mxu0 0.0
  %10448 = vmatprep.subr.mxu0 0.0
  %10449 = vmatpush1.msra.mxu0 0.0
  %10450 = vmatprep.subr.mxu0 0.0
  %10451 = vmatpush1.msra.mxu0 0.0
  %10452 = vmatprep.subr.mxu0 0.0
  %10453 = vmatpush1.msra.mxu0 0.0
  %10454 = vmatprep.subr.mxu0 0.0
  %10455 = vmatpush1.msra.mxu0 0.0
  %10456 = vmatprep.subr.mxu0 0.0
  %10457 = vmatpush1.msra.mxu0 0.0
  %10458 = vmatprep.subr.mxu0 0.0
  %10459 = vmatpush1.msra.mxu0 0.0
  %10460 = vmatprep.subr.mxu0 0.0
  %10461 = vmatpush1.msra.mxu0 0.0
  %10462 = vmatprep.subr.mxu0 0.0
  %10463 = vmatpush1.msra.mxu0 0.0
  %10464 = vmatprep.subr.mxu0 0.0
  %10465 = vmatpush1.msra.mxu0 0.0
  %10466 = vmatprep.subr.mxu0 0.0
  %10467 = vmatpush1.msra.mxu0 0.0
  %10468 = vmatprep.subr.mxu0 0.0
  %10469 = vmatpush1.msra.mxu0 0.0
  %10470 = vmatprep.subr.mxu0 0.0
  %10471 = vmatpush1.msra.mxu0 0.0
  %10472 = vmatprep.subr.mxu0 0.0
  %10473 = vmatpush1.msra.mxu0 0.0
  %10474 = vmatprep.subr.mxu0 0.0
  %10475 = vmatpush1.msra.mxu0 0.0
  %10476 = vmatprep.subr.mxu0 0.0
  %10477 = vmatpush1.msra.mxu0 0.0
  %10478 = vmatprep.subr.mxu0 0.0
  %10479 = vmatpush1.msra.mxu0 0.0
  %10480 = vmatprep.subr.mxu0 0.0
  %10481 = vmatpush1.msra.mxu0 0.0
  %10482 = vmatprep.subr.mxu0 0.0
  %10483 = vmatpush1.msra.mxu0 0.0
  %10484 = vmatprep.mubr.f32.mxu0 0.0
  %10485 = vmatmul.mubr.f32.gmra.mrb[0].mxu0 %v10348
  %v10486 = vpop.f32.mrb[0].mxu0
  %v10487 = vadd.f32 %v10417, %v10486
  %v10488 = vpop.f32.mrb[0].mxu0
  %10489 = vdwg.mxu0
  %v10491 = vsel %vm6938, %v10264, 0
  %10493 = vmatprep.subr.mxu0 0.0
  %10494 = vmatpush1.msra.mxu0 %v10301
  %10495 = vmatprep.subr.mxu0 0.0
  %10496 = vmatpush1.msra.mxu0 %v10302
  %10497 = vmatprep.subr.mxu0 0.0
  %10498 = vmatpush1.msra.mxu0 %v10303
  %10499 = vmatprep.subr.mxu0 0.0
  %10500 = vmatpush1.msra.mxu0 %v10304
  %10501 = vmatprep.subr.mxu0 0.0
  %10502 = vmatpush1.msra.mxu0 %v10305
  %10503 = vmatprep.subr.mxu0 0.0
  %10504 = vmatpush1.msra.mxu0 %v10306
  %10505 = vmatprep.subr.mxu0 0.0
  %10506 = vmatpush1.msra.mxu0 %v10307
  %10507 = vmatprep.subr.mxu0 0.0
  %10508 = vmatpush1.msra.mxu0 %v10308
  %10509 = vmatprep.subr.mxu0 0.0
  %10510 = vmatpush1.msra.mxu0 %v10309
  %10511 = vmatprep.subr.mxu0 0.0
  %10512 = vmatpush1.msra.mxu0 %v10310
  %10513 = vmatprep.subr.mxu0 0.0
  %10514 = vmatpush1.msra.mxu0 %v10311
  %10515 = vmatprep.subr.mxu0 0.0
  %10516 = vmatpush1.msra.mxu0 %v10312
  %10517 = vmatprep.subr.mxu0 0.0
  %10518 = vmatpush1.msra.mxu0 %v10313
  %10519 = vmatprep.subr.mxu0 0.0
  %10520 = vmatpush1.msra.mxu0 %v10314
  %10521 = vmatprep.subr.mxu0 0.0
  %10522 = vmatpush1.msra.mxu0 %v10315
  %10523 = vmatprep.subr.mxu0 0.0
  %10524 = vmatpush1.msra.mxu0 %v10316
  %10525 = vmatprep.subr.mxu0 0.0
  %10526 = vmatpush1.msra.mxu0 %v10317
  %10527 = vmatprep.subr.mxu0 0.0
  %10528 = vmatpush1.msra.mxu0 %v10318
  %10529 = vmatprep.subr.mxu0 0.0
  %10530 = vmatpush1.msra.mxu0 %v10319
  %10531 = vmatprep.subr.mxu0 0.0
  %10532 = vmatpush1.msra.mxu0 %v10320
  %10533 = vmatprep.subr.mxu0 0.0
  %10534 = vmatpush1.msra.mxu0 %v10321
  %10535 = vmatprep.subr.mxu0 0.0
  %10536 = vmatpush1.msra.mxu0 %v10322
  %10537 = vmatprep.subr.mxu0 0.0
  %10538 = vmatpush1.msra.mxu0 %v10323
  %10539 = vmatprep.subr.mxu0 0.0
  %10540 = vmatpush1.msra.mxu0 %v10324
  %10541 = vmatprep.subr.mxu0 0.0
  %10542 = vmatpush1.msra.mxu0 %v10325
  %10543 = vmatprep.subr.mxu0 0.0
  %10544 = vmatpush1.msra.mxu0 %v10326
  %10545 = vmatprep.subr.mxu0 0.0
  %10546 = vmatpush1.msra.mxu0 %v10327
  %10547 = vmatprep.subr.mxu0 0.0
  %10548 = vmatpush1.msra.mxu0 %v10328
  %10549 = vmatprep.subr.mxu0 0.0
  %10550 = vmatpush1.msra.mxu0 %v10329
  %10551 = vmatprep.subr.mxu0 0.0
  %10552 = vmatpush1.msra.mxu0 %v10330
  %10553 = vmatprep.subr.mxu0 0.0
  %10554 = vmatpush1.msra.mxu0 %v10331
  %10555 = vmatprep.subr.mxu0 0.0
  %10556 = vmatpush1.msra.mxu0 %v10332
  %10557 = vmatprep.mubr.f32.mxu0 %v10263
  %10558 = vmatmul.mubr.f32.gmra.mrb[0].mxu0 %v10262
  %v10559 = vpop.f32.mrb[0].mxu0
  %v10560 = vadd.f32 0.0, %v10559
  %v10561 = vpop.f32.mrb[0].mxu0
  %10562 = vdwg.mxu0
  %10563 = vmatprep.subr.mxu0 0.0
  %10564 = vmatpush1.msra.mxu0 %v10333
  %10565 = vmatprep.subr.mxu0 0.0
  %10566 = vmatpush1.msra.mxu0 %v10334
  %10567 = vmatprep.subr.mxu0 0.0
  %10568 = vmatpush1.msra.mxu0 %v10335
  %10569 = vmatprep.subr.mxu0 0.0
  %10570 = vmatpush1.msra.mxu0 %v10336
  %10571 = vmatprep.subr.mxu0 0.0
  %10572 = vmatpush1.msra.mxu0 0.0
  %10573 = vmatprep.subr.mxu0 0.0
  %10574 = vmatpush1.msra.mxu0 0.0
  %10575 = vmatprep.subr.mxu0 0.0
  %10576 = vmatpush1.msra.mxu0 0.0
  %10577 = vmatprep.subr.mxu0 0.0
  %10578 = vmatpush1.msra.mxu0 0.0
  %10579 = vmatprep.subr.mxu0 0.0
  %10580 = vmatpush1.msra.mxu0 0.0
  %10581 = vmatprep.subr.mxu0 0.0
  %10582 = vmatpush1.msra.mxu0 0.0
  %10583 = vmatprep.subr.mxu0 0.0
  %10584 = vmatpush1.msra.mxu0 0.0
  %10585 = vmatprep.subr.mxu0 0.0
  %10586 = vmatpush1.msra.mxu0 0.0
  %10587 = vmatprep.subr.mxu0 0.0
  %10588 = vmatpush1.msra.mxu0 0.0
  %10589 = vmatprep.subr.mxu0 0.0
  %10590 = vmatpush1.msra.mxu0 0.0
  %10591 = vmatprep.subr.mxu0 0.0
  %10592 = vmatpush1.msra.mxu0 0.0
  %10593 = vmatprep.subr.mxu0 0.0
  %10594 = vmatpush1.msra.mxu0 0.0
  %10595 = vmatprep.subr.mxu0 0.0
  %10596 = vmatpush1.msra.mxu0 0.0
  %10597 = vmatprep.subr.mxu0 0.0
  %10598 = vmatpush1.msra.mxu0 0.0
  %10599 = vmatprep.subr.mxu0 0.0
  %10600 = vmatpush1.msra.mxu0 0.0
  %10601 = vmatprep.subr.mxu0 0.0
  %10602 = vmatpush1.msra.mxu0 0.0
  %10603 = vmatprep.subr.mxu0 0.0
  %10604 = vmatpush1.msra.mxu0 0.0
  %10605 = vmatprep.subr.mxu0 0.0
  %10606 = vmatpush1.msra.mxu0 0.0
  %10607 = vmatprep.subr.mxu0 0.0
  %10608 = vmatpush1.msra.mxu0 0.0
  %10609 = vmatprep.subr.mxu0 0.0
  %10610 = vmatpush1.msra.mxu0 0.0
  %10611 = vmatprep.subr.mxu0 0.0
  %10612 = vmatpush1.msra.mxu0 0.0
  %10613 = vmatprep.subr.mxu0 0.0
  %10614 = vmatpush1.msra.mxu0 0.0
  %10615 = vmatprep.subr.mxu0 0.0
  %10616 = vmatpush1.msra.mxu0 0.0
  %10617 = vmatprep.subr.mxu0 0.0
  %10618 = vmatpush1.msra.mxu0 0.0
  %10619 = vmatprep.subr.mxu0 0.0
  %10620 = vmatpush1.msra.mxu0 0.0
  %10621 = vmatprep.subr.mxu0 0.0
  %10622 = vmatpush1.msra.mxu0 0.0
  %10623 = vmatprep.subr.mxu0 0.0
  %10624 = vmatpush1.msra.mxu0 0.0
  %10625 = vmatprep.subr.mxu0 0.0
  %10626 = vmatpush1.msra.mxu0 0.0
  %10627 = vmatprep.mubr.f32.mxu0 0.0
  %10628 = vmatmul.mubr.f32.gmra.mrb[0].mxu0 %v10491
  %v10629 = vpop.f32.mrb[0].mxu0
  %v10630 = vadd.f32 %v10560, %v10629
  %v10631 = vpop.f32.mrb[0].mxu0
  %10632 = vdwg.mxu0
  %v10633 = vld [vmem:[%s18] sm:$0x1]
  %v10634 = vld [vmem:[%s19] sm:$0x1]
  %v10635 = vrcp.pop 512.0
  %v10636 = vmul.f32 %v10487, %v10635
  %v10637 = vmul.f32 %v10630, %v10635
  %v10638 = vmul.f32 %v10636, %v10636
  %v10639 = vsub.f32 %v10637, %v10638
  %v10640 = vmax.f32 %v10639, 0.0
  %v10641 = vadd.f32 %v10640, 1e-05
  %v10642 = vrsqrt.pop %v10641
  %v10643 = vmul.f32 %v10633, %v10642
  %v10644 = vmul.f32 %v10636, %v10643
  %v10645 = vsub.f32 %v10634, %v10644
  %vm10646 = vcmask 130048
  %v10648 = vsel %vm10646, %v10643, 0
  %10650 = vmatprep.subr.mxu0 %v10342
  %10651 = vmatpush1.msra.mxu0 %v10341
  %10652 = vmatprep.subr.mxu0 %v10345
  %10653 = vmatpush1.msra.mxu0 %v10344
  %10654 = vmatprep.subr.mxu0 0.0
  %10655 = vmatpush1.msra.mxu0 0.0
  %10656 = vmatprep.subr.mxu0 0.0
  %10657 = vmatpush1.msra.mxu0 0.0
  %10658 = vmatprep.subr.mxu0 0.0
  %10659 = vmatpush1.msra.mxu0 0.0
  %10660 = vmatprep.subr.mxu0 0.0
  %10661 = vmatpush1.msra.mxu0 0.0
  %10662 = vmatprep.subr.mxu0 0.0
  %10663 = vmatpush1.msra.mxu0 0.0
  %10664 = vmatprep.subr.mxu0 0.0
  %10665 = vmatpush1.msra.mxu0 0.0
  %10666 = vmatprep.subr.mxu0 0.0
  %10667 = vmatpush1.msra.mxu0 0.0
  %10668 = vmatprep.subr.mxu0 0.0
  %10669 = vmatpush1.msra.mxu0 0.0
  %10670 = vmatprep.subr.mxu0 0.0
  %10671 = vmatpush1.msra.mxu0 0.0
  %10672 = vmatprep.subr.mxu0 0.0
  %10673 = vmatpush1.msra.mxu0 0.0
  %10674 = vmatprep.subr.mxu0 0.0
  %10675 = vmatpush1.msra.mxu0 0.0
  %10676 = vmatprep.subr.mxu0 0.0
  %10677 = vmatpush1.msra.mxu0 0.0
  %10678 = vmatprep.subr.mxu0 0.0
  %10679 = vmatpush1.msra.mxu0 0.0
  %10680 = vmatprep.subr.mxu0 0.0
  %10681 = vmatpush1.msra.mxu0 0.0
  %10682 = vmatprep.subr.mxu0 0.0
  %10683 = vmatpush1.msra.mxu0 0.0
  %10684 = vmatprep.subr.mxu0 0.0
  %10685 = vmatpush1.msra.mxu0 0.0
  %10686 = vmatprep.subr.mxu0 0.0
  %10687 = vmatpush1.msra.mxu0 0.0
  %10688 = vmatprep.subr.mxu0 0.0
  %10689 = vmatpush1.msra.mxu0 0.0
  %10690 = vmatprep.subr.mxu0 0.0
  %10691 = vmatpush1.msra.mxu0 0.0
  %10692 = vmatprep.subr.mxu0 0.0
  %10693 = vmatpush1.msra.mxu0 0.0
  %10694 = vmatprep.subr.mxu0 0.0
  %10695 = vmatpush1.msra.mxu0 0.0
  %10696 = vmatprep.subr.mxu0 0.0
  %10697 = vmatpush1.msra.mxu0 0.0
  %10698 = vmatprep.subr.mxu0 0.0
  %10699 = vmatpush1.msra.mxu0 0.0
  %10700 = vmatprep.subr.mxu0 0.0
  %10701 = vmatpush1.msra.mxu0 0.0
  %10702 = vmatprep.subr.mxu0 0.0
  %10703 = vmatpush1.msra.mxu0 0.0
  %10704 = vmatprep.subr.mxu0 0.0
  %10705 = vmatpush1.msra.mxu0 0.0
  %10706 = vmatprep.subr.mxu0 0.0
  %10707 = vmatpush1.msra.mxu0 0.0
  %10708 = vmatprep.subr.mxu0 0.0
  %10709 = vmatpush1.msra.mxu0 0.0
  %10710 = vmatprep.subr.mxu0 0.0
  %10711 = vmatpush1.msra.mxu0 0.0
  %10712 = vmatprep.subr.mxu0 0.0
  %10713 = vmatpush1.msra.mxu0 0.0
  %10714 = vmatprep.mubr.f32.mxu0 0.0
  %10715 = vmatmul.mubr.f32.gmra.mrb[0].mxu0 %v10648
  %v10716 = vpop.f32.mrb[0].mxu0
  %v10717 = vadd.f32 0.0, %v10716
  %v10718 = vpop.f32.mrb[0].mxu0
  %v10719 = vadd.f32 0.0, %v10718
  %10720 = vdwg.mxu0
  %10721 = vmatprep.subr.mxu0 0.0
  %10722 = vmatpush1.msra.mxu0 %v10343
  %10723 = vmatprep.subr.mxu0 0.0
  %10724 = vmatpush1.msra.mxu0 %v10346
  %10725 = vmatprep.subr.mxu0 0.0
  %10726 = vmatpush1.msra.mxu0 0.0
  %10727 = vmatprep.subr.mxu0 0.0
  %10728 = vmatpush1.msra.mxu0 0.0
  %10729 = vmatprep.subr.mxu0 0.0
  %10730 = vmatpush1.msra.mxu0 0.0
  %10731 = vmatprep.subr.mxu0 0.0
  %10732 = vmatpush1.msra.mxu0 0.0
  %10733 = vmatprep.subr.mxu0 0.0
  %10734 = vmatpush1.msra.mxu0 0.0
  %10735 = vmatprep.subr.mxu0 0.0
  %10736 = vmatpush1.msra.mxu0 0.0
  %10737 = vmatprep.subr.mxu0 0.0
  %10738 = vmatpush1.msra.mxu0 0.0
  %10739 = vmatprep.subr.mxu0 0.0
  %10740 = vmatpush1.msra.mxu0 0.0
  %10741 = vmatprep.subr.mxu0 0.0
  %10742 = vmatpush1.msra.mxu0 0.0
  %10743 = vmatprep.subr.mxu0 0.0
  %10744 = vmatpush1.msra.mxu0 0.0
  %10745 = vmatprep.subr.mxu0 0.0
  %10746 = vmatpush1.msra.mxu0 0.0
  %10747 = vmatprep.subr.mxu0 0.0
  %10748 = vmatpush1.msra.mxu0 0.0
  %10749 = vmatprep.subr.mxu0 0.0
  %10750 = vmatpush1.msra.mxu0 0.0
  %10751 = vmatprep.subr.mxu0 0.0
  %10752 = vmatpush1.msra.mxu0 0.0
  %10753 = vmatprep.subr.mxu0 0.0
  %10754 = vmatpush1.msra.mxu0 0.0
  %10755 = vmatprep.subr.mxu0 0.0
  %10756 = vmatpush1.msra.mxu0 0.0
  %10757 = vmatprep.subr.mxu0 0.0
  %10758 = vmatpush1.msra.mxu0 0.0
  %10759 = vmatprep.subr.mxu0 0.0
  %10760 = vmatpush1.msra.mxu0 0.0
  %10761 = vmatprep.subr.mxu0 0.0
  %10762 = vmatpush1.msra.mxu0 0.0
  %10763 = vmatprep.subr.mxu0 0.0
  %10764 = vmatpush1.msra.mxu0 0.0
  %10765 = vmatprep.subr.mxu0 0.0
  %10766 = vmatpush1.msra.mxu0 0.0
  %10767 = vmatprep.subr.mxu0 0.0
  %10768 = vmatpush1.msra.mxu0 0.0
  %10769 = vmatprep.subr.mxu0 0.0
  %10770 = vmatpush1.msra.mxu0 0.0
  %10771 = vmatprep.subr.mxu0 0.0
  %10772 = vmatpush1.msra.mxu0 0.0
  %10773 = vmatprep.subr.mxu0 0.0
  %10774 = vmatpush1.msra.mxu0 0.0
  %10775 = vmatprep.subr.mxu0 0.0
  %10776 = vmatpush1.msra.mxu0 0.0
  %10777 = vmatprep.subr.mxu0 0.0
  %10778 = vmatpush1.msra.mxu0 0.0
  %10779 = vmatprep.subr.mxu0 0.0
  %10780 = vmatpush1.msra.mxu0 0.0
  %10781 = vmatprep.subr.mxu0 0.0
  %10782 = vmatpush1.msra.mxu0 0.0
  %10783 = vmatprep.subr.mxu0 0.0
  %10784 = vmatpush1.msra.mxu0 0.0
  %10785 = vmatprep.mubr.f32.mxu0 0.0
  %10786 = vmatmul.mubr.f32.gmra.mrb[0].mxu0 %v10648
  %v10787 = vpop.f32.mrb[0].mxu0
  %v10788 = vadd.f32 0.0, %v10787
  %v10789 = vpop.f32.mrb[0].mxu0
  %10790 = vdwg.mxu0
  %v10792 = vsel %vm10646, %v10645, 0
  %10794 = vmatprep.subr.mxu0 %v10342
  %10795 = vmatpush1.msra.mxu0 %v10341
  %10796 = vmatprep.subr.mxu0 %v10345
  %10797 = vmatpush1.msra.mxu0 %v10344
  %10798 = vmatprep.subr.mxu0 0.0
  %10799 = vmatpush1.msra.mxu0 0.0
  %10800 = vmatprep.subr.mxu0 0.0
  %10801 = vmatpush1.msra.mxu0 0.0
  %10802 = vmatprep.subr.mxu0 0.0
  %10803 = vmatpush1.msra.mxu0 0.0
  %10804 = vmatprep.subr.mxu0 0.0
  %10805 = vmatpush1.msra.mxu0 0.0
  %10806 = vmatprep.subr.mxu0 0.0
  %10807 = vmatpush1.msra.mxu0 0.0
  %10808 = vmatprep.subr.mxu0 0.0
  %10809 = vmatpush1.msra.mxu0 0.0
  %10810 = vmatprep.subr.mxu0 0.0
  %10811 = vmatpush1.msra.mxu0 0.0
  %10812 = vmatprep.subr.mxu0 0.0
  %10813 = vmatpush1.msra.mxu0 0.0
  %10814 = vmatprep.subr.mxu0 0.0
  %10815 = vmatpush1.msra.mxu0 0.0
  %10816 = vmatprep.subr.mxu0 0.0
  %10817 = vmatpush1.msra.mxu0 0.0
  %10818 = vmatprep.subr.mxu0 0.0
  %10819 = vmatpush1.msra.mxu0 0.0
  %10820 = vmatprep.subr.mxu0 0.0
  %10821 = vmatpush1.msra.mxu0 0.0
  %10822 = vmatprep.subr.mxu0 0.0
  %10823 = vmatpush1.msra.mxu0 0.0
  %10824 = vmatprep.subr.mxu0 0.0
  %10825 = vmatpush1.msra.mxu0 0.0
  %10826 = vmatprep.subr.mxu0 0.0
  %10827 = vmatpush1.msra.mxu0 0.0
  %10828 = vmatprep.subr.mxu0 0.0
  %10829 = vmatpush1.msra.mxu0 0.0
  %10830 = vmatprep.subr.mxu0 0.0
  %10831 = vmatpush1.msra.mxu0 0.0
  %10832 = vmatprep.subr.mxu0 0.0
  %10833 = vmatpush1.msra.mxu0 0.0
  %10834 = vmatprep.subr.mxu0 0.0
  %10835 = vmatpush1.msra.mxu0 0.0
  %10836 = vmatprep.subr.mxu0 0.0
  %10837 = vmatpush1.msra.mxu0 0.0
  %10838 = vmatprep.subr.mxu0 0.0
  %10839 = vmatpush1.msra.mxu0 0.0
  %10840 = vmatprep.subr.mxu0 0.0
  %10841 = vmatpush1.msra.mxu0 0.0
  %10842 = vmatprep.subr.mxu0 0.0
  %10843 = vmatpush1.msra.mxu0 0.0
  %10844 = vmatprep.subr.mxu0 0.0
  %10845 = vmatpush1.msra.mxu0 0.0
  %10846 = vmatprep.subr.mxu0 0.0
  %10847 = vmatpush1.msra.mxu0 0.0
  %10848 = vmatprep.subr.mxu0 0.0
  %10849 = vmatpush1.msra.mxu0 0.0
  %10850 = vmatprep.subr.mxu0 0.0
  %10851 = vmatpush1.msra.mxu0 0.0
  %10852 = vmatprep.subr.mxu0 0.0
  %10853 = vmatpush1.msra.mxu0 0.0
  %10854 = vmatprep.subr.mxu0 0.0
  %10855 = vmatpush1.msra.mxu0 0.0
  %10856 = vmatprep.subr.mxu0 0.0
  %10857 = vmatpush1.msra.mxu0 0.0
  %10858 = vmatprep.mubr.f32.mxu0 0.0
  %10859 = vmatmul.mubr.f32.gmra.mrb[0].mxu0 %v10792
  %v10860 = vpop.f32.mrb[0].mxu0
  %v10861 = vadd.f32 0.0, %v10860
  %v10862 = vpop.f32.mrb[0].mxu0
  %v10863 = vadd.f32 0.0, %v10862
  %10864 = vdwg.mxu0
  %10865 = vmatprep.subr.mxu0 0.0
  %10866 = vmatpush1.msra.mxu0 %v10343
  %10867 = vmatprep.subr.mxu0 0.0
  %10868 = vmatpush1.msra.mxu0 %v10346
  %10869 = vmatprep.subr.mxu0 0.0
  %10870 = vmatpush1.msra.mxu0 0.0
  %10871 = vmatprep.subr.mxu0 0.0
  %10872 = vmatpush1.msra.mxu0 0.0
  %10873 = vmatprep.subr.mxu0 0.0
  %10874 = vmatpush1.msra.mxu0 0.0
  %10875 = vmatprep.subr.mxu0 0.0
  %10876 = vmatpush1.msra.mxu0 0.0
  %10877 = vmatprep.subr.mxu0 0.0
  %10878 = vmatpush1.msra.mxu0 0.0
  %10879 = vmatprep.subr.mxu0 0.0
  %10880 = vmatpush1.msra.mxu0 0.0
  %10881 = vmatprep.subr.mxu0 0.0
  %10882 = vmatpush1.msra.mxu0 0.0
  %10883 = vmatprep.subr.mxu0 0.0
  %10884 = vmatpush1.msra.mxu0 0.0
  %10885 = vmatprep.subr.mxu0 0.0
  %10886 = vmatpush1.msra.mxu0 0.0
  %10887 = vmatprep.subr.mxu0 0.0
  %10888 = vmatpush1.msra.mxu0 0.0
  %10889 = vmatprep.subr.mxu0 0.0
  %10890 = vmatpush1.msra.mxu0 0.0
  %10891 = vmatprep.subr.mxu0 0.0
  %10892 = vmatpush1.msra.mxu0 0.0
  %10893 = vmatprep.subr.mxu0 0.0
  %10894 = vmatpush1.msra.mxu0 0.0
  %10895 = vmatprep.subr.mxu0 0.0
  %10896 = vmatpush1.msra.mxu0 0.0
  %10897 = vmatprep.subr.mxu0 0.0
  %10898 = vmatpush1.msra.mxu0 0.0
  %10899 = vmatprep.subr.mxu0 0.0
  %10900 = vmatpush1.msra.mxu0 0.0
  %10901 = vmatprep.subr.mxu0 0.0
  %10902 = vmatpush1.msra.mxu0 0.0
  %10903 = vmatprep.subr.mxu0 0.0
  %10904 = vmatpush1.msra.mxu0 0.0
  %10905 = vmatprep.subr.mxu0 0.0
  %10906 = vmatpush1.msra.mxu0 0.0
  %10907 = vmatprep.subr.mxu0 0.0
  %10908 = vmatpush1.msra.mxu0 0.0
  %10909 = vmatprep.subr.mxu0 0.0
  %10910 = vmatpush1.msra.mxu0 0.0
  %10911 = vmatprep.subr.mxu0 0.0
  %10912 = vmatpush1.msra.mxu0 0.0
  %10913 = vmatprep.subr.mxu0 0.0
  %10914 = vmatpush1.msra.mxu0 0.0
  %10915 = vmatprep.subr.mxu0 0.0
  %10916 = vmatpush1.msra.mxu0 0.0
  %10917 = vmatprep.subr.mxu0 0.0
  %10918 = vmatpush1.msra.mxu0 0.0
  %10919 = vmatprep.subr.mxu0 0.0
  %10920 = vmatpush1.msra.mxu0 0.0
  %10921 = vmatprep.subr.mxu0 0.0
  %10922 = vmatpush1.msra.mxu0 0.0
  %10923 = vmatprep.subr.mxu0 0.0
  %10924 = vmatpush1.msra.mxu0 0.0
  %10925 = vmatprep.subr.mxu0 0.0
  %10926 = vmatpush1.msra.mxu0 0.0
  %10927 = vmatprep.subr.mxu0 0.0
  %10928 = vmatpush1.msra.mxu0 0.0
  %10929 = vmatprep.mubr.f32.mxu0 0.0
  %10930 = vmatmul.mubr.f32.gmra.mrb[0].mxu0 %v10792
  %v10931 = vpop.f32.mrb[0].mxu0
  %v10932 = vadd.f32 0.0, %v10931
  %v10933 = vpop.f32.mrb[0].mxu0
  %10934 = vdwg.mxu0
  %v10935 = vlaneseq
  %v10936 = vshrl.u32 %v10935, 7
  %v10937 = vsub.s32 0, %v10936
  %v10938 = vrot.slane %v10717, %v10937
  %v10939 = vlaneseq
  %v10940 = vshrl.u32 %v10939, 7
  %v10941 = vsub.s32 0, %v10940
  %v10942 = vrot.slane %v10719, %v10941
  %v10943 = vlaneseq
  %v10944 = vshrl.u32 %v10943, 7
  %v10945 = vsub.s32 0, %v10944
  %v10946 = vrot.slane %v10788, %v10945
  %v10947 = vmul.f32 %v8924, %v10938
  %v10948 = vmul.f32 %v8926, %v10942
  %v10949 = vmul.f32 %v9008, %v10946
  %v10950 = vmul.f32 %v8928, %v10938
  %v10951 = vmul.f32 %v8930, %v10942
  %v10952 = vmul.f32 %v9011, %v10946
  %v10953 = vlaneseq
  %v10954 = vshrl.u32 %v10953, 7
  %v10955 = vsub.s32 0, %v10954
  %v10956 = vrot.slane %v10861, %v10955
  %v10957 = vlaneseq
  %v10958 = vshrl.u32 %v10957, 7
  %v10959 = vsub.s32 0, %v10958
  %v10960 = vrot.slane %v10863, %v10959
  %v10961 = vlaneseq
  %v10962 = vshrl.u32 %v10961, 7
  %v10963 = vsub.s32 0, %v10962
  %v10964 = vrot.slane %v10932, %v10963
  %v10965 = vadd.f32 %v10947, %v10956
  %v10966 = vadd.f32 %v10948, %v10960
  %v10967 = vadd.f32 %v10949, %v10964
  %v10968 = vadd.f32 %v10950, %v10956
  %v10969 = vadd.f32 %v10951, %v10960
  %v10970 = vadd.f32 %v10952, %v10964
  %v10971 = vmax.f32 %v10965, 0.0
  %v10972 = vmax.f32 %v10966, 0.0
  %v10973 = vmax.f32 %v10967, 0.0
  %v10974 = vmax.f32 %v10968, 0.0
  %v10975 = vmax.f32 %v10969, 0.0
  %v10976 = vmax.f32 %v10970, 0.0
  %v10977 = vpack.c.bf16 %v10974, %v10971
  %v10978 = vpack.c.bf16 %v10975, %v10972
  %v10979 = vpack.c.bf16 %v10976, %v10973
  %v10980 = vmul.f32 %v10065, %v10938
  %v10981 = vmul.f32 %v10067, %v10942
  %v10982 = vmul.f32 %v10149, %v10946
  %v10983 = vmul.f32 %v10069, %v10938
  %v10984 = vmul.f32 %v10071, %v10942
  %v10985 = vmul.f32 %v10152, %v10946
  %v10986 = vadd.f32 %v10980, %v10956
  %v10987 = vadd.f32 %v10981, %v10960
  %v10988 = vadd.f32 %v10982, %v10964
  %v10989 = vadd.f32 %v10983, %v10956
  %v10990 = vadd.f32 %v10984, %v10960
  %v10991 = vadd.f32 %v10985, %v10964
  %v10992 = vmax.f32 %v10986, 0.0
  %v10993 = vmax.f32 %v10987, 0.0
  %v10994 = vmax.f32 %v10988, 0.0
  %v10995 = vmax.f32 %v10989, 0.0
  %v10996 = vmax.f32 %v10990, 0.0
  %v10997 = vmax.f32 %v10991, 0.0
  %v10998 = vpack.c.bf16 %v10995, %v10992
  %v10999 = vpack.c.bf16 %v10996, %v10993
  %v11000 = vpack.c.bf16 %v10997, %v10994
  %v11001 = vld [vmem:[%s20] sm:$0xf]
  %v11002 = vld [vmem:[%s20 + $0x4] sm:$0xf]
  %v11003 = vld [vmem:[%s20 + $0x8] sm:$0xf]
  %v11004 = vld [vmem:[%s20 + $0xc] sm:$0xf]
  %s11005 = scalar_lea.vmem %s20, 16
  %v11006 = vld [vmem:[%s11005] sm:$0xf]
  %v11007 = vld [vmem:[%s11005 + $0x4] sm:$0xf]
  %v11008 = vld [vmem:[%s11005 + $0x8] sm:$0xf]
  %v11009 = vld [vmem:[%s11005 + $0xc] sm:$0xf]
  %v11014 = vunpack.c.l.b16 %v11006
  %v11015 = vunpack.c.l.b16 %v11007
  %v11016 = vunpack.c.l.b16 %v11008
  %v11017 = vunpack.c.l.b16 %v11009
  %v11018 = vpack.c.b16 %v11015, %v11014
  %v11019 = vpack.c.b16 %v11017, %v11016
  %v11021 = vsel %vm10646, %v11018, 0
  %v11024 = vsel %vm10646, %v11019, 0
  %11026 = vmatprep.subr.bf16.mxu0 %v10999
  %11027 = vmatpush1.bf16.msra.mxu0 %v10998
  %11028 = vmatprep.subr.bf16.mxu0 0
  %11029 = vmatpush1.bf16.msra.mxu0 0
  %11030 = vmatprep.subr.bf16.mxu0 0
  %11031 = vmatpush1.bf16.msra.mxu0 0
  %11032 = vmatprep.subr.bf16.mxu0 0
  %11033 = vmatpush1.bf16.msra.mxu0 0
  %11034 = vmatprep.subr.bf16.mxu0 0
  %11035 = vmatpush1.bf16.msra.mxu0 0
  %11036 = vmatprep.subr.bf16.mxu0 0
  %11037 = vmatpush1.bf16.msra.mxu0 0
  %11038 = vmatprep.subr.bf16.mxu0 0
  %11039 = vmatpush1.bf16.msra.mxu0 0
  %11040 = vmatprep.subr.bf16.mxu0 0
  %11041 = vmatpush1.bf16.msra.mxu0 0
  %11042 = vmatprep.subr.bf16.mxu0 0
  %11043 = vmatpush1.bf16.msra.mxu0 0
  %11044 = vmatprep.subr.bf16.mxu0 0
  %11045 = vmatpush1.bf16.msra.mxu0 0
  %11046 = vmatprep.subr.bf16.mxu0 0
  %11047 = vmatpush1.bf16.msra.mxu0 0
  %11048 = vmatprep.subr.bf16.mxu0 0
  %11049 = vmatpush1.bf16.msra.mxu0 0
  %11050 = vmatprep.subr.bf16.mxu0 0
  %11051 = vmatpush1.bf16.msra.mxu0 0
  %11052 = vmatprep.subr.bf16.mxu0 0
  %11053 = vmatpush1.bf16.msra.mxu0 0
  %11054 = vmatprep.subr.bf16.mxu0 0
  %11055 = vmatpush1.bf16.msra.mxu0 0
  %11056 = vmatprep.subr.bf16.mxu0 0
  %11057 = vmatpush1.bf16.msra.mxu0 0
  %11058 = vmatprep.mubr.bf16.mxu0 0
  %11059 = vmatmul.mubr.bf16.gmra.mrb[0].mxu0 %v11021
  %v11060 = vpop.f32.mrb[0].mxu0
  %v11061 = vadd.f32 0.0, %v11060
  %v11062 = vpop.f32.mrb[0].mxu0
  %v11063 = vadd.f32 0.0, %v11062
  %v11064 = vpop.f32.mrb[0].mxu0
  %v11065 = vadd.f32 0.0, %v11064
  %v11066 = vpop.f32.mrb[0].mxu0
  %v11067 = vadd.f32 0.0, %v11066
  %11068 = vmatprep.mubr.bf16.mxu0 0
  %11069 = vmatmul.mubr.bf16.gmra.mrb[0].mxu0 %v11024
  %v11070 = vpop.f32.mrb[0].mxu0
  %v11071 = vadd.f32 0.0, %v11070
  %v11072 = vpop.f32.mrb[0].mxu0
  %v11073 = vadd.f32 0.0, %v11072
  %v11074 = vpop.f32.mrb[0].mxu0
  %v11075 = vadd.f32 0.0, %v11074
  %v11076 = vpop.f32.mrb[0].mxu0
  %v11077 = vadd.f32 0.0, %v11076
  %11078 = vdwg.mxu0
  %11079 = vmatprep.subr.bf16.mxu0 0
  %11080 = vmatpush1.bf16.msra.mxu0 %v11000
  %11081 = vmatprep.subr.bf16.mxu0 0
  %11082 = vmatpush1.bf16.msra.mxu0 0
  %11083 = vmatprep.subr.bf16.mxu0 0
  %11084 = vmatpush1.bf16.msra.mxu0 0
  %11085 = vmatprep.subr.bf16.mxu0 0
  %11086 = vmatpush1.bf16.msra.mxu0 0
  %11087 = vmatprep.subr.bf16.mxu0 0
  %11088 = vmatpush1.bf16.msra.mxu0 0
  %11089 = vmatprep.subr.bf16.mxu0 0
  %11090 = vmatpush1.bf16.msra.mxu0 0
  %11091 = vmatprep.subr.bf16.mxu0 0
  %11092 = vmatpush1.bf16.msra.mxu0 0
  %11093 = vmatprep.subr.bf16.mxu0 0
  %11094 = vmatpush1.bf16.msra.mxu0 0
  %11095 = vmatprep.subr.bf16.mxu0 0
  %11096 = vmatpush1.bf16.msra.mxu0 0
  %11097 = vmatprep.subr.bf16.mxu0 0
  %11098 = vmatpush1.bf16.msra.mxu0 0
  %11099 = vmatprep.subr.bf16.mxu0 0
  %11100 = vmatpush1.bf16.msra.mxu0 0
  %11101 = vmatprep.subr.bf16.mxu0 0
  %11102 = vmatpush1.bf16.msra.mxu0 0
  %11103 = vmatprep.subr.bf16.mxu0 0
  %11104 = vmatpush1.bf16.msra.mxu0 0
  %11105 = vmatprep.subr.bf16.mxu0 0
  %11106 = vmatpush1.bf16.msra.mxu0 0
  %11107 = vmatprep.subr.bf16.mxu0 0
  %11108 = vmatpush1.bf16.msra.mxu0 0
  %11109 = vmatprep.subr.bf16.mxu0 0
  %11110 = vmatpush1.bf16.msra.mxu0 0
  %11111 = vmatprep.mubr.bf16.mxu0 0
  %11112 = vmatmul.mubr.bf16.gmra.mrb[0].mxu0 %v11021
  %v11113 = vpop.f32.mrb[0].mxu0
  %v11114 = vadd.f32 0.0, %v11113
  %v11115 = vpop.f32.mrb[0].mxu0
  %v11116 = vpop.f32.mrb[0].mxu0
  %v11117 = vadd.f32 0.0, %v11116
  %v11118 = vpop.f32.mrb[0].mxu0
  %11119 = vmatprep.mubr.bf16.mxu0 0
  %11120 = vmatmul.mubr.bf16.gmra.mrb[0].mxu0 %v11024
  %v11121 = vpop.f32.mrb[0].mxu0
  %v11122 = vadd.f32 0.0, %v11121
  %v11123 = vpop.f32.mrb[0].mxu0
  %v11124 = vpop.f32.mrb[0].mxu0
  %v11125 = vadd.f32 0.0, %v11124
  %v11126 = vpop.f32.mrb[0].mxu0
  %11127 = vdwg.mxu0
  %v11132 = vunpack.c.l.b16 %v11001
  %v11133 = vunpack.c.l.b16 %v11002
  %v11134 = vunpack.c.l.b16 %v11003
  %v11135 = vunpack.c.l.b16 %v11004
  %v11136 = vpack.c.b16 %v11133, %v11132
  %v11137 = vpack.c.b16 %v11135, %v11134
  %v11139 = vsel %vm10646, %v11136, 0
  %v11142 = vsel %vm10646, %v11137, 0
  %11144 = vmatprep.subr.bf16.mxu0 %v10978
  %11145 = vmatpush1.bf16.msra.mxu0 %v10977
  %11146 = vmatprep.subr.bf16.mxu0 0
  %11147 = vmatpush1.bf16.msra.mxu0 0
  %11148 = vmatprep.subr.bf16.mxu0 0
  %11149 = vmatpush1.bf16.msra.mxu0 0
  %11150 = vmatprep.subr.bf16.mxu0 0
  %11151 = vmatpush1.bf16.msra.mxu0 0
  %11152 = vmatprep.subr.bf16.mxu0 0
  %11153 = vmatpush1.bf16.msra.mxu0 0
  %11154 = vmatprep.subr.bf16.mxu0 0
  %11155 = vmatpush1.bf16.msra.mxu0 0
  %11156 = vmatprep.subr.bf16.mxu0 0
  %11157 = vmatpush1.bf16.msra.mxu0 0
  %11158 = vmatprep.subr.bf16.mxu0 0
  %11159 = vmatpush1.bf16.msra.mxu0 0
  %11160 = vmatprep.subr.bf16.mxu0 0
  %11161 = vmatpush1.bf16.msra.mxu0 0
  %11162 = vmatprep.subr.bf16.mxu0 0
  %11163 = vmatpush1.bf16.msra.mxu0 0
  %11164 = vmatprep.subr.bf16.mxu0 0
  %11165 = vmatpush1.bf16.msra.mxu0 0
  %11166 = vmatprep.subr.bf16.mxu0 0
  %11167 = vmatpush1.bf16.msra.mxu0 0
  %11168 = vmatprep.subr.bf16.mxu0 0
  %11169 = vmatpush1.bf16.msra.mxu0 0
  %11170 = vmatprep.subr.bf16.mxu0 0
  %11171 = vmatpush1.bf16.msra.mxu0 0
  %11172 = vmatprep.subr.bf16.mxu0 0
  %11173 = vmatpush1.bf16.msra.mxu0 0
  %11174 = vmatprep.subr.bf16.mxu0 0
  %11175 = vmatpush1.bf16.msra.mxu0 0
  %11176 = vmatprep.mubr.bf16.mxu0 0
  %11177 = vmatmul.mubr.bf16.gmra.mrb[0].mxu0 %v11139
  %v11178 = vpop.f32.mrb[0].mxu0
  %v11179 = vadd.f32 %v11061, %v11178
  %v11180 = vpop.f32.mrb[0].mxu0
  %v11181 = vadd.f32 %v11063, %v11180
  %v11182 = vpop.f32.mrb[0].mxu0
  %v11183 = vadd.f32 %v11065, %v11182
  %v11184 = vpop.f32.mrb[0].mxu0
  %v11185 = vadd.f32 %v11067, %v11184
  %11186 = vmatprep.mubr.bf16.mxu0 0
  %11187 = vmatmul.mubr.bf16.gmra.mrb[0].mxu0 %v11142
  %v11188 = vpop.f32.mrb[0].mxu0
  %v11189 = vadd.f32 %v11071, %v11188
  %v11190 = vpop.f32.mrb[0].mxu0
  %v11191 = vadd.f32 %v11073, %v11190
  %v11192 = vpop.f32.mrb[0].mxu0
  %v11193 = vadd.f32 %v11075, %v11192
  %v11194 = vpop.f32.mrb[0].mxu0
  %v11195 = vadd.f32 %v11077, %v11194
  %11196 = vdwg.mxu0
  %11197 = vmatprep.subr.bf16.mxu0 0
  %11198 = vmatpush1.bf16.msra.mxu0 %v10979
  %11199 = vmatprep.subr.bf16.mxu0 0
  %11200 = vmatpush1.bf16.msra.mxu0 0
  %11201 = vmatprep.subr.bf16.mxu0 0
  %11202 = vmatpush1.bf16.msra.mxu0 0
  %11203 = vmatprep.subr.bf16.mxu0 0
  %11204 = vmatpush1.bf16.msra.mxu0 0
  %11205 = vmatprep.subr.bf16.mxu0 0
  %11206 = vmatpush1.bf16.msra.mxu0 0
  %11207 = vmatprep.subr.bf16.mxu0 0
  %11208 = vmatpush1.bf16.msra.mxu0 0
  %11209 = vmatprep.subr.bf16.mxu0 0
  %11210 = vmatpush1.bf16.msra.mxu0 0
  %11211 = vmatprep.subr.bf16.mxu0 0
  %11212 = vmatpush1.bf16.msra.mxu0 0
  %11213 = vmatprep.subr.bf16.mxu0 0
  %11214 = vmatpush1.bf16.msra.mxu0 0
  %11215 = vmatprep.subr.bf16.mxu0 0
  %11216 = vmatpush1.bf16.msra.mxu0 0
  %11217 = vmatprep.subr.bf16.mxu0 0
  %11218 = vmatpush1.bf16.msra.mxu0 0
  %11219 = vmatprep.subr.bf16.mxu0 0
  %11220 = vmatpush1.bf16.msra.mxu0 0
  %11221 = vmatprep.subr.bf16.mxu0 0
  %11222 = vmatpush1.bf16.msra.mxu0 0
  %11223 = vmatprep.subr.bf16.mxu0 0
  %11224 = vmatpush1.bf16.msra.mxu0 0
  %11225 = vmatprep.subr.bf16.mxu0 0
  %11226 = vmatpush1.bf16.msra.mxu0 0
  %11227 = vmatprep.subr.bf16.mxu0 0
  %11228 = vmatpush1.bf16.msra.mxu0 0
  %11229 = vmatprep.mubr.bf16.mxu0 0
  %11230 = vmatmul.mubr.bf16.gmra.mrb[0].mxu0 %v11139
  %v11231 = vpop.f32.mrb[0].mxu0
  %v11232 = vadd.f32 %v11114, %v11231
  %v11233 = vpop.f32.mrb[0].mxu0
  %v11234 = vpop.f32.mrb[0].mxu0
  %v11235 = vadd.f32 %v11117, %v11234
  %v11236 = vpop.f32.mrb[0].mxu0
  %11237 = vmatprep.mubr.bf16.mxu0 0
  %11238 = vmatmul.mubr.bf16.gmra.mrb[0].mxu0 %v11142
  %v11239 = vpop.f32.mrb[0].mxu0
  %v11240 = vadd.f32 %v11122, %v11239
  %v11241 = vpop.f32.mrb[0].mxu0
  %v11242 = vpop.f32.mrb[0].mxu0
  %v11243 = vadd.f32 %v11125, %v11242
  %v11244 = vpop.f32.mrb[0].mxu0
  %11245 = vdwg.mxu0
  %v11246 = vpack.c.bf16 %v11183, %v11179
  %v11247 = vpack.c.bf16 %v11185, %v11181
  %v11248 = vpack.c.bf16 %v11235, %v11232
  %v11249 = vpack.c.bf16 %v11193, %v11189
  %v11250 = vpack.c.bf16 %v11195, %v11191
  %v11251 = vpack.c.bf16 %v11243, %v11240
  %s11252 = scalar_lea.vmem %s20, 32
  %v11253 = vld [vmem:[%s11252] sm:$0xf]
  %v11254 = vld [vmem:[%s11252 + $0x4] sm:$0xf]
  %v11255 = vld [vmem:[%s11252 + $0x8] sm:$0xf]
  %v11256 = vld [vmem:[%s11252 + $0xc] sm:$0xf]
  %s11257 = scalar_lea.vmem %s20, 48
  %v11258 = vld [vmem:[%s11257] sm:$0xf]
  %v11259 = vld [vmem:[%s11257 + $0x4] sm:$0xf]
  %v11260 = vld [vmem:[%s11257 + $0x8] sm:$0xf]
  %v11261 = vld [vmem:[%s11257 + $0xc] sm:$0xf]
  %v11266 = vunpack.c.l.b16 %v11258
  %v11267 = vunpack.c.l.b16 %v11259
  %v11268 = vunpack.c.l.b16 %v11260
  %v11269 = vunpack.c.l.b16 %v11261
  %v11270 = vpack.c.b16 %v11267, %v11266
  %v11271 = vpack.c.b16 %v11269, %v11268
  %v11273 = vsel %vm10646, %v11270, 0
  %v11276 = vsel %vm10646, %v11271, 0
  %11278 = vmatprep.subr.bf16.mxu0 %v10999
  %11279 = vmatpush1.bf16.msra.mxu0 %v10998
  %11280 = vmatprep.subr.bf16.mxu0 0
  %11281 = vmatpush1.bf16.msra.mxu0 0
  %11282 = vmatprep.subr.bf16.mxu0 0
  %11283 = vmatpush1.bf16.msra.mxu0 0
  %11284 = vmatprep.subr.bf16.mxu0 0
  %11285 = vmatpush1.bf16.msra.mxu0 0
  %11286 = vmatprep.subr.bf16.mxu0 0
  %11287 = vmatpush1.bf16.msra.mxu0 0
  %11288 = vmatprep.subr.bf16.mxu0 0
  %11289 = vmatpush1.bf16.msra.mxu0 0
  %11290 = vmatprep.subr.bf16.mxu0 0
  %11291 = vmatpush1.bf16.msra.mxu0 0
  %11292 = vmatprep.subr.bf16.mxu0 0
  %11293 = vmatpush1.bf16.msra.mxu0 0
  %11294 = vmatprep.subr.bf16.mxu0 0
  %11295 = vmatpush1.bf16.msra.mxu0 0
  %11296 = vmatprep.subr.bf16.mxu0 0
  %11297 = vmatpush1.bf16.msra.mxu0 0
  %11298 = vmatprep.subr.bf16.mxu0 0
  %11299 = vmatpush1.bf16.msra.mxu0 0
  %11300 = vmatprep.subr.bf16.mxu0 0
  %11301 = vmatpush1.bf16.msra.mxu0 0
  %11302 = vmatprep.subr.bf16.mxu0 0
  %11303 = vmatpush1.bf16.msra.mxu0 0
  %11304 = vmatprep.subr.bf16.mxu0 0
  %11305 = vmatpush1.bf16.msra.mxu0 0
  %11306 = vmatprep.subr.bf16.mxu0 0
  %11307 = vmatpush1.bf16.msra.mxu0 0
  %11308 = vmatprep.subr.bf16.mxu0 0
  %11309 = vmatpush1.bf16.msra.mxu0 0
  %11310 = vmatprep.mubr.bf16.mxu0 0
  %11311 = vmatmul.mubr.bf16.gmra.mrb[0].mxu0 %v11273
  %v11312 = vpop.f32.mrb[0].mxu0
  %v11313 = vadd.f32 0.0, %v11312
  %v11314 = vpop.f32.mrb[0].mxu0
  %v11315 = vadd.f32 0.0, %v11314
  %v11316 = vpop.f32.mrb[0].mxu0
  %v11317 = vadd.f32 0.0, %v11316
  %v11318 = vpop.f32.mrb[0].mxu0
  %v11319 = vadd.f32 0.0, %v11318
  %11320 = vmatprep.mubr.bf16.mxu0 0
  %11321 = vmatmul.mubr.bf16.gmra.mrb[0].mxu0 %v11276
  %v11322 = vpop.f32.mrb[0].mxu0
  %v11323 = vadd.f32 0.0, %v11322
  %v11324 = vpop.f32.mrb[0].mxu0
  %v11325 = vadd.f32 0.0, %v11324
  %v11326 = vpop.f32.mrb[0].mxu0
  %v11327 = vadd.f32 0.0, %v11326
  %v11328 = vpop.f32.mrb[0].mxu0
  %v11329 = vadd.f32 0.0, %v11328
  %11330 = vdwg.mxu0
  %11331 = vmatprep.subr.bf16.mxu0 0
  %11332 = vmatpush1.bf16.msra.mxu0 %v11000
  %11333 = vmatprep.subr.bf16.mxu0 0
  %11334 = vmatpush1.bf16.msra.mxu0 0
  %11335 = vmatprep.subr.bf16.mxu0 0
  %11336 = vmatpush1.bf16.msra.mxu0 0
  %11337 = vmatprep.subr.bf16.mxu0 0
  %11338 = vmatpush1.bf16.msra.mxu0 0
  %11339 = vmatprep.subr.bf16.mxu0 0
  %11340 = vmatpush1.bf16.msra.mxu0 0
  %11341 = vmatprep.subr.bf16.mxu0 0
  %11342 = vmatpush1.bf16.msra.mxu0 0
  %11343 = vmatprep.subr.bf16.mxu0 0
  %11344 = vmatpush1.bf16.msra.mxu0 0
  %11345 = vmatprep.subr.bf16.mxu0 0
  %11346 = vmatpush1.bf16.msra.mxu0 0
  %11347 = vmatprep.subr.bf16.mxu0 0
  %11348 = vmatpush1.bf16.msra.mxu0 0
  %11349 = vmatprep.subr.bf16.mxu0 0
  %11350 = vmatpush1.bf16.msra.mxu0 0
  %11351 = vmatprep.subr.bf16.mxu0 0
  %11352 = vmatpush1.bf16.msra.mxu0 0
  %11353 = vmatprep.subr.bf16.mxu0 0
  %11354 = vmatpush1.bf16.msra.mxu0 0
  %11355 = vmatprep.subr.bf16.mxu0 0
  %11356 = vmatpush1.bf16.msra.mxu0 0
  %11357 = vmatprep.subr.bf16.mxu0 0
  %11358 = vmatpush1.bf16.msra.mxu0 0
  %11359 = vmatprep.subr.bf16.mxu0 0
  %11360 = vmatpush1.bf16.msra.mxu0 0
  %11361 = vmatprep.subr.bf16.mxu0 0
  %11362 = vmatpush1.bf16.msra.mxu0 0
  %11363 = vmatprep.mubr.bf16.mxu0 0
  %11364 = vmatmul.mubr.bf16.gmra.mrb[0].mxu0 %v11273
  %v11365 = vpop.f32.mrb[0].mxu0
  %v11366 = vadd.f32 0.0, %v11365
  %v11367 = vpop.f32.mrb[0].mxu0
  %v11368 = vpop.f32.mrb[0].mxu0
  %v11369 = vadd.f32 0.0, %v11368
  %v11370 = vpop.f32.mrb[0].mxu0
  %11371 = vmatprep.mubr.bf16.mxu0 0
  %11372 = vmatmul.mubr.bf16.gmra.mrb[0].mxu0 %v11276
  %v11373 = vpop.f32.mrb[0].mxu0
  %v11374 = vadd.f32 0.0, %v11373
  %v11375 = vpop.f32.mrb[0].mxu0
  %v11376 = vpop.f32.mrb[0].mxu0
  %v11377 = vadd.f32 0.0, %v11376
  %v11378 = vpop.f32.mrb[0].mxu0
  %11379 = vdwg.mxu0
  %v11384 = vunpack.c.l.b16 %v11253
  %v11385 = vunpack.c.l.b16 %v11254
  %v11386 = vunpack.c.l.b16 %v11255
  %v11387 = vunpack.c.l.b16 %v11256
  %v11388 = vpack.c.b16 %v11385, %v11384
  %v11389 = vpack.c.b16 %v11387, %v11386
  %v11391 = vsel %vm10646, %v11388, 0
  %v11394 = vsel %vm10646, %v11389, 0
  %11396 = vmatprep.subr.bf16.mxu0 %v10978
  %11397 = vmatpush1.bf16.msra.mxu0 %v10977
  %11398 = vmatprep.subr.bf16.mxu0 0
  %11399 = vmatpush1.bf16.msra.mxu0 0
  %11400 = vmatprep.subr.bf16.mxu0 0
  %11401 = vmatpush1.bf16.msra.mxu0 0
  %11402 = vmatprep.subr.bf16.mxu0 0
  %11403 = vmatpush1.bf16.msra.mxu0 0
  %11404 = vmatprep.subr.bf16.mxu0 0
  %11405 = vmatpush1.bf16.msra.mxu0 0
  %11406 = vmatprep.subr.bf16.mxu0 0
  %11407 = vmatpush1.bf16.msra.mxu0 0
  %11408 = vmatprep.subr.bf16.mxu0 0
  %11409 = vmatpush1.bf16.msra.mxu0 0
  %11410 = vmatprep.subr.bf16.mxu0 0
  %11411 = vmatpush1.bf16.msra.mxu0 0
  %11412 = vmatprep.subr.bf16.mxu0 0
  %11413 = vmatpush1.bf16.msra.mxu0 0
  %11414 = vmatprep.subr.bf16.mxu0 0
  %11415 = vmatpush1.bf16.msra.mxu0 0
  %11416 = vmatprep.subr.bf16.mxu0 0
  %11417 = vmatpush1.bf16.msra.mxu0 0
  %11418 = vmatprep.subr.bf16.mxu0 0
  %11419 = vmatpush1.bf16.msra.mxu0 0
  %11420 = vmatprep.subr.bf16.mxu0 0
  %11421 = vmatpush1.bf16.msra.mxu0 0
  %11422 = vmatprep.subr.bf16.mxu0 0
  %11423 = vmatpush1.bf16.msra.mxu0 0
  %11424 = vmatprep.subr.bf16.mxu0 0
  %11425 = vmatpush1.bf16.msra.mxu0 0
  %11426 = vmatprep.subr.bf16.mxu0 0
  %11427 = vmatpush1.bf16.msra.mxu0 0
  %11428 = vmatprep.mubr.bf16.mxu0 0
  %11429 = vmatmul.mubr.bf16.gmra.mrb[0].mxu0 %v11391
  %v11430 = vpop.f32.mrb[0].mxu0
  %v11431 = vadd.f32 %v11313, %v11430
  %v11432 = vpop.f32.mrb[0].mxu0
  %v11433 = vadd.f32 %v11315, %v11432
  %v11434 = vpop.f32.mrb[0].mxu0
  %v11435 = vadd.f32 %v11317, %v11434
  %v11436 = vpop.f32.mrb[0].mxu0
  %v11437 = vadd.f32 %v11319, %v11436
  %11438 = vmatprep.mubr.bf16.mxu0 0
  %11439 = vmatmul.mubr.bf16.gmra.mrb[0].mxu0 %v11394
  %v11440 = vpop.f32.mrb[0].mxu0
  %v11441 = vadd.f32 %v11323, %v11440
  %v11442 = vpop.f32.mrb[0].mxu0
  %v11443 = vadd.f32 %v11325, %v11442
  %v11444 = vpop.f32.mrb[0].mxu0
  %v11445 = vadd.f32 %v11327, %v11444
  %v11446 = vpop.f32.mrb[0].mxu0
  %v11447 = vadd.f32 %v11329, %v11446
  %11448 = vdwg.mxu0
  %11449 = vmatprep.subr.bf16.mxu0 0
  %11450 = vmatpush1.bf16.msra.mxu0 %v10979
  %11451 = vmatprep.subr.bf16.mxu0 0
  %11452 = vmatpush1.bf16.msra.mxu0 0
  %11453 = vmatprep.subr.bf16.mxu0 0
  %11454 = vmatpush1.bf16.msra.mxu0 0
  %11455 = vmatprep.subr.bf16.mxu0 0
  %11456 = vmatpush1.bf16.msra.mxu0 0
  %11457 = vmatprep.subr.bf16.mxu0 0
  %11458 = vmatpush1.bf16.msra.mxu0 0
  %11459 = vmatprep.subr.bf16.mxu0 0
  %11460 = vmatpush1.bf16.msra.mxu0 0
  %11461 = vmatprep.subr.bf16.mxu0 0
  %11462 = vmatpush1.bf16.msra.mxu0 0
  %11463 = vmatprep.subr.bf16.mxu0 0
  %11464 = vmatpush1.bf16.msra.mxu0 0
  %11465 = vmatprep.subr.bf16.mxu0 0
  %11466 = vmatpush1.bf16.msra.mxu0 0
  %11467 = vmatprep.subr.bf16.mxu0 0
  %11468 = vmatpush1.bf16.msra.mxu0 0
  %11469 = vmatprep.subr.bf16.mxu0 0
  %11470 = vmatpush1.bf16.msra.mxu0 0
  %11471 = vmatprep.subr.bf16.mxu0 0
  %11472 = vmatpush1.bf16.msra.mxu0 0
  %11473 = vmatprep.subr.bf16.mxu0 0
  %11474 = vmatpush1.bf16.msra.mxu0 0
  %11475 = vmatprep.subr.bf16.mxu0 0
  %11476 = vmatpush1.bf16.msra.mxu0 0
  %11477 = vmatprep.subr.bf16.mxu0 0
  %11478 = vmatpush1.bf16.msra.mxu0 0
  %11479 = vmatprep.subr.bf16.mxu0 0
  %11480 = vmatpush1.bf16.msra.mxu0 0
  %11481 = vmatprep.mubr.bf16.mxu0 0
  %11482 = vmatmul.mubr.bf16.gmra.mrb[0].mxu0 %v11391
  %v11483 = vpop.f32.mrb[0].mxu0
  %v11484 = vadd.f32 %v11366, %v11483
  %v11485 = vpop.f32.mrb[0].mxu0
  %v11486 = vpop.f32.mrb[0].mxu0
  %v11487 = vadd.f32 %v11369, %v11486
  %v11488 = vpop.f32.mrb[0].mxu0
  %11489 = vmatprep.mubr.bf16.mxu0 0
  %11490 = vmatmul.mubr.bf16.gmra.mrb[0].mxu0 %v11394
  %v11491 = vpop.f32.mrb[0].mxu0
  %v11492 = vadd.f32 %v11374, %v11491
  %v11493 = vpop.f32.mrb[0].mxu0
  %v11494 = vpop.f32.mrb[0].mxu0
  %v11495 = vadd.f32 %v11377, %v11494
  %v11496 = vpop.f32.mrb[0].mxu0
  %11497 = vdwg.mxu0
  %v11498 = vpack.c.bf16 %v11435, %v11431
  %v11499 = vpack.c.bf16 %v11437, %v11433
  %v11500 = vpack.c.bf16 %v11487, %v11484
  %v11501 = vpack.c.bf16 %v11445, %v11441
  %v11502 = vpack.c.bf16 %v11447, %v11443
  %v11503 = vpack.c.bf16 %v11495, %v11492
  %s11504 = scalar_lea.vmem %s20, 64
  %v11505 = vld [vmem:[%s11504] sm:$0xf]
  %v11506 = vld [vmem:[%s11504 + $0x4] sm:$0xf]
  %v11507 = vld [vmem:[%s11504 + $0x8] sm:$0xf]
  %v11508 = vld [vmem:[%s11504 + $0xc] sm:$0xf]
  %s11509 = scalar_lea.vmem %s20, 80
  %v11510 = vld [vmem:[%s11509] sm:$0xf]
  %v11511 = vld [vmem:[%s11509 + $0x4] sm:$0xf]
  %v11512 = vld [vmem:[%s11509 + $0x8] sm:$0xf]
  %v11513 = vld [vmem:[%s11509 + $0xc] sm:$0xf]
  %v11518 = vunpack.c.l.b16 %v11510
  %v11519 = vunpack.c.l.b16 %v11511
  %v11520 = vunpack.c.l.b16 %v11512
  %v11521 = vunpack.c.l.b16 %v11513
  %v11522 = vpack.c.b16 %v11519, %v11518
  %v11523 = vpack.c.b16 %v11521, %v11520
  %v11525 = vsel %vm10646, %v11522, 0
  %v11528 = vsel %vm10646, %v11523, 0
  %11530 = vmatprep.subr.bf16.mxu0 %v10999
  %11531 = vmatpush1.bf16.msra.mxu0 %v10998
  %11532 = vmatprep.subr.bf16.mxu0 0
  %11533 = vmatpush1.bf16.msra.mxu0 0
  %11534 = vmatprep.subr.bf16.mxu0 0
  %11535 = vmatpush1.bf16.msra.mxu0 0
  %11536 = vmatprep.subr.bf16.mxu0 0
  %11537 = vmatpush1.bf16.msra.mxu0 0
  %11538 = vmatprep.subr.bf16.mxu0 0
  %11539 = vmatpush1.bf16.msra.mxu0 0
  %11540 = vmatprep.subr.bf16.mxu0 0
  %11541 = vmatpush1.bf16.msra.mxu0 0
  %11542 = vmatprep.subr.bf16.mxu0 0
  %11543 = vmatpush1.bf16.msra.mxu0 0
  %11544 = vmatprep.subr.bf16.mxu0 0
  %11545 = vmatpush1.bf16.msra.mxu0 0
  %11546 = vmatprep.subr.bf16.mxu0 0
  %11547 = vmatpush1.bf16.msra.mxu0 0
  %11548 = vmatprep.subr.bf16.mxu0 0
  %11549 = vmatpush1.bf16.msra.mxu0 0
  %11550 = vmatprep.subr.bf16.mxu0 0
  %11551 = vmatpush1.bf16.msra.mxu0 0
  %11552 = vmatprep.subr.bf16.mxu0 0
  %11553 = vmatpush1.bf16.msra.mxu0 0
  %11554 = vmatprep.subr.bf16.mxu0 0
  %11555 = vmatpush1.bf16.msra.mxu0 0
  %11556 = vmatprep.subr.bf16.mxu0 0
  %11557 = vmatpush1.bf16.msra.mxu0 0
  %11558 = vmatprep.subr.bf16.mxu0 0
  %11559 = vmatpush1.bf16.msra.mxu0 0
  %11560 = vmatprep.subr.bf16.mxu0 0
  %11561 = vmatpush1.bf16.msra.mxu0 0
  %11562 = vmatprep.mubr.bf16.mxu0 0
  %11563 = vmatmul.mubr.bf16.gmra.mrb[0].mxu0 %v11525
  %v11564 = vpop.f32.mrb[0].mxu0
  %v11565 = vadd.f32 0.0, %v11564
  %v11566 = vpop.f32.mrb[0].mxu0
  %v11567 = vadd.f32 0.0, %v11566
  %v11568 = vpop.f32.mrb[0].mxu0
  %v11569 = vadd.f32 0.0, %v11568
  %v11570 = vpop.f32.mrb[0].mxu0
  %v11571 = vadd.f32 0.0, %v11570
  %11572 = vmatprep.mubr.bf16.mxu0 0
  %11573 = vmatmul.mubr.bf16.gmra.mrb[0].mxu0 %v11528
  %v11574 = vpop.f32.mrb[0].mxu0
  %v11575 = vadd.f32 0.0, %v11574
  %v11576 = vpop.f32.mrb[0].mxu0
  %v11577 = vadd.f32 0.0, %v11576
  %v11578 = vpop.f32.mrb[0].mxu0
  %v11579 = vadd.f32 0.0, %v11578
  %v11580 = vpop.f32.mrb[0].mxu0
  %v11581 = vadd.f32 0.0, %v11580
  %11582 = vdwg.mxu0
  %11583 = vmatprep.subr.bf16.mxu0 0
  %11584 = vmatpush1.bf16.msra.mxu0 %v11000
  %11585 = vmatprep.subr.bf16.mxu0 0
  %11586 = vmatpush1.bf16.msra.mxu0 0
  %11587 = vmatprep.subr.bf16.mxu0 0
  %11588 = vmatpush1.bf16.msra.mxu0 0
  %11589 = vmatprep.subr.bf16.mxu0 0
  %11590 = vmatpush1.bf16.msra.mxu0 0
  %11591 = vmatprep.subr.bf16.mxu0 0
  %11592 = vmatpush1.bf16.msra.mxu0 0
  %11593 = vmatprep.subr.bf16.mxu0 0
  %11594 = vmatpush1.bf16.msra.mxu0 0
  %11595 = vmatprep.subr.bf16.mxu0 0
  %11596 = vmatpush1.bf16.msra.mxu0 0
  %11597 = vmatprep.subr.bf16.mxu0 0
  %11598 = vmatpush1.bf16.msra.mxu0 0
  %11599 = vmatprep.subr.bf16.mxu0 0
  %11600 = vmatpush1.bf16.msra.mxu0 0
  %11601 = vmatprep.subr.bf16.mxu0 0
  %11602 = vmatpush1.bf16.msra.mxu0 0
  %11603 = vmatprep.subr.bf16.mxu0 0
  %11604 = vmatpush1.bf16.msra.mxu0 0
  %11605 = vmatprep.subr.bf16.mxu0 0
  %11606 = vmatpush1.bf16.msra.mxu0 0
  %11607 = vmatprep.subr.bf16.mxu0 0
  %11608 = vmatpush1.bf16.msra.mxu0 0
  %11609 = vmatprep.subr.bf16.mxu0 0
  %11610 = vmatpush1.bf16.msra.mxu0 0
  %11611 = vmatprep.subr.bf16.mxu0 0
  %11612 = vmatpush1.bf16.msra.mxu0 0
  %11613 = vmatprep.subr.bf16.mxu0 0
  %11614 = vmatpush1.bf16.msra.mxu0 0
  %11615 = vmatprep.mubr.bf16.mxu0 0
  %11616 = vmatmul.mubr.bf16.gmra.mrb[0].mxu0 %v11525
  %v11617 = vpop.f32.mrb[0].mxu0
  %v11618 = vadd.f32 0.0, %v11617
  %v11619 = vpop.f32.mrb[0].mxu0
  %v11620 = vpop.f32.mrb[0].mxu0
  %v11621 = vadd.f32 0.0, %v11620
  %v11622 = vpop.f32.mrb[0].mxu0
  %11623 = vmatprep.mubr.bf16.mxu0 0
  %11624 = vmatmul.mubr.bf16.gmra.mrb[0].mxu0 %v11528
  %v11625 = vpop.f32.mrb[0].mxu0
  %v11626 = vadd.f32 0.0, %v11625
  %v11627 = vpop.f32.mrb[0].mxu0
  %v11628 = vpop.f32.mrb[0].mxu0
  %v11629 = vadd.f32 0.0, %v11628
  %v11630 = vpop.f32.mrb[0].mxu0
  %11631 = vdwg.mxu0
  %v11636 = vunpack.c.l.b16 %v11505
  %v11637 = vunpack.c.l.b16 %v11506
  %v11638 = vunpack.c.l.b16 %v11507
  %v11639 = vunpack.c.l.b16 %v11508
  %v11640 = vpack.c.b16 %v11637, %v11636
  %v11641 = vpack.c.b16 %v11639, %v11638
  %v11643 = vsel %vm10646, %v11640, 0
  %v11646 = vsel %vm10646, %v11641, 0
  %11648 = vmatprep.subr.bf16.mxu0 %v10978
  %11649 = vmatpush1.bf16.msra.mxu0 %v10977
  %11650 = vmatprep.subr.bf16.mxu0 0
  %11651 = vmatpush1.bf16.msra.mxu0 0
  %11652 = vmatprep.subr.bf16.mxu0 0
  %11653 = vmatpush1.bf16.msra.mxu0 0
  %11654 = vmatprep.subr.bf16.mxu0 0
  %11655 = vmatpush1.bf16.msra.mxu0 0
  %11656 = vmatprep.subr.bf16.mxu0 0
  %11657 = vmatpush1.bf16.msra.mxu0 0
  %11658 = vmatprep.subr.bf16.mxu0 0
  %11659 = vmatpush1.bf16.msra.mxu0 0
  %11660 = vmatprep.subr.bf16.mxu0 0
  %11661 = vmatpush1.bf16.msra.mxu0 0
  %11662 = vmatprep.subr.bf16.mxu0 0
  %11663 = vmatpush1.bf16.msra.mxu0 0
  %11664 = vmatprep.subr.bf16.mxu0 0
  %11665 = vmatpush1.bf16.msra.mxu0 0
  %11666 = vmatprep.subr.bf16.mxu0 0
  %11667 = vmatpush1.bf16.msra.mxu0 0
  %11668 = vmatprep.subr.bf16.mxu0 0
  %11669 = vmatpush1.bf16.msra.mxu0 0
  %11670 = vmatprep.subr.bf16.mxu0 0
  %11671 = vmatpush1.bf16.msra.mxu0 0
  %11672 = vmatprep.subr.bf16.mxu0 0
  %11673 = vmatpush1.bf16.msra.mxu0 0
  %11674 = vmatprep.subr.bf16.mxu0 0
  %11675 = vmatpush1.bf16.msra.mxu0 0
  %11676 = vmatprep.subr.bf16.mxu0 0
  %11677 = vmatpush1.bf16.msra.mxu0 0
  %11678 = vmatprep.subr.bf16.mxu0 0
  %11679 = vmatpush1.bf16.msra.mxu0 0
  %11680 = vmatprep.mubr.bf16.mxu0 0
  %11681 = vmatmul.mubr.bf16.gmra.mrb[0].mxu0 %v11643
  %v11682 = vpop.f32.mrb[0].mxu0
  %v11683 = vadd.f32 %v11565, %v11682
  %v11684 = vpop.f32.mrb[0].mxu0
  %v11685 = vadd.f32 %v11567, %v11684
  %v11686 = vpop.f32.mrb[0].mxu0
  %v11687 = vadd.f32 %v11569, %v11686
  %v11688 = vpop.f32.mrb[0].mxu0
  %v11689 = vadd.f32 %v11571, %v11688
  %11690 = vmatprep.mubr.bf16.mxu0 0
  %11691 = vmatmul.mubr.bf16.gmra.mrb[0].mxu0 %v11646
  %v11692 = vpop.f32.mrb[0].mxu0
  %v11693 = vadd.f32 %v11575, %v11692
  %v11694 = vpop.f32.mrb[0].mxu0
  %v11695 = vadd.f32 %v11577, %v11694
  %v11696 = vpop.f32.mrb[0].mxu0
  %v11697 = vadd.f32 %v11579, %v11696
  %v11698 = vpop.f32.mrb[0].mxu0
  %v11699 = vadd.f32 %v11581, %v11698
  %11700 = vdwg.mxu0
  %11701 = vmatprep.subr.bf16.mxu0 0
  %11702 = vmatpush1.bf16.msra.mxu0 %v10979
  %11703 = vmatprep.subr.bf16.mxu0 0
  %11704 = vmatpush1.bf16.msra.mxu0 0
  %11705 = vmatprep.subr.bf16.mxu0 0
  %11706 = vmatpush1.bf16.msra.mxu0 0
  %11707 = vmatprep.subr.bf16.mxu0 0
  %11708 = vmatpush1.bf16.msra.mxu0 0
  %11709 = vmatprep.subr.bf16.mxu0 0
  %11710 = vmatpush1.bf16.msra.mxu0 0
  %11711 = vmatprep.subr.bf16.mxu0 0
  %11712 = vmatpush1.bf16.msra.mxu0 0
  %11713 = vmatprep.subr.bf16.mxu0 0
  %11714 = vmatpush1.bf16.msra.mxu0 0
  %11715 = vmatprep.subr.bf16.mxu0 0
  %11716 = vmatpush1.bf16.msra.mxu0 0
  %11717 = vmatprep.subr.bf16.mxu0 0
  %11718 = vmatpush1.bf16.msra.mxu0 0
  %11719 = vmatprep.subr.bf16.mxu0 0
  %11720 = vmatpush1.bf16.msra.mxu0 0
  %11721 = vmatprep.subr.bf16.mxu0 0
  %11722 = vmatpush1.bf16.msra.mxu0 0
  %11723 = vmatprep.subr.bf16.mxu0 0
  %11724 = vmatpush1.bf16.msra.mxu0 0
  %11725 = vmatprep.subr.bf16.mxu0 0
  %11726 = vmatpush1.bf16.msra.mxu0 0
  %11727 = vmatprep.subr.bf16.mxu0 0
  %11728 = vmatpush1.bf16.msra.mxu0 0
  %11729 = vmatprep.subr.bf16.mxu0 0
  %11730 = vmatpush1.bf16.msra.mxu0 0
  %11731 = vmatprep.subr.bf16.mxu0 0
  %11732 = vmatpush1.bf16.msra.mxu0 0
  %11733 = vmatprep.mubr.bf16.mxu0 0
  %11734 = vmatmul.mubr.bf16.gmra.mrb[0].mxu0 %v11643
  %v11735 = vpop.f32.mrb[0].mxu0
  %v11736 = vadd.f32 %v11618, %v11735
  %v11737 = vpop.f32.mrb[0].mxu0
  %v11738 = vpop.f32.mrb[0].mxu0
  %v11739 = vadd.f32 %v11621, %v11738
  %v11740 = vpop.f32.mrb[0].mxu0
  %11741 = vmatprep.mubr.bf16.mxu0 0
  %11742 = vmatmul.mubr.bf16.gmra.mrb[0].mxu0 %v11646
  %v11743 = vpop.f32.mrb[0].mxu0
  %v11744 = vadd.f32 %v11626, %v11743
  %v11745 = vpop.f32.mrb[0].mxu0
  %v11746 = vpop.f32.mrb[0].mxu0
  %v11747 = vadd.f32 %v11629, %v11746
  %v11748 = vpop.f32.mrb[0].mxu0
  %11749 = vdwg.mxu0
  %v11750 = vpack.c.bf16 %v11687, %v11683
  %v11751 = vpack.c.bf16 %v11689, %v11685
  %v11752 = vpack.c.bf16 %v11739, %v11736
  %v11753 = vpack.c.bf16 %v11697, %v11693
  %v11754 = vpack.c.bf16 %v11699, %v11695
  %v11755 = vpack.c.bf16 %v11747, %v11744
  %v11756 = vld [vmem:[%s21] sm:$0xf]
  %v11757 = vld [vmem:[%s21 + $0x4] sm:$0xf]
  %v11758 = vld [vmem:[%s21 + $0x8] sm:$0xf]
  %v11759 = vld [vmem:[%s21 + $0xc] sm:$0xf]
  %v11760 = vld [vmem:[%s21 + $0x10] sm:$0xf]
  %v11761 = vld [vmem:[%s21 + $0x14] sm:$0xf]
  %v11762 = vld [vmem:[%s21 + $0x18] sm:$0xf]
  %v11763 = vld [vmem:[%s21 + $0x1c] sm:$0xf]
  %v11764 = vld [vmem:[%s21 + $0x20] sm:$0xf]
  %v11765 = vld [vmem:[%s21 + $0x24] sm:$0xf]
  %v11766 = vld [vmem:[%s21 + $0x28] sm:$0xf]
  %v11767 = vld [vmem:[%s21 + $0x2c] sm:$0xf]
  %v11768 = vld [vmem:[%s21 + $0x30] sm:$0xf]
  %v11769 = vld [vmem:[%s21 + $0x34] sm:$0xf]
  %v11770 = vld [vmem:[%s21 + $0x38] sm:$0xf]
  %v11771 = vld [vmem:[%s21 + $0x3c] sm:$0xf]
  %v11772 = vld [vmem:[%s21 + $0x40] sm:$0xf]
  %v11773 = vld [vmem:[%s21 + $0x44] sm:$0xf]
  %v11774 = vld [vmem:[%s21 + $0x48] sm:$0xf]
  %v11775 = vld [vmem:[%s21 + $0x4c] sm:$0xf]
  %v11776 = vld [vmem:[%s21 + $0x50] sm:$0xf]
  %v11777 = vld [vmem:[%s21 + $0x54] sm:$0xf]
  %v11778 = vld [vmem:[%s21 + $0x58] sm:$0xf]
  %v11779 = vld [vmem:[%s21 + $0x5c] sm:$0xf]
  %v11780 = vld [vmem:[%s21 + $0x60] sm:$0xf]
  %v11781 = vld [vmem:[%s21 + $0x64] sm:$0xf]
  %v11782 = vld [vmem:[%s21 + $0x68] sm:$0xf]
  %v11783 = vld [vmem:[%s21 + $0x6c] sm:$0xf]
  %v11784 = vld [vmem:[%s21 + $0x70] sm:$0xf]
  %v11785 = vld [vmem:[%s21 + $0x74] sm:$0xf]
  %v11786 = vld [vmem:[%s21 + $0x78] sm:$0xf]
  %v11787 = vld [vmem:[%s21 + $0x7c] sm:$0xf]
  %v11788 = vld [vmem:[%s21 + $0x80] sm:$0xf]
  %v11789 = vld [vmem:[%s21 + $0x84] sm:$0xf]
  %v11790 = vld [vmem:[%s21 + $0x88] sm:$0xf]
  %v11791 = vld [vmem:[%s21 + $0x8c] sm:$0xf]
  %s11792 = scalar_lea.vmem %s21, 144
  %v11793 = vld [vmem:[%s11792] sm:$0xf]
  %v11794 = vld [vmem:[%s11792 + $0x4] sm:$0xf]
  %v11795 = vld [vmem:[%s11792 + $0x8] sm:$0xf]
  %v11796 = vld [vmem:[%s11792 + $0xc] sm:$0xf]
  %v11797 = vld [vmem:[%s11792 + $0x10] sm:$0xf]
  %v11798 = vld [vmem:[%s11792 + $0x14] sm:$0xf]
  %v11799 = vld [vmem:[%s11792 + $0x18] sm:$0xf]
  %v11800 = vld [vmem:[%s11792 + $0x1c] sm:$0xf]
  %v11801 = vld [vmem:[%s11792 + $0x20] sm:$0xf]
  %v11802 = vld [vmem:[%s11792 + $0x24] sm:$0xf]
  %v11803 = vld [vmem:[%s11792 + $0x28] sm:$0xf]
  %v11804 = vld [vmem:[%s11792 + $0x2c] sm:$0xf]
  %v11805 = vld [vmem:[%s11792 + $0x30] sm:$0xf]
  %v11806 = vld [vmem:[%s11792 + $0x34] sm:$0xf]
  %v11807 = vld [vmem:[%s11792 + $0x38] sm:$0xf]
  %v11808 = vld [vmem:[%s11792 + $0x3c] sm:$0xf]
  %v11809 = vld [vmem:[%s11792 + $0x40] sm:$0xf]
  %v11810 = vld [vmem:[%s11792 + $0x44] sm:$0xf]
  %v11811 = vld [vmem:[%s11792 + $0x48] sm:$0xf]
  %v11812 = vld [vmem:[%s11792 + $0x4c] sm:$0xf]
  %v11813 = vld [vmem:[%s11792 + $0x50] sm:$0xf]
  %v11814 = vld [vmem:[%s11792 + $0x54] sm:$0xf]
  %v11815 = vld [vmem:[%s11792 + $0x58] sm:$0xf]
  %v11816 = vld [vmem:[%s11792 + $0x5c] sm:$0xf]
  %v11817 = vld [vmem:[%s11792 + $0x60] sm:$0xf]
  %v11818 = vld [vmem:[%s11792 + $0x64] sm:$0xf]
  %v11819 = vld [vmem:[%s11792 + $0x68] sm:$0xf]
  %v11820 = vld [vmem:[%s11792 + $0x6c] sm:$0xf]
  %v11821 = vld [vmem:[%s11792 + $0x70] sm:$0xf]
  %v11822 = vld [vmem:[%s11792 + $0x74] sm:$0xf]
  %v11823 = vld [vmem:[%s11792 + $0x78] sm:$0xf]
  %v11824 = vld [vmem:[%s11792 + $0x7c] sm:$0xf]
  %v11825 = vld [vmem:[%s11792 + $0x80] sm:$0xf]
  %v11826 = vld [vmem:[%s11792 + $0x84] sm:$0xf]
  %v11827 = vld [vmem:[%s11792 + $0x88] sm:$0xf]
  %v11828 = vld [vmem:[%s11792 + $0x8c] sm:$0xf]
  %v11865 = vunpack.c.l.b16 %v11793
  %v11866 = vunpack.c.l.b16 %v11794
  %v11867 = vunpack.c.l.b16 %v11795
  %v11868 = vunpack.c.l.b16 %v11796
  %v11869 = vunpack.c.l.b16 %v11797
  %v11870 = vunpack.c.l.b16 %v11798
  %v11871 = vunpack.c.l.b16 %v11799
  %v11872 = vunpack.c.l.b16 %v11800
  %v11873 = vunpack.c.l.b16 %v11801
  %v11874 = vunpack.c.l.b16 %v11802
  %v11875 = vunpack.c.l.b16 %v11803
  %v11876 = vunpack.c.l.b16 %v11804
  %v11877 = vunpack.c.l.b16 %v11805
  %v11878 = vunpack.c.l.b16 %v11806
  %v11879 = vunpack.c.l.b16 %v11807
  %v11880 = vunpack.c.l.b16 %v11808
  %v11881 = vunpack.c.l.b16 %v11809
  %v11882 = vunpack.c.l.b16 %v11810
  %v11883 = vunpack.c.l.b16 %v11811
  %v11884 = vunpack.c.l.b16 %v11812
  %v11885 = vunpack.c.l.b16 %v11813
  %v11886 = vunpack.c.l.b16 %v11814
  %v11887 = vunpack.c.l.b16 %v11815
  %v11888 = vunpack.c.l.b16 %v11816
  %v11889 = vunpack.c.l.b16 %v11817
  %v11890 = vunpack.c.l.b16 %v11818
  %v11891 = vunpack.c.l.b16 %v11819
  %v11892 = vunpack.c.l.b16 %v11820
  %v11893 = vunpack.c.l.b16 %v11821
  %v11894 = vunpack.c.l.b16 %v11822
  %v11895 = vunpack.c.l.b16 %v11823
  %v11896 = vunpack.c.l.b16 %v11824
  %v11897 = vunpack.c.l.b16 %v11825
  %v11898 = vunpack.c.l.b16 %v11826
  %v11899 = vunpack.c.l.b16 %v11827
  %v11900 = vunpack.c.l.b16 %v11828
  %v11901 = vpack.c.b16 %v11866, %v11865
  %v11902 = vpack.c.b16 %v11868, %v11867
  %v11903 = vpack.c.b16 %v11870, %v11869
  %v11904 = vpack.c.b16 %v11872, %v11871
  %v11905 = vpack.c.b16 %v11874, %v11873
  %v11906 = vpack.c.b16 %v11876, %v11875
  %v11907 = vpack.c.b16 %v11878, %v11877
  %v11908 = vpack.c.b16 %v11880, %v11879
  %v11909 = vpack.c.b16 %v11882, %v11881
  %v11910 = vpack.c.b16 %v11884, %v11883
  %v11911 = vpack.c.b16 %v11886, %v11885
  %v11912 = vpack.c.b16 %v11888, %v11887
  %v11913 = vpack.c.b16 %v11890, %v11889
  %v11914 = vpack.c.b16 %v11892, %v11891
  %v11915 = vpack.c.b16 %v11894, %v11893
  %v11916 = vpack.c.b16 %v11896, %v11895
  %v11917 = vpack.c.b16 %v11898, %v11897
  %v11918 = vpack.c.b16 %v11900, %v11899
  %v11938 = vsel %vm6938, %v11248, 0
  %v11941 = vsel %vm6938, %v11251, 0
  %11943 = vmatprep.subr.bf16.mxu0 0
  %11944 = vmatpush1.bf16.msra.mxu0 %v11901
  %11945 = vmatprep.subr.bf16.mxu0 0
  %11946 = vmatpush1.bf16.msra.mxu0 %v11902
  %11947 = vmatprep.subr.bf16.mxu0 0
  %11948 = vmatpush1.bf16.msra.mxu0 %v11903
  %11949 = vmatprep.subr.bf16.mxu0 0
  %11950 = vmatpush1.bf16.msra.mxu0 %v11904
  %11951 = vmatprep.subr.bf16.mxu0 0
  %11952 = vmatpush1.bf16.msra.mxu0 %v11905
  %11953 = vmatprep.subr.bf16.mxu0 0
  %11954 = vmatpush1.bf16.msra.mxu0 %v11906
  %11955 = vmatprep.subr.bf16.mxu0 0
  %11956 = vmatpush1.bf16.msra.mxu0 %v11907
  %11957 = vmatprep.subr.bf16.mxu0 0
  %11958 = vmatpush1.bf16.msra.mxu0 %v11908
  %11959 = vmatprep.subr.bf16.mxu0 0
  %11960 = vmatpush1.bf16.msra.mxu0 %v11909
  %11961 = vmatprep.subr.bf16.mxu0 0
  %11962 = vmatpush1.bf16.msra.mxu0 %v11910
  %11963 = vmatprep.subr.bf16.mxu0 0
  %11964 = vmatpush1.bf16.msra.mxu0 %v11911
  %11965 = vmatprep.subr.bf16.mxu0 0
  %11966 = vmatpush1.bf16.msra.mxu0 %v11912
  %11967 = vmatprep.subr.bf16.mxu0 0
  %11968 = vmatpush1.bf16.msra.mxu0 %v11913
  %11969 = vmatprep.subr.bf16.mxu0 0
  %11970 = vmatpush1.bf16.msra.mxu0 %v11914
  %11971 = vmatprep.subr.bf16.mxu0 0
  %11972 = vmatpush1.bf16.msra.mxu0 %v11915
  %11973 = vmatprep.subr.bf16.mxu0 0
  %11974 = vmatpush1.bf16.msra.mxu0 %v11916
  %11975 = vmatprep.mubr.bf16.mxu0 %v11247
  %11976 = vmatmul.mubr.bf16.gmra.mrb[0].mxu0 %v11246
  %v11977 = vpop.f32.mrb[0].mxu0
  %v11978 = vadd.f32 0.0, %v11977
  %v11979 = vpop.f32.mrb[0].mxu0
  %v11980 = vpop.f32.mrb[0].mxu0
  %v11981 = vadd.f32 0.0, %v11980
  %v11982 = vpop.f32.mrb[0].mxu0
  %11983 = vmatprep.mubr.bf16.mxu0 %v11250
  %11984 = vmatmul.mubr.bf16.gmra.mrb[0].mxu0 %v11249
  %v11985 = vpop.f32.mrb[0].mxu0
  %v11986 = vadd.f32 0.0, %v11985
  %v11987 = vpop.f32.mrb[0].mxu0
  %v11988 = vpop.f32.mrb[0].mxu0
  %v11989 = vadd.f32 0.0, %v11988
  %v11990 = vpop.f32.mrb[0].mxu0
  %11991 = vdwg.mxu0
  %11992 = vmatprep.subr.bf16.mxu0 0
  %11993 = vmatpush1.bf16.msra.mxu0 %v11917
  %11994 = vmatprep.subr.bf16.mxu0 0
  %11995 = vmatpush1.bf16.msra.mxu0 %v11918
  %11996 = vmatprep.subr.bf16.mxu0 0
  %11997 = vmatpush1.bf16.msra.mxu0 0
  %11998 = vmatprep.subr.bf16.mxu0 0
  %11999 = vmatpush1.bf16.msra.mxu0 0
  %12000 = vmatprep.subr.bf16.mxu0 0
  %12001 = vmatpush1.bf16.msra.mxu0 0
  %12002 = vmatprep.subr.bf16.mxu0 0
  %12003 = vmatpush1.bf16.msra.mxu0 0
  %12004 = vmatprep.subr.bf16.mxu0 0
  %12005 = vmatpush1.bf16.msra.mxu0 0
  %12006 = vmatprep.subr.bf16.mxu0 0
  %12007 = vmatpush1.bf16.msra.mxu0 0
  %12008 = vmatprep.subr.bf16.mxu0 0
  %12009 = vmatpush1.bf16.msra.mxu0 0
  %12010 = vmatprep.subr.bf16.mxu0 0
  %12011 = vmatpush1.bf16.msra.mxu0 0
  %12012 = vmatprep.subr.bf16.mxu0 0
  %12013 = vmatpush1.bf16.msra.mxu0 0
  %12014 = vmatprep.subr.bf16.mxu0 0
  %12015 = vmatpush1.bf16.msra.mxu0 0
  %12016 = vmatprep.subr.bf16.mxu0 0
  %12017 = vmatpush1.bf16.msra.mxu0 0
  %12018 = vmatprep.subr.bf16.mxu0 0
  %12019 = vmatpush1.bf16.msra.mxu0 0
  %12020 = vmatprep.subr.bf16.mxu0 0
  %12021 = vmatpush1.bf16.msra.mxu0 0
  %12022 = vmatprep.subr.bf16.mxu0 0
  %12023 = vmatpush1.bf16.msra.mxu0 0
  %12024 = vmatprep.mubr.bf16.mxu0 0
  %12025 = vmatmul.mubr.bf16.gmra.mrb[0].mxu0 %v11938
  %v12026 = vpop.f32.mrb[0].mxu0
  %v12027 = vadd.f32 %v11978, %v12026
  %v12028 = vpop.f32.mrb[0].mxu0
  %v12029 = vpop.f32.mrb[0].mxu0
  %v12030 = vadd.f32 %v11981, %v12029
  %v12031 = vpop.f32.mrb[0].mxu0
  %12032 = vmatprep.mubr.bf16.mxu0 0
  %12033 = vmatmul.mubr.bf16.gmra.mrb[0].mxu0 %v11941
  %v12034 = vpop.f32.mrb[0].mxu0
  %v12035 = vadd.f32 %v11986, %v12034
  %v12036 = vpop.f32.mrb[0].mxu0
  %v12037 = vpop.f32.mrb[0].mxu0
  %v12038 = vadd.f32 %v11989, %v12037
  %v12039 = vpop.f32.mrb[0].mxu0
  %12040 = vdwg.mxu0
  %v12077 = vunpack.c.l.b16 %v11756
  %v12078 = vunpack.c.l.b16 %v11757
  %v12079 = vunpack.c.l.b16 %v11758
  %v12080 = vunpack.c.l.b16 %v11759
  %v12081 = vunpack.c.l.b16 %v11760
  %v12082 = vunpack.c.l.b16 %v11761
  %v12083 = vunpack.c.l.b16 %v11762
  %v12084 = vunpack.c.l.b16 %v11763
  %v12085 = vunpack.c.l.b16 %v11764
  %v12086 = vunpack.c.l.b16 %v11765
  %v12087 = vunpack.c.l.b16 %v11766
  %v12088 = vunpack.c.l.b16 %v11767
  %v12089 = vunpack.c.l.b16 %v11768
  %v12090 = vunpack.c.l.b16 %v11769
  %v12091 = vunpack.c.l.b16 %v11770
  %v12092 = vunpack.c.l.b16 %v11771
  %v12093 = vunpack.c.l.b16 %v11772
  %v12094 = vunpack.c.l.b16 %v11773
  %v12095 = vunpack.c.l.b16 %v11774
  %v12096 = vunpack.c.l.b16 %v11775
  %v12097 = vunpack.c.l.b16 %v11776
  %v12098 = vunpack.c.l.b16 %v11777
  %v12099 = vunpack.c.l.b16 %v11778
  %v12100 = vunpack.c.l.b16 %v11779
  %v12101 = vunpack.c.l.b16 %v11780
  %v12102 = vunpack.c.l.b16 %v11781
  %v12103 = vunpack.c.l.b16 %v11782
  %v12104 = vunpack.c.l.b16 %v11783
  %v12105 = vunpack.c.l.b16 %v11784
  %v12106 = vunpack.c.l.b16 %v11785
  %v12107 = vunpack.c.l.b16 %v11786
  %v12108 = vunpack.c.l.b16 %v11787
  %v12109 = vunpack.c.l.b16 %v11788
  %v12110 = vunpack.c.l.b16 %v11789
  %v12111 = vunpack.c.l.b16 %v11790
  %v12112 = vunpack.c.l.b16 %v11791
  %v12113 = vpack.c.b16 %v12078, %v12077
  %v12114 = vpack.c.b16 %v12080, %v12079
  %v12115 = vpack.c.b16 %v12082, %v12081
  %v12116 = vpack.c.b16 %v12084, %v12083
  %v12117 = vpack.c.b16 %v12086, %v12085
  %v12118 = vpack.c.b16 %v12088, %v12087
  %v12119 = vpack.c.b16 %v12090, %v12089
  %v12120 = vpack.c.b16 %v12092, %v12091
  %v12121 = vpack.c.b16 %v12094, %v12093
  %v12122 = vpack.c.b16 %v12096, %v12095
  %v12123 = vpack.c.b16 %v12098, %v12097
  %v12124 = vpack.c.b16 %v12100, %v12099
  %v12125 = vpack.c.b16 %v12102, %v12101
  %v12126 = vpack.c.b16 %v12104, %v12103
  %v12127 = vpack.c.b16 %v12106, %v12105
  %v12128 = vpack.c.b16 %v12108, %v12107
  %v12129 = vpack.c.b16 %v12110, %v12109
  %v12130 = vpack.c.b16 %v12112, %v12111
  %v12150 = vsel %vm6938, %v11500, 0
  %v12153 = vsel %vm6938, %v11503, 0
  %12155 = vmatprep.subr.bf16.mxu0 0
  %12156 = vmatpush1.bf16.msra.mxu0 %v12113
  %12157 = vmatprep.subr.bf16.mxu0 0
  %12158 = vmatpush1.bf16.msra.mxu0 %v12114
  %12159 = vmatprep.subr.bf16.mxu0 0
  %12160 = vmatpush1.bf16.msra.mxu0 %v12115
  %12161 = vmatprep.subr.bf16.mxu0 0
  %12162 = vmatpush1.bf16.msra.mxu0 %v12116
  %12163 = vmatprep.subr.bf16.mxu0 0
  %12164 = vmatpush1.bf16.msra.mxu0 %v12117
  %12165 = vmatprep.subr.bf16.mxu0 0
  %12166 = vmatpush1.bf16.msra.mxu0 %v12118
  %12167 = vmatprep.subr.bf16.mxu0 0
  %12168 = vmatpush1.bf16.msra.mxu0 %v12119
  %12169 = vmatprep.subr.bf16.mxu0 0
  %12170 = vmatpush1.bf16.msra.mxu0 %v12120
  %12171 = vmatprep.subr.bf16.mxu0 0
  %12172 = vmatpush1.bf16.msra.mxu0 %v12121
  %12173 = vmatprep.subr.bf16.mxu0 0
  %12174 = vmatpush1.bf16.msra.mxu0 %v12122
  %12175 = vmatprep.subr.bf16.mxu0 0
  %12176 = vmatpush1.bf16.msra.mxu0 %v12123
  %12177 = vmatprep.subr.bf16.mxu0 0
  %12178 = vmatpush1.bf16.msra.mxu0 %v12124
  %12179 = vmatprep.subr.bf16.mxu0 0
  %12180 = vmatpush1.bf16.msra.mxu0 %v12125
  %12181 = vmatprep.subr.bf16.mxu0 0
  %12182 = vmatpush1.bf16.msra.mxu0 %v12126
  %12183 = vmatprep.subr.bf16.mxu0 0
  %12184 = vmatpush1.bf16.msra.mxu0 %v12127
  %12185 = vmatprep.subr.bf16.mxu0 0
  %12186 = vmatpush1.bf16.msra.mxu0 %v12128
  %12187 = vmatprep.mubr.bf16.mxu0 %v11499
  %12188 = vmatmul.mubr.bf16.gmra.mrb[0].mxu0 %v11498
  %v12189 = vpop.f32.mrb[0].mxu0
  %v12190 = vadd.f32 %v12027, %v12189
  %v12191 = vpop.f32.mrb[0].mxu0
  %v12192 = vpop.f32.mrb[0].mxu0
  %v12193 = vadd.f32 %v12030, %v12192
  %v12194 = vpop.f32.mrb[0].mxu0
  %12195 = vmatprep.mubr.bf16.mxu0 %v11502
  %12196 = vmatmul.mubr.bf16.gmra.mrb[0].mxu0 %v11501
  %v12197 = vpop.f32.mrb[0].mxu0
  %v12198 = vadd.f32 %v12035, %v12197
  %v12199 = vpop.f32.mrb[0].mxu0
  %v12200 = vpop.f32.mrb[0].mxu0
  %v12201 = vadd.f32 %v12038, %v12200
  %v12202 = vpop.f32.mrb[0].mxu0
  %12203 = vdwg.mxu0
  %12204 = vmatprep.subr.bf16.mxu0 0
  %12205 = vmatpush1.bf16.msra.mxu0 %v12129
  %12206 = vmatprep.subr.bf16.mxu0 0
  %12207 = vmatpush1.bf16.msra.mxu0 %v12130
  %12208 = vmatprep.subr.bf16.mxu0 0
  %12209 = vmatpush1.bf16.msra.mxu0 0
  %12210 = vmatprep.subr.bf16.mxu0 0
  %12211 = vmatpush1.bf16.msra.mxu0 0
  %12212 = vmatprep.subr.bf16.mxu0 0
  %12213 = vmatpush1.bf16.msra.mxu0 0
  %12214 = vmatprep.subr.bf16.mxu0 0
  %12215 = vmatpush1.bf16.msra.mxu0 0
  %12216 = vmatprep.subr.bf16.mxu0 0
  %12217 = vmatpush1.bf16.msra.mxu0 0
  %12218 = vmatprep.subr.bf16.mxu0 0
  %12219 = vmatpush1.bf16.msra.mxu0 0
  %12220 = vmatprep.subr.bf16.mxu0 0
  %12221 = vmatpush1.bf16.msra.mxu0 0
  %12222 = vmatprep.subr.bf16.mxu0 0
  %12223 = vmatpush1.bf16.msra.mxu0 0
  %12224 = vmatprep.subr.bf16.mxu0 0
  %12225 = vmatpush1.bf16.msra.mxu0 0
  %12226 = vmatprep.subr.bf16.mxu0 0
  %12227 = vmatpush1.bf16.msra.mxu0 0
  %12228 = vmatprep.subr.bf16.mxu0 0
  %12229 = vmatpush1.bf16.msra.mxu0 0
  %12230 = vmatprep.subr.bf16.mxu0 0
  %12231 = vmatpush1.bf16.msra.mxu0 0
  %12232 = vmatprep.subr.bf16.mxu0 0
  %12233 = vmatpush1.bf16.msra.mxu0 0
  %12234 = vmatprep.subr.bf16.mxu0 0
  %12235 = vmatpush1.bf16.msra.mxu0 0
  %12236 = vmatprep.mubr.bf16.mxu0 0
  %12237 = vmatmul.mubr.bf16.gmra.mrb[0].mxu0 %v12150
  %v12238 = vpop.f32.mrb[0].mxu0
  %v12239 = vadd.f32 %v12190, %v12238
  %v12240 = vpop.f32.mrb[0].mxu0
  %v12241 = vpop.f32.mrb[0].mxu0
  %v12242 = vadd.f32 %v12193, %v12241
  %v12243 = vpop.f32.mrb[0].mxu0
  %12244 = vmatprep.mubr.bf16.mxu0 0
  %12245 = vmatmul.mubr.bf16.gmra.mrb[0].mxu0 %v12153
  %v12246 = vpop.f32.mrb[0].mxu0
  %v12247 = vadd.f32 %v12198, %v12246
  %v12248 = vpop.f32.mrb[0].mxu0
  %v12249 = vpop.f32.mrb[0].mxu0
  %v12250 = vadd.f32 %v12201, %v12249
  %v12251 = vpop.f32.mrb[0].mxu0
  %12252 = vdwg.mxu0
  %s12253 = scalar_lea.vmem %s21, 288
  %v12254 = vld [vmem:[%s12253] sm:$0xf]
  %v12255 = vld [vmem:[%s12253 + $0x4] sm:$0xf]
  %v12256 = vld [vmem:[%s12253 + $0x8] sm:$0xf]
  %v12257 = vld [vmem:[%s12253 + $0xc] sm:$0xf]
  %v12258 = vld [vmem:[%s12253 + $0x10] sm:$0xf]
  %v12259 = vld [vmem:[%s12253 + $0x14] sm:$0xf]
  %v12260 = vld [vmem:[%s12253 + $0x18] sm:$0xf]
  %v12261 = vld [vmem:[%s12253 + $0x1c] sm:$0xf]
  %v12262 = vld [vmem:[%s12253 + $0x20] sm:$0xf]
  %v12263 = vld [vmem:[%s12253 + $0x24] sm:$0xf]
  %v12264 = vld [vmem:[%s12253 + $0x28] sm:$0xf]
  %v12265 = vld [vmem:[%s12253 + $0x2c] sm:$0xf]
  %v12266 = vld [vmem:[%s12253 + $0x30] sm:$0xf]
  %v12267 = vld [vmem:[%s12253 + $0x34] sm:$0xf]
  %v12268 = vld [vmem:[%s12253 + $0x38] sm:$0xf]
  %v12269 = vld [vmem:[%s12253 + $0x3c] sm:$0xf]
  %v12270 = vld [vmem:[%s12253 + $0x40] sm:$0xf]
  %v12271 = vld [vmem:[%s12253 + $0x44] sm:$0xf]
  %v12272 = vld [vmem:[%s12253 + $0x48] sm:$0xf]
  %v12273 = vld [vmem:[%s12253 + $0x4c] sm:$0xf]
  %v12274 = vld [vmem:[%s12253 + $0x50] sm:$0xf]
  %v12275 = vld [vmem:[%s12253 + $0x54] sm:$0xf]
  %v12276 = vld [vmem:[%s12253 + $0x58] sm:$0xf]
  %v12277 = vld [vmem:[%s12253 + $0x5c] sm:$0xf]
  %v12278 = vld [vmem:[%s12253 + $0x60] sm:$0xf]
  %v12279 = vld [vmem:[%s12253 + $0x64] sm:$0xf]
  %v12280 = vld [vmem:[%s12253 + $0x68] sm:$0xf]
  %v12281 = vld [vmem:[%s12253 + $0x6c] sm:$0xf]
  %v12282 = vld [vmem:[%s12253 + $0x70] sm:$0xf]
  %v12283 = vld [vmem:[%s12253 + $0x74] sm:$0xf]
  %v12284 = vld [vmem:[%s12253 + $0x78] sm:$0xf]
  %v12285 = vld [vmem:[%s12253 + $0x7c] sm:$0xf]
  %v12286 = vld [vmem:[%s12253 + $0x80] sm:$0xf]
  %v12287 = vld [vmem:[%s12253 + $0x84] sm:$0xf]
  %v12288 = vld [vmem:[%s12253 + $0x88] sm:$0xf]
  %v12289 = vld [vmem:[%s12253 + $0x8c] sm:$0xf]
  %s12290 = scalar_lea.vmem %s21, 432
  %v12291 = vld [vmem:[%s12290] sm:$0xf]
  %v12292 = vld [vmem:[%s12290 + $0x4] sm:$0xf]
  %v12293 = vld [vmem:[%s12290 + $0x8] sm:$0xf]
  %v12294 = vld [vmem:[%s12290 + $0xc] sm:$0xf]
  %v12295 = vld [vmem:[%s12290 + $0x10] sm:$0xf]
  %v12296 = vld [vmem:[%s12290 + $0x14] sm:$0xf]
  %v12297 = vld [vmem:[%s12290 + $0x18] sm:$0xf]
  %v12298 = vld [vmem:[%s12290 + $0x1c] sm:$0xf]
  %v12299 = vld [vmem:[%s12290 + $0x20] sm:$0xf]
  %v12300 = vld [vmem:[%s12290 + $0x24] sm:$0xf]
  %v12301 = vld [vmem:[%s12290 + $0x28] sm:$0xf]
  %v12302 = vld [vmem:[%s12290 + $0x2c] sm:$0xf]
  %v12303 = vld [vmem:[%s12290 + $0x30] sm:$0xf]
  %v12304 = vld [vmem:[%s12290 + $0x34] sm:$0xf]
  %v12305 = vld [vmem:[%s12290 + $0x38] sm:$0xf]
  %v12306 = vld [vmem:[%s12290 + $0x3c] sm:$0xf]
  %v12307 = vld [vmem:[%s12290 + $0x40] sm:$0xf]
  %v12308 = vld [vmem:[%s12290 + $0x44] sm:$0xf]
  %v12309 = vld [vmem:[%s12290 + $0x48] sm:$0xf]
  %v12310 = vld [vmem:[%s12290 + $0x4c] sm:$0xf]
  %v12311 = vld [vmem:[%s12290 + $0x50] sm:$0xf]
  %v12312 = vld [vmem:[%s12290 + $0x54] sm:$0xf]
  %v12313 = vld [vmem:[%s12290 + $0x58] sm:$0xf]
  %v12314 = vld [vmem:[%s12290 + $0x5c] sm:$0xf]
  %v12315 = vld [vmem:[%s12290 + $0x60] sm:$0xf]
  %v12316 = vld [vmem:[%s12290 + $0x64] sm:$0xf]
  %v12317 = vld [vmem:[%s12290 + $0x68] sm:$0xf]
  %v12318 = vld [vmem:[%s12290 + $0x6c] sm:$0xf]
  %v12319 = vld [vmem:[%s12290 + $0x70] sm:$0xf]
  %v12320 = vld [vmem:[%s12290 + $0x74] sm:$0xf]
  %v12321 = vld [vmem:[%s12290 + $0x78] sm:$0xf]
  %v12322 = vld [vmem:[%s12290 + $0x7c] sm:$0xf]
  %v12323 = vld [vmem:[%s12290 + $0x80] sm:$0xf]
  %v12324 = vld [vmem:[%s12290 + $0x84] sm:$0xf]
  %v12325 = vld [vmem:[%s12290 + $0x88] sm:$0xf]
  %v12326 = vld [vmem:[%s12290 + $0x8c] sm:$0xf]
  %v12363 = vunpack.c.l.b16 %v12291
  %v12364 = vunpack.c.l.b16 %v12292
  %v12365 = vunpack.c.l.b16 %v12293
  %v12366 = vunpack.c.l.b16 %v12294
  %v12367 = vunpack.c.l.b16 %v12295
  %v12368 = vunpack.c.l.b16 %v12296
  %v12369 = vunpack.c.l.b16 %v12297
  %v12370 = vunpack.c.l.b16 %v12298
  %v12371 = vunpack.c.l.b16 %v12299
  %v12372 = vunpack.c.l.b16 %v12300
  %v12373 = vunpack.c.l.b16 %v12301
  %v12374 = vunpack.c.l.b16 %v12302
  %v12375 = vunpack.c.l.b16 %v12303
  %v12376 = vunpack.c.l.b16 %v12304
  %v12377 = vunpack.c.l.b16 %v12305
  %v12378 = vunpack.c.l.b16 %v12306
  %v12379 = vunpack.c.l.b16 %v12307
  %v12380 = vunpack.c.l.b16 %v12308
  %v12381 = vunpack.c.l.b16 %v12309
  %v12382 = vunpack.c.l.b16 %v12310
  %v12383 = vunpack.c.l.b16 %v12311
  %v12384 = vunpack.c.l.b16 %v12312
  %v12385 = vunpack.c.l.b16 %v12313
  %v12386 = vunpack.c.l.b16 %v12314
  %v12387 = vunpack.c.l.b16 %v12315
  %v12388 = vunpack.c.l.b16 %v12316
  %v12389 = vunpack.c.l.b16 %v12317
  %v12390 = vunpack.c.l.b16 %v12318
  %v12391 = vunpack.c.l.b16 %v12319
  %v12392 = vunpack.c.l.b16 %v12320
  %v12393 = vunpack.c.l.b16 %v12321
  %v12394 = vunpack.c.l.b16 %v12322
  %v12395 = vunpack.c.l.b16 %v12323
  %v12396 = vunpack.c.l.b16 %v12324
  %v12397 = vunpack.c.l.b16 %v12325
  %v12398 = vunpack.c.l.b16 %v12326
  %v12399 = vpack.c.b16 %v12364, %v12363
  %v12400 = vpack.c.b16 %v12366, %v12365
  %v12401 = vpack.c.b16 %v12368, %v12367
  %v12402 = vpack.c.b16 %v12370, %v12369
  %v12403 = vpack.c.b16 %v12372, %v12371
  %v12404 = vpack.c.b16 %v12374, %v12373
  %v12405 = vpack.c.b16 %v12376, %v12375
  %v12406 = vpack.c.b16 %v12378, %v12377
  %v12407 = vpack.c.b16 %v12380, %v12379
  %v12408 = vpack.c.b16 %v12382, %v12381
  %v12409 = vpack.c.b16 %v12384, %v12383
  %v12410 = vpack.c.b16 %v12386, %v12385
  %v12411 = vpack.c.b16 %v12388, %v12387
  %v12412 = vpack.c.b16 %v12390, %v12389
  %v12413 = vpack.c.b16 %v12392, %v12391
  %v12414 = vpack.c.b16 %v12394, %v12393
  %v12415 = vpack.c.b16 %v12396, %v12395
  %v12416 = vpack.c.b16 %v12398, %v12397
  %v12436 = vsel %vm6938, %v11752, 0
  %v12439 = vsel %vm6938, %v11755, 0
  %12441 = vmatprep.subr.bf16.mxu0 0
  %12442 = vmatpush1.bf16.msra.mxu0 %v12399
  %12443 = vmatprep.subr.bf16.mxu0 0
  %12444 = vmatpush1.bf16.msra.mxu0 %v12400
  %12445 = vmatprep.subr.bf16.mxu0 0
  %12446 = vmatpush1.bf16.msra.mxu0 %v12401
  %12447 = vmatprep.subr.bf16.mxu0 0
  %12448 = vmatpush1.bf16.msra.mxu0 %v12402
  %12449 = vmatprep.subr.bf16.mxu0 0
  %12450 = vmatpush1.bf16.msra.mxu0 %v12403
  %12451 = vmatprep.subr.bf16.mxu0 0
  %12452 = vmatpush1.bf16.msra.mxu0 %v12404
  %12453 = vmatprep.subr.bf16.mxu0 0
  %12454 = vmatpush1.bf16.msra.mxu0 %v12405
  %12455 = vmatprep.subr.bf16.mxu0 0
  %12456 = vmatpush1.bf16.msra.mxu0 %v12406
  %12457 = vmatprep.subr.bf16.mxu0 0
  %12458 = vmatpush1.bf16.msra.mxu0 %v12407
  %12459 = vmatprep.subr.bf16.mxu0 0
  %12460 = vmatpush1.bf16.msra.mxu0 %v12408
  %12461 = vmatprep.subr.bf16.mxu0 0
  %12462 = vmatpush1.bf16.msra.mxu0 %v12409
  %12463 = vmatprep.subr.bf16.mxu0 0
  %12464 = vmatpush1.bf16.msra.mxu0 %v12410
  %12465 = vmatprep.subr.bf16.mxu0 0
  %12466 = vmatpush1.bf16.msra.mxu0 %v12411
  %12467 = vmatprep.subr.bf16.mxu0 0
  %12468 = vmatpush1.bf16.msra.mxu0 %v12412
  %12469 = vmatprep.subr.bf16.mxu0 0
  %12470 = vmatpush1.bf16.msra.mxu0 %v12413
  %12471 = vmatprep.subr.bf16.mxu0 0
  %12472 = vmatpush1.bf16.msra.mxu0 %v12414
  %12473 = vmatprep.mubr.bf16.mxu0 %v11751
  %12474 = vmatmul.mubr.bf16.gmra.mrb[0].mxu0 %v11750
  %v12475 = vpop.f32.mrb[0].mxu0
  %v12476 = vadd.f32 0.0, %v12475
  %v12477 = vpop.f32.mrb[0].mxu0
  %v12478 = vpop.f32.mrb[0].mxu0
  %v12479 = vadd.f32 0.0, %v12478
  %v12480 = vpop.f32.mrb[0].mxu0
  %12481 = vmatprep.mubr.bf16.mxu0 %v11754
  %12482 = vmatmul.mubr.bf16.gmra.mrb[0].mxu0 %v11753
  %v12483 = vpop.f32.mrb[0].mxu0
  %v12484 = vadd.f32 0.0, %v12483
  %v12485 = vpop.f32.mrb[0].mxu0
  %v12486 = vpop.f32.mrb[0].mxu0
  %v12487 = vadd.f32 0.0, %v12486
  %v12488 = vpop.f32.mrb[0].mxu0
  %12489 = vdwg.mxu0
  %12490 = vmatprep.subr.bf16.mxu0 0
  %12491 = vmatpush1.bf16.msra.mxu0 %v12415
  %12492 = vmatprep.subr.bf16.mxu0 0
  %12493 = vmatpush1.bf16.msra.mxu0 %v12416
  %12494 = vmatprep.subr.bf16.mxu0 0
  %12495 = vmatpush1.bf16.msra.mxu0 0
  %12496 = vmatprep.subr.bf16.mxu0 0
  %12497 = vmatpush1.bf16.msra.mxu0 0
  %12498 = vmatprep.subr.bf16.mxu0 0
  %12499 = vmatpush1.bf16.msra.mxu0 0
  %12500 = vmatprep.subr.bf16.mxu0 0
  %12501 = vmatpush1.bf16.msra.mxu0 0
  %12502 = vmatprep.subr.bf16.mxu0 0
  %12503 = vmatpush1.bf16.msra.mxu0 0
  %12504 = vmatprep.subr.bf16.mxu0 0
  %12505 = vmatpush1.bf16.msra.mxu0 0
  %12506 = vmatprep.subr.bf16.mxu0 0
  %12507 = vmatpush1.bf16.msra.mxu0 0
  %12508 = vmatprep.subr.bf16.mxu0 0
  %12509 = vmatpush1.bf16.msra.mxu0 0
  %12510 = vmatprep.subr.bf16.mxu0 0
  %12511 = vmatpush1.bf16.msra.mxu0 0
  %12512 = vmatprep.subr.bf16.mxu0 0
  %12513 = vmatpush1.bf16.msra.mxu0 0
  %12514 = vmatprep.subr.bf16.mxu0 0
  %12515 = vmatpush1.bf16.msra.mxu0 0
  %12516 = vmatprep.subr.bf16.mxu0 0
  %12517 = vmatpush1.bf16.msra.mxu0 0
  %12518 = vmatprep.subr.bf16.mxu0 0
  %12519 = vmatpush1.bf16.msra.mxu0 0
  %12520 = vmatprep.subr.bf16.mxu0 0
  %12521 = vmatpush1.bf16.msra.mxu0 0
  %12522 = vmatprep.mubr.bf16.mxu0 0
  %12523 = vmatmul.mubr.bf16.gmra.mrb[0].mxu0 %v12436
  %v12524 = vpop.f32.mrb[0].mxu0
  %v12525 = vadd.f32 %v12476, %v12524
  %v12526 = vpop.f32.mrb[0].mxu0
  %v12527 = vpop.f32.mrb[0].mxu0
  %v12528 = vadd.f32 %v12479, %v12527
  %v12529 = vpop.f32.mrb[0].mxu0
  %12530 = vmatprep.mubr.bf16.mxu0 0
  %12531 = vmatmul.mubr.bf16.gmra.mrb[0].mxu0 %v12439
  %v12532 = vpop.f32.mrb[0].mxu0
  %v12533 = vadd.f32 %v12484, %v12532
  %v12534 = vpop.f32.mrb[0].mxu0
  %v12535 = vpop.f32.mrb[0].mxu0
  %v12536 = vadd.f32 %v12487, %v12535
  %v12537 = vpop.f32.mrb[0].mxu0
  %12538 = vdwg.mxu0
  %v12575 = vunpack.c.l.b16 %v12254
  %v12576 = vunpack.c.l.b16 %v12255
  %v12577 = vunpack.c.l.b16 %v12256
  %v12578 = vunpack.c.l.b16 %v12257
  %v12579 = vunpack.c.l.b16 %v12258
  %v12580 = vunpack.c.l.b16 %v12259
  %v12581 = vunpack.c.l.b16 %v12260
  %v12582 = vunpack.c.l.b16 %v12261
  %v12583 = vunpack.c.l.b16 %v12262
  %v12584 = vunpack.c.l.b16 %v12263
  %v12585 = vunpack.c.l.b16 %v12264
  %v12586 = vunpack.c.l.b16 %v12265
  %v12587 = vunpack.c.l.b16 %v12266
  %v12588 = vunpack.c.l.b16 %v12267
  %v12589 = vunpack.c.l.b16 %v12268
  %v12590 = vunpack.c.l.b16 %v12269
  %v12591 = vunpack.c.l.b16 %v12270
  %v12592 = vunpack.c.l.b16 %v12271
  %v12593 = vunpack.c.l.b16 %v12272
  %v12594 = vunpack.c.l.b16 %v12273
  %v12595 = vunpack.c.l.b16 %v12274
  %v12596 = vunpack.c.l.b16 %v12275
  %v12597 = vunpack.c.l.b16 %v12276
  %v12598 = vunpack.c.l.b16 %v12277
  %v12599 = vunpack.c.l.b16 %v12278
  %v12600 = vunpack.c.l.b16 %v12279
  %v12601 = vunpack.c.l.b16 %v12280
  %v12602 = vunpack.c.l.b16 %v12281
  %v12603 = vunpack.c.l.b16 %v12282
  %v12604 = vunpack.c.l.b16 %v12283
  %v12605 = vunpack.c.l.b16 %v12284
  %v12606 = vunpack.c.l.b16 %v12285
  %v12607 = vunpack.c.l.b16 %v12286
  %v12608 = vunpack.c.l.b16 %v12287
  %v12609 = vunpack.c.l.b16 %v12288
  %v12610 = vunpack.c.l.b16 %v12289
  %v12611 = vpack.c.b16 %v12576, %v12575
  %v12612 = vpack.c.b16 %v12578, %v12577
  %v12613 = vpack.c.b16 %v12580, %v12579
  %v12614 = vpack.c.b16 %v12582, %v12581
  %v12615 = vpack.c.b16 %v12584, %v12583
  %v12616 = vpack.c.b16 %v12586, %v12585
  %v12617 = vpack.c.b16 %v12588, %v12587
  %v12618 = vpack.c.b16 %v12590, %v12589
  %v12619 = vpack.c.b16 %v12592, %v12591
  %v12620 = vpack.c.b16 %v12594, %v12593
  %v12621 = vpack.c.b16 %v12596, %v12595
  %v12622 = vpack.c.b16 %v12598, %v12597
  %v12623 = vpack.c.b16 %v12600, %v12599
  %v12624 = vpack.c.b16 %v12602, %v12601
  %v12625 = vpack.c.b16 %v12604, %v12603
  %v12626 = vpack.c.b16 %v12606, %v12605
  %v12627 = vpack.c.b16 %v12608, %v12607
  %v12628 = vpack.c.b16 %v12610, %v12609
  %12647 = vmatprep.subr.bf16.mxu0 0
  %12648 = vmatpush1.bf16.msra.mxu0 %v12611
  %12649 = vmatprep.subr.bf16.mxu0 0
  %12650 = vmatpush1.bf16.msra.mxu0 %v12612
  %12651 = vmatprep.subr.bf16.mxu0 0
  %12652 = vmatpush1.bf16.msra.mxu0 %v12613
  %12653 = vmatprep.subr.bf16.mxu0 0
  %12654 = vmatpush1.bf16.msra.mxu0 %v12614
  %12655 = vmatprep.subr.bf16.mxu0 0
  %12656 = vmatpush1.bf16.msra.mxu0 %v12615
  %12657 = vmatprep.subr.bf16.mxu0 0
  %12658 = vmatpush1.bf16.msra.mxu0 %v12616
  %12659 = vmatprep.subr.bf16.mxu0 0
  %12660 = vmatpush1.bf16.msra.mxu0 %v12617
  %12661 = vmatprep.subr.bf16.mxu0 0
  %12662 = vmatpush1.bf16.msra.mxu0 %v12618
  %12663 = vmatprep.subr.bf16.mxu0 0
  %12664 = vmatpush1.bf16.msra.mxu0 %v12619
  %12665 = vmatprep.subr.bf16.mxu0 0
  %12666 = vmatpush1.bf16.msra.mxu0 %v12620
  %12667 = vmatprep.subr.bf16.mxu0 0
  %12668 = vmatpush1.bf16.msra.mxu0 %v12621
  %12669 = vmatprep.subr.bf16.mxu0 0
  %12670 = vmatpush1.bf16.msra.mxu0 %v12622
  %12671 = vmatprep.subr.bf16.mxu0 0
  %12672 = vmatpush1.bf16.msra.mxu0 %v12623
  %12673 = vmatprep.subr.bf16.mxu0 0
  %12674 = vmatpush1.bf16.msra.mxu0 %v12624
  %12675 = vmatprep.subr.bf16.mxu0 0
  %12676 = vmatpush1.bf16.msra.mxu0 %v12625
  %12677 = vmatprep.subr.bf16.mxu0 0
  %12678 = vmatpush1.bf16.msra.mxu0 %v12626
  %12679 = vmatprep.mubr.bf16.mxu0 %v11499
  %12680 = vmatmul.mubr.bf16.gmra.mrb[0].mxu0 %v11498
  %v12681 = vpop.f32.mrb[0].mxu0
  %v12682 = vadd.f32 %v12525, %v12681
  %v12683 = vpop.f32.mrb[0].mxu0
  %v12684 = vpop.f32.mrb[0].mxu0
  %v12685 = vadd.f32 %v12528, %v12684
  %v12686 = vpop.f32.mrb[0].mxu0
  %12687 = vmatprep.mubr.bf16.mxu0 %v11502
  %12688 = vmatmul.mubr.bf16.gmra.mrb[0].mxu0 %v11501
  %v12689 = vpop.f32.mrb[0].mxu0
  %v12690 = vadd.f32 %v12533, %v12689
  %v12691 = vpop.f32.mrb[0].mxu0
  %v12692 = vpop.f32.mrb[0].mxu0
  %v12693 = vadd.f32 %v12536, %v12692
  %v12694 = vpop.f32.mrb[0].mxu0
  %12695 = vdwg.mxu0
  %12696 = vmatprep.subr.bf16.mxu0 0
  %12697 = vmatpush1.bf16.msra.mxu0 %v12627
  %12698 = vmatprep.subr.bf16.mxu0 0
  %12699 = vmatpush1.bf16.msra.mxu0 %v12628
  %12700 = vmatprep.subr.bf16.mxu0 0
  %12701 = vmatpush1.bf16.msra.mxu0 0
  %12702 = vmatprep.subr.bf16.mxu0 0
  %12703 = vmatpush1.bf16.msra.mxu0 0
  %12704 = vmatprep.subr.bf16.mxu0 0
  %12705 = vmatpush1.bf16.msra.mxu0 0
  %12706 = vmatprep.subr.bf16.mxu0 0
  %12707 = vmatpush1.bf16.msra.mxu0 0
  %12708 = vmatprep.subr.bf16.mxu0 0
  %12709 = vmatpush1.bf16.msra.mxu0 0
  %12710 = vmatprep.subr.bf16.mxu0 0
  %12711 = vmatpush1.bf16.msra.mxu0 0
  %12712 = vmatprep.subr.bf16.mxu0 0
  %12713 = vmatpush1.bf16.msra.mxu0 0
  %12714 = vmatprep.subr.bf16.mxu0 0
  %12715 = vmatpush1.bf16.msra.mxu0 0
  %12716 = vmatprep.subr.bf16.mxu0 0
  %12717 = vmatpush1.bf16.msra.mxu0 0
  %12718 = vmatprep.subr.bf16.mxu0 0
  %12719 = vmatpush1.bf16.msra.mxu0 0
  %12720 = vmatprep.subr.bf16.mxu0 0
  %12721 = vmatpush1.bf16.msra.mxu0 0
  %12722 = vmatprep.subr.bf16.mxu0 0
  %12723 = vmatpush1.bf16.msra.mxu0 0
  %12724 = vmatprep.subr.bf16.mxu0 0
  %12725 = vmatpush1.bf16.msra.mxu0 0
  %12726 = vmatprep.subr.bf16.mxu0 0
  %12727 = vmatpush1.bf16.msra.mxu0 0
  %12728 = vmatprep.mubr.bf16.mxu0 0
  %12729 = vmatmul.mubr.bf16.gmra.mrb[0].mxu0 %v12150
  %v12730 = vpop.f32.mrb[0].mxu0
  %v12731 = vadd.f32 %v12682, %v12730
  %v12732 = vpop.f32.mrb[0].mxu0
  %v12733 = vpop.f32.mrb[0].mxu0
  %v12734 = vadd.f32 %v12685, %v12733
  %v12735 = vpop.f32.mrb[0].mxu0
  %12736 = vmatprep.mubr.bf16.mxu0 0
  %12737 = vmatmul.mubr.bf16.gmra.mrb[0].mxu0 %v12153
  %v12738 = vpop.f32.mrb[0].mxu0
  %v12739 = vadd.f32 %v12690, %v12738
  %v12740 = vpop.f32.mrb[0].mxu0
  %v12741 = vpop.f32.mrb[0].mxu0
  %v12742 = vadd.f32 %v12693, %v12741
  %v12743 = vpop.f32.mrb[0].mxu0
  %12744 = vdwg.mxu0
  %v12745 = vld [vmem:[%s22] sm:$0xff]
  %v12746 = vld [vmem:[%s22 + $0x8] sm:$0xff]
  %v12747 = vld [vmem:[%s22 + $0x10] sm:$0xff]
  %v12748 = vld [vmem:[%s22 + $0x18] sm:$0xff]
  %v12749 = vld [vmem:[%s22 + $0x20] sm:$0xff]
  %v12750 = vld [vmem:[%s22 + $0x28] sm:$0xff]
  %v12751 = vld [vmem:[%s22 + $0x30] sm:$0xff]
  %v12752 = vld [vmem:[%s22 + $0x38] sm:$0xff]
  %s12753 = scalar_lea.vmem %s22, 64
  %v12754 = vld [vmem:[%s12753] sm:$0xff]
  %v12755 = vld [vmem:[%s12753 + $0x8] sm:$0xff]
  %v12756 = vld [vmem:[%s12753 + $0x10] sm:$0xff]
  %v12757 = vld [vmem:[%s12753 + $0x18] sm:$0xff]
  %v12758 = vld [vmem:[%s12753 + $0x20] sm:$0xff]
  %v12759 = vld [vmem:[%s12753 + $0x28] sm:$0xff]
  %v12760 = vld [vmem:[%s12753 + $0x30] sm:$0xff]
  %v12761 = vld [vmem:[%s12753 + $0x38] sm:$0xff]
  %v12763 = vsel %vm6938, %v12754, 0
  %v12766 = vsel %vm6938, %v12755, 0
  %v12769 = vsel %vm6938, %v12756, 0
  %v12772 = vsel %vm6938, %v12757, 0
  %v12775 = vsel %vm6938, %v12758, 0
  %v12778 = vsel %vm6938, %v12759, 0
  %v12781 = vsel %vm6938, %v12760, 0
  %v12784 = vsel %vm6938, %v12761, 0
  %12786 = vmatprep.subr.mxu0 0.0
  %12787 = vmatpush1.msra.mxu0 %v12731
  %12788 = vmatprep.subr.mxu0 0.0
  %12789 = vmatpush1.msra.mxu0 %v12734
  %12790 = vmatprep.subr.mxu0 0.0
  %12791 = vmatpush1.msra.mxu0 %v12739
  %12792 = vmatprep.subr.mxu0 0.0
  %12793 = vmatpush1.msra.mxu0 %v12742
  %12794 = vmatprep.subr.mxu0 0.0
  %12795 = vmatpush1.msra.mxu0 0.0
  %12796 = vmatprep.subr.mxu0 0.0
  %12797 = vmatpush1.msra.mxu0 0.0
  %12798 = vmatprep.subr.mxu0 0.0
  %12799 = vmatpush1.msra.mxu0 0.0
  %12800 = vmatprep.subr.mxu0 0.0
  %12801 = vmatpush1.msra.mxu0 0.0
  %12802 = vmatprep.subr.mxu0 0.0
  %12803 = vmatpush1.msra.mxu0 0.0
  %12804 = vmatprep.subr.mxu0 0.0
  %12805 = vmatpush1.msra.mxu0 0.0
  %12806 = vmatprep.subr.mxu0 0.0
  %12807 = vmatpush1.msra.mxu0 0.0
  %12808 = vmatprep.subr.mxu0 0.0
  %12809 = vmatpush1.msra.mxu0 0.0
  %12810 = vmatprep.subr.mxu0 0.0
  %12811 = vmatpush1.msra.mxu0 0.0
  %12812 = vmatprep.subr.mxu0 0.0
  %12813 = vmatpush1.msra.mxu0 0.0
  %12814 = vmatprep.subr.mxu0 0.0
  %12815 = vmatpush1.msra.mxu0 0.0
  %12816 = vmatprep.subr.mxu0 0.0
  %12817 = vmatpush1.msra.mxu0 0.0
  %12818 = vmatprep.subr.mxu0 0.0
  %12819 = vmatpush1.msra.mxu0 0.0
  %12820 = vmatprep.subr.mxu0 0.0
  %12821 = vmatpush1.msra.mxu0 0.0
  %12822 = vmatprep.subr.mxu0 0.0
  %12823 = vmatpush1.msra.mxu0 0.0
  %12824 = vmatprep.subr.mxu0 0.0
  %12825 = vmatpush1.msra.mxu0 0.0
  %12826 = vmatprep.subr.mxu0 0.0
  %12827 = vmatpush1.msra.mxu0 0.0
  %12828 = vmatprep.subr.mxu0 0.0
  %12829 = vmatpush1.msra.mxu0 0.0
  %12830 = vmatprep.subr.mxu0 0.0
  %12831 = vmatpush1.msra.mxu0 0.0
  %12832 = vmatprep.subr.mxu0 0.0
  %12833 = vmatpush1.msra.mxu0 0.0
  %12834 = vmatprep.subr.mxu0 0.0
  %12835 = vmatpush1.msra.mxu0 0.0
  %12836 = vmatprep.subr.mxu0 0.0
  %12837 = vmatpush1.msra.mxu0 0.0
  %12838 = vmatprep.subr.mxu0 0.0
  %12839 = vmatpush1.msra.mxu0 0.0
  %12840 = vmatprep.subr.mxu0 0.0
  %12841 = vmatpush1.msra.mxu0 0.0
  %12842 = vmatprep.subr.mxu0 0.0
  %12843 = vmatpush1.msra.mxu0 0.0
  %12844 = vmatprep.subr.mxu0 0.0
  %12845 = vmatpush1.msra.mxu0 0.0
  %12846 = vmatprep.subr.mxu0 0.0
  %12847 = vmatpush1.msra.mxu0 0.0
  %12848 = vmatprep.subr.mxu0 0.0
  %12849 = vmatpush1.msra.mxu0 0.0
  %12850 = vmatprep.mubr.f32.mxu0 0.0
  %12851 = vmatmul.mubr.f32.gmra.mrb[0].mxu0 %v12763
  %v12852 = vpop.f32.mrb[0].mxu0
  %v12853 = vadd.f32 0.0, %v12852
  %v12854 = vpop.f32.mrb[0].mxu0
  %12855 = vmatprep.mubr.f32.mxu0 0.0
  %12856 = vmatmul.mubr.f32.gmra.mrb[0].mxu0 %v12766
  %v12857 = vpop.f32.mrb[0].mxu0
  %v12858 = vadd.f32 0.0, %v12857
  %v12859 = vpop.f32.mrb[0].mxu0
  %12860 = vmatprep.mubr.f32.mxu0 0.0
  %12861 = vmatmul.mubr.f32.gmra.mrb[0].mxu0 %v12769
  %v12862 = vpop.f32.mrb[0].mxu0
  %v12863 = vadd.f32 0.0, %v12862
  %v12864 = vpop.f32.mrb[0].mxu0
  %12865 = vmatprep.mubr.f32.mxu0 0.0
  %12866 = vmatmul.mubr.f32.gmra.mrb[0].mxu0 %v12772
  %v12867 = vpop.f32.mrb[0].mxu0
  %v12868 = vadd.f32 0.0, %v12867
  %v12869 = vpop.f32.mrb[0].mxu0
  %12870 = vmatprep.mubr.f32.mxu0 0.0
  %12871 = vmatmul.mubr.f32.gmra.mrb[0].mxu0 %v12775
  %v12872 = vpop.f32.mrb[0].mxu0
  %v12873 = vadd.f32 0.0, %v12872
  %v12874 = vpop.f32.mrb[0].mxu0
  %12875 = vmatprep.mubr.f32.mxu0 0.0
  %12876 = vmatmul.mubr.f32.gmra.mrb[0].mxu0 %v12778
  %v12877 = vpop.f32.mrb[0].mxu0
  %v12878 = vadd.f32 0.0, %v12877
  %v12879 = vpop.f32.mrb[0].mxu0
  %12880 = vmatprep.mubr.f32.mxu0 0.0
  %12881 = vmatmul.mubr.f32.gmra.mrb[0].mxu0 %v12781
  %v12882 = vpop.f32.mrb[0].mxu0
  %v12883 = vadd.f32 0.0, %v12882
  %v12884 = vpop.f32.mrb[0].mxu0
  %12885 = vmatprep.mubr.f32.mxu0 0.0
  %12886 = vmatmul.mubr.f32.gmra.mrb[0].mxu0 %v12784
  %v12887 = vpop.f32.mrb[0].mxu0
  %v12888 = vadd.f32 0.0, %v12887
  %v12889 = vpop.f32.mrb[0].mxu0
  %12890 = vdwg.mxu0
  %v12892 = vsel %vm6938, %v12745, 0
  %v12895 = vsel %vm6938, %v12746, 0
  %v12898 = vsel %vm6938, %v12747, 0
  %v12901 = vsel %vm6938, %v12748, 0
  %v12904 = vsel %vm6938, %v12749, 0
  %v12907 = vsel %vm6938, %v12750, 0
  %v12910 = vsel %vm6938, %v12751, 0
  %v12913 = vsel %vm6938, %v12752, 0
  %12915 = vmatprep.subr.mxu0 0.0
  %12916 = vmatpush1.msra.mxu0 %v12239
  %12917 = vmatprep.subr.mxu0 0.0
  %12918 = vmatpush1.msra.mxu0 %v12242
  %12919 = vmatprep.subr.mxu0 0.0
  %12920 = vmatpush1.msra.mxu0 %v12247
  %12921 = vmatprep.subr.mxu0 0.0
  %12922 = vmatpush1.msra.mxu0 %v12250
  %12923 = vmatprep.subr.mxu0 0.0
  %12924 = vmatpush1.msra.mxu0 0.0
  %12925 = vmatprep.subr.mxu0 0.0
  %12926 = vmatpush1.msra.mxu0 0.0
  %12927 = vmatprep.subr.mxu0 0.0
  %12928 = vmatpush1.msra.mxu0 0.0
  %12929 = vmatprep.subr.mxu0 0.0
  %12930 = vmatpush1.msra.mxu0 0.0
  %12931 = vmatprep.subr.mxu0 0.0
  %12932 = vmatpush1.msra.mxu0 0.0
  %12933 = vmatprep.subr.mxu0 0.0
  %12934 = vmatpush1.msra.mxu0 0.0
  %12935 = vmatprep.subr.mxu0 0.0
  %12936 = vmatpush1.msra.mxu0 0.0
  %12937 = vmatprep.subr.mxu0 0.0
  %12938 = vmatpush1.msra.mxu0 0.0
  %12939 = vmatprep.subr.mxu0 0.0
  %12940 = vmatpush1.msra.mxu0 0.0
  %12941 = vmatprep.subr.mxu0 0.0
  %12942 = vmatpush1.msra.mxu0 0.0
  %12943 = vmatprep.subr.mxu0 0.0
  %12944 = vmatpush1.msra.mxu0 0.0
  %12945 = vmatprep.subr.mxu0 0.0
  %12946 = vmatpush1.msra.mxu0 0.0
  %12947 = vmatprep.subr.mxu0 0.0
  %12948 = vmatpush1.msra.mxu0 0.0
  %12949 = vmatprep.subr.mxu0 0.0
  %12950 = vmatpush1.msra.mxu0 0.0
  %12951 = vmatprep.subr.mxu0 0.0
  %12952 = vmatpush1.msra.mxu0 0.0
  %12953 = vmatprep.subr.mxu0 0.0
  %12954 = vmatpush1.msra.mxu0 0.0
  %12955 = vmatprep.subr.mxu0 0.0
  %12956 = vmatpush1.msra.mxu0 0.0
  %12957 = vmatprep.subr.mxu0 0.0
  %12958 = vmatpush1.msra.mxu0 0.0
  %12959 = vmatprep.subr.mxu0 0.0
  %12960 = vmatpush1.msra.mxu0 0.0
  %12961 = vmatprep.subr.mxu0 0.0
  %12962 = vmatpush1.msra.mxu0 0.0
  %12963 = vmatprep.subr.mxu0 0.0
  %12964 = vmatpush1.msra.mxu0 0.0
  %12965 = vmatprep.subr.mxu0 0.0
  %12966 = vmatpush1.msra.mxu0 0.0
  %12967 = vmatprep.subr.mxu0 0.0
  %12968 = vmatpush1.msra.mxu0 0.0
  %12969 = vmatprep.subr.mxu0 0.0
  %12970 = vmatpush1.msra.mxu0 0.0
  %12971 = vmatprep.subr.mxu0 0.0
  %12972 = vmatpush1.msra.mxu0 0.0
  %12973 = vmatprep.subr.mxu0 0.0
  %12974 = vmatpush1.msra.mxu0 0.0
  %12975 = vmatprep.subr.mxu0 0.0
  %12976 = vmatpush1.msra.mxu0 0.0
  %12977 = vmatprep.subr.mxu0 0.0
  %12978 = vmatpush1.msra.mxu0 0.0
  %12979 = vmatprep.mubr.f32.mxu0 0.0
  %12980 = vmatmul.mubr.f32.gmra.mrb[0].mxu0 %v12892
  %v12981 = vpop.f32.mrb[0].mxu0
  %v12982 = vadd.f32 %v12853, %v12981
  %v12983 = vpop.f32.mrb[0].mxu0
  %12984 = vmatprep.mubr.f32.mxu0 0.0
  %12985 = vmatmul.mubr.f32.gmra.mrb[0].mxu0 %v12895
  %v12986 = vpop.f32.mrb[0].mxu0
  %v12987 = vadd.f32 %v12858, %v12986
  %v12988 = vpop.f32.mrb[0].mxu0
  %12989 = vmatprep.mubr.f32.mxu0 0.0
  %12990 = vmatmul.mubr.f32.gmra.mrb[0].mxu0 %v12898
  %v12991 = vpop.f32.mrb[0].mxu0
  %v12992 = vadd.f32 %v12863, %v12991
  %v12993 = vpop.f32.mrb[0].mxu0
  %12994 = vmatprep.mubr.f32.mxu0 0.0
  %12995 = vmatmul.mubr.f32.gmra.mrb[0].mxu0 %v12901
  %v12996 = vpop.f32.mrb[0].mxu0
  %v12997 = vadd.f32 %v12868, %v12996
  %v12998 = vpop.f32.mrb[0].mxu0
  %12999 = vmatprep.mubr.f32.mxu0 0.0
  %13000 = vmatmul.mubr.f32.gmra.mrb[0].mxu0 %v12904
  %v13001 = vpop.f32.mrb[0].mxu0
  %v13002 = vadd.f32 %v12873, %v13001
  %v13003 = vpop.f32.mrb[0].mxu0
  %13004 = vmatprep.mubr.f32.mxu0 0.0
  %13005 = vmatmul.mubr.f32.gmra.mrb[0].mxu0 %v12907
  %v13006 = vpop.f32.mrb[0].mxu0
  %v13007 = vadd.f32 %v12878, %v13006
  %v13008 = vpop.f32.mrb[0].mxu0
  %13009 = vmatprep.mubr.f32.mxu0 0.0
  %13010 = vmatmul.mubr.f32.gmra.mrb[0].mxu0 %v12910
  %v13011 = vpop.f32.mrb[0].mxu0
  %v13012 = vadd.f32 %v12883, %v13011
  %v13013 = vpop.f32.mrb[0].mxu0
  %13014 = vmatprep.mubr.f32.mxu0 0.0
  %13015 = vmatmul.mubr.f32.gmra.mrb[0].mxu0 %v12913
  %v13016 = vpop.f32.mrb[0].mxu0
  %v13017 = vadd.f32 %v12888, %v13016
  %v13018 = vpop.f32.mrb[0].mxu0
  %13019 = vdwg.mxu0
  %v13020 = vtanh.pop %v12982
  %v13021 = vtanh.pop %v12987
  %v13022 = vtanh.pop %v12992
  %v13023 = vtanh.pop %v12997
  %v13024 = vtanh.pop %v13002
  %v13025 = vtanh.pop %v13007
  %v13026 = vtanh.pop %v13012
  %v13027 = vtanh.pop %v13017
  %vm13028 = vcmask 785408
  %13029 = vst.msk [vmem:[%s23] sm:$0xff] %vm13028, %v13020
  %13030 = vst.msk [vmem:[%s23 + $0x8] sm:$0xff] %vm13028, %v13021
  %13031 = vst.msk [vmem:[%s23 + $0x10] sm:$0xff] %vm13028, %v13022
  %13032 = vst.msk [vmem:[%s23 + $0x18] sm:$0xff] %vm13028, %v13023
  %13033 = vst.msk [vmem:[%s23 + $0x20] sm:$0xff] %vm13028, %v13024
  %13034 = vst.msk [vmem:[%s23 + $0x28] sm:$0xff] %vm13028, %v13025
  %13035 = vst.msk [vmem:[%s23 + $0x30] sm:$0xff] %vm13028, %v13026
  %13036 = vst.msk [vmem:[%s23 + $0x38] sm:$0xff] %vm13028, %v13027
  // Predicated region
  $region94: #{generator_forward.1} parent=0 // pred_check
    _
  $region95: #{generator_forward.1} parent=0 // pred_check_branch
    %13038 = sbr.rel (0) target = $region97
  $region96: #{generator_forward.1} parent=0 // pred_region
    _
  $region97: #{generator_forward.1} parent=0 // pred_fallthru
    _
  // Predicated region
  $region98: #{generator_forward.1} parent=0 // pred_check
    _
  $region99: #{generator_forward.1} parent=0 // pred_check_branch
    %13040 = sbr.rel (0) target = $region101
  $region100: #{generator_forward.1} parent=0 // pred_region
    _
  $region101: #{generator_forward.1} parent=0 // pred_fallthru
    _

</llo_original>
